<compile_context>
chip_gen: v7x
topology: tpu7x:2x2x1
jax: 0.10.0
libtpu: 0.0.40
codegen_flags: <defaults>
</compile_context>

<pallas_src>
import functools

import jax
import jax.numpy as jnp
from jax.experimental import pallas as pl
from jax.experimental.pallas import tpu as pltpu


def _cdiv(a, b):
    return (a + b - 1) // b


def _round_up(a, m):
    return _cdiv(a, m) * m


# ----------------------------------------------------------------------------
# Pallas kernels
# ----------------------------------------------------------------------------

def _linear_kernel(x_ref, w_ref, b_ref, o_ref, *, relu):
    acc = jnp.dot(x_ref[...], w_ref[...], preferred_element_type=jnp.float32)
    acc = acc + b_ref[...]
    if relu:
        acc = jnp.maximum(acc, 0.0)
    o_ref[...] = acc.astype(o_ref.dtype)


def pallas_linear(x, w, b, *, relu=False):
    """y = x @ w + b (optional fused ReLU), tiled over M with a 'parallel' grid.

    Matmul operands are cast to bf16 (MXU peak rate), accumulation/bias/output
    stay f32.  x: (M, K), w: (K, N), b: (N,).
    """
    M, K = x.shape
    K2, N = w.shape
    assert K == K2
    # M tiling: target <= 256 rows per tile, sublane-aligned (multiple of 8).
    gm = max(1, _cdiv(M, 256))
    tm = _round_up(_cdiv(M, gm), 8)
    Mp = tm * gm
    x = x.astype(jnp.bfloat16)
    if Mp != M:
        x = jnp.pad(x, ((0, Mp - M), (0, 0)))
    out = pl.pallas_call(
        functools.partial(_linear_kernel, relu=relu),
        out_shape=jax.ShapeDtypeStruct((Mp, N), jnp.float32),
        grid=(gm,),
        in_specs=[
            pl.BlockSpec((tm, K), lambda i: (i, 0)),
            pl.BlockSpec((K, N), lambda i: (0, 0)),
            pl.BlockSpec((1, N), lambda i: (0, 0)),
        ],
        out_specs=pl.BlockSpec((tm, N), lambda i: (i, 0)),
        compiler_params=pltpu.CompilerParams(
            dimension_semantics=("parallel",),
        ),
    )(x, w.astype(jnp.bfloat16), b.reshape(1, N).astype(jnp.float32))
    return out[:M] if Mp != M else out


def _gru2_kernel(gi0_ref, whh0_ref, bhh0_ref, wih1_ref, bih1_ref,
                 whh1_ref, bhh1_ref, o_ref):
    # gi0_ref: (seq, bs_pad, 3H) precomputed layer-0 input gates (x@W_ih+b_ih).
    # Both GRU layers fused; only the recurrent matmuls stay inside the loop.
    seq, bsp, G = gi0_ref.shape
    H = G // 3

    w_hh0 = whh0_ref[...]
    w_ih1 = wih1_ref[...]
    w_hh1 = whh1_ref[...]
    b_hh0 = bhh0_ref[...]
    b_ih1 = bih1_ref[...]
    b_hh1 = bhh1_ref[...]

    def cell(gi, gh, h_prev):
        # PyTorch gate order: [r, z, n]; elementwise math kept in f32.
        r = jax.nn.sigmoid(gi[:, 0 * H:1 * H] + gh[:, 0 * H:1 * H])
        z = jax.nn.sigmoid(gi[:, 1 * H:2 * H] + gh[:, 1 * H:2 * H])
        n = jnp.tanh(gi[:, 2 * H:3 * H] + r * gh[:, 2 * H:3 * H])
        return (1.0 - z) * n + z * h_prev

    h1 = jnp.zeros((bsp, H), jnp.float32)
    h2 = jnp.zeros((bsp, H), jnp.float32)

    # Fully-unrolled time loop (seq is static and small) -- equivalent to
    # lax.fori_loop(..., unroll=True) and gives the scheduler full visibility.
    for t in range(seq):
        gh0 = jnp.dot(h1.astype(jnp.bfloat16), w_hh0,
                      preferred_element_type=jnp.float32) + b_hh0
        h1 = cell(gi0_ref[t], gh0, h1)
        gi1 = jnp.dot(h1.astype(jnp.bfloat16), w_ih1,
                      preferred_element_type=jnp.float32) + b_ih1
        gh1 = jnp.dot(h2.astype(jnp.bfloat16), w_hh1,
                      preferred_element_type=jnp.float32) + b_hh1
        h2 = cell(gi1, gh1, h2)
        o_ref[t] = h2


def pallas_gru2(gi0_tm, w_hh0, b_hh0, w_ih1, b_ih1, w_hh1, b_hh1):
    """Fused 2-layer GRU recurrence, zero initial hidden state.

    gi0_tm: (seq, bs_pad, 3H) time-major precomputed layer-0 input gates.
    Returns layer-1 hidden states, (seq, bs_pad, H) f32.
    """
    seq, bsp, G = gi0_tm.shape
    H = G // 3
    bf, f32 = jnp.bfloat16, jnp.float32
    return pl.pallas_call(
        _gru2_kernel,
        out_shape=jax.ShapeDtypeStruct((seq, bsp, H), jnp.float32),
        grid=(1,),
        in_specs=[
            pl.BlockSpec((seq, bsp, G), lambda i: (0, 0, 0)),
            pl.BlockSpec((H, G), lambda i: (0, 0)),
            pl.BlockSpec((1, G), lambda i: (0, 0)),
            pl.BlockSpec((H, G), lambda i: (0, 0)),
            pl.BlockSpec((1, G), lambda i: (0, 0)),
            pl.BlockSpec((H, G), lambda i: (0, 0)),
            pl.BlockSpec((1, G), lambda i: (0, 0)),
        ],
        out_specs=pl.BlockSpec((seq, bsp, H), lambda i: (0, 0, 0)),
        compiler_params=pltpu.CompilerParams(
            dimension_semantics=("arbitrary",),
        ),
    )(gi0_tm.astype(f32),
      w_hh0.astype(bf), b_hh0.reshape(1, G).astype(f32),
      w_ih1.astype(bf), b_ih1.reshape(1, G).astype(f32),
      w_hh1.astype(bf), b_hh1.reshape(1, G).astype(f32))


def _joiner_output_kernel(x_ref, w1_ref, b1_ref, w2_ref, b2_ref, o_ref):
    h = jnp.dot(x_ref[...], w1_ref[...], preferred_element_type=jnp.float32)
    h = jnp.maximum(h + b1_ref[...], 0.0)
    out = jnp.dot(h.astype(jnp.bfloat16), w2_ref[...],
                  preferred_element_type=jnp.float32) + b2_ref[...]
    o_ref[...] = out


def pallas_joiner_output(x, w1, b1, w2p, b2p):
    """Fused relu(x @ w1 + b1) @ w2p + b2p; w2p/b2p are lane-padded to 128."""
    M, K = x.shape
    N1 = w1.shape[1]
    Np = w2p.shape[1]
    Mp = _round_up(M, 8)
    x = x.astype(jnp.bfloat16)
    if Mp != M:
        x = jnp.pad(x, ((0, Mp - M), (0, 0)))
    out = pl.pallas_call(
        _joiner_output_kernel,
        out_shape=jax.ShapeDtypeStruct((Mp, Np), jnp.float32),
        grid=(1,),
        in_specs=[
            pl.BlockSpec((Mp, K), lambda i: (0, 0)),
            pl.BlockSpec((K, N1), lambda i: (0, 0)),
            pl.BlockSpec((1, N1), lambda i: (0, 0)),
            pl.BlockSpec((N1, Np), lambda i: (0, 0)),
            pl.BlockSpec((1, Np), lambda i: (0, 0)),
        ],
        out_specs=pl.BlockSpec((Mp, Np), lambda i: (0, 0)),
        compiler_params=pltpu.CompilerParams(
            dimension_semantics=("arbitrary",),
        ),
    )(x, w1.astype(jnp.bfloat16), b1.reshape(1, N1).astype(jnp.float32),
      w2p.astype(jnp.bfloat16), b2p.reshape(1, Np).astype(jnp.float32))
    return out[:M]


# ----------------------------------------------------------------------------
# JAX glue: NHWC im2col conv, parameter prep, full forward
# ----------------------------------------------------------------------------

def _im2col_nhwc(x, k, stride):
    B, H, W, C = x.shape
    oh = (H - k) // stride + 1
    ow = (W - k) // stride + 1
    patches = []
    for i in range(k):
        for j in range(k):
            patches.append(x[:, i:i + stride * oh:stride,
                             j:j + stride * ow:stride, :])
    cols = jnp.concatenate(patches, axis=-1)          # (B, oh, ow, k*k*C), (i,j,c) order
    return cols.reshape(B * oh * ow, k * k * C), oh, ow


def conv2d_nhwc(x, w_flat, b, *, k, stride, relu):
    """Conv2d (valid padding) on NHWC input via im2col + fused Pallas matmul.
    w_flat: (k*k*C, O) in (kh, kw, C) row order (pre-converted from torch OCkk)."""
    B = x.shape[0]
    O = w_flat.shape[1]
    cols, oh, ow = _im2col_nhwc(x, k, stride)
    y = pallas_linear(cols, w_flat, b, relu=relu)
    return y.reshape(B, oh, ow, O)                    # stays NHWC, no transpose back


def init_params(key, output_dim):
    """Torch-equivalent random parameters (linear weights stored as (in, out))."""
    ks = jax.random.split(key, 18)
    H = 128

    def u(k, shape, scale):
        return jax.random.uniform(k, shape, jnp.float32, -scale, scale)

    p = {}
    # MapEncoder
    p["conv1_w"] = u(ks[0], (64, 10, 8, 8), 0.05)
    p["conv1_b"] = u(ks[1], (64,), 0.05)
    p["conv2_w"] = u(ks[2], (128, 64, 4, 4), 0.05)
    p["conv2_b"] = u(ks[3], (128,), 0.05)
    p["ffn_map_w"] = u(ks[4], (3200, 512), 0.02)      # rows in torch NCHW-flatten order
    p["ffn_map_b"] = u(ks[5], (512,), 0.02)
    # GRU(9, 128, num_layers=2, batch_first=True); weights stored as (in, 3H)
    p["gru_w_ih_l0"] = u(ks[6], (9, 3 * H), 0.1)
    p["gru_w_hh_l0"] = u(ks[7], (H, 3 * H), 0.1)
    p["gru_b_ih_l0"] = u(ks[8], (3 * H,), 0.1)
    p["gru_b_hh_l0"] = u(ks[9], (3 * H,), 0.1)
    p["gru_w_ih_l1"] = u(ks[10], (H, 3 * H), 0.1)
    p["gru_w_hh_l1"] = u(ks[11], (H, 3 * H), 0.1)
    p["gru_b_ih_l1"] = u(ks[12], (3 * H,), 0.1)
    p["gru_b_hh_l1"] = u(ks[13], (3 * H,), 0.1)
    # joiner(640 -> 512), output(512 -> output_dim)
    p["joiner_w"] = u(ks[14], (640, 512), 0.05)
    p["joiner_b"] = u(ks[15], (512,), 0.05)
    p["output_w"] = u(ks[16], (512, output_dim), 0.05)
    p["output_b"] = u(ks[17], (output_dim,), 0.05)
    return p


def prepare_params(p):
    """One-time conversion of torch-layout params into compute layouts:
    (k*k*C, O) bf16 conv weights matching the NHWC im2col order, NHWC-permuted
    ffn_map rows (so NHWC flatten == torch's NCHW .view(-1, 3200)), bf16 matmul
    weights, and a 128-lane zero-padded output head."""
    f32, bf = jnp.float32, jnp.bfloat16
    cp = {}
    for name in ("conv1", "conv2"):
        w = p[name + "_w"]                            # (O, C, k, k)
        cp[name + "_w"] = jnp.transpose(w, (2, 3, 1, 0)).reshape(-1, w.shape[0]).astype(bf)
        cp[name + "_b"] = p[name + "_b"].astype(f32)
    # ffn_map row permutation: nhwc flat pos (h,w,c) -> nchw flat index c*25+h*5+w
    idx_nchw = jnp.arange(3200).reshape(128, 5, 5)
    perm = jnp.transpose(idx_nchw, (1, 2, 0)).reshape(-1)
    cp["ffn_map_w"] = p["ffn_map_w"][perm].astype(bf)
    cp["ffn_map_b"] = p["ffn_map_b"].astype(f32)
    for key in ("gru_w_ih_l0", "gru_w_hh_l0", "gru_w_ih_l1", "gru_w_hh_l1",
                "joiner_w"):
        cp[key] = p[key].astype(bf)
    for key in ("gru_b_ih_l0", "gru_b_hh_l0", "gru_b_ih_l1", "gru_b_hh_l1",
                "joiner_b"):
        cp[key] = p[key].astype(f32)
    out_dim = p["output_w"].shape[1]
    Np = _round_up(out_dim, 128)
    cp["output_w"] = jnp.pad(p["output_w"], ((0, 0), (0, Np - out_dim))).astype(bf)
    cp["output_b"] = jnp.pad(p["output_b"], ((0, Np - out_dim),)).astype(f32)
    cp["output_dim"] = out_dim                        # python int, stripped before jit
    return cp


@functools.partial(jax.jit, static_argnames=("output_dim",))
def _forward_dense(cp, global_features, units_features, *, output_dim):
    bs = global_features.shape[0]
    seq = units_features.shape[1]
    H = 128

    # ---- MapEncoder: conv1 -> relu -> conv2 -> relu -> flatten -> ffn_map ----
    x = jnp.transpose(global_features, (0, 2, 3, 1))              # NCHW -> NHWC once
    y = conv2d_nhwc(x, cp["conv1_w"], cp["conv1_b"], k=8, stride=2, relu=True)   # (bs,12,12,64)
    y = conv2d_nhwc(y, cp["conv2_w"], cp["conv2_b"], k=4, stride=2, relu=True)   # (bs,5,5,128)
    flat = y.reshape(bs, 3200)                        # NHWC flatten; ffn rows pre-permuted
    glob = pallas_linear(flat, cp["ffn_map_w"], cp["ffn_map_b"])  # (bs, 512)

    # ---- 2-layer GRU, h0 = zeros; layer-0 input projection hoisted ----
    gi0 = pallas_linear(units_features.reshape(bs * seq, 9),
                        cp["gru_w_ih_l0"], cp["gru_b_ih_l0"])     # (bs*seq, 384)
    gi0 = gi0.reshape(bs, seq, 3 * H).transpose(1, 0, 2)          # (seq, bs, 384)
    bsp = _round_up(bs, 8)                                        # pad batch to sublane width
    if bsp != bs:
        gi0 = jnp.pad(gi0, ((0, 0), (0, bsp - bs), (0, 0)))
    h2 = pallas_gru2(gi0, cp["gru_w_hh_l0"], cp["gru_b_hh_l0"],
                     cp["gru_w_ih_l1"], cp["gru_b_ih_l1"],
                     cp["gru_w_hh_l1"], cp["gru_b_hh_l1"])        # (seq, bsp, 128)
    preds = jnp.transpose(h2, (1, 0, 2))[:bs]                     # (bs, seq, 128)

    # ---- fused joiner -> relu -> output (lane-padded head) ----
    glob_rep = jnp.broadcast_to(glob[:, None, :], (bs, seq, glob.shape[-1]))
    cat = jnp.concatenate([glob_rep, preds], axis=2).reshape(bs * seq, 640)
    out_p = pallas_joiner_output(cat, cp["joiner_w"], cp["joiner_b"],
                                 cp["output_w"], cp["output_b"])  # (bs*seq, 128)
    return out_p[:, :output_dim].reshape(bs, seq, output_dim)


def luxr_net_forward(prepared_params, global_features, units_features, packed=False):
    if packed:
        # TODO(synk): packed-sequence path (pack_padded_sequence/pad_packed_sequence)
        # has no clean Pallas equivalent; only the dense (packed=False) path exists.
        raise NotImplementedError("packed=True path is not implemented")
    cp = {k: v for k, v in prepared_params.items() if k != "output_dim"}
    out = _forward_dense(cp, global_features, units_features,
                         output_dim=prepared_params["output_dim"])
    seq_len = out.shape[1]
    # Split into the per-timestep list outside jit, matching the torch module.
    return [out[:, k, :] for k in range(seq_len)]


if __name__ == "__main__":
    key = jax.random.PRNGKey(0)
    k_glob, k_units, k_params = jax.random.split(key, 3)

    bs, seq, output_dim = 2, 8, 16
    # Conv stack forces 30x30 spatial so the flatten yields 3200 (= 128*5*5).
    global_features = jax.random.normal(k_glob, (bs, 10, 30, 30), jnp.float32)
    units_features = jax.random.normal(k_units, (bs, seq, 9), jnp.float32)

    params = init_params(k_params, output_dim)
    prepared = prepare_params(params)

    outs = luxr_net_forward(prepared, global_features, units_features, packed=False)
    outs = jax.block_until_ready(outs)

    assert len(outs) == seq
    assert all(o.shape == (bs, output_dim) for o in outs)
    assert all(bool(jnp.all(jnp.isfinite(o))) for o in outs)
    print("KERNEL_OK")
</pallas_src>

<mosaic_0001>
module attributes {stable_mosaic.version = 11 : i64} {
  func.func @_linear_kernel(%arg0: i32, %arg1: memref<144x640xbf16, #tpu.memory_space<vmem>>, %arg2: memref<640x64xbf16, #tpu.memory_space<vmem>>, %arg3: memref<1x64xf32, #tpu.memory_space<vmem>>, %arg4: memref<144x64xf32, #tpu.memory_space<vmem>>) attributes {dimension_semantics = [#tpu.dimension_semantics<parallel>], iteration_bounds = array<i64: 2>, scalar_prefetch = 0 : i64, scratch_operands = 0 : i64, tpu.core_type = #tpu.core_type<tc>, window_params = [{transform_indices = @transform_0, window_bounds = array<i64: 144, 640>}, {pipeline_mode = #tpu.pipeline_mode<synchronous>, transform_indices = @transform_1, window_bounds = array<i64: 640, 64>}, {pipeline_mode = #tpu.pipeline_mode<synchronous>, transform_indices = @transform_2, window_bounds = array<i64: 1, 64>}, {transform_indices = @transform_3, window_bounds = array<i64: 144, 64>}]} {
    %c0 = arith.constant 0 : index
    %c0_0 = arith.constant 0 : index
    %0 = vector.load %arg1[%c0, %c0_0] : memref<144x640xbf16, #tpu.memory_space<vmem>>, vector<144x640xbf16>
    %c0_1 = arith.constant 0 : index
    %c0_2 = arith.constant 0 : index
    %1 = vector.load %arg2[%c0_1, %c0_2] : memref<640x64xbf16, #tpu.memory_space<vmem>>, vector<640x64xbf16>
    %cst = arith.constant dense<0.000000e+00> : vector<144x64xf32>
    %2 = tpu.matmul %0, %1, %cst {dimension_numbers = #tpu.dot_dimension_numbers<[1], [0], [0], [1], [0, 0, 1, 1], [], []>} : vector<144x640xbf16>, vector<640x64xbf16>, vector<144x64xf32> -> vector<144x64xf32>
    %c0_3 = arith.constant 0 : index
    %c0_4 = arith.constant 0 : index
    %3 = vector.load %arg3[%c0_3, %c0_4] : memref<1x64xf32, #tpu.memory_space<vmem>>, vector<1x64xf32>
    %4 = vector.broadcast %3 : vector<1x64xf32> to vector<144x64xf32>
    %5 = arith.addf %2, %4 : vector<144x64xf32>
    %cst_5 = arith.constant 0.000000e+00 : f32
    %6 = vector.broadcast %cst_5 : f32 to vector<144x64xf32>
    %7 = arith.maximumf %5, %6 : vector<144x64xf32>
    %c0_6 = arith.constant 0 : index
    %c0_7 = arith.constant 0 : index
    %8 = vector.load %arg4[%c0_6, %c0_7] : memref<144x64xf32, #tpu.memory_space<vmem>>, vector<144x64xf32>
    tpu.vector_store %arg4[%c0_6, %c0_7], %7 {strides = array<i32>} : memref<144x64xf32, #tpu.memory_space<vmem>>, vector<144x64xf32>,
    return
  }
  func.func @transform_0(%arg0: i32) -> (i32, i32) {
    %c0_i32 = arith.constant 0 : i32
    %c0_i32_0 = arith.constant 0 : i32
    return %arg0, %c0_i32 : i32, i32
  }
  func.func @transform_1(%arg0: i32) -> (i32, i32) {
    %c0_i32 = arith.constant 0 : i32
    %c0_i32_0 = arith.constant 0 : i32
    %c0_i32_1 = arith.constant 0 : i32
    return %c0_i32, %c0_i32_0 : i32, i32
  }
  func.func @transform_2(%arg0: i32) -> (i32, i32) {
    %c0_i32 = arith.constant 0 : i32
    %c0_i32_0 = arith.constant 0 : i32
    %c0_i32_1 = arith.constant 0 : i32
    return %c0_i32, %c0_i32_0 : i32, i32
  }
  func.func @transform_3(%arg0: i32) -> (i32, i32) {
    %c0_i32 = arith.constant 0 : i32
    %c0_i32_0 = arith.constant 0 : i32
    return %arg0, %c0_i32 : i32, i32
  }
}

module attributes {stable_mosaic.version = 11 : i64} {
  func.func @_linear_kernel(%arg0: i32, %arg1: memref<56x1024xbf16, #tpu.memory_space<vmem>>, %arg2: memref<1024x128xbf16, #tpu.memory_space<vmem>>, %arg3: memref<1x128xf32, #tpu.memory_space<vmem>>, %arg4: memref<56x128xf32, #tpu.memory_space<vmem>>) attributes {dimension_semantics = [#tpu.dimension_semantics<parallel>], iteration_bounds = array<i64: 1>, scalar_prefetch = 0 : i64, scratch_operands = 0 : i64, tpu.core_type = #tpu.core_type<tc>, window_params = [{transform_indices = @transform_0, window_bounds = array<i64: 56, 1024>}, {pipeline_mode = #tpu.pipeline_mode<synchronous>, transform_indices = @transform_1, window_bounds = array<i64: 1024, 128>}, {pipeline_mode = #tpu.pipeline_mode<synchronous>, transform_indices = @transform_2, window_bounds = array<i64: 1, 128>}, {transform_indices = @transform_3, window_bounds = array<i64: 56, 128>}]} {
    %c0 = arith.constant 0 : index
    %c0_0 = arith.constant 0 : index
    %0 = vector.load %arg1[%c0, %c0_0] : memref<56x1024xbf16, #tpu.memory_space<vmem>>, vector<56x1024xbf16>
    %c0_1 = arith.constant 0 : index
    %c0_2 = arith.constant 0 : index
    %1 = vector.load %arg2[%c0_1, %c0_2] : memref<1024x128xbf16, #tpu.memory_space<vmem>>, vector<1024x128xbf16>
    %cst = arith.constant dense<0.000000e+00> : vector<56x128xf32>
    %2 = tpu.matmul %0, %1, %cst {dimension_numbers = #tpu.dot_dimension_numbers<[1], [0], [0], [1], [0, 0, 1, 1], [], []>} : vector<56x1024xbf16>, vector<1024x128xbf16>, vector<56x128xf32> -> vector<56x128xf32>
    %c0_3 = arith.constant 0 : index
    %c0_4 = arith.constant 0 : index
    %3 = vector.load %arg3[%c0_3, %c0_4] : memref<1x128xf32, #tpu.memory_space<vmem>>, vector<1x128xf32>
    %4 = vector.broadcast %3 : vector<1x128xf32> to vector<56x128xf32>
    %5 = arith.addf %2, %4 : vector<56x128xf32>
    %cst_5 = arith.constant 0.000000e+00 : f32
    %6 = vector.broadcast %cst_5 : f32 to vector<56x128xf32>
    %7 = arith.maximumf %5, %6 : vector<56x128xf32>
    %c0_6 = arith.constant 0 : index
    %c0_7 = arith.constant 0 : index
    %8 = vector.load %arg4[%c0_6, %c0_7] : memref<56x128xf32, #tpu.memory_space<vmem>>, vector<56x128xf32>
    tpu.vector_store %arg4[%c0_6, %c0_7], %7 {strides = array<i32>} : memref<56x128xf32, #tpu.memory_space<vmem>>, vector<56x128xf32>,
    return
  }
  func.func @transform_0(%arg0: i32) -> (i32, i32) {
    %c0_i32 = arith.constant 0 : i32
    %c0_i32_0 = arith.constant 0 : i32
    return %arg0, %c0_i32 : i32, i32
  }
  func.func @transform_1(%arg0: i32) -> (i32, i32) {
    %c0_i32 = arith.constant 0 : i32
    %c0_i32_0 = arith.constant 0 : i32
    %c0_i32_1 = arith.constant 0 : i32
    return %c0_i32, %c0_i32_0 : i32, i32
  }
  func.func @transform_2(%arg0: i32) -> (i32, i32) {
    %c0_i32 = arith.constant 0 : i32
    %c0_i32_0 = arith.constant 0 : i32
    %c0_i32_1 = arith.constant 0 : i32
    return %c0_i32, %c0_i32_0 : i32, i32
  }
  func.func @transform_3(%arg0: i32) -> (i32, i32) {
    %c0_i32 = arith.constant 0 : i32
    %c0_i32_0 = arith.constant 0 : i32
    return %arg0, %c0_i32 : i32, i32
  }
}

module attributes {stable_mosaic.version = 11 : i64} {
  func.func @_linear_kernel(%arg0: i32, %arg1: memref<8x3200xbf16, #tpu.memory_space<vmem>>, %arg2: memref<3200x512xbf16, #tpu.memory_space<vmem>>, %arg3: memref<1x512xf32, #tpu.memory_space<vmem>>, %arg4: memref<8x512xf32, #tpu.memory_space<vmem>>) attributes {dimension_semantics = [#tpu.dimension_semantics<parallel>], iteration_bounds = array<i64: 1>, scalar_prefetch = 0 : i64, scratch_operands = 0 : i64, tpu.core_type = #tpu.core_type<tc>, window_params = [{transform_indices = @transform_0, window_bounds = array<i64: 8, 3200>}, {pipeline_mode = #tpu.pipeline_mode<synchronous>, transform_indices = @transform_1, window_bounds = array<i64: 3200, 512>}, {pipeline_mode = #tpu.pipeline_mode<synchronous>, transform_indices = @transform_2, window_bounds = array<i64: 1, 512>}, {transform_indices = @transform_3, window_bounds = array<i64: 8, 512>}]} {
    %c0 = arith.constant 0 : index
    %c0_0 = arith.constant 0 : index
    %0 = vector.load %arg1[%c0, %c0_0] : memref<8x3200xbf16, #tpu.memory_space<vmem>>, vector<8x3200xbf16>
    %c0_1 = arith.constant 0 : index
    %c0_2 = arith.constant 0 : index
    %1 = vector.load %arg2[%c0_1, %c0_2] : memref<3200x512xbf16, #tpu.memory_space<vmem>>, vector<3200x512xbf16>
    %cst = arith.constant dense<0.000000e+00> : vector<8x512xf32>
    %2 = tpu.matmul %0, %1, %cst {dimension_numbers = #tpu.dot_dimension_numbers<[1], [0], [0], [1], [0, 0, 1, 1], [], []>} : vector<8x3200xbf16>, vector<3200x512xbf16>, vector<8x512xf32> -> vector<8x512xf32>
    %c0_3 = arith.constant 0 : index
    %c0_4 = arith.constant 0 : index
    %3 = vector.load %arg3[%c0_3, %c0_4] : memref<1x512xf32, #tpu.memory_space<vmem>>, vector<1x512xf32>
    %4 = vector.broadcast %3 : vector<1x512xf32> to vector<8x512xf32>
    %5 = arith.addf %2, %4 : vector<8x512xf32>
    %c0_5 = arith.constant 0 : index
    %c0_6 = arith.constant 0 : index
    %6 = vector.load %arg4[%c0_5, %c0_6] : memref<8x512xf32, #tpu.memory_space<vmem>>, vector<8x512xf32>
    tpu.vector_store %arg4[%c0_5, %c0_6], %5 {strides = array<i32>} : memref<8x512xf32, #tpu.memory_space<vmem>>, vector<8x512xf32>,
    return
  }
  func.func @transform_0(%arg0: i32) -> (i32, i32) {
    %c0_i32 = arith.constant 0 : i32
    %c0_i32_0 = arith.constant 0 : i32
    return %arg0, %c0_i32 : i32, i32
  }
  func.func @transform_1(%arg0: i32) -> (i32, i32) {
    %c0_i32 = arith.constant 0 : i32
    %c0_i32_0 = arith.constant 0 : i32
    %c0_i32_1 = arith.constant 0 : i32
    return %c0_i32, %c0_i32_0 : i32, i32
  }
  func.func @transform_2(%arg0: i32) -> (i32, i32) {
    %c0_i32 = arith.constant 0 : i32
    %c0_i32_0 = arith.constant 0 : i32
    %c0_i32_1 = arith.constant 0 : i32
    return %c0_i32, %c0_i32_0 : i32, i32
  }
  func.func @transform_3(%arg0: i32) -> (i32, i32) {
    %c0_i32 = arith.constant 0 : i32
    %c0_i32_0 = arith.constant 0 : i32
    return %arg0, %c0_i32 : i32, i32
  }
}

module attributes {stable_mosaic.version = 11 : i64} {
  func.func @_gru2_kernel(%arg0: i32, %arg1: memref<8x8x384xf32, #tpu.memory_space<vmem>>, %arg2: memref<128x384xbf16, #tpu.memory_space<vmem>>, %arg3: memref<1x384xf32, #tpu.memory_space<vmem>>, %arg4: memref<128x384xbf16, #tpu.memory_space<vmem>>, %arg5: memref<1x384xf32, #tpu.memory_space<vmem>>, %arg6: memref<128x384xbf16, #tpu.memory_space<vmem>>, %arg7: memref<1x384xf32, #tpu.memory_space<vmem>>, %arg8: memref<8x8x128xf32, #tpu.memory_space<vmem>>) attributes {dimension_semantics = [#tpu.dimension_semantics<arbitrary>], iteration_bounds = array<i64: 1>, scalar_prefetch = 0 : i64, scratch_operands = 0 : i64, tpu.core_type = #tpu.core_type<tc>, window_params = [{pipeline_mode = #tpu.pipeline_mode<synchronous>, transform_indices = @transform_0, window_bounds = array<i64: 8, 8, 384>}, {pipeline_mode = #tpu.pipeline_mode<synchronous>, transform_indices = @transform_1, window_bounds = array<i64: 128, 384>}, {pipeline_mode = #tpu.pipeline_mode<synchronous>, transform_indices = @transform_2, window_bounds = array<i64: 1, 384>}, {pipeline_mode = #tpu.pipeline_mode<synchronous>, transform_indices = @transform_3, window_bounds = array<i64: 128, 384>}, {pipeline_mode = #tpu.pipeline_mode<synchronous>, transform_indices = @transform_4, window_bounds = array<i64: 1, 384>}, {pipeline_mode = #tpu.pipeline_mode<synchronous>, transform_indices = @transform_5, window_bounds = array<i64: 128, 384>}, {pipeline_mode = #tpu.pipeline_mode<synchronous>, transform_indices = @transform_6, window_bounds = array<i64: 1, 384>}, {pipeline_mode = #tpu.pipeline_mode<synchronous>, transform_indices = @transform_7, window_bounds = array<i64: 8, 8, 128>}]} {
    %c0 = arith.constant 0 : index
    %c0_0 = arith.constant 0 : index
    %0 = vector.load %arg2[%c0, %c0_0] : memref<128x384xbf16, #tpu.memory_space<vmem>>, vector<128x384xbf16>
    %c0_1 = arith.constant 0 : index
    %c0_2 = arith.constant 0 : index
    %1 = vector.load %arg4[%c0_1, %c0_2] : memref<128x384xbf16, #tpu.memory_space<vmem>>, vector<128x384xbf16>
    %c0_3 = arith.constant 0 : index
    %c0_4 = arith.constant 0 : index
    %2 = vector.load %arg6[%c0_3, %c0_4] : memref<128x384xbf16, #tpu.memory_space<vmem>>, vector<128x384xbf16>
    %c0_5 = arith.constant 0 : index
    %c0_6 = arith.constant 0 : index
    %3 = vector.load %arg3[%c0_5, %c0_6] : memref<1x384xf32, #tpu.memory_space<vmem>>, vector<1x384xf32>
    %c0_7 = arith.constant 0 : index
    %c0_8 = arith.constant 0 : index
    %4 = vector.load %arg5[%c0_7, %c0_8] : memref<1x384xf32, #tpu.memory_space<vmem>>, vector<1x384xf32>
    %c0_9 = arith.constant 0 : index
    %c0_10 = arith.constant 0 : index
    %5 = vector.load %arg7[%c0_9, %c0_10] : memref<1x384xf32, #tpu.memory_space<vmem>>, vector<1x384xf32>
    %cst = arith.constant 0.000000e+00 : f32
    %6 = vector.broadcast %cst : f32 to vector<8x128xf32>
    %cst_11 = arith.constant 0.000000e+00 : f32
    %7 = vector.broadcast %cst_11 : f32 to vector<8x128xf32>
    %8 = arith.truncf %6 : vector<8x128xf32> to vector<8x128xbf16>
    %cst_12 = arith.constant dense<0.000000e+00> : vector<8x384xf32>
    %9 = tpu.matmul %8, %0, %cst_12 {dimension_numbers = #tpu.dot_dimension_numbers<[1], [0], [0], [1], [0, 0, 1, 1], [], []>} : vector<8x128xbf16>, vector<128x384xbf16>, vector<8x384xf32> -> vector<8x384xf32>
    %10 = vector.broadcast %3 : vector<1x384xf32> to vector<8x384xf32>
    %11 = arith.addf %9, %10 : vector<8x384xf32>
    %c0_13 = arith.constant 0 : index
    %c0_14 = arith.constant 0 : index
    %c0_15 = arith.constant 0 : index
    %12 = vector.load %arg1[%c0_13, %c0_14, %c0_15] : memref<8x8x384xf32, #tpu.memory_space<vmem>>, vector<1x8x384xf32>
    %13 = vector.shape_cast %12 : vector<1x8x384xf32> to vector<8x384xf32>
    %14 = vector.extract_strided_slice %13 {offsets = [0, 0], sizes = [8, 128], strides = [1, 1]} : vector<8x384xf32> to vector<8x128xf32>
    %15 = vector.extract_strided_slice %11 {offsets = [0, 0], sizes = [8, 128], strides = [1, 1]} : vector<8x384xf32> to vector<8x128xf32>
    %16 = arith.addf %14, %15 : vector<8x128xf32>
    %17 = arith.negf %16 : vector<8x128xf32>
    %18 = math.exp %17 : vector<8x128xf32>
    %cst_16 = arith.constant 1.000000e+00 : f32
    %19 = vector.broadcast %cst_16 : f32 to vector<8x128xf32>
    %20 = arith.addf %19, %18 : vector<8x128xf32>
    %21 = arith.divf %19, %20 : vector<8x128xf32>
    %22 = vector.extract_strided_slice %13 {offsets = [0, 128], sizes = [8, 128], strides = [1, 1]} : vector<8x384xf32> to vector<8x128xf32>
    %23 = vector.extract_strided_slice %11 {offsets = [0, 128], sizes = [8, 128], strides = [1, 1]} : vector<8x384xf32> to vector<8x128xf32>
    %24 = arith.addf %22, %23 : vector<8x128xf32>
    %25 = arith.negf %24 : vector<8x128xf32>
    %26 = math.exp %25 : vector<8x128xf32>
    %cst_17 = arith.constant 1.000000e+00 : f32
    %27 = vector.broadcast %cst_17 : f32 to vector<8x128xf32>
    %28 = arith.addf %27, %26 : vector<8x128xf32>
    %29 = arith.divf %27, %28 : vector<8x128xf32>
    %30 = vector.extract_strided_slice %13 {offsets = [0, 256], sizes = [8, 128], strides = [1, 1]} : vector<8x384xf32> to vector<8x128xf32>
    %31 = vector.extract_strided_slice %11 {offsets = [0, 256], sizes = [8, 128], strides = [1, 1]} : vector<8x384xf32> to vector<8x128xf32>
    %32 = arith.mulf %21, %31 : vector<8x128xf32>
    %33 = arith.addf %30, %32 : vector<8x128xf32>
    %34 = math.tanh %33 : vector<8x128xf32>
    %cst_18 = arith.constant 1.000000e+00 : f32
    %35 = vector.broadcast %cst_18 : f32 to vector<8x128xf32>
    %36 = arith.subf %35, %29 : vector<8x128xf32>
    %37 = arith.mulf %36, %34 : vector<8x128xf32>
    %38 = arith.mulf %29, %6 : vector<8x128xf32>
    %39 = arith.addf %37, %38 : vector<8x128xf32>
    %40 = arith.truncf %39 : vector<8x128xf32> to vector<8x128xbf16>
    %cst_19 = arith.constant dense<0.000000e+00> : vector<8x384xf32>
    %41 = tpu.matmul %40, %1, %cst_19 {dimension_numbers = #tpu.dot_dimension_numbers<[1], [0], [0], [1], [0, 0, 1, 1], [], []>} : vector<8x128xbf16>, vector<128x384xbf16>, vector<8x384xf32> -> vector<8x384xf32>
    %42 = vector.broadcast %4 : vector<1x384xf32> to vector<8x384xf32>
    %43 = arith.addf %41, %42 : vector<8x384xf32>
    %44 = arith.truncf %7 : vector<8x128xf32> to vector<8x128xbf16>
    %cst_20 = arith.constant dense<0.000000e+00> : vector<8x384xf32>
    %45 = tpu.matmul %44, %2, %cst_20 {dimension_numbers = #tpu.dot_dimension_numbers<[1], [0], [0], [1], [0, 0, 1, 1], [], []>} : vector<8x128xbf16>, vector<128x384xbf16>, vector<8x384xf32> -> vector<8x384xf32>
    %46 = vector.broadcast %5 : vector<1x384xf32> to vector<8x384xf32>
    %47 = arith.addf %45, %46 : vector<8x384xf32>
    %48 = vector.extract_strided_slice %43 {offsets = [0, 0], sizes = [8, 128], strides = [1, 1]} : vector<8x384xf32> to vector<8x128xf32>
    %49 = vector.extract_strided_slice %47 {offsets = [0, 0], sizes = [8, 128], strides = [1, 1]} : vector<8x384xf32> to vector<8x128xf32>
    %50 = arith.addf %48, %49 : vector<8x128xf32>
    %51 = arith.negf %50 : vector<8x128xf32>
    %52 = math.exp %51 : vector<8x128xf32>
    %cst_21 = arith.constant 1.000000e+00 : f32
    %53 = vector.broadcast %cst_21 : f32 to vector<8x128xf32>
    %54 = arith.addf %53, %52 : vector<8x128xf32>
    %55 = arith.divf %53, %54 : vector<8x128xf32>
    %56 = vector.extract_strided_slice %43 {offsets = [0, 128], sizes = [8, 128], strides = [1, 1]} : vector<8x384xf32> to vector<8x128xf32>
    %57 = vector.extract_strided_slice %47 {offsets = [0, 128], sizes = [8, 128], strides = [1, 1]} : vector<8x384xf32> to vector<8x128xf32>
    %58 = arith.addf %56, %57 : vector<8x128xf32>
    %59 = arith.negf %58 : vector<8x128xf32>
    %60 = math.exp %59 : vector<8x128xf32>
    %cst_22 = arith.constant 1.000000e+00 : f32
    %61 = vector.broadcast %cst_22 : f32 to vector<8x128xf32>
    %62 = arith.addf %61, %60 : vector<8x128xf32>
    %63 = arith.divf %61, %62 : vector<8x128xf32>
    %64 = vector.extract_strided_slice %43 {offsets = [0, 256], sizes = [8, 128], strides = [1, 1]} : vector<8x384xf32> to vector<8x128xf32>
    %65 = vector.extract_strided_slice %47 {offsets = [0, 256], sizes = [8, 128], strides = [1, 1]} : vector<8x384xf32> to vector<8x128xf32>
    %66 = arith.mulf %55, %65 : vector<8x128xf32>
    %67 = arith.addf %64, %66 : vector<8x128xf32>
    %68 = math.tanh %67 : vector<8x128xf32>
    %cst_23 = arith.constant 1.000000e+00 : f32
    %69 = vector.broadcast %cst_23 : f32 to vector<8x128xf32>
    %70 = arith.subf %69, %63 : vector<8x128xf32>
    %71 = arith.mulf %70, %68 : vector<8x128xf32>
    %72 = arith.mulf %63, %7 : vector<8x128xf32>
    %73 = arith.addf %71, %72 : vector<8x128xf32>
    %c0_24 = arith.constant 0 : index
    %c0_25 = arith.constant 0 : index
    %c0_26 = arith.constant 0 : index
    %74 = vector.load %arg8[%c0_24, %c0_25, %c0_26] : memref<8x8x128xf32, #tpu.memory_space<vmem>>, vector<1x8x128xf32>
    %75 = vector.shape_cast %74 : vector<1x8x128xf32> to vector<8x128xf32>
    %76 = vector.shape_cast %73 : vector<8x128xf32> to vector<1x8x128xf32>
    tpu.vector_store %arg8[%c0_24, %c0_25, %c0_26], %76 {strides = array<i32>} : memref<8x8x128xf32, #tpu.memory_space<vmem>>, vector<1x8x128xf32>,
    %77 = arith.truncf %39 : vector<8x128xf32> to vector<8x128xbf16>
    %cst_27 = arith.constant dense<0.000000e+00> : vector<8x384xf32>
    %78 = tpu.matmul %77, %0, %cst_27 {dimension_numbers = #tpu.dot_dimension_numbers<[1], [0], [0], [1], [0, 0, 1, 1], [], []>} : vector<8x128xbf16>, vector<128x384xbf16>, vector<8x384xf32> -> vector<8x384xf32>
    %79 = vector.broadcast %3 : vector<1x384xf32> to vector<8x384xf32>
    %80 = arith.addf %78, %79 : vector<8x384xf32>
    %c1 = arith.constant 1 : index
    %c0_28 = arith.constant 0 : index
    %c0_29 = arith.constant 0 : index
    %81 = vector.load %arg1[%c1, %c0_28, %c0_29] : memref<8x8x384xf32, #tpu.memory_space<vmem>>, vector<1x8x384xf32>
    %82 = vector.shape_cast %81 : vector<1x8x384xf32> to vector<8x384xf32>
    %83 = vector.extract_strided_slice %82 {offsets = [0, 0], sizes = [8, 128], strides = [1, 1]} : vector<8x384xf32> to vector<8x128xf32>
    %84 = vector.extract_strided_slice %80 {offsets = [0, 0], sizes = [8, 128], strides = [1, 1]} : vector<8x384xf32> to vector<8x128xf32>
    %85 = arith.addf %83, %84 : vector<8x128xf32>
    %86 = arith.negf %85 : vector<8x128xf32>
    %87 = math.exp %86 : vector<8x128xf32>
    %cst_30 = arith.constant 1.000000e+00 : f32
    %88 = vector.broadcast %cst_30 : f32 to vector<8x128xf32>
    %89 = arith.addf %88, %87 : vector<8x128xf32>
    %90 = arith.divf %88, %89 : vector<8x128xf32>
    %91 = vector.extract_strided_slice %82 {offsets = [0, 128], sizes = [8, 128], strides = [1, 1]} : vector<8x384xf32> to vector<8x128xf32>
    %92 = vector.extract_strided_slice %80 {offsets = [0, 128], sizes = [8, 128], strides = [1, 1]} : vector<8x384xf32> to vector<8x128xf32>
    %93 = arith.addf %91, %92 : vector<8x128xf32>
    %94 = arith.negf %93 : vector<8x128xf32>
    %95 = math.exp %94 : vector<8x128xf32>
    %cst_31 = arith.constant 1.000000e+00 : f32
    %96 = vector.broadcast %cst_31 : f32 to vector<8x128xf32>
    %97 = arith.addf %96, %95 : vector<8x128xf32>
    %98 = arith.divf %96, %97 : vector<8x128xf32>
    %99 = vector.extract_strided_slice %82 {offsets = [0, 256], sizes = [8, 128], strides = [1, 1]} : vector<8x384xf32> to vector<8x128xf32>
    %100 = vector.extract_strided_slice %80 {offsets = [0, 256], sizes = [8, 128], strides = [1, 1]} : vector<8x384xf32> to vector<8x128xf32>
    %101 = arith.mulf %90, %100 : vector<8x128xf32>
    %102 = arith.addf %99, %101 : vector<8x128xf32>
    %103 = math.tanh %102 : vector<8x128xf32>
    %cst_32 = arith.constant 1.000000e+00 : f32
    %104 = vector.broadcast %cst_32 : f32 to vector<8x128xf32>
    %105 = arith.subf %104, %98 : vector<8x128xf32>
    %106 = arith.mulf %105, %103 : vector<8x128xf32>
    %107 = arith.mulf %98, %39 : vector<8x128xf32>
    %108 = arith.addf %106, %107 : vector<8x128xf32>
    %109 = arith.truncf %108 : vector<8x128xf32> to vector<8x128xbf16>
    %cst_33 = arith.constant dense<0.000000e+00> : vector<8x384xf32>
    %110 = tpu.matmul %109, %1, %cst_33 {dimension_numbers = #tpu.dot_dimension_numbers<[1], [0], [0], [1], [0, 0, 1, 1], [], []>} : vector<8x128xbf16>, vector<128x384xbf16>, vector<8x384xf32> -> vector<8x384xf32>
    %111 = vector.broadcast %4 : vector<1x384xf32> to vector<8x384xf32>
    %112 = arith.addf %110, %111 : vector<8x384xf32>
    %113 = arith.truncf %73 : vector<8x128xf32> to vector<8x128xbf16>
    %cst_34 = arith.constant dense<0.000000e+00> : vector<8x384xf32>
    %114 = tpu.matmul %113, %2, %cst_34 {dimension_numbers = #tpu.dot_dimension_numbers<[1], [0], [0], [1], [0, 0, 1, 1], [], []>} : vector<8x128xbf16>, vector<128x384xbf16>, vector<8x384xf32> -> vector<8x384xf32>
    %115 = vector.broadcast %5 : vector<1x384xf32> to vector<8x384xf32>
    %116 = arith.addf %114, %115 : vector<8x384xf32>
    %117 = vector.extract_strided_slice %112 {offsets = [0, 0], sizes = [8, 128], strides = [1, 1]} : vector<8x384xf32> to vector<8x128xf32>
    %118 = vector.extract_strided_slice %116 {offsets = [0, 0], sizes = [8, 128], strides = [1, 1]} : vector<8x384xf32> to vector<8x128xf32>
    %119 = arith.addf %117, %118 : vector<8x128xf32>
    %120 = arith.negf %119 : vector<8x128xf32>
    %121 = math.exp %120 : vector<8x128xf32>
    %cst_35 = arith.constant 1.000000e+00 : f32
    %122 = vector.broadcast %cst_35 : f32 to vector<8x128xf32>
    %123 = arith.addf %122, %121 : vector<8x128xf32>
    %124 = arith.divf %122, %123 : vector<8x128xf32>
    %125 = vector.extract_strided_slice %112 {offsets = [0, 128], sizes = [8, 128], strides = [1, 1]} : vector<8x384xf32> to vector<8x128xf32>
    %126 = vector.extract_strided_slice %116 {offsets = [0, 128], sizes = [8, 128], strides = [1, 1]} : vector<8x384xf32> to vector<8x128xf32>
    %127 = arith.addf %125, %126 : vector<8x128xf32>
    %128 = arith.negf %127 : vector<8x128xf32>
    %129 = math.exp %128 : vector<8x128xf32>
    %cst_36 = arith.constant 1.000000e+00 : f32
    %130 = vector.broadcast %cst_36 : f32 to vector<8x128xf32>
    %131 = arith.addf %130, %129 : vector<8x128xf32>
    %132 = arith.divf %130, %131 : vector<8x128xf32>
    %133 = vector.extract_strided_slice %112 {offsets = [0, 256], sizes = [8, 128], strides = [1, 1]} : vector<8x384xf32> to vector<8x128xf32>
    %134 = vector.extract_strided_slice %116 {offsets = [0, 256], sizes = [8, 128], strides = [1, 1]} : vector<8x384xf32> to vector<8x128xf32>
    %135 = arith.mulf %124, %134 : vector<8x128xf32>
    %136 = arith.addf %133, %135 : vector<8x128xf32>
    %137 = math.tanh %136 : vector<8x128xf32>
    %cst_37 = arith.constant 1.000000e+00 : f32
    %138 = vector.broadcast %cst_37 : f32 to vector<8x128xf32>
    %139 = arith.subf %138, %132 : vector<8x128xf32>
    %140 = arith.mulf %139, %137 : vector<8x128xf32>
    %141 = arith.mulf %132, %73 : vector<8x128xf32>
    %142 = arith.addf %140, %141 : vector<8x128xf32>
    %c1_38 = arith.constant 1 : index
    %c0_39 = arith.constant 0 : index
    %c0_40 = arith.constant 0 : index
    %143 = vector.load %arg8[%c1_38, %c0_39, %c0_40] : memref<8x8x128xf32, #tpu.memory_space<vmem>>, vector<1x8x128xf32>
    %144 = vector.shape_cast %143 : vector<1x8x128xf32> to vector<8x128xf32>
    %145 = vector.shape_cast %142 : vector<8x128xf32> to vector<1x8x128xf32>
    tpu.vector_store %arg8[%c1_38, %c0_39, %c0_40], %145 {strides = array<i32>} : memref<8x8x128xf32, #tpu.memory_space<vmem>>, vector<1x8x128xf32>,
    %146 = arith.truncf %108 : vector<8x128xf32> to vector<8x128xbf16>
    %cst_41 = arith.constant dense<0.000000e+00> : vector<8x384xf32>
    %147 = tpu.matmul %146, %0, %cst_41 {dimension_numbers = #tpu.dot_dimension_numbers<[1], [0], [0], [1], [0, 0, 1, 1], [], []>} : vector<8x128xbf16>, vector<128x384xbf16>, vector<8x384xf32> -> vector<8x384xf32>
    %148 = vector.broadcast %3 : vector<1x384xf32> to vector<8x384xf32>
    %149 = arith.addf %147, %148 : vector<8x384xf32>
    %c2 = arith.constant 2 : index
    %c0_42 = arith.constant 0 : index
    %c0_43 = arith.constant 0 : index
    %150 = vector.load %arg1[%c2, %c0_42, %c0_43] : memref<8x8x384xf32, #tpu.memory_space<vmem>>, vector<1x8x384xf32>
    %151 = vector.shape_cast %150 : vector<1x8x384xf32> to vector<8x384xf32>
    %152 = vector.extract_strided_slice %151 {offsets = [0, 0], sizes = [8, 128], strides = [1, 1]} : vector<8x384xf32> to vector<8x128xf32>
    %153 = vector.extract_strided_slice %149 {offsets = [0, 0], sizes = [8, 128], strides = [1, 1]} : vector<8x384xf32> to vector<8x128xf32>
    %154 = arith.addf %152, %153 : vector<8x128xf32>
    %155 = arith.negf %154 : vector<8x128xf32>
    %156 = math.exp %155 : vector<8x128xf32>
    %cst_44 = arith.constant 1.000000e+00 : f32
    %157 = vector.broadcast %cst_44 : f32 to vector<8x128xf32>
    %158 = arith.addf %157, %156 : vector<8x128xf32>
    %159 = arith.divf %157, %158 : vector<8x128xf32>
    %160 = vector.extract_strided_slice %151 {offsets = [0, 128], sizes = [8, 128], strides = [1, 1]} : vector<8x384xf32> to vector<8x128xf32>
    %161 = vector.extract_strided_slice %149 {offsets = [0, 128], sizes = [8, 128], strides = [1, 1]} : vector<8x384xf32> to vector<8x128xf32>
    %162 = arith.addf %160, %161 : vector<8x128xf32>
    %163 = arith.negf %162 : vector<8x128xf32>
    %164 = math.exp %163 : vector<8x128xf32>
    %cst_45 = arith.constant 1.000000e+00 : f32
    %165 = vector.broadcast %cst_45 : f32 to vector<8x128xf32>
    %166 = arith.addf %165, %164 : vector<8x128xf32>
    %167 = arith.divf %165, %166 : vector<8x128xf32>
    %168 = vector.extract_strided_slice %151 {offsets = [0, 256], sizes = [8, 128], strides = [1, 1]} : vector<8x384xf32> to vector<8x128xf32>
    %169 = vector.extract_strided_slice %149 {offsets = [0, 256], sizes = [8, 128], strides = [1, 1]} : vector<8x384xf32> to vector<8x128xf32>
    %170 = arith.mulf %159, %169 : vector<8x128xf32>
    %171 = arith.addf %168, %170 : vector<8x128xf32>
    %172 = math.tanh %171 : vector<8x128xf32>
    %cst_46 = arith.constant 1.000000e+00 : f32
    %173 = vector.broadcast %cst_46 : f32 to vector<8x128xf32>
    %174 = arith.subf %173, %167 : vector<8x128xf32>
    %175 = arith.mulf %174, %172 : vector<8x128xf32>
    %176 = arith.mulf %167, %108 : vector<8x128xf32>
    %177 = arith.addf %175, %176 : vector<8x128xf32>
    %178 = arith.truncf %177 : vector<8x128xf32> to vector<8x128xbf16>
    %cst_47 = arith.constant dense<0.000000e+00> : vector<8x384xf32>
    %179 = tpu.matmul %178, %1, %cst_47 {dimension_numbers = #tpu.dot_dimension_numbers<[1], [0], [0], [1], [0, 0, 1, 1], [], []>} : vector<8x128xbf16>, vector<128x384xbf16>, vector<8x384xf32> -> vector<8x384xf32>
    %180 = vector.broadcast %4 : vector<1x384xf32> to vector<8x384xf32>
    %181 = arith.addf %179, %180 : vector<8x384xf32>
    %182 = arith.truncf %142 : vector<8x128xf32> to vector<8x128xbf16>
    %cst_48 = arith.constant dense<0.000000e+00> : vector<8x384xf32>
    %183 = tpu.matmul %182, %2, %cst_48 {dimension_numbers = #tpu.dot_dimension_numbers<[1], [0], [0], [1], [0, 0, 1, 1], [], []>} : vector<8x128xbf16>, vector<128x384xbf16>, vector<8x384xf32> -> vector<8x384xf32>
    %184 = vector.broadcast %5 : vector<1x384xf32> to vector<8x384xf32>
    %185 = arith.addf %183, %184 : vector<8x384xf32>
    %186 = vector.extract_strided_slice %181 {offsets = [0, 0], sizes = [8, 128], strides = [1, 1]} : vector<8x384xf32> to vector<8x128xf32>
    %187 = vector.extract_strided_slice %185 {offsets = [0, 0], sizes = [8, 128], strides = [1, 1]} : vector<8x384xf32> to vector<8x128xf32>
    %188 = arith.addf %186, %187 : vector<8x128xf32>
    %189 = arith.negf %188 : vector<8x128xf32>
    %190 = math.exp %189 : vector<8x128xf32>
    %cst_49 = arith.constant 1.000000e+00 : f32
    %191 = vector.broadcast %cst_49 : f32 to vector<8x128xf32>
    %192 = arith.addf %191, %190 : vector<8x128xf32>
    %193 = arith.divf %191, %192 : vector<8x128xf32>
    %194 = vector.extract_strided_slice %181 {offsets = [0, 128], sizes = [8, 128], strides = [1, 1]} : vector<8x384xf32> to vector<8x128xf32>
    %195 = vector.extract_strided_slice %185 {offsets = [0, 128], sizes = [8, 128], strides = [1, 1]} : vector<8x384xf32> to vector<8x128xf32>
    %196 = arith.addf %194, %195 : vector<8x128xf32>
    %197 = arith.negf %196 : vector<8x128xf32>
    %198 = math.exp %197 : vector<8x128xf32>
    %cst_50 = arith.constant 1.000000e+00 : f32
    %199 = vector.broadcast %cst_50 : f32 to vector<8x128xf32>
    %200 = arith.addf %199, %198 : vector<8x128xf32>
    %201 = arith.divf %199, %200 : vector<8x128xf32>
    %202 = vector.extract_strided_slice %181 {offsets = [0, 256], sizes = [8, 128], strides = [1, 1]} : vector<8x384xf32> to vector<8x128xf32>
    %203 = vector.extract_strided_slice %185 {offsets = [0, 256], sizes = [8, 128], strides = [1, 1]} : vector<8x384xf32> to vector<8x128xf32>
    %204 = arith.mulf %193, %203 : vector<8x128xf32>
    %205 = arith.addf %202, %204 : vector<8x128xf32>
    %206 = math.tanh %205 : vector<8x128xf32>
    %cst_51 = arith.constant 1.000000e+00 : f32
    %207 = vector.broadcast %cst_51 : f32 to vector<8x128xf32>
    %208 = arith.subf %207, %201 : vector<8x128xf32>
    %209 = arith.mulf %208, %206 : vector<8x128xf32>
    %210 = arith.mulf %201, %142 : vector<8x128xf32>
    %211 = arith.addf %209, %210 : vector<8x128xf32>
    %c2_52 = arith.constant 2 : index
    %c0_53 = arith.constant 0 : index
    %c0_54 = arith.constant 0 : index
    %212 = vector.load %arg8[%c2_52, %c0_53, %c0_54] : memref<8x8x128xf32, #tpu.memory_space<vmem>>, vector<1x8x128xf32>
    %213 = vector.shape_cast %212 : vector<1x8x128xf32> to vector<8x128xf32>
    %214 = vector.shape_cast %211 : vector<8x128xf32> to vector<1x8x128xf32>
    tpu.vector_store %arg8[%c2_52, %c0_53, %c0_54], %214 {strides = array<i32>} : memref<8x8x128xf32, #tpu.memory_space<vmem>>, vector<1x8x128xf32>,
    %215 = arith.truncf %177 : vector<8x128xf32> to vector<8x128xbf16>
    %cst_55 = arith.constant dense<0.000000e+00> : vector<8x384xf32>
    %216 = tpu.matmul %215, %0, %cst_55 {dimension_numbers = #tpu.dot_dimension_numbers<[1], [0], [0], [1], [0, 0, 1, 1], [], []>} : vector<8x128xbf16>, vector<128x384xbf16>, vector<8x384xf32> -> vector<8x384xf32>
    %217 = vector.broadcast %3 : vector<1x384xf32> to vector<8x384xf32>
    %218 = arith.addf %216, %217 : vector<8x384xf32>
    %c3 = arith.constant 3 : index
    %c0_56 = arith.constant 0 : index
    %c0_57 = arith.constant 0 : index
    %219 = vector.load %arg1[%c3, %c0_56, %c0_57] : memref<8x8x384xf32, #tpu.memory_space<vmem>>, vector<1x8x384xf32>
    %220 = vector.shape_cast %219 : vector<1x8x384xf32> to vector<8x384xf32>
    %221 = vector.extract_strided_slice %220 {offsets = [0, 0], sizes = [8, 128], strides = [1, 1]} : vector<8x384xf32> to vector<8x128xf32>
    %222 = vector.extract_strided_slice %218 {offsets = [0, 0], sizes = [8, 128], strides = [1, 1]} : vector<8x384xf32> to vector<8x128xf32>
    %223 = arith.addf %221, %222 : vector<8x128xf32>
    %224 = arith.negf %223 : vector<8x128xf32>
    %225 = math.exp %224 : vector<8x128xf32>
    %cst_58 = arith.constant 1.000000e+00 : f32
    %226 = vector.broadcast %cst_58 : f32 to vector<8x128xf32>
    %227 = arith.addf %226, %225 : vector<8x128xf32>
    %228 = arith.divf %226, %227 : vector<8x128xf32>
    %229 = vector.extract_strided_slice %220 {offsets = [0, 128], sizes = [8, 128], strides = [1, 1]} : vector<8x384xf32> to vector<8x128xf32>
    %230 = vector.extract_strided_slice %218 {offsets = [0, 128], sizes = [8, 128], strides = [1, 1]} : vector<8x384xf32> to vector<8x128xf32>
    %231 = arith.addf %229, %230 : vector<8x128xf32>
    %232 = arith.negf %231 : vector<8x128xf32>
    %233 = math.exp %232 : vector<8x128xf32>
    %cst_59 = arith.constant 1.000000e+00 : f32
    %234 = vector.broadcast %cst_59 : f32 to vector<8x128xf32>
    %235 = arith.addf %234, %233 : vector<8x128xf32>
    %236 = arith.divf %234, %235 : vector<8x128xf32>
    %237 = vector.extract_strided_slice %220 {offsets = [0, 256], sizes = [8, 128], strides = [1, 1]} : vector<8x384xf32> to vector<8x128xf32>
    %238 = vector.extract_strided_slice %218 {offsets = [0, 256], sizes = [8, 128], strides = [1, 1]} : vector<8x384xf32> to vector<8x128xf32>
    %239 = arith.mulf %228, %238 : vector<8x128xf32>
    %240 = arith.addf %237, %239 : vector<8x128xf32>
    %241 = math.tanh %240 : vector<8x128xf32>
    %cst_60 = arith.constant 1.000000e+00 : f32
    %242 = vector.broadcast %cst_60 : f32 to vector<8x128xf32>
    %243 = arith.subf %242, %236 : vector<8x128xf32>
    %244 = arith.mulf %243, %241 : vector<8x128xf32>
    %245 = arith.mulf %236, %177 : vector<8x128xf32>
    %246 = arith.addf %244, %245 : vector<8x128xf32>
    %247 = arith.truncf %246 : vector<8x128xf32> to vector<8x128xbf16>
    %cst_61 = arith.constant dense<0.000000e+00> : vector<8x384xf32>
    %248 = tpu.matmul %247, %1, %cst_61 {dimension_numbers = #tpu.dot_dimension_numbers<[1], [0], [0], [1], [0, 0, 1, 1], [], []>} : vector<8x128xbf16>, vector<128x384xbf16>, vector<8x384xf32> -> vector<8x384xf32>
    %249 = vector.broadcast %4 : vector<1x384xf32> to vector<8x384xf32>
    %250 = arith.addf %248, %249 : vector<8x384xf32>
    %251 = arith.truncf %211 : vector<8x128xf32> to vector<8x128xbf16>
    %cst_62 = arith.constant dense<0.000000e+00> : vector<8x384xf32>
    %252 = tpu.matmul %251, %2, %cst_62 {dimension_numbers = #tpu.dot_dimension_numbers<[1], [0], [0], [1], [0, 0, 1, 1], [], []>} : vector<8x128xbf16>, vector<128x384xbf16>, vector<8x384xf32> -> vector<8x384xf32>
    %253 = vector.broadcast %5 : vector<1x384xf32> to vector<8x384xf32>
    %254 = arith.addf %252, %253 : vector<8x384xf32>
    %255 = vector.extract_strided_slice %250 {offsets = [0, 0], sizes = [8, 128], strides = [1, 1]} : vector<8x384xf32> to vector<8x128xf32>
    %256 = vector.extract_strided_slice %254 {offsets = [0, 0], sizes = [8, 128], strides = [1, 1]} : vector<8x384xf32> to vector<8x128xf32>
    %257 = arith.addf %255, %256 : vector<8x128xf32>
    %258 = arith.negf %257 : vector<8x128xf32>
    %259 = math.exp %258 : vector<8x128xf32>
    %cst_63 = arith.constant 1.000000e+00 : f32
    %260 = vector.broadcast %cst_63 : f32 to vector<8x128xf32>
    %261 = arith.addf %260, %259 : vector<8x128xf32>
    %262 = arith.divf %260, %261 : vector<8x128xf32>
    %263 = vector.extract_strided_slice %250 {offsets = [0, 128], sizes = [8, 128], strides = [1, 1]} : vector<8x384xf32> to vector<8x128xf32>
    %264 = vector.extract_strided_slice %254 {offsets = [0, 128], sizes = [8, 128], strides = [1, 1]} : vector<8x384xf32> to vector<8x128xf32>
    %265 = arith.addf %263, %264 : vector<8x128xf32>
    %266 = arith.negf %265 : vector<8x128xf32>
    %267 = math.exp %266 : vector<8x128xf32>
    %cst_64 = arith.constant 1.000000e+00 : f32
    %268 = vector.broadcast %cst_64 : f32 to vector<8x128xf32>
    %269 = arith.addf %268, %267 : vector<8x128xf32>
    %270 = arith.divf %268, %269 : vector<8x128xf32>
    %271 = vector.extract_strided_slice %250 {offsets = [0, 256], sizes = [8, 128], strides = [1, 1]} : vector<8x384xf32> to vector<8x128xf32>
    %272 = vector.extract_strided_slice %254 {offsets = [0, 256], sizes = [8, 128], strides = [1, 1]} : vector<8x384xf32> to vector<8x128xf32>
    %273 = arith.mulf %262, %272 : vector<8x128xf32>
    %274 = arith.addf %271, %273 : vector<8x128xf32>
    %275 = math.tanh %274 : vector<8x128xf32>
    %cst_65 = arith.constant 1.000000e+00 : f32
    %276 = vector.broadcast %cst_65 : f32 to vector<8x128xf32>
    %277 = arith.subf %276, %270 : vector<8x128xf32>
    %278 = arith.mulf %277, %275 : vector<8x128xf32>
    %279 = arith.mulf %270, %211 : vector<8x128xf32>
    %280 = arith.addf %278, %279 : vector<8x128xf32>
    %c3_66 = arith.constant 3 : index
    %c0_67 = arith.constant 0 : index
    %c0_68 = arith.constant 0 : index
    %281 = vector.load %arg8[%c3_66, %c0_67, %c0_68] : memref<8x8x128xf32, #tpu.memory_space<vmem>>, vector<1x8x128xf32>
    %282 = vector.shape_cast %281 : vector<1x8x128xf32> to vector<8x128xf32>
    %283 = vector.shape_cast %280 : vector<8x128xf32> to vector<1x8x128xf32>
    tpu.vector_store %arg8[%c3_66, %c0_67, %c0_68], %283 {strides = array<i32>} : memref<8x8x128xf32, #tpu.memory_space<vmem>>, vector<1x8x128xf32>,
    %284 = arith.truncf %246 : vector<8x128xf32> to vector<8x128xbf16>
    %cst_69 = arith.constant dense<0.000000e+00> : vector<8x384xf32>
    %285 = tpu.matmul %284, %0, %cst_69 {dimension_numbers = #tpu.dot_dimension_numbers<[1], [0], [0], [1], [0, 0, 1, 1], [], []>} : vector<8x128xbf16>, vector<128x384xbf16>, vector<8x384xf32> -> vector<8x384xf32>
    %286 = vector.broadcast %3 : vector<1x384xf32> to vector<8x384xf32>
    %287 = arith.addf %285, %286 : vector<8x384xf32>
    %c4 = arith.constant 4 : index
    %c0_70 = arith.constant 0 : index
    %c0_71 = arith.constant 0 : index
    %288 = vector.load %arg1[%c4, %c0_70, %c0_71] : memref<8x8x384xf32, #tpu.memory_space<vmem>>, vector<1x8x384xf32>
    %289 = vector.shape_cast %288 : vector<1x8x384xf32> to vector<8x384xf32>
    %290 = vector.extract_strided_slice %289 {offsets = [0, 0], sizes = [8, 128], strides = [1, 1]} : vector<8x384xf32> to vector<8x128xf32>
    %291 = vector.extract_strided_slice %287 {offsets = [0, 0], sizes = [8, 128], strides = [1, 1]} : vector<8x384xf32> to vector<8x128xf32>
    %292 = arith.addf %290, %291 : vector<8x128xf32>
    %293 = arith.negf %292 : vector<8x128xf32>
    %294 = math.exp %293 : vector<8x128xf32>
    %cst_72 = arith.constant 1.000000e+00 : f32
    %295 = vector.broadcast %cst_72 : f32 to vector<8x128xf32>
    %296 = arith.addf %295, %294 : vector<8x128xf32>
    %297 = arith.divf %295, %296 : vector<8x128xf32>
    %298 = vector.extract_strided_slice %289 {offsets = [0, 128], sizes = [8, 128], strides = [1, 1]} : vector<8x384xf32> to vector<8x128xf32>
    %299 = vector.extract_strided_slice %287 {offsets = [0, 128], sizes = [8, 128], strides = [1, 1]} : vector<8x384xf32> to vector<8x128xf32>
    %300 = arith.addf %298, %299 : vector<8x128xf32>
    %301 = arith.negf %300 : vector<8x128xf32>
    %302 = math.exp %301 : vector<8x128xf32>
    %cst_73 = arith.constant 1.000000e+00 : f32
    %303 = vector.broadcast %cst_73 : f32 to vector<8x128xf32>
    %304 = arith.addf %303, %302 : vector<8x128xf32>
    %305 = arith.divf %303, %304 : vector<8x128xf32>
    %306 = vector.extract_strided_slice %289 {offsets = [0, 256], sizes = [8, 128], strides = [1, 1]} : vector<8x384xf32> to vector<8x128xf32>
    %307 = vector.extract_strided_slice %287 {offsets = [0, 256], sizes = [8, 128], strides = [1, 1]} : vector<8x384xf32> to vector<8x128xf32>
    %308 = arith.mulf %297, %307 : vector<8x128xf32>
    %309 = arith.addf %306, %308 : vector<8x128xf32>
    %310 = math.tanh %309 : vector<8x128xf32>
    %cst_74 = arith.constant 1.000000e+00 : f32
    %311 = vector.broadcast %cst_74 : f32 to vector<8x128xf32>
    %312 = arith.subf %311, %305 : vector<8x128xf32>
    %313 = arith.mulf %312, %310 : vector<8x128xf32>
    %314 = arith.mulf %305, %246 : vector<8x128xf32>
    %315 = arith.addf %313, %314 : vector<8x128xf32>
    %316 = arith.truncf %315 : vector<8x128xf32> to vector<8x128xbf16>
    %cst_75 = arith.constant dense<0.000000e+00> : vector<8x384xf32>
    %317 = tpu.matmul %316, %1, %cst_75 {dimension_numbers = #tpu.dot_dimension_numbers<[1], [0], [0], [1], [0, 0, 1, 1], [], []>} : vector<8x128xbf16>, vector<128x384xbf16>, vector<8x384xf32> -> vector<8x384xf32>
    %318 = vector.broadcast %4 : vector<1x384xf32> to vector<8x384xf32>
    %319 = arith.addf %317, %318 : vector<8x384xf32>
    %320 = arith.truncf %280 : vector<8x128xf32> to vector<8x128xbf16>
    %cst_76 = arith.constant dense<0.000000e+00> : vector<8x384xf32>
    %321 = tpu.matmul %320, %2, %cst_76 {dimension_numbers = #tpu.dot_dimension_numbers<[1], [0], [0], [1], [0, 0, 1, 1], [], []>} : vector<8x128xbf16>, vector<128x384xbf16>, vector<8x384xf32> -> vector<8x384xf32>
    %322 = vector.broadcast %5 : vector<1x384xf32> to vector<8x384xf32>
    %323 = arith.addf %321, %322 : vector<8x384xf32>
    %324 = vector.extract_strided_slice %319 {offsets = [0, 0], sizes = [8, 128], strides = [1, 1]} : vector<8x384xf32> to vector<8x128xf32>
    %325 = vector.extract_strided_slice %323 {offsets = [0, 0], sizes = [8, 128], strides = [1, 1]} : vector<8x384xf32> to vector<8x128xf32>
    %326 = arith.addf %324, %325 : vector<8x128xf32>
    %327 = arith.negf %326 : vector<8x128xf32>
    %328 = math.exp %327 : vector<8x128xf32>
    %cst_77 = arith.constant 1.000000e+00 : f32
    %329 = vector.broadcast %cst_77 : f32 to vector<8x128xf32>
    %330 = arith.addf %329, %328 : vector<8x128xf32>
    %331 = arith.divf %329, %330 : vector<8x128xf32>
    %332 = vector.extract_strided_slice %319 {offsets = [0, 128], sizes = [8, 128], strides = [1, 1]} : vector<8x384xf32> to vector<8x128xf32>
    %333 = vector.extract_strided_slice %323 {offsets = [0, 128], sizes = [8, 128], strides = [1, 1]} : vector<8x384xf32> to vector<8x128xf32>
    %334 = arith.addf %332, %333 : vector<8x128xf32>
    %335 = arith.negf %334 : vector<8x128xf32>
    %336 = math.exp %335 : vector<8x128xf32>
    %cst_78 = arith.constant 1.000000e+00 : f32
    %337 = vector.broadcast %cst_78 : f32 to vector<8x128xf32>
    %338 = arith.addf %337, %336 : vector<8x128xf32>
    %339 = arith.divf %337, %338 : vector<8x128xf32>
    %340 = vector.extract_strided_slice %319 {offsets = [0, 256], sizes = [8, 128], strides = [1, 1]} : vector<8x384xf32> to vector<8x128xf32>
    %341 = vector.extract_strided_slice %323 {offsets = [0, 256], sizes = [8, 128], strides = [1, 1]} : vector<8x384xf32> to vector<8x128xf32>
    %342 = arith.mulf %331, %341 : vector<8x128xf32>
    %343 = arith.addf %340, %342 : vector<8x128xf32>
    %344 = math.tanh %343 : vector<8x128xf32>
    %cst_79 = arith.constant 1.000000e+00 : f32
    %345 = vector.broadcast %cst_79 : f32 to vector<8x128xf32>
    %346 = arith.subf %345, %339 : vector<8x128xf32>
    %347 = arith.mulf %346, %344 : vector<8x128xf32>
    %348 = arith.mulf %339, %280 : vector<8x128xf32>
    %349 = arith.addf %347, %348 : vector<8x128xf32>
    %c4_80 = arith.constant 4 : index
    %c0_81 = arith.constant 0 : index
    %c0_82 = arith.constant 0 : index
    %350 = vector.load %arg8[%c4_80, %c0_81, %c0_82] : memref<8x8x128xf32, #tpu.memory_space<vmem>>, vector<1x8x128xf32>
    %351 = vector.shape_cast %350 : vector<1x8x128xf32> to vector<8x128xf32>
    %352 = vector.shape_cast %349 : vector<8x128xf32> to vector<1x8x128xf32>
    tpu.vector_store %arg8[%c4_80, %c0_81, %c0_82], %352 {strides = array<i32>} : memref<8x8x128xf32, #tpu.memory_space<vmem>>, vector<1x8x128xf32>,
    %353 = arith.truncf %315 : vector<8x128xf32> to vector<8x128xbf16>
    %cst_83 = arith.constant dense<0.000000e+00> : vector<8x384xf32>
    %354 = tpu.matmul %353, %0, %cst_83 {dimension_numbers = #tpu.dot_dimension_numbers<[1], [0], [0], [1], [0, 0, 1, 1], [], []>} : vector<8x128xbf16>, vector<128x384xbf16>, vector<8x384xf32> -> vector<8x384xf32>
    %355 = vector.broadcast %3 : vector<1x384xf32> to vector<8x384xf32>
    %356 = arith.addf %354, %355 : vector<8x384xf32>
    %c5 = arith.constant 5 : index
    %c0_84 = arith.constant 0 : index
    %c0_85 = arith.constant 0 : index
    %357 = vector.load %arg1[%c5, %c0_84, %c0_85] : memref<8x8x384xf32, #tpu.memory_space<vmem>>, vector<1x8x384xf32>
    %358 = vector.shape_cast %357 : vector<1x8x384xf32> to vector<8x384xf32>
    %359 = vector.extract_strided_slice %358 {offsets = [0, 0], sizes = [8, 128], strides = [1, 1]} : vector<8x384xf32> to vector<8x128xf32>
    %360 = vector.extract_strided_slice %356 {offsets = [0, 0], sizes = [8, 128], strides = [1, 1]} : vector<8x384xf32> to vector<8x128xf32>
    %361 = arith.addf %359, %360 : vector<8x128xf32>
    %362 = arith.negf %361 : vector<8x128xf32>
    %363 = math.exp %362 : vector<8x128xf32>
    %cst_86 = arith.constant 1.000000e+00 : f32
    %364 = vector.broadcast %cst_86 : f32 to vector<8x128xf32>
    %365 = arith.addf %364, %363 : vector<8x128xf32>
    %366 = arith.divf %364, %365 : vector<8x128xf32>
    %367 = vector.extract_strided_slice %358 {offsets = [0, 128], sizes = [8, 128], strides = [1, 1]} : vector<8x384xf32> to vector<8x128xf32>
    %368 = vector.extract_strided_slice %356 {offsets = [0, 128], sizes = [8, 128], strides = [1, 1]} : vector<8x384xf32> to vector<8x128xf32>
    %369 = arith.addf %367, %368 : vector<8x128xf32>
    %370 = arith.negf %369 : vector<8x128xf32>
    %371 = math.exp %370 : vector<8x128xf32>
    %cst_87 = arith.constant 1.000000e+00 : f32
    %372 = vector.broadcast %cst_87 : f32 to vector<8x128xf32>
    %373 = arith.addf %372, %371 : vector<8x128xf32>
    %374 = arith.divf %372, %373 : vector<8x128xf32>
    %375 = vector.extract_strided_slice %358 {offsets = [0, 256], sizes = [8, 128], strides = [1, 1]} : vector<8x384xf32> to vector<8x128xf32>
    %376 = vector.extract_strided_slice %356 {offsets = [0, 256], sizes = [8, 128], strides = [1, 1]} : vector<8x384xf32> to vector<8x128xf32>
    %377 = arith.mulf %366, %376 : vector<8x128xf32>
    %378 = arith.addf %375, %377 : vector<8x128xf32>
    %379 = math.tanh %378 : vector<8x128xf32>
    %cst_88 = arith.constant 1.000000e+00 : f32
    %380 = vector.broadcast %cst_88 : f32 to vector<8x128xf32>
    %381 = arith.subf %380, %374 : vector<8x128xf32>
    %382 = arith.mulf %381, %379 : vector<8x128xf32>
    %383 = arith.mulf %374, %315 : vector<8x128xf32>
    %384 = arith.addf %382, %383 : vector<8x128xf32>
    %385 = arith.truncf %384 : vector<8x128xf32> to vector<8x128xbf16>
    %cst_89 = arith.constant dense<0.000000e+00> : vector<8x384xf32>
    %386 = tpu.matmul %385, %1, %cst_89 {dimension_numbers = #tpu.dot_dimension_numbers<[1], [0], [0], [1], [0, 0, 1, 1], [], []>} : vector<8x128xbf16>, vector<128x384xbf16>, vector<8x384xf32> -> vector<8x384xf32>
    %387 = vector.broadcast %4 : vector<1x384xf32> to vector<8x384xf32>
    %388 = arith.addf %386, %387 : vector<8x384xf32>
    %389 = arith.truncf %349 : vector<8x128xf32> to vector<8x128xbf16>
    %cst_90 = arith.constant dense<0.000000e+00> : vector<8x384xf32>
    %390 = tpu.matmul %389, %2, %cst_90 {dimension_numbers = #tpu.dot_dimension_numbers<[1], [0], [0], [1], [0, 0, 1, 1], [], []>} : vector<8x128xbf16>, vector<128x384xbf16>, vector<8x384xf32> -> vector<8x384xf32>
    %391 = vector.broadcast %5 : vector<1x384xf32> to vector<8x384xf32>
    %392 = arith.addf %390, %391 : vector<8x384xf32>
    %393 = vector.extract_strided_slice %388 {offsets = [0, 0], sizes = [8, 128], strides = [1, 1]} : vector<8x384xf32> to vector<8x128xf32>
    %394 = vector.extract_strided_slice %392 {offsets = [0, 0], sizes = [8, 128], strides = [1, 1]} : vector<8x384xf32> to vector<8x128xf32>
    %395 = arith.addf %393, %394 : vector<8x128xf32>
    %396 = arith.negf %395 : vector<8x128xf32>
    %397 = math.exp %396 : vector<8x128xf32>
    %cst_91 = arith.constant 1.000000e+00 : f32
    %398 = vector.broadcast %cst_91 : f32 to vector<8x128xf32>
    %399 = arith.addf %398, %397 : vector<8x128xf32>
    %400 = arith.divf %398, %399 : vector<8x128xf32>
    %401 = vector.extract_strided_slice %388 {offsets = [0, 128], sizes = [8, 128], strides = [1, 1]} : vector<8x384xf32> to vector<8x128xf32>
    %402 = vector.extract_strided_slice %392 {offsets = [0, 128], sizes = [8, 128], strides = [1, 1]} : vector<8x384xf32> to vector<8x128xf32>
    %403 = arith.addf %401, %402 : vector<8x128xf32>
    %404 = arith.negf %403 : vector<8x128xf32>
    %405 = math.exp %404 : vector<8x128xf32>
    %cst_92 = arith.constant 1.000000e+00 : f32
    %406 = vector.broadcast %cst_92 : f32 to vector<8x128xf32>
    %407 = arith.addf %406, %405 : vector<8x128xf32>
    %408 = arith.divf %406, %407 : vector<8x128xf32>
    %409 = vector.extract_strided_slice %388 {offsets = [0, 256], sizes = [8, 128], strides = [1, 1]} : vector<8x384xf32> to vector<8x128xf32>
    %410 = vector.extract_strided_slice %392 {offsets = [0, 256], sizes = [8, 128], strides = [1, 1]} : vector<8x384xf32> to vector<8x128xf32>
    %411 = arith.mulf %400, %410 : vector<8x128xf32>
    %412 = arith.addf %409, %411 : vector<8x128xf32>
    %413 = math.tanh %412 : vector<8x128xf32>
    %cst_93 = arith.constant 1.000000e+00 : f32
    %414 = vector.broadcast %cst_93 : f32 to vector<8x128xf32>
    %415 = arith.subf %414, %408 : vector<8x128xf32>
    %416 = arith.mulf %415, %413 : vector<8x128xf32>
    %417 = arith.mulf %408, %349 : vector<8x128xf32>
    %418 = arith.addf %416, %417 : vector<8x128xf32>
    %c5_94 = arith.constant 5 : index
    %c0_95 = arith.constant 0 : index
    %c0_96 = arith.constant 0 : index
    %419 = vector.load %arg8[%c5_94, %c0_95, %c0_96] : memref<8x8x128xf32, #tpu.memory_space<vmem>>, vector<1x8x128xf32>
    %420 = vector.shape_cast %419 : vector<1x8x128xf32> to vector<8x128xf32>
    %421 = vector.shape_cast %418 : vector<8x128xf32> to vector<1x8x128xf32>
    tpu.vector_store %arg8[%c5_94, %c0_95, %c0_96], %421 {strides = array<i32>} : memref<8x8x128xf32, #tpu.memory_space<vmem>>, vector<1x8x128xf32>,
    %422 = arith.truncf %384 : vector<8x128xf32> to vector<8x128xbf16>
    %cst_97 = arith.constant dense<0.000000e+00> : vector<8x384xf32>
    %423 = tpu.matmul %422, %0, %cst_97 {dimension_numbers = #tpu.dot_dimension_numbers<[1], [0], [0], [1], [0, 0, 1, 1], [], []>} : vector<8x128xbf16>, vector<128x384xbf16>, vector<8x384xf32> -> vector<8x384xf32>
    %424 = vector.broadcast %3 : vector<1x384xf32> to vector<8x384xf32>
    %425 = arith.addf %423, %424 : vector<8x384xf32>
    %c6 = arith.constant 6 : index
    %c0_98 = arith.constant 0 : index
    %c0_99 = arith.constant 0 : index
    %426 = vector.load %arg1[%c6, %c0_98, %c0_99] : memref<8x8x384xf32, #tpu.memory_space<vmem>>, vector<1x8x384xf32>
    %427 = vector.shape_cast %426 : vector<1x8x384xf32> to vector<8x384xf32>
    %428 = vector.extract_strided_slice %427 {offsets = [0, 0], sizes = [8, 128], strides = [1, 1]} : vector<8x384xf32> to vector<8x128xf32>
    %429 = vector.extract_strided_slice %425 {offsets = [0, 0], sizes = [8, 128], strides = [1, 1]} : vector<8x384xf32> to vector<8x128xf32>
    %430 = arith.addf %428, %429 : vector<8x128xf32>
    %431 = arith.negf %430 : vector<8x128xf32>
    %432 = math.exp %431 : vector<8x128xf32>
    %cst_100 = arith.constant 1.000000e+00 : f32
    %433 = vector.broadcast %cst_100 : f32 to vector<8x128xf32>
    %434 = arith.addf %433, %432 : vector<8x128xf32>
    %435 = arith.divf %433, %434 : vector<8x128xf32>
    %436 = vector.extract_strided_slice %427 {offsets = [0, 128], sizes = [8, 128], strides = [1, 1]} : vector<8x384xf32> to vector<8x128xf32>
    %437 = vector.extract_strided_slice %425 {offsets = [0, 128], sizes = [8, 128], strides = [1, 1]} : vector<8x384xf32> to vector<8x128xf32>
    %438 = arith.addf %436, %437 : vector<8x128xf32>
    %439 = arith.negf %438 : vector<8x128xf32>
    %440 = math.exp %439 : vector<8x128xf32>
    %cst_101 = arith.constant 1.000000e+00 : f32
    %441 = vector.broadcast %cst_101 : f32 to vector<8x128xf32>
    %442 = arith.addf %441, %440 : vector<8x128xf32>
    %443 = arith.divf %441, %442 : vector<8x128xf32>
    %444 = vector.extract_strided_slice %427 {offsets = [0, 256], sizes = [8, 128], strides = [1, 1]} : vector<8x384xf32> to vector<8x128xf32>
    %445 = vector.extract_strided_slice %425 {offsets = [0, 256], sizes = [8, 128], strides = [1, 1]} : vector<8x384xf32> to vector<8x128xf32>
    %446 = arith.mulf %435, %445 : vector<8x128xf32>
    %447 = arith.addf %444, %446 : vector<8x128xf32>
    %448 = math.tanh %447 : vector<8x128xf32>
    %cst_102 = arith.constant 1.000000e+00 : f32
    %449 = vector.broadcast %cst_102 : f32 to vector<8x128xf32>
    %450 = arith.subf %449, %443 : vector<8x128xf32>
    %451 = arith.mulf %450, %448 : vector<8x128xf32>
    %452 = arith.mulf %443, %384 : vector<8x128xf32>
    %453 = arith.addf %451, %452 : vector<8x128xf32>
    %454 = arith.truncf %453 : vector<8x128xf32> to vector<8x128xbf16>
    %cst_103 = arith.constant dense<0.000000e+00> : vector<8x384xf32>
    %455 = tpu.matmul %454, %1, %cst_103 {dimension_numbers = #tpu.dot_dimension_numbers<[1], [0], [0], [1], [0, 0, 1, 1], [], []>} : vector<8x128xbf16>, vector<128x384xbf16>, vector<8x384xf32> -> vector<8x384xf32>
    %456 = vector.broadcast %4 : vector<1x384xf32> to vector<8x384xf32>
    %457 = arith.addf %455, %456 : vector<8x384xf32>
    %458 = arith.truncf %418 : vector<8x128xf32> to vector<8x128xbf16>
    %cst_104 = arith.constant dense<0.000000e+00> : vector<8x384xf32>
    %459 = tpu.matmul %458, %2, %cst_104 {dimension_numbers = #tpu.dot_dimension_numbers<[1], [0], [0], [1], [0, 0, 1, 1], [], []>} : vector<8x128xbf16>, vector<128x384xbf16>, vector<8x384xf32> -> vector<8x384xf32>
    %460 = vector.broadcast %5 : vector<1x384xf32> to vector<8x384xf32>
    %461 = arith.addf %459, %460 : vector<8x384xf32>
    %462 = vector.extract_strided_slice %457 {offsets = [0, 0], sizes = [8, 128], strides = [1, 1]} : vector<8x384xf32> to vector<8x128xf32>
    %463 = vector.extract_strided_slice %461 {offsets = [0, 0], sizes = [8, 128], strides = [1, 1]} : vector<8x384xf32> to vector<8x128xf32>
    %464 = arith.addf %462, %463 : vector<8x128xf32>
    %465 = arith.negf %464 : vector<8x128xf32>
    %466 = math.exp %465 : vector<8x128xf32>
    %cst_105 = arith.constant 1.000000e+00 : f32
    %467 = vector.broadcast %cst_105 : f32 to vector<8x128xf32>
    %468 = arith.addf %467, %466 : vector<8x128xf32>
    %469 = arith.divf %467, %468 : vector<8x128xf32>
    %470 = vector.extract_strided_slice %457 {offsets = [0, 128], sizes = [8, 128], strides = [1, 1]} : vector<8x384xf32> to vector<8x128xf32>
    %471 = vector.extract_strided_slice %461 {offsets = [0, 128], sizes = [8, 128], strides = [1, 1]} : vector<8x384xf32> to vector<8x128xf32>
    %472 = arith.addf %470, %471 : vector<8x128xf32>
    %473 = arith.negf %472 : vector<8x128xf32>
    %474 = math.exp %473 : vector<8x128xf32>
    %cst_106 = arith.constant 1.000000e+00 : f32
    %475 = vector.broadcast %cst_106 : f32 to vector<8x128xf32>
    %476 = arith.addf %475, %474 : vector<8x128xf32>
    %477 = arith.divf %475, %476 : vector<8x128xf32>
    %478 = vector.extract_strided_slice %457 {offsets = [0, 256], sizes = [8, 128], strides = [1, 1]} : vector<8x384xf32> to vector<8x128xf32>
    %479 = vector.extract_strided_slice %461 {offsets = [0, 256], sizes = [8, 128], strides = [1, 1]} : vector<8x384xf32> to vector<8x128xf32>
    %480 = arith.mulf %469, %479 : vector<8x128xf32>
    %481 = arith.addf %478, %480 : vector<8x128xf32>
    %482 = math.tanh %481 : vector<8x128xf32>
    %cst_107 = arith.constant 1.000000e+00 : f32
    %483 = vector.broadcast %cst_107 : f32 to vector<8x128xf32>
    %484 = arith.subf %483, %477 : vector<8x128xf32>
    %485 = arith.mulf %484, %482 : vector<8x128xf32>
    %486 = arith.mulf %477, %418 : vector<8x128xf32>
    %487 = arith.addf %485, %486 : vector<8x128xf32>
    %c6_108 = arith.constant 6 : index
    %c0_109 = arith.constant 0 : index
    %c0_110 = arith.constant 0 : index
    %488 = vector.load %arg8[%c6_108, %c0_109, %c0_110] : memref<8x8x128xf32, #tpu.memory_space<vmem>>, vector<1x8x128xf32>
    %489 = vector.shape_cast %488 : vector<1x8x128xf32> to vector<8x128xf32>
    %490 = vector.shape_cast %487 : vector<8x128xf32> to vector<1x8x128xf32>
    tpu.vector_store %arg8[%c6_108, %c0_109, %c0_110], %490 {strides = array<i32>} : memref<8x8x128xf32, #tpu.memory_space<vmem>>, vector<1x8x128xf32>,
    %491 = arith.truncf %453 : vector<8x128xf32> to vector<8x128xbf16>
    %cst_111 = arith.constant dense<0.000000e+00> : vector<8x384xf32>
    %492 = tpu.matmul %491, %0, %cst_111 {dimension_numbers = #tpu.dot_dimension_numbers<[1], [0], [0], [1], [0, 0, 1, 1], [], []>} : vector<8x128xbf16>, vector<128x384xbf16>, vector<8x384xf32> -> vector<8x384xf32>
    %493 = vector.broadcast %3 : vector<1x384xf32> to vector<8x384xf32>
    %494 = arith.addf %492, %493 : vector<8x384xf32>
    %c7 = arith.constant 7 : index
    %c0_112 = arith.constant 0 : index
    %c0_113 = arith.constant 0 : index
    %495 = vector.load %arg1[%c7, %c0_112, %c0_113] : memref<8x8x384xf32, #tpu.memory_space<vmem>>, vector<1x8x384xf32>
    %496 = vector.shape_cast %495 : vector<1x8x384xf32> to vector<8x384xf32>
    %497 = vector.extract_strided_slice %496 {offsets = [0, 0], sizes = [8, 128], strides = [1, 1]} : vector<8x384xf32> to vector<8x128xf32>
    %498 = vector.extract_strided_slice %494 {offsets = [0, 0], sizes = [8, 128], strides = [1, 1]} : vector<8x384xf32> to vector<8x128xf32>
    %499 = arith.addf %497, %498 : vector<8x128xf32>
    %500 = arith.negf %499 : vector<8x128xf32>
    %501 = math.exp %500 : vector<8x128xf32>
    %cst_114 = arith.constant 1.000000e+00 : f32
    %502 = vector.broadcast %cst_114 : f32 to vector<8x128xf32>
    %503 = arith.addf %502, %501 : vector<8x128xf32>
    %504 = arith.divf %502, %503 : vector<8x128xf32>
    %505 = vector.extract_strided_slice %496 {offsets = [0, 128], sizes = [8, 128], strides = [1, 1]} : vector<8x384xf32> to vector<8x128xf32>
    %506 = vector.extract_strided_slice %494 {offsets = [0, 128], sizes = [8, 128], strides = [1, 1]} : vector<8x384xf32> to vector<8x128xf32>
    %507 = arith.addf %505, %506 : vector<8x128xf32>
    %508 = arith.negf %507 : vector<8x128xf32>
    %509 = math.exp %508 : vector<8x128xf32>
    %cst_115 = arith.constant 1.000000e+00 : f32
    %510 = vector.broadcast %cst_115 : f32 to vector<8x128xf32>
    %511 = arith.addf %510, %509 : vector<8x128xf32>
    %512 = arith.divf %510, %511 : vector<8x128xf32>
    %513 = vector.extract_strided_slice %496 {offsets = [0, 256], sizes = [8, 128], strides = [1, 1]} : vector<8x384xf32> to vector<8x128xf32>
    %514 = vector.extract_strided_slice %494 {offsets = [0, 256], sizes = [8, 128], strides = [1, 1]} : vector<8x384xf32> to vector<8x128xf32>
    %515 = arith.mulf %504, %514 : vector<8x128xf32>
    %516 = arith.addf %513, %515 : vector<8x128xf32>
    %517 = math.tanh %516 : vector<8x128xf32>
    %cst_116 = arith.constant 1.000000e+00 : f32
    %518 = vector.broadcast %cst_116 : f32 to vector<8x128xf32>
    %519 = arith.subf %518, %512 : vector<8x128xf32>
    %520 = arith.mulf %519, %517 : vector<8x128xf32>
    %521 = arith.mulf %512, %453 : vector<8x128xf32>
    %522 = arith.addf %520, %521 : vector<8x128xf32>
    %523 = arith.truncf %522 : vector<8x128xf32> to vector<8x128xbf16>
    %cst_117 = arith.constant dense<0.000000e+00> : vector<8x384xf32>
    %524 = tpu.matmul %523, %1, %cst_117 {dimension_numbers = #tpu.dot_dimension_numbers<[1], [0], [0], [1], [0, 0, 1, 1], [], []>} : vector<8x128xbf16>, vector<128x384xbf16>, vector<8x384xf32> -> vector<8x384xf32>
    %525 = vector.broadcast %4 : vector<1x384xf32> to vector<8x384xf32>
    %526 = arith.addf %524, %525 : vector<8x384xf32>
    %527 = arith.truncf %487 : vector<8x128xf32> to vector<8x128xbf16>
    %cst_118 = arith.constant dense<0.000000e+00> : vector<8x384xf32>
    %528 = tpu.matmul %527, %2, %cst_118 {dimension_numbers = #tpu.dot_dimension_numbers<[1], [0], [0], [1], [0, 0, 1, 1], [], []>} : vector<8x128xbf16>, vector<128x384xbf16>, vector<8x384xf32> -> vector<8x384xf32>
    %529 = vector.broadcast %5 : vector<1x384xf32> to vector<8x384xf32>
    %530 = arith.addf %528, %529 : vector<8x384xf32>
    %531 = vector.extract_strided_slice %526 {offsets = [0, 0], sizes = [8, 128], strides = [1, 1]} : vector<8x384xf32> to vector<8x128xf32>
    %532 = vector.extract_strided_slice %530 {offsets = [0, 0], sizes = [8, 128], strides = [1, 1]} : vector<8x384xf32> to vector<8x128xf32>
    %533 = arith.addf %531, %532 : vector<8x128xf32>
    %534 = arith.negf %533 : vector<8x128xf32>
    %535 = math.exp %534 : vector<8x128xf32>
    %cst_119 = arith.constant 1.000000e+00 : f32
    %536 = vector.broadcast %cst_119 : f32 to vector<8x128xf32>
    %537 = arith.addf %536, %535 : vector<8x128xf32>
    %538 = arith.divf %536, %537 : vector<8x128xf32>
    %539 = vector.extract_strided_slice %526 {offsets = [0, 128], sizes = [8, 128], strides = [1, 1]} : vector<8x384xf32> to vector<8x128xf32>
    %540 = vector.extract_strided_slice %530 {offsets = [0, 128], sizes = [8, 128], strides = [1, 1]} : vector<8x384xf32> to vector<8x128xf32>
    %541 = arith.addf %539, %540 : vector<8x128xf32>
    %542 = arith.negf %541 : vector<8x128xf32>
    %543 = math.exp %542 : vector<8x128xf32>
    %cst_120 = arith.constant 1.000000e+00 : f32
    %544 = vector.broadcast %cst_120 : f32 to vector<8x128xf32>
    %545 = arith.addf %544, %543 : vector<8x128xf32>
    %546 = arith.divf %544, %545 : vector<8x128xf32>
    %547 = vector.extract_strided_slice %526 {offsets = [0, 256], sizes = [8, 128], strides = [1, 1]} : vector<8x384xf32> to vector<8x128xf32>
    %548 = vector.extract_strided_slice %530 {offsets = [0, 256], sizes = [8, 128], strides = [1, 1]} : vector<8x384xf32> to vector<8x128xf32>
    %549 = arith.mulf %538, %548 : vector<8x128xf32>
    %550 = arith.addf %547, %549 : vector<8x128xf32>
    %551 = math.tanh %550 : vector<8x128xf32>
    %cst_121 = arith.constant 1.000000e+00 : f32
    %552 = vector.broadcast %cst_121 : f32 to vector<8x128xf32>
    %553 = arith.subf %552, %546 : vector<8x128xf32>
    %554 = arith.mulf %553, %551 : vector<8x128xf32>
    %555 = arith.mulf %546, %487 : vector<8x128xf32>
    %556 = arith.addf %554, %555 : vector<8x128xf32>
    %c7_122 = arith.constant 7 : index
    %c0_123 = arith.constant 0 : index
    %c0_124 = arith.constant 0 : index
    %557 = vector.load %arg8[%c7_122, %c0_123, %c0_124] : memref<8x8x128xf32, #tpu.memory_space<vmem>>, vector<1x8x128xf32>
    %558 = vector.shape_cast %557 : vector<1x8x128xf32> to vector<8x128xf32>
    %559 = vector.shape_cast %556 : vector<8x128xf32> to vector<1x8x128xf32>
    tpu.vector_store %arg8[%c7_122, %c0_123, %c0_124], %559 {strides = array<i32>} : memref<8x8x128xf32, #tpu.memory_space<vmem>>, vector<1x8x128xf32>,
    return
  }
  func.func @transform_0(%arg0: i32) -> (i32, i32, i32) {
    %c0_i32 = arith.constant 0 : i32
    %c0_i32_0 = arith.constant 0 : i32
    %c0_i32_1 = arith.constant 0 : i32
    %c0_i32_2 = arith.constant 0 : i32
    return %c0_i32, %c0_i32_0, %c0_i32_1 : i32, i32, i32
  }
  func.func @transform_1(%arg0: i32) -> (i32, i32) {
    %c0_i32 = arith.constant 0 : i32
    %c0_i32_0 = arith.constant 0 : i32
    %c0_i32_1 = arith.constant 0 : i32
    return %c0_i32, %c0_i32_0 : i32, i32
  }
  func.func @transform_2(%arg0: i32) -> (i32, i32) {
    %c0_i32 = arith.constant 0 : i32
    %c0_i32_0 = arith.constant 0 : i32
    %c0_i32_1 = arith.constant 0 : i32
    return %c0_i32, %c0_i32_0 : i32, i32
  }
  func.func @transform_3(%arg0: i32) -> (i32, i32) {
    %c0_i32 = arith.constant 0 : i32
    %c0_i32_0 = arith.constant 0 : i32
    %c0_i32_1 = arith.constant 0 : i32
    return %c0_i32, %c0_i32_0 : i32, i32
  }
  func.func @transform_4(%arg0: i32) -> (i32, i32) {
    %c0_i32 = arith.constant 0 : i32
    %c0_i32_0 = arith.constant 0 : i32
    %c0_i32_1 = arith.constant 0 : i32
    return %c0_i32, %c0_i32_0 : i32, i32
  }
  func.func @transform_5(%arg0: i32) -> (i32, i32) {
    %c0_i32 = arith.constant 0 : i32
    %c0_i32_0 = arith.constant 0 : i32
    %c0_i32_1 = arith.constant 0 : i32
    return %c0_i32, %c0_i32_0 : i32, i32
  }
  func.func @transform_6(%arg0: i32) -> (i32, i32) {
    %c0_i32 = arith.constant 0 : i32
    %c0_i32_0 = arith.constant 0 : i32
    %c0_i32_1 = arith.constant 0 : i32
    return %c0_i32, %c0_i32_0 : i32, i32
  }
  func.func @transform_7(%arg0: i32) -> (i32, i32, i32) {
    %c0_i32 = arith.constant 0 : i32
    %c0_i32_0 = arith.constant 0 : i32
    %c0_i32_1 = arith.constant 0 : i32
    %c0_i32_2 = arith.constant 0 : i32
    return %c0_i32, %c0_i32_0, %c0_i32_1 : i32, i32, i32
  }
}

module attributes {stable_mosaic.version = 11 : i64} {
  func.func @_linear_kernel(%arg0: i32, %arg1: memref<16x9xbf16, #tpu.memory_space<vmem>>, %arg2: memref<9x384xbf16, #tpu.memory_space<vmem>>, %arg3: memref<1x384xf32, #tpu.memory_space<vmem>>, %arg4: memref<16x384xf32, #tpu.memory_space<vmem>>) attributes {dimension_semantics = [#tpu.dimension_semantics<parallel>], iteration_bounds = array<i64: 1>, scalar_prefetch = 0 : i64, scratch_operands = 0 : i64, tpu.core_type = #tpu.core_type<tc>, window_params = [{transform_indices = @transform_0, window_bounds = array<i64: 16, 9>}, {pipeline_mode = #tpu.pipeline_mode<synchronous>, transform_indices = @transform_1, window_bounds = array<i64: 9, 384>}, {pipeline_mode = #tpu.pipeline_mode<synchronous>, transform_indices = @transform_2, window_bounds = array<i64: 1, 384>}, {transform_indices = @transform_3, window_bounds = array<i64: 16, 384>}]} {
    %c0 = arith.constant 0 : index
    %c0_0 = arith.constant 0 : index
    %0 = vector.load %arg1[%c0, %c0_0] : memref<16x9xbf16, #tpu.memory_space<vmem>>, vector<16x9xbf16>
    %c0_1 = arith.constant 0 : index
    %c0_2 = arith.constant 0 : index
    %1 = vector.load %arg2[%c0_1, %c0_2] : memref<9x384xbf16, #tpu.memory_space<vmem>>, vector<9x384xbf16>
    %cst = arith.constant dense<0.000000e+00> : vector<16x384xf32>
    %2 = tpu.matmul %0, %1, %cst {dimension_numbers = #tpu.dot_dimension_numbers<[1], [0], [0], [1], [0, 0, 1, 1], [], []>} : vector<16x9xbf16>, vector<9x384xbf16>, vector<16x384xf32> -> vector<16x384xf32>
    %c0_3 = arith.constant 0 : index
    %c0_4 = arith.constant 0 : index
    %3 = vector.load %arg3[%c0_3, %c0_4] : memref<1x384xf32, #tpu.memory_space<vmem>>, vector<1x384xf32>
    %4 = vector.broadcast %3 : vector<1x384xf32> to vector<16x384xf32>
    %5 = arith.addf %2, %4 : vector<16x384xf32>
    %c0_5 = arith.constant 0 : index
    %c0_6 = arith.constant 0 : index
    %6 = vector.load %arg4[%c0_5, %c0_6] : memref<16x384xf32, #tpu.memory_space<vmem>>, vector<16x384xf32>
    tpu.vector_store %arg4[%c0_5, %c0_6], %5 {strides = array<i32>} : memref<16x384xf32, #tpu.memory_space<vmem>>, vector<16x384xf32>,
    return
  }
  func.func @transform_0(%arg0: i32) -> (i32, i32) {
    %c0_i32 = arith.constant 0 : i32
    %c0_i32_0 = arith.constant 0 : i32
    return %arg0, %c0_i32 : i32, i32
  }
  func.func @transform_1(%arg0: i32) -> (i32, i32) {
    %c0_i32 = arith.constant 0 : i32
    %c0_i32_0 = arith.constant 0 : i32
    %c0_i32_1 = arith.constant 0 : i32
    return %c0_i32, %c0_i32_0 : i32, i32
  }
  func.func @transform_2(%arg0: i32) -> (i32, i32) {
    %c0_i32 = arith.constant 0 : i32
    %c0_i32_0 = arith.constant 0 : i32
    %c0_i32_1 = arith.constant 0 : i32
    return %c0_i32, %c0_i32_0 : i32, i32
  }
  func.func @transform_3(%arg0: i32) -> (i32, i32) {
    %c0_i32 = arith.constant 0 : i32
    %c0_i32_0 = arith.constant 0 : i32
    return %arg0, %c0_i32 : i32, i32
  }
}

module attributes {stable_mosaic.version = 11 : i64} {
  func.func @_joiner_output_kernel(%arg0: i32, %arg1: memref<16x640xbf16, #tpu.memory_space<vmem>>, %arg2: memref<640x512xbf16, #tpu.memory_space<vmem>>, %arg3: memref<1x512xf32, #tpu.memory_space<vmem>>, %arg4: memref<512x128xbf16, #tpu.memory_space<vmem>>, %arg5: memref<1x128xf32, #tpu.memory_space<vmem>>, %arg6: memref<16x128xf32, #tpu.memory_space<vmem>>) attributes {dimension_semantics = [#tpu.dimension_semantics<arbitrary>], iteration_bounds = array<i64: 1>, scalar_prefetch = 0 : i64, scratch_operands = 0 : i64, tpu.core_type = #tpu.core_type<tc>, window_params = [{pipeline_mode = #tpu.pipeline_mode<synchronous>, transform_indices = @transform_0, window_bounds = array<i64: 16, 640>}, {pipeline_mode = #tpu.pipeline_mode<synchronous>, transform_indices = @transform_1, window_bounds = array<i64: 640, 512>}, {pipeline_mode = #tpu.pipeline_mode<synchronous>, transform_indices = @transform_2, window_bounds = array<i64: 1, 512>}, {pipeline_mode = #tpu.pipeline_mode<synchronous>, transform_indices = @transform_3, window_bounds = array<i64: 512, 128>}, {pipeline_mode = #tpu.pipeline_mode<synchronous>, transform_indices = @transform_4, window_bounds = array<i64: 1, 128>}, {pipeline_mode = #tpu.pipeline_mode<synchronous>, transform_indices = @transform_5, window_bounds = array<i64: 16, 128>}]} {
    %c0 = arith.constant 0 : index
    %c0_0 = arith.constant 0 : index
    %0 = vector.load %arg1[%c0, %c0_0] : memref<16x640xbf16, #tpu.memory_space<vmem>>, vector<16x640xbf16>
    %c0_1 = arith.constant 0 : index
    %c0_2 = arith.constant 0 : index
    %1 = vector.load %arg2[%c0_1, %c0_2] : memref<640x512xbf16, #tpu.memory_space<vmem>>, vector<640x512xbf16>
    %cst = arith.constant dense<0.000000e+00> : vector<16x512xf32>
    %2 = tpu.matmul %0, %1, %cst {dimension_numbers = #tpu.dot_dimension_numbers<[1], [0], [0], [1], [0, 0, 1, 1], [], []>} : vector<16x640xbf16>, vector<640x512xbf16>, vector<16x512xf32> -> vector<16x512xf32>
    %c0_3 = arith.constant 0 : index
    %c0_4 = arith.constant 0 : index
    %3 = vector.load %arg3[%c0_3, %c0_4] : memref<1x512xf32, #tpu.memory_space<vmem>>, vector<1x512xf32>
    %4 = vector.broadcast %3 : vector<1x512xf32> to vector<16x512xf32>
    %5 = arith.addf %2, %4 : vector<16x512xf32>
    %cst_5 = arith.constant 0.000000e+00 : f32
    %6 = vector.broadcast %cst_5 : f32 to vector<16x512xf32>
    %7 = arith.maximumf %5, %6 : vector<16x512xf32>
    %8 = arith.truncf %7 : vector<16x512xf32> to vector<16x512xbf16>
    %c0_6 = arith.constant 0 : index
    %c0_7 = arith.constant 0 : index
    %9 = vector.load %arg4[%c0_6, %c0_7] : memref<512x128xbf16, #tpu.memory_space<vmem>>, vector<512x128xbf16>
    %cst_8 = arith.constant dense<0.000000e+00> : vector<16x128xf32>
    %10 = tpu.matmul %8, %9, %cst_8 {dimension_numbers = #tpu.dot_dimension_numbers<[1], [0], [0], [1], [0, 0, 1, 1], [], []>} : vector<16x512xbf16>, vector<512x128xbf16>, vector<16x128xf32> -> vector<16x128xf32>
    %c0_9 = arith.constant 0 : index
    %c0_10 = arith.constant 0 : index
    %11 = vector.load %arg5[%c0_9, %c0_10] : memref<1x128xf32, #tpu.memory_space<vmem>>, vector<1x128xf32>
    %12 = vector.broadcast %11 : vector<1x128xf32> to vector<16x128xf32>
    %13 = arith.addf %10, %12 : vector<16x128xf32>
    %c0_11 = arith.constant 0 : index
    %c0_12 = arith.constant 0 : index
    %14 = vector.load %arg6[%c0_11, %c0_12] : memref<16x128xf32, #tpu.memory_space<vmem>>, vector<16x128xf32>
    tpu.vector_store %arg6[%c0_11, %c0_12], %13 {strides = array<i32>} : memref<16x128xf32, #tpu.memory_space<vmem>>, vector<16x128xf32>,
    return
  }
  func.func @transform_0(%arg0: i32) -> (i32, i32) {
    %c0_i32 = arith.constant 0 : i32
    %c0_i32_0 = arith.constant 0 : i32
    %c0_i32_1 = arith.constant 0 : i32
    return %c0_i32, %c0_i32_0 : i32, i32
  }
  func.func @transform_1(%arg0: i32) -> (i32, i32) {
    %c0_i32 = arith.constant 0 : i32
    %c0_i32_0 = arith.constant 0 : i32
    %c0_i32_1 = arith.constant 0 : i32
    return %c0_i32, %c0_i32_0 : i32, i32
  }
  func.func @transform_2(%arg0: i32) -> (i32, i32) {
    %c0_i32 = arith.constant 0 : i32
    %c0_i32_0 = arith.constant 0 : i32
    %c0_i32_1 = arith.constant 0 : i32
    return %c0_i32, %c0_i32_0 : i32, i32
  }
  func.func @transform_3(%arg0: i32) -> (i32, i32) {
    %c0_i32 = arith.constant 0 : i32
    %c0_i32_0 = arith.constant 0 : i32
    %c0_i32_1 = arith.constant 0 : i32
    return %c0_i32, %c0_i32_0 : i32, i32
  }
  func.func @transform_4(%arg0: i32) -> (i32, i32) {
    %c0_i32 = arith.constant 0 : i32
    %c0_i32_0 = arith.constant 0 : i32
    %c0_i32_1 = arith.constant 0 : i32
    return %c0_i32, %c0_i32_0 : i32, i32
  }
  func.func @transform_5(%arg0: i32) -> (i32, i32) {
    %c0_i32 = arith.constant 0 : i32
    %c0_i32_0 = arith.constant 0 : i32
    %c0_i32_1 = arith.constant 0 : i32
    return %c0_i32, %c0_i32_0 : i32, i32
  }
}

</mosaic_0001>

<llo_original>
// kernel: _forward_dense.6
$region0: #{_forward_dense.6}
  #allocation0 [shape = 'u32[]', space=smem, size = 0x4, offset = 0x4, fixed_abs, tag = 'smem constant byte address 0x4 - core index']
  #allocation1 [shape = 'u32[144,128]{1,0:T(1,128)}', space=vmem, size = 0x12000, scoped, tag = 'internal scratch']
  %s0 = inlined_call_operand.vmem [shape: bf16[288,640], index: 0, kind: input, shape index: {}]
  %s1 = inlined_call_operand.vmem [shape: bf16[640,64], index: 1, kind: input, shape index: {}]
  %s2 = inlined_call_operand.vmem [shape: f32[1,64], index: 2, kind: input, shape index: {}]
  %s3 = inlined_call_operand.vmem [shape: f32[288,64], index: 3, kind: output, shape index: {}]
  %s4 = sld [smem:[#allocation0]]
  $region45: #{_forward_dense.6} parent=0
    _
  %s6 = ssub.s32 1, %s4
  %s7 = scalar_select 0, %s6, %s4
  loop: start=0, step=1, limit=4
  $region2: #{_forward_dense.6} parent=0 // loop_pre_header
    _
  $region3: #{_forward_dense.6} parent=0 // loop_header
    %s9 = sphi 0, %s13
    %p10 = scmp.ge.s32.totalorder %s9, 4
    %s19 = sphi 0, %s21
    %s22 = sphi 0, %s19
    %s23 = sphi 0, %s22
    %s39 = sphi 0, %s23
    %s43 = sphi 0, %s43
    %s45 = sphi 0, %s43
    %s46 = sphi 0, %s45
    %s60 = sphi 0, %s46
    %s64 = sphi 0, %s64
    %s66 = sphi 0, %s64
    %s67 = sphi 0, %s66
    %s81 = sphi 0, %s67
    %s87 = sphi 0, %s89
    %s90 = sphi 0, %s87
    %s91 = sphi 0, %s90
    %s107 = sphi 0, %s91
  $region4: #{_forward_dense.6} parent=0 // loop_header_branch
    %12 = sbr.rel (%p10) target = $region8
  $region5: #{_forward_dense.6} parent=0 // loop_body
    %s14 = ssub.s32 %s9, 1
    %s15 = ssub.s32 %s9, 2
    %s16 = sadd.s32 %s9, 1
    %s17 = ssub.s32 %s9, %s16
    %p18 = scmp.eq.s32.totalorder %s17, 0
    %s20 = sadd.s32 %s19, 1
    %s21 = scalar_select %p18, %s19, %s20
    %p24 = pneg %p18
    %p25 = scmp.eq.s32.totalorder %s9, 1
    %p26 = por %p24, %p25
    %p27 = scmp.ne.s32.totalorder %s19, %s22
    %p28 = scmp.eq.s32.totalorder %s9, 0
    %p29 = por %p27, %p28
    %p30 = scmp.ne.s32.totalorder %s19, %s22
    %p31 = scmp.eq.s32.totalorder %s14, 1
    %p32 = por %p30, %p31
    %p33 = scmp.ne.s32.totalorder %s22, %s23
    %p34 = scmp.eq.s32.totalorder %s14, 0
    %p35 = por %p33, %p34
    %p36 = scmp.ne.s32.totalorder %s22, %s23
    %p37 = scmp.eq.s32.totalorder %s15, 1
    %p38 = por %p36, %p37
    %p40 = scmp.ne.s32.totalorder %s23, %s39
    %p41 = scmp.eq.s32.totalorder %s15, 0
    %p42 = por %p40, %p41
    %s44 = sadd.s32 %s43, 1
    %p47 = scmp.eq.s32.totalorder %s9, 1
    %p48 = scmp.ne.s32.totalorder %s43, %s45
    %p49 = scmp.eq.s32.totalorder %s9, 0
    %p50 = por %p48, %p49
    %p51 = scmp.ne.s32.totalorder %s43, %s45
    %p52 = scmp.eq.s32.totalorder %s14, 1
    %p53 = por %p51, %p52
    %p54 = scmp.ne.s32.totalorder %s45, %s46
    %p55 = scmp.eq.s32.totalorder %s14, 0
    %p56 = por %p54, %p55
    %p57 = scmp.ne.s32.totalorder %s45, %s46
    %p58 = scmp.eq.s32.totalorder %s15, 1
    %p59 = por %p57, %p58
    %p61 = scmp.ne.s32.totalorder %s46, %s60
    %p62 = scmp.eq.s32.totalorder %s15, 0
    %p63 = por %p61, %p62
    %s65 = sadd.s32 %s64, 1
    %p68 = scmp.eq.s32.totalorder %s9, 1
    %p69 = scmp.ne.s32.totalorder %s64, %s66
    %p70 = scmp.eq.s32.totalorder %s9, 0
    %p71 = por %p69, %p70
    %p72 = scmp.ne.s32.totalorder %s64, %s66
    %p73 = scmp.eq.s32.totalorder %s14, 1
    %p74 = por %p72, %p73
    %p75 = scmp.ne.s32.totalorder %s66, %s67
    %p76 = scmp.eq.s32.totalorder %s14, 0
    %p77 = por %p75, %p76
    %p78 = scmp.ne.s32.totalorder %s66, %s67
    %p79 = scmp.eq.s32.totalorder %s15, 1
    %p80 = por %p78, %p79
    %p82 = scmp.ne.s32.totalorder %s67, %s81
    %p83 = scmp.eq.s32.totalorder %s15, 0
    %p84 = por %p82, %p83
    %s85 = ssub.s32 %s9, %s16
    %p86 = scmp.eq.s32.totalorder %s85, 0
    %s88 = sadd.s32 %s87, 1
    %s89 = scalar_select %p86, %s87, %s88
    %p92 = pneg %p86
    %p93 = scmp.eq.s32.totalorder %s9, 1
    %p94 = por %p92, %p93
    %p95 = scmp.ne.s32.totalorder %s87, %s90
    %p96 = scmp.eq.s32.totalorder %s9, 0
    %p97 = por %p95, %p96
    %p98 = scmp.ne.s32.totalorder %s87, %s90
    %p99 = scmp.eq.s32.totalorder %s14, 1
    %p100 = por %p98, %p99
    %p101 = scmp.ne.s32.totalorder %s90, %s91
    %p102 = scmp.eq.s32.totalorder %s14, 0
    %p103 = por %p101, %p102
    %p104 = scmp.ne.s32.totalorder %s90, %s91
    %p105 = scmp.eq.s32.totalorder %s15, 1
    %p106 = por %p104, %p105
    %p108 = scmp.ne.s32.totalorder %s91, %s107
    %p109 = scmp.eq.s32.totalorder %s15, 0
    %p110 = por %p108, %p109
    %p111 = scmp.le.s32.totalorder 1, %s9
    %p112 = scmp.lt.s32.totalorder %s9, 3
    %p113 = pnand %p111, %p112
    %p114 = pneg %p113
    // Predicated region
    $region9: #{_forward_dense.6} parent=5 // pred_check
      _
    $region10: #{_forward_dense.6} parent=5 // pred_check_branch
      %116 = sbr.rel (%p113) target = $region12
    $region11: #{_forward_dense.6} parent=5 // pred_region
      %s117 = ssub.s32 %s9, 1
      // Predicated region
      $region13: #{_forward_dense.6} parent=11 // pred_check
        %p118 = pneg %p56
      $region14: #{_forward_dense.6} parent=11 // pred_check_branch
        %120 = sbr.rel (%p118) target = $region16
      $region15: #{_forward_dense.6} parent=11 // pred_region
        _
      $region16: #{_forward_dense.6} parent=11 // pred_fallthru
        _
      // Predicated region
      $region17: #{_forward_dense.6} parent=11 // pred_check
        %p121 = pneg %p77
      $region18: #{_forward_dense.6} parent=11 // pred_check_branch
        %123 = sbr.rel (%p121) target = $region20
      $region19: #{_forward_dense.6} parent=11 // pred_region
        _
      $region20: #{_forward_dense.6} parent=11 // pred_fallthru
        _
    $region12: #{_forward_dense.6} parent=5 // pred_fallthru
      _
    %p124 = scmp.lt.s32.totalorder %s9, 2
    // Predicated region
    $region21: #{_forward_dense.6} parent=5 // pred_check
      %p125 = pneg %p124
    $region22: #{_forward_dense.6} parent=5 // pred_check_branch
      %127 = sbr.rel (%p125) target = $region24
    $region23: #{_forward_dense.6} parent=5 // pred_region
      // Predicated region
      $region25: #{_forward_dense.6} parent=23 // pred_check
        %p128 = pneg %p29
      $region26: #{_forward_dense.6} parent=23 // pred_check_branch
        %130 = sbr.rel (%p128) target = $region28
      $region27: #{_forward_dense.6} parent=23 // pred_region
        %s131 = smul.u32 18, %s9
        %p132 = scmp.lt.s32.totalorder %s131, 35
        %s133 = scalar_select %p132, %s131, 35
        %s134 = smul.addr %s133, 5
        %s135 = smul.addr %s134, 4
        %s136 = scalar_lea.vmem %s0, %s135
        %s137 = smul.u32 18, %s9
      $region28: #{_forward_dense.6} parent=23 // pred_fallthru
        _
    $region24: #{_forward_dense.6} parent=5 // pred_fallthru
      _
    %p138 = scmp.le.s32.totalorder 1, %s9
    %p139 = scmp.lt.s32.totalorder %s9, 3
    %p140 = pnand %p138, %p139
    %p141 = pneg %p140
    // Predicated region
    $region29: #{_forward_dense.6} parent=5 // pred_check
      _
    $region30: #{_forward_dense.6} parent=5 // pred_check_branch
      %143 = sbr.rel (%p140) target = $region32
    $region31: #{_forward_dense.6} parent=5 // pred_region
      %s144 = ssub.s32 %s9, 1
      %s145 = smul.u32 18, %s14
      %p146 = scmp.lt.s32.totalorder %s145, 35
      %s147 = scalar_select %p146, %s145, 35
      %s148 = smul.addr %s147, 5
      %s149 = smul.addr %s148, 4
      %s150 = scalar_lea.vmem %s0, %s149
      %p151 = pneg %p35
      %p152 = pneg %p32
      %p153 = pneg %p56
      %p154 = pneg %p53
      %p155 = pneg %p77
      %p156 = pneg %p74
      %p157 = pneg %p103
      %p158 = pneg %p100
      %s159 = smul.u32 18, %s14
      %p160 = scmp.lt.s32.totalorder %s159, 35
      %s161 = scalar_select %p160, %s159, 35
      %s162 = smul.addr %s161, 8
      %s163 = scalar_lea.vmem %s3, %s162
      %s164 = smul.u32 18, %s14
      %p165 = scmp.lt.s32.totalorder %s164, 35
      %s166 = scalar_select %p165, %s164, 35
      %s167 = smul.addr %s166, 5
      %s168 = smul.addr %s167, 4
      %s169 = scalar_lea.vmem %s0, %s168
      %s170 = smul.u32 18, %s14
      %s171 = smul.u32 18, %s14
      %p172 = scmp.lt.s32.totalorder %s171, 35
      %s173 = scalar_select %p172, %s171, 35
      %s174 = smul.addr %s173, 8
      %s175 = scalar_lea.vmem %s3, %s174
      %s176 = smul.u32 18, %s14
      %v178 = vld [vmem:[%s169] sm:$0xff]
      %v179 = vld [vmem:[%s169 + $0x8] sm:$0xff]
      %v180 = vld [vmem:[%s169 + $0x10] sm:$0xf]
      %v181 = vld [vmem:[%s169 + $0x14] sm:$0xff]
      %v182 = vld [vmem:[%s169 + $0x1c] sm:$0xff]
      %v183 = vld [vmem:[%s169 + $0x24] sm:$0xf]
      %v184 = vld [vmem:[%s169 + $0x28] sm:$0xff]
      %v185 = vld [vmem:[%s169 + $0x30] sm:$0xff]
      %v186 = vld [vmem:[%s169 + $0x38] sm:$0xf]
      %v187 = vld [vmem:[%s169 + $0x3c] sm:$0xff]
      %v188 = vld [vmem:[%s169 + $0x44] sm:$0xff]
      %v189 = vld [vmem:[%s169 + $0x4c] sm:$0xf]
      %v190 = vld [vmem:[%s169 + $0x50] sm:$0xff]
      %v191 = vld [vmem:[%s169 + $0x58] sm:$0xff]
      %v192 = vld [vmem:[%s169 + $0x60] sm:$0xf]
      %v193 = vld [vmem:[%s169 + $0x64] sm:$0xff]
      %v194 = vld [vmem:[%s169 + $0x6c] sm:$0xff]
      %v195 = vld [vmem:[%s169 + $0x74] sm:$0xf]
      %v196 = vld [vmem:[%s169 + $0x78] sm:$0xff]
      %v197 = vld [vmem:[%s169 + $0x80] sm:$0xff]
      %v198 = vld [vmem:[%s169 + $0x88] sm:$0xf]
      %v199 = vld [vmem:[%s169 + $0x8c] sm:$0xff]
      %v200 = vld [vmem:[%s169 + $0x94] sm:$0xff]
      %v201 = vld [vmem:[%s169 + $0x9c] sm:$0xf]
      %v202 = vld [vmem:[%s169 + $0xa0] sm:$0xff]
      %v203 = vld [vmem:[%s169 + $0xa8] sm:$0xff]
      %v204 = vld [vmem:[%s169 + $0xb0] sm:$0xf]
      %v205 = vld [vmem:[%s169 + $0xb4] sm:$0xff]
      %v206 = vld [vmem:[%s169 + $0xbc] sm:$0xff]
      %v207 = vld [vmem:[%s169 + $0xc4] sm:$0xf]
      %v208 = vld [vmem:[%s169 + $0xc8] sm:$0xff]
      %v209 = vld [vmem:[%s169 + $0xd0] sm:$0xff]
      %v210 = vld [vmem:[%s169 + $0xd8] sm:$0xf]
      %v211 = vld [vmem:[%s169 + $0xdc] sm:$0xff]
      %v212 = vld [vmem:[%s169 + $0xe4] sm:$0xff]
      %v213 = vld [vmem:[%s169 + $0xec] sm:$0xf]
      %v214 = vld [vmem:[%s169 + $0xf0] sm:$0xff]
      %v215 = vld [vmem:[%s169 + $0xf8] sm:$0xff]
      %v216 = vld [vmem:[%s169 + $0x100] sm:$0xf]
      %v217 = vld [vmem:[%s169 + $0x104] sm:$0xff]
      %v218 = vld [vmem:[%s169 + $0x10c] sm:$0xff]
      %v219 = vld [vmem:[%s169 + $0x114] sm:$0xf]
      %v220 = vld [vmem:[%s169 + $0x118] sm:$0xff]
      %v221 = vld [vmem:[%s169 + $0x120] sm:$0xff]
      %v222 = vld [vmem:[%s169 + $0x128] sm:$0xf]
      %v223 = vld [vmem:[%s169 + $0x12c] sm:$0xff]
      %v224 = vld [vmem:[%s169 + $0x134] sm:$0xff]
      %v225 = vld [vmem:[%s169 + $0x13c] sm:$0xf]
      %v226 = vld [vmem:[%s169 + $0x140] sm:$0xff]
      %v227 = vld [vmem:[%s169 + $0x148] sm:$0xff]
      %v228 = vld [vmem:[%s169 + $0x150] sm:$0xf]
      %v229 = vld [vmem:[%s169 + $0x154] sm:$0xff]
      %v230 = vld [vmem:[%s169 + $0x15c] sm:$0xff]
      %v231 = vld [vmem:[%s169 + $0x164] sm:$0xf]
      %v232 = vld [vmem:[%s1] sm:$0xf]
      %v233 = vld [vmem:[%s1 + $0x4] sm:$0xf]
      %v234 = vld [vmem:[%s1 + $0x8] sm:$0xf]
      %v235 = vld [vmem:[%s1 + $0xc] sm:$0xf]
      %v236 = vld [vmem:[%s1 + $0x10] sm:$0xf]
      %v237 = vld [vmem:[%s1 + $0x14] sm:$0xf]
      %v238 = vld [vmem:[%s1 + $0x18] sm:$0xf]
      %v239 = vld [vmem:[%s1 + $0x1c] sm:$0xf]
      %v240 = vld [vmem:[%s1 + $0x20] sm:$0xf]
      %v241 = vld [vmem:[%s1 + $0x24] sm:$0xf]
      %v242 = vld [vmem:[%s1 + $0x28] sm:$0xf]
      %v243 = vld [vmem:[%s1 + $0x2c] sm:$0xf]
      %v244 = vld [vmem:[%s1 + $0x30] sm:$0xf]
      %v245 = vld [vmem:[%s1 + $0x34] sm:$0xf]
      %v246 = vld [vmem:[%s1 + $0x38] sm:$0xf]
      %v247 = vld [vmem:[%s1 + $0x3c] sm:$0xf]
      %v248 = vld [vmem:[%s1 + $0x40] sm:$0xf]
      %v249 = vld [vmem:[%s1 + $0x44] sm:$0xf]
      %v250 = vld [vmem:[%s1 + $0x48] sm:$0xf]
      %v251 = vld [vmem:[%s1 + $0x4c] sm:$0xf]
      %v252 = vld [vmem:[%s1 + $0x50] sm:$0xf]
      %v253 = vld [vmem:[%s1 + $0x54] sm:$0xf]
      %v254 = vld [vmem:[%s1 + $0x58] sm:$0xf]
      %v255 = vld [vmem:[%s1 + $0x5c] sm:$0xf]
      %v256 = vld [vmem:[%s1 + $0x60] sm:$0xf]
      %v257 = vld [vmem:[%s1 + $0x64] sm:$0xf]
      %v258 = vld [vmem:[%s1 + $0x68] sm:$0xf]
      %v259 = vld [vmem:[%s1 + $0x6c] sm:$0xf]
      %v260 = vld [vmem:[%s1 + $0x70] sm:$0xf]
      %v261 = vld [vmem:[%s1 + $0x74] sm:$0xf]
      %v262 = vld [vmem:[%s1 + $0x78] sm:$0xf]
      %v263 = vld [vmem:[%s1 + $0x7c] sm:$0xf]
      %v264 = vld [vmem:[%s1 + $0x80] sm:$0xf]
      %v265 = vld [vmem:[%s1 + $0x84] sm:$0xf]
      %v266 = vld [vmem:[%s1 + $0x88] sm:$0xf]
      %v267 = vld [vmem:[%s1 + $0x8c] sm:$0xf]
      %v268 = vld [vmem:[%s1 + $0x90] sm:$0xf]
      %v269 = vld [vmem:[%s1 + $0x94] sm:$0xf]
      %v270 = vld [vmem:[%s1 + $0x98] sm:$0xf]
      %v271 = vld [vmem:[%s1 + $0x9c] sm:$0xf]
      %v272 = vld [vmem:[%s1 + $0xa0] sm:$0xf]
      %v273 = vld [vmem:[%s1 + $0xa4] sm:$0xf]
      %v274 = vld [vmem:[%s1 + $0xa8] sm:$0xf]
      %v275 = vld [vmem:[%s1 + $0xac] sm:$0xf]
      %v276 = vld [vmem:[%s1 + $0xb0] sm:$0xf]
      %v277 = vld [vmem:[%s1 + $0xb4] sm:$0xf]
      %v278 = vld [vmem:[%s1 + $0xb8] sm:$0xf]
      %v279 = vld [vmem:[%s1 + $0xbc] sm:$0xf]
      %v280 = vld [vmem:[%s1 + $0xc0] sm:$0xf]
      %v281 = vld [vmem:[%s1 + $0xc4] sm:$0xf]
      %v282 = vld [vmem:[%s1 + $0xc8] sm:$0xf]
      %v283 = vld [vmem:[%s1 + $0xcc] sm:$0xf]
      %v284 = vld [vmem:[%s1 + $0xd0] sm:$0xf]
      %v285 = vld [vmem:[%s1 + $0xd4] sm:$0xf]
      %v286 = vld [vmem:[%s1 + $0xd8] sm:$0xf]
      %v287 = vld [vmem:[%s1 + $0xdc] sm:$0xf]
      %v288 = vld [vmem:[%s1 + $0xe0] sm:$0xf]
      %v289 = vld [vmem:[%s1 + $0xe4] sm:$0xf]
      %v290 = vld [vmem:[%s1 + $0xe8] sm:$0xf]
      %v291 = vld [vmem:[%s1 + $0xec] sm:$0xf]
      %v292 = vld [vmem:[%s1 + $0xf0] sm:$0xf]
      %v293 = vld [vmem:[%s1 + $0xf4] sm:$0xf]
      %v294 = vld [vmem:[%s1 + $0xf8] sm:$0xf]
      %v295 = vld [vmem:[%s1 + $0xfc] sm:$0xf]
      %v296 = vld [vmem:[%s1 + $0x100] sm:$0xf]
      %v297 = vld [vmem:[%s1 + $0x104] sm:$0xf]
      %v298 = vld [vmem:[%s1 + $0x108] sm:$0xf]
      %v299 = vld [vmem:[%s1 + $0x10c] sm:$0xf]
      %v300 = vld [vmem:[%s1 + $0x110] sm:$0xf]
      %v301 = vld [vmem:[%s1 + $0x114] sm:$0xf]
      %v302 = vld [vmem:[%s1 + $0x118] sm:$0xf]
      %v303 = vld [vmem:[%s1 + $0x11c] sm:$0xf]
      %v304 = vld [vmem:[%s1 + $0x120] sm:$0xf]
      %v305 = vld [vmem:[%s1 + $0x124] sm:$0xf]
      %v306 = vld [vmem:[%s1 + $0x128] sm:$0xf]
      %v307 = vld [vmem:[%s1 + $0x12c] sm:$0xf]
      %v308 = vld [vmem:[%s1 + $0x130] sm:$0xf]
      %v309 = vld [vmem:[%s1 + $0x134] sm:$0xf]
      %v310 = vld [vmem:[%s1 + $0x138] sm:$0xf]
      %v311 = vld [vmem:[%s1 + $0x13c] sm:$0xf]
      %v312 = vld [vmem:[%s2] sm:$0x1]
      %v314 = vlaneseq
      %v315 = vshrl.u32 %v314, 7
      %v316 = vsub.s32 0, %v315
      %v317 = vrot.slane %v312, %v316
      %v373 = vunpack.c.l.b16 %v178
      %v374 = vunpack.c.h.b16 %v178
      %v375 = vunpack.c.l.b16 %v179
      %v376 = vunpack.c.h.b16 %v179
      %v377 = vunpack.c.l.b16 %v180
      %v378 = vunpack.c.l.b16 %v181
      %v379 = vunpack.c.h.b16 %v181
      %v380 = vunpack.c.l.b16 %v182
      %v381 = vunpack.c.h.b16 %v182
      %v382 = vunpack.c.l.b16 %v183
      %v383 = vunpack.c.l.b16 %v184
      %v384 = vunpack.c.h.b16 %v184
      %v385 = vunpack.c.l.b16 %v185
      %v386 = vunpack.c.h.b16 %v185
      %v387 = vunpack.c.l.b16 %v186
      %v388 = vunpack.c.l.b16 %v187
      %v389 = vunpack.c.h.b16 %v187
      %v390 = vunpack.c.l.b16 %v188
      %v391 = vunpack.c.h.b16 %v188
      %v392 = vunpack.c.l.b16 %v189
      %v393 = vunpack.c.l.b16 %v190
      %v394 = vunpack.c.h.b16 %v190
      %v395 = vunpack.c.l.b16 %v191
      %v396 = vunpack.c.h.b16 %v191
      %v397 = vunpack.c.l.b16 %v192
      %v398 = vunpack.c.l.b16 %v193
      %v399 = vunpack.c.h.b16 %v193
      %v400 = vunpack.c.l.b16 %v194
      %v401 = vunpack.c.h.b16 %v194
      %v402 = vunpack.c.l.b16 %v195
      %v403 = vunpack.c.l.b16 %v196
      %v404 = vunpack.c.h.b16 %v196
      %v405 = vunpack.c.l.b16 %v197
      %v406 = vunpack.c.h.b16 %v197
      %v407 = vunpack.c.l.b16 %v198
      %v408 = vunpack.c.l.b16 %v199
      %v409 = vunpack.c.h.b16 %v199
      %v410 = vunpack.c.l.b16 %v200
      %v411 = vunpack.c.h.b16 %v200
      %v412 = vunpack.c.l.b16 %v201
      %v413 = vunpack.c.l.b16 %v202
      %v414 = vunpack.c.h.b16 %v202
      %v415 = vunpack.c.l.b16 %v203
      %v416 = vunpack.c.h.b16 %v203
      %v417 = vunpack.c.l.b16 %v204
      %v418 = vunpack.c.l.b16 %v205
      %v419 = vunpack.c.h.b16 %v205
      %v420 = vunpack.c.l.b16 %v206
      %v421 = vunpack.c.h.b16 %v206
      %v422 = vunpack.c.l.b16 %v207
      %v423 = vunpack.c.l.b16 %v208
      %v424 = vunpack.c.h.b16 %v208
      %v425 = vunpack.c.l.b16 %v209
      %v426 = vunpack.c.h.b16 %v209
      %v427 = vunpack.c.l.b16 %v210
      %v428 = vunpack.c.l.b16 %v211
      %v429 = vunpack.c.h.b16 %v211
      %v430 = vunpack.c.l.b16 %v212
      %v431 = vunpack.c.h.b16 %v212
      %v432 = vunpack.c.l.b16 %v213
      %v433 = vunpack.c.l.b16 %v214
      %v434 = vunpack.c.h.b16 %v214
      %v435 = vunpack.c.l.b16 %v215
      %v436 = vunpack.c.h.b16 %v215
      %v437 = vunpack.c.l.b16 %v216
      %v438 = vunpack.c.l.b16 %v217
      %v439 = vunpack.c.h.b16 %v217
      %v440 = vunpack.c.l.b16 %v218
      %v441 = vunpack.c.h.b16 %v218
      %v442 = vunpack.c.l.b16 %v219
      %v443 = vunpack.c.l.b16 %v220
      %v444 = vunpack.c.h.b16 %v220
      %v445 = vunpack.c.l.b16 %v221
      %v446 = vunpack.c.h.b16 %v221
      %v447 = vunpack.c.l.b16 %v222
      %v448 = vunpack.c.l.b16 %v223
      %v449 = vunpack.c.h.b16 %v223
      %v450 = vunpack.c.l.b16 %v224
      %v451 = vunpack.c.h.b16 %v224
      %v452 = vunpack.c.l.b16 %v225
      %v453 = vunpack.c.l.b16 %v226
      %v454 = vunpack.c.h.b16 %v226
      %v455 = vunpack.c.l.b16 %v227
      %v456 = vunpack.c.h.b16 %v227
      %v457 = vunpack.c.l.b16 %v228
      %v458 = vunpack.c.l.b16 %v229
      %v459 = vunpack.c.h.b16 %v229
      %v460 = vunpack.c.l.b16 %v230
      %v461 = vunpack.c.h.b16 %v230
      %v462 = vunpack.c.l.b16 %v231
      %v463 = vpack.c.b16 %v378, %v373
      %v464 = vpack.c.b16 %v379, %v374
      %v465 = vpack.c.b16 %v380, %v375
      %v466 = vpack.c.b16 %v381, %v376
      %v467 = vpack.c.b16 %v382, %v377
      %v468 = vpack.c.b16 %v388, %v383
      %v469 = vpack.c.b16 %v389, %v384
      %v470 = vpack.c.b16 %v390, %v385
      %v471 = vpack.c.b16 %v391, %v386
      %v472 = vpack.c.b16 %v392, %v387
      %v473 = vpack.c.b16 %v398, %v393
      %v474 = vpack.c.b16 %v399, %v394
      %v475 = vpack.c.b16 %v400, %v395
      %v476 = vpack.c.b16 %v401, %v396
      %v477 = vpack.c.b16 %v402, %v397
      %v478 = vpack.c.b16 %v408, %v403
      %v479 = vpack.c.b16 %v409, %v404
      %v480 = vpack.c.b16 %v410, %v405
      %v481 = vpack.c.b16 %v411, %v406
      %v482 = vpack.c.b16 %v412, %v407
      %v483 = vpack.c.b16 %v418, %v413
      %v484 = vpack.c.b16 %v419, %v414
      %v485 = vpack.c.b16 %v420, %v415
      %v486 = vpack.c.b16 %v421, %v416
      %v487 = vpack.c.b16 %v422, %v417
      %v488 = vpack.c.b16 %v428, %v423
      %v489 = vpack.c.b16 %v429, %v424
      %v490 = vpack.c.b16 %v430, %v425
      %v491 = vpack.c.b16 %v431, %v426
      %v492 = vpack.c.b16 %v432, %v427
      %v493 = vpack.c.b16 %v438, %v433
      %v494 = vpack.c.b16 %v439, %v434
      %v495 = vpack.c.b16 %v440, %v435
      %v496 = vpack.c.b16 %v441, %v436
      %v497 = vpack.c.b16 %v442, %v437
      %v498 = vpack.c.b16 %v448, %v443
      %v499 = vpack.c.b16 %v449, %v444
      %v500 = vpack.c.b16 %v450, %v445
      %v501 = vpack.c.b16 %v451, %v446
      %v502 = vpack.c.b16 %v452, %v447
      %v503 = vpack.c.b16 %v458, %v453
      %v504 = vpack.c.b16 %v459, %v454
      %v505 = vpack.c.b16 %v460, %v455
      %v506 = vpack.c.b16 %v461, %v456
      %v507 = vpack.c.b16 %v462, %v457
      %v633 = vunpack.c.l.b16 %v232
      %v634 = vunpack.c.l.b16 %v233
      %v635 = vunpack.c.l.b16 %v234
      %v636 = vunpack.c.l.b16 %v235
      %v637 = vunpack.c.l.b16 %v236
      %v638 = vunpack.c.l.b16 %v237
      %v639 = vunpack.c.l.b16 %v238
      %v640 = vunpack.c.l.b16 %v239
      %v641 = vunpack.c.l.b16 %v240
      %v642 = vunpack.c.l.b16 %v241
      %v643 = vunpack.c.l.b16 %v242
      %v644 = vunpack.c.l.b16 %v243
      %v645 = vunpack.c.l.b16 %v244
      %v646 = vunpack.c.l.b16 %v245
      %v647 = vunpack.c.l.b16 %v246
      %v648 = vunpack.c.l.b16 %v247
      %v649 = vunpack.c.l.b16 %v248
      %v650 = vunpack.c.l.b16 %v249
      %v651 = vunpack.c.l.b16 %v250
      %v652 = vunpack.c.l.b16 %v251
      %v653 = vunpack.c.l.b16 %v252
      %v654 = vunpack.c.l.b16 %v253
      %v655 = vunpack.c.l.b16 %v254
      %v656 = vunpack.c.l.b16 %v255
      %v657 = vunpack.c.l.b16 %v256
      %v658 = vunpack.c.l.b16 %v257
      %v659 = vunpack.c.l.b16 %v258
      %v660 = vunpack.c.l.b16 %v259
      %v661 = vunpack.c.l.b16 %v260
      %v662 = vunpack.c.l.b16 %v261
      %v663 = vunpack.c.l.b16 %v262
      %v664 = vunpack.c.l.b16 %v263
      %v665 = vunpack.c.l.b16 %v264
      %v666 = vunpack.c.l.b16 %v265
      %v667 = vunpack.c.l.b16 %v266
      %v668 = vunpack.c.l.b16 %v267
      %v669 = vunpack.c.l.b16 %v268
      %v670 = vunpack.c.l.b16 %v269
      %v671 = vunpack.c.l.b16 %v270
      %v672 = vunpack.c.l.b16 %v271
      %v673 = vunpack.c.l.b16 %v272
      %v674 = vunpack.c.l.b16 %v273
      %v675 = vunpack.c.l.b16 %v274
      %v676 = vunpack.c.l.b16 %v275
      %v677 = vunpack.c.l.b16 %v276
      %v678 = vunpack.c.l.b16 %v277
      %v679 = vunpack.c.l.b16 %v278
      %v680 = vunpack.c.l.b16 %v279
      %v681 = vunpack.c.l.b16 %v280
      %v682 = vunpack.c.l.b16 %v281
      %v683 = vunpack.c.l.b16 %v282
      %v684 = vunpack.c.l.b16 %v283
      %v685 = vunpack.c.l.b16 %v284
      %v686 = vunpack.c.l.b16 %v285
      %v687 = vunpack.c.l.b16 %v286
      %v688 = vunpack.c.l.b16 %v287
      %v689 = vunpack.c.l.b16 %v288
      %v690 = vunpack.c.l.b16 %v289
      %v691 = vunpack.c.l.b16 %v290
      %v692 = vunpack.c.l.b16 %v291
      %v693 = vunpack.c.l.b16 %v292
      %v694 = vunpack.c.l.b16 %v293
      %v695 = vunpack.c.l.b16 %v294
      %v696 = vunpack.c.l.b16 %v295
      %v697 = vunpack.c.l.b16 %v296
      %v698 = vunpack.c.l.b16 %v297
      %v699 = vunpack.c.l.b16 %v298
      %v700 = vunpack.c.l.b16 %v299
      %v701 = vunpack.c.l.b16 %v300
      %v702 = vunpack.c.l.b16 %v301
      %v703 = vunpack.c.l.b16 %v302
      %v704 = vunpack.c.l.b16 %v303
      %v705 = vunpack.c.l.b16 %v304
      %v706 = vunpack.c.l.b16 %v305
      %v707 = vunpack.c.l.b16 %v306
      %v708 = vunpack.c.l.b16 %v307
      %v709 = vunpack.c.l.b16 %v308
      %v710 = vunpack.c.l.b16 %v309
      %v711 = vunpack.c.l.b16 %v310
      %v712 = vunpack.c.l.b16 %v311
      %v713 = vpack.c.b16 %v634, %v633
      %v714 = vpack.c.b16 %v636, %v635
      %v715 = vpack.c.b16 %v638, %v637
      %v716 = vpack.c.b16 %v640, %v639
      %v717 = vpack.c.b16 %v642, %v641
      %v718 = vpack.c.b16 %v644, %v643
      %v719 = vpack.c.b16 %v646, %v645
      %v720 = vpack.c.b16 %v648, %v647
      %v721 = vpack.c.b16 %v650, %v649
      %v722 = vpack.c.b16 %v652, %v651
      %v723 = vpack.c.b16 %v654, %v653
      %v724 = vpack.c.b16 %v656, %v655
      %v725 = vpack.c.b16 %v658, %v657
      %v726 = vpack.c.b16 %v660, %v659
      %v727 = vpack.c.b16 %v662, %v661
      %v728 = vpack.c.b16 %v664, %v663
      %v729 = vpack.c.b16 %v666, %v665
      %v730 = vpack.c.b16 %v668, %v667
      %v731 = vpack.c.b16 %v670, %v669
      %v732 = vpack.c.b16 %v672, %v671
      %v733 = vpack.c.b16 %v674, %v673
      %v734 = vpack.c.b16 %v676, %v675
      %v735 = vpack.c.b16 %v678, %v677
      %v736 = vpack.c.b16 %v680, %v679
      %v737 = vpack.c.b16 %v682, %v681
      %v738 = vpack.c.b16 %v684, %v683
      %v739 = vpack.c.b16 %v686, %v685
      %v740 = vpack.c.b16 %v688, %v687
      %v741 = vpack.c.b16 %v690, %v689
      %v742 = vpack.c.b16 %v692, %v691
      %v743 = vpack.c.b16 %v694, %v693
      %v744 = vpack.c.b16 %v696, %v695
      %v745 = vpack.c.b16 %v698, %v697
      %v746 = vpack.c.b16 %v700, %v699
      %v747 = vpack.c.b16 %v702, %v701
      %v748 = vpack.c.b16 %v704, %v703
      %v749 = vpack.c.b16 %v706, %v705
      %v750 = vpack.c.b16 %v708, %v707
      %v751 = vpack.c.b16 %v710, %v709
      %v752 = vpack.c.b16 %v712, %v711
      %793 = vmatprep.subr.bf16.mxu0 0
      %794 = vmatpush1.bf16.msra.mxu0 %v713
      %795 = vmatprep.subr.bf16.mxu0 0
      %796 = vmatpush1.bf16.msra.mxu0 %v714
      %797 = vmatprep.subr.bf16.mxu0 0
      %798 = vmatpush1.bf16.msra.mxu0 %v715
      %799 = vmatprep.subr.bf16.mxu0 0
      %800 = vmatpush1.bf16.msra.mxu0 %v716
      %801 = vmatprep.subr.bf16.mxu0 0
      %802 = vmatpush1.bf16.msra.mxu0 %v717
      %803 = vmatprep.subr.bf16.mxu0 0
      %804 = vmatpush1.bf16.msra.mxu0 %v718
      %805 = vmatprep.subr.bf16.mxu0 0
      %806 = vmatpush1.bf16.msra.mxu0 %v719
      %807 = vmatprep.subr.bf16.mxu0 0
      %808 = vmatpush1.bf16.msra.mxu0 %v720
      %809 = vmatprep.subr.bf16.mxu0 0
      %810 = vmatpush1.bf16.msra.mxu0 %v721
      %811 = vmatprep.subr.bf16.mxu0 0
      %812 = vmatpush1.bf16.msra.mxu0 %v722
      %813 = vmatprep.subr.bf16.mxu0 0
      %814 = vmatpush1.bf16.msra.mxu0 %v723
      %815 = vmatprep.subr.bf16.mxu0 0
      %816 = vmatpush1.bf16.msra.mxu0 %v724
      %817 = vmatprep.subr.bf16.mxu0 0
      %818 = vmatpush1.bf16.msra.mxu0 %v725
      %819 = vmatprep.subr.bf16.mxu0 0
      %820 = vmatpush1.bf16.msra.mxu0 %v726
      %821 = vmatprep.subr.bf16.mxu0 0
      %822 = vmatpush1.bf16.msra.mxu0 %v727
      %823 = vmatprep.subr.bf16.mxu0 0
      %824 = vmatpush1.bf16.msra.mxu0 %v728
      %825 = vmatprep.mubr.bf16.mxu0 %v464
      %826 = vmatmul.mubr.bf16.gmra.mrb[0].mxu0 %v463
      %v827 = vpop.f32.mrb[0].mxu0
      %v828 = vadd.f32 %v317, %v827
      %v829 = vpop.f32.mrb[0].mxu0
      %v830 = vpop.f32.mrb[0].mxu0
      %v831 = vadd.f32 %v317, %v830
      %v832 = vpop.f32.mrb[0].mxu0
      %833 = vmatprep.mubr.bf16.mxu0 %v469
      %834 = vmatmul.mubr.bf16.gmra.mrb[0].mxu0 %v468
      %v835 = vpop.f32.mrb[0].mxu0
      %v836 = vadd.f32 %v317, %v835
      %v837 = vpop.f32.mrb[0].mxu0
      %v838 = vpop.f32.mrb[0].mxu0
      %v839 = vadd.f32 %v317, %v838
      %v840 = vpop.f32.mrb[0].mxu0
      %841 = vmatprep.mubr.bf16.mxu0 %v474
      %842 = vmatmul.mubr.bf16.gmra.mrb[0].mxu0 %v473
      %v843 = vpop.f32.mrb[0].mxu0
      %v844 = vadd.f32 %v317, %v843
      %v845 = vpop.f32.mrb[0].mxu0
      %v846 = vpop.f32.mrb[0].mxu0
      %v847 = vadd.f32 %v317, %v846
      %v848 = vpop.f32.mrb[0].mxu0
      %849 = vmatprep.mubr.bf16.mxu0 %v479
      %850 = vmatmul.mubr.bf16.gmra.mrb[0].mxu0 %v478
      %v851 = vpop.f32.mrb[0].mxu0
      %v852 = vadd.f32 %v317, %v851
      %v853 = vpop.f32.mrb[0].mxu0
      %v854 = vpop.f32.mrb[0].mxu0
      %v855 = vadd.f32 %v317, %v854
      %v856 = vpop.f32.mrb[0].mxu0
      %857 = vmatprep.mubr.bf16.mxu0 %v484
      %858 = vmatmul.mubr.bf16.gmra.mrb[0].mxu0 %v483
      %v859 = vpop.f32.mrb[0].mxu0
      %v860 = vadd.f32 %v317, %v859
      %v861 = vpop.f32.mrb[0].mxu0
      %v862 = vpop.f32.mrb[0].mxu0
      %v863 = vadd.f32 %v317, %v862
      %v864 = vpop.f32.mrb[0].mxu0
      %865 = vmatprep.mubr.bf16.mxu0 %v489
      %866 = vmatmul.mubr.bf16.gmra.mrb[0].mxu0 %v488
      %v867 = vpop.f32.mrb[0].mxu0
      %v868 = vadd.f32 %v317, %v867
      %v869 = vpop.f32.mrb[0].mxu0
      %v870 = vpop.f32.mrb[0].mxu0
      %v871 = vadd.f32 %v317, %v870
      %v872 = vpop.f32.mrb[0].mxu0
      %873 = vmatprep.mubr.bf16.mxu0 %v494
      %874 = vmatmul.mubr.bf16.gmra.mrb[0].mxu0 %v493
      %v875 = vpop.f32.mrb[0].mxu0
      %v876 = vadd.f32 %v317, %v875
      %v877 = vpop.f32.mrb[0].mxu0
      %v878 = vpop.f32.mrb[0].mxu0
      %v879 = vadd.f32 %v317, %v878
      %v880 = vpop.f32.mrb[0].mxu0
      %881 = vmatprep.mubr.bf16.mxu0 %v499
      %882 = vmatmul.mubr.bf16.gmra.mrb[0].mxu0 %v498
      %v883 = vpop.f32.mrb[0].mxu0
      %v884 = vadd.f32 %v317, %v883
      %v885 = vpop.f32.mrb[0].mxu0
      %v886 = vpop.f32.mrb[0].mxu0
      %v887 = vadd.f32 %v317, %v886
      %v888 = vpop.f32.mrb[0].mxu0
      %889 = vmatprep.mubr.bf16.mxu0 %v504
      %890 = vmatmul.mubr.bf16.gmra.mrb[0].mxu0 %v503
      %v891 = vpop.f32.mrb[0].mxu0
      %v892 = vadd.f32 %v317, %v891
      %v893 = vpop.f32.mrb[0].mxu0
      %v894 = vpop.f32.mrb[0].mxu0
      %v895 = vadd.f32 %v317, %v894
      %v896 = vpop.f32.mrb[0].mxu0
      %897 = vdwg.mxu0
      %898 = vmatprep.subr.bf16.mxu0 0
      %899 = vmatpush1.bf16.msra.mxu0 %v729
      %900 = vmatprep.subr.bf16.mxu0 0
      %901 = vmatpush1.bf16.msra.mxu0 %v730
      %902 = vmatprep.subr.bf16.mxu0 0
      %903 = vmatpush1.bf16.msra.mxu0 %v731
      %904 = vmatprep.subr.bf16.mxu0 0
      %905 = vmatpush1.bf16.msra.mxu0 %v732
      %906 = vmatprep.subr.bf16.mxu0 0
      %907 = vmatpush1.bf16.msra.mxu0 %v733
      %908 = vmatprep.subr.bf16.mxu0 0
      %909 = vmatpush1.bf16.msra.mxu0 %v734
      %910 = vmatprep.subr.bf16.mxu0 0
      %911 = vmatpush1.bf16.msra.mxu0 %v735
      %912 = vmatprep.subr.bf16.mxu0 0
      %913 = vmatpush1.bf16.msra.mxu0 %v736
      %914 = vmatprep.subr.bf16.mxu0 0
      %915 = vmatpush1.bf16.msra.mxu0 %v737
      %916 = vmatprep.subr.bf16.mxu0 0
      %917 = vmatpush1.bf16.msra.mxu0 %v738
      %918 = vmatprep.subr.bf16.mxu0 0
      %919 = vmatpush1.bf16.msra.mxu0 %v739
      %920 = vmatprep.subr.bf16.mxu0 0
      %921 = vmatpush1.bf16.msra.mxu0 %v740
      %922 = vmatprep.subr.bf16.mxu0 0
      %923 = vmatpush1.bf16.msra.mxu0 %v741
      %924 = vmatprep.subr.bf16.mxu0 0
      %925 = vmatpush1.bf16.msra.mxu0 %v742
      %926 = vmatprep.subr.bf16.mxu0 0
      %927 = vmatpush1.bf16.msra.mxu0 %v743
      %928 = vmatprep.subr.bf16.mxu0 0
      %929 = vmatpush1.bf16.msra.mxu0 %v744
      %930 = vmatprep.mubr.bf16.mxu0 %v466
      %931 = vmatmul.mubr.bf16.gmra.mrb[0].mxu0 %v465
      %v932 = vpop.f32.mrb[0].mxu0
      %v933 = vadd.f32 %v828, %v932
      %v934 = vpop.f32.mrb[0].mxu0
      %v935 = vpop.f32.mrb[0].mxu0
      %v936 = vadd.f32 %v831, %v935
      %v937 = vpop.f32.mrb[0].mxu0
      %938 = vmatprep.mubr.bf16.mxu0 %v471
      %939 = vmatmul.mubr.bf16.gmra.mrb[0].mxu0 %v470
      %v940 = vpop.f32.mrb[0].mxu0
      %v941 = vadd.f32 %v836, %v940
      %v942 = vpop.f32.mrb[0].mxu0
      %v943 = vpop.f32.mrb[0].mxu0
      %v944 = vadd.f32 %v839, %v943
      %v945 = vpop.f32.mrb[0].mxu0
      %946 = vmatprep.mubr.bf16.mxu0 %v476
      %947 = vmatmul.mubr.bf16.gmra.mrb[0].mxu0 %v475
      %v948 = vpop.f32.mrb[0].mxu0
      %v949 = vadd.f32 %v844, %v948
      %v950 = vpop.f32.mrb[0].mxu0
      %v951 = vpop.f32.mrb[0].mxu0
      %v952 = vadd.f32 %v847, %v951
      %v953 = vpop.f32.mrb[0].mxu0
      %954 = vmatprep.mubr.bf16.mxu0 %v481
      %955 = vmatmul.mubr.bf16.gmra.mrb[0].mxu0 %v480
      %v956 = vpop.f32.mrb[0].mxu0
      %v957 = vadd.f32 %v852, %v956
      %v958 = vpop.f32.mrb[0].mxu0
      %v959 = vpop.f32.mrb[0].mxu0
      %v960 = vadd.f32 %v855, %v959
      %v961 = vpop.f32.mrb[0].mxu0
      %962 = vmatprep.mubr.bf16.mxu0 %v486
      %963 = vmatmul.mubr.bf16.gmra.mrb[0].mxu0 %v485
      %v964 = vpop.f32.mrb[0].mxu0
      %v965 = vadd.f32 %v860, %v964
      %v966 = vpop.f32.mrb[0].mxu0
      %v967 = vpop.f32.mrb[0].mxu0
      %v968 = vadd.f32 %v863, %v967
      %v969 = vpop.f32.mrb[0].mxu0
      %970 = vmatprep.mubr.bf16.mxu0 %v491
      %971 = vmatmul.mubr.bf16.gmra.mrb[0].mxu0 %v490
      %v972 = vpop.f32.mrb[0].mxu0
      %v973 = vadd.f32 %v868, %v972
      %v974 = vpop.f32.mrb[0].mxu0
      %v975 = vpop.f32.mrb[0].mxu0
      %v976 = vadd.f32 %v871, %v975
      %v977 = vpop.f32.mrb[0].mxu0
      %978 = vmatprep.mubr.bf16.mxu0 %v496
      %979 = vmatmul.mubr.bf16.gmra.mrb[0].mxu0 %v495
      %v980 = vpop.f32.mrb[0].mxu0
      %v981 = vadd.f32 %v876, %v980
      %v982 = vpop.f32.mrb[0].mxu0
      %v983 = vpop.f32.mrb[0].mxu0
      %v984 = vadd.f32 %v879, %v983
      %v985 = vpop.f32.mrb[0].mxu0
      %986 = vmatprep.mubr.bf16.mxu0 %v501
      %987 = vmatmul.mubr.bf16.gmra.mrb[0].mxu0 %v500
      %v988 = vpop.f32.mrb[0].mxu0
      %v989 = vadd.f32 %v884, %v988
      %v990 = vpop.f32.mrb[0].mxu0
      %v991 = vpop.f32.mrb[0].mxu0
      %v992 = vadd.f32 %v887, %v991
      %v993 = vpop.f32.mrb[0].mxu0
      %994 = vmatprep.mubr.bf16.mxu0 %v506
      %995 = vmatmul.mubr.bf16.gmra.mrb[0].mxu0 %v505
      %v996 = vpop.f32.mrb[0].mxu0
      %v997 = vadd.f32 %v892, %v996
      %v998 = vpop.f32.mrb[0].mxu0
      %v999 = vpop.f32.mrb[0].mxu0
      %v1000 = vadd.f32 %v895, %v999
      %v1001 = vpop.f32.mrb[0].mxu0
      %1002 = vdwg.mxu0
      %1003 = vmatprep.subr.bf16.mxu0 0
      %1004 = vmatpush1.bf16.msra.mxu0 %v745
      %1005 = vmatprep.subr.bf16.mxu0 0
      %1006 = vmatpush1.bf16.msra.mxu0 %v746
      %1007 = vmatprep.subr.bf16.mxu0 0
      %1008 = vmatpush1.bf16.msra.mxu0 %v747
      %1009 = vmatprep.subr.bf16.mxu0 0
      %1010 = vmatpush1.bf16.msra.mxu0 %v748
      %1011 = vmatprep.subr.bf16.mxu0 0
      %1012 = vmatpush1.bf16.msra.mxu0 %v749
      %1013 = vmatprep.subr.bf16.mxu0 0
      %1014 = vmatpush1.bf16.msra.mxu0 %v750
      %1015 = vmatprep.subr.bf16.mxu0 0
      %1016 = vmatpush1.bf16.msra.mxu0 %v751
      %1017 = vmatprep.subr.bf16.mxu0 0
      %1018 = vmatpush1.bf16.msra.mxu0 %v752
      %1019 = vmatprep.subr.bf16.mxu0 0
      %1020 = vmatpush1.bf16.msra.mxu0 0
      %1021 = vmatprep.subr.bf16.mxu0 0
      %1022 = vmatpush1.bf16.msra.mxu0 0
      %1023 = vmatprep.subr.bf16.mxu0 0
      %1024 = vmatpush1.bf16.msra.mxu0 0
      %1025 = vmatprep.subr.bf16.mxu0 0
      %1026 = vmatpush1.bf16.msra.mxu0 0
      %1027 = vmatprep.subr.bf16.mxu0 0
      %1028 = vmatpush1.bf16.msra.mxu0 0
      %1029 = vmatprep.subr.bf16.mxu0 0
      %1030 = vmatpush1.bf16.msra.mxu0 0
      %1031 = vmatprep.subr.bf16.mxu0 0
      %1032 = vmatpush1.bf16.msra.mxu0 0
      %1033 = vmatprep.subr.bf16.mxu0 0
      %1034 = vmatpush1.bf16.msra.mxu0 0
      %1035 = vmatprep.mubr.bf16.mxu0 0
      %1036 = vmatmul.mubr.bf16.gmra.mrb[0].mxu0 %v467
      %v1037 = vpop.f32.mrb[0].mxu0
      %v1038 = vadd.f32 %v933, %v1037
      %v1039 = vpop.f32.mrb[0].mxu0
      %v1040 = vpop.f32.mrb[0].mxu0
      %v1041 = vadd.f32 %v936, %v1040
      %v1042 = vpop.f32.mrb[0].mxu0
      %1043 = vmatprep.mubr.bf16.mxu0 0
      %1044 = vmatmul.mubr.bf16.gmra.mrb[0].mxu0 %v472
      %v1045 = vpop.f32.mrb[0].mxu0
      %v1046 = vadd.f32 %v941, %v1045
      %v1047 = vpop.f32.mrb[0].mxu0
      %v1048 = vpop.f32.mrb[0].mxu0
      %v1049 = vadd.f32 %v944, %v1048
      %v1050 = vpop.f32.mrb[0].mxu0
      %1051 = vmatprep.mubr.bf16.mxu0 0
      %1052 = vmatmul.mubr.bf16.gmra.mrb[0].mxu0 %v477
      %v1053 = vpop.f32.mrb[0].mxu0
      %v1054 = vadd.f32 %v949, %v1053
      %v1055 = vpop.f32.mrb[0].mxu0
      %v1056 = vpop.f32.mrb[0].mxu0
      %v1057 = vadd.f32 %v952, %v1056
      %v1058 = vpop.f32.mrb[0].mxu0
      %1059 = vmatprep.mubr.bf16.mxu0 0
      %1060 = vmatmul.mubr.bf16.gmra.mrb[0].mxu0 %v482
      %v1061 = vpop.f32.mrb[0].mxu0
      %v1062 = vadd.f32 %v957, %v1061
      %v1063 = vpop.f32.mrb[0].mxu0
      %v1064 = vpop.f32.mrb[0].mxu0
      %v1065 = vadd.f32 %v960, %v1064
      %v1066 = vpop.f32.mrb[0].mxu0
      %1067 = vmatprep.mubr.bf16.mxu0 0
      %1068 = vmatmul.mubr.bf16.gmra.mrb[0].mxu0 %v487
      %v1069 = vpop.f32.mrb[0].mxu0
      %v1070 = vadd.f32 %v965, %v1069
      %v1071 = vpop.f32.mrb[0].mxu0
      %v1072 = vpop.f32.mrb[0].mxu0
      %v1073 = vadd.f32 %v968, %v1072
      %v1074 = vpop.f32.mrb[0].mxu0
      %1075 = vmatprep.mubr.bf16.mxu0 0
      %1076 = vmatmul.mubr.bf16.gmra.mrb[0].mxu0 %v492
      %v1077 = vpop.f32.mrb[0].mxu0
      %v1078 = vadd.f32 %v973, %v1077
      %v1079 = vpop.f32.mrb[0].mxu0
      %v1080 = vpop.f32.mrb[0].mxu0
      %v1081 = vadd.f32 %v976, %v1080
      %v1082 = vpop.f32.mrb[0].mxu0
      %1083 = vmatprep.mubr.bf16.mxu0 0
      %1084 = vmatmul.mubr.bf16.gmra.mrb[0].mxu0 %v497
      %v1085 = vpop.f32.mrb[0].mxu0
      %v1086 = vadd.f32 %v981, %v1085
      %v1087 = vpop.f32.mrb[0].mxu0
      %v1088 = vpop.f32.mrb[0].mxu0
      %v1089 = vadd.f32 %v984, %v1088
      %v1090 = vpop.f32.mrb[0].mxu0
      %1091 = vmatprep.mubr.bf16.mxu0 0
      %1092 = vmatmul.mubr.bf16.gmra.mrb[0].mxu0 %v502
      %v1093 = vpop.f32.mrb[0].mxu0
      %v1094 = vadd.f32 %v989, %v1093
      %v1095 = vpop.f32.mrb[0].mxu0
      %v1096 = vpop.f32.mrb[0].mxu0
      %v1097 = vadd.f32 %v992, %v1096
      %v1098 = vpop.f32.mrb[0].mxu0
      %1099 = vmatprep.mubr.bf16.mxu0 0
      %1100 = vmatmul.mubr.bf16.gmra.mrb[0].mxu0 %v507
      %v1101 = vpop.f32.mrb[0].mxu0
      %v1102 = vadd.f32 %v997, %v1101
      %v1103 = vpop.f32.mrb[0].mxu0
      %v1104 = vpop.f32.mrb[0].mxu0
      %v1105 = vadd.f32 %v1000, %v1104
      %v1106 = vpop.f32.mrb[0].mxu0
      %1107 = vdwg.mxu0
      %v1108 = vmax.f32 %v1038, 0.0
      %v1109 = vmax.f32 %v1041, 0.0
      %v1110 = vmax.f32 %v1046, 0.0
      %v1111 = vmax.f32 %v1049, 0.0
      %v1112 = vmax.f32 %v1054, 0.0
      %v1113 = vmax.f32 %v1057, 0.0
      %v1114 = vmax.f32 %v1062, 0.0
      %v1115 = vmax.f32 %v1065, 0.0
      %v1116 = vmax.f32 %v1070, 0.0
      %v1117 = vmax.f32 %v1073, 0.0
      %v1118 = vmax.f32 %v1078, 0.0
      %v1119 = vmax.f32 %v1081, 0.0
      %v1120 = vmax.f32 %v1086, 0.0
      %v1121 = vmax.f32 %v1089, 0.0
      %v1122 = vmax.f32 %v1094, 0.0
      %v1123 = vmax.f32 %v1097, 0.0
      %v1124 = vmax.f32 %v1102, 0.0
      %v1125 = vmax.f32 %v1105, 0.0
      %vm1126 = vcmask 523264
      %1127 = vst.msk [vmem:[%s175] sm:$0xff] %vm1126, %v1108
      %1128 = vst.msk [vmem:[%s175 + $0x8] sm:$0xff] %vm1126, %v1109
      %1129 = vst.msk [vmem:[%s175 + $0x10] sm:$0xff] %vm1126, %v1110
      %1130 = vst.msk [vmem:[%s175 + $0x18] sm:$0xff] %vm1126, %v1111
      %1131 = vst.msk [vmem:[%s175 + $0x20] sm:$0xff] %vm1126, %v1112
      %1132 = vst.msk [vmem:[%s175 + $0x28] sm:$0xff] %vm1126, %v1113
      %1133 = vst.msk [vmem:[%s175 + $0x30] sm:$0xff] %vm1126, %v1114
      %1134 = vst.msk [vmem:[%s175 + $0x38] sm:$0xff] %vm1126, %v1115
      %1135 = vst.msk [vmem:[%s175 + $0x40] sm:$0xff] %vm1126, %v1116
      %1136 = vst.msk [vmem:[%s175 + $0x48] sm:$0xff] %vm1126, %v1117
      %1137 = vst.msk [vmem:[%s175 + $0x50] sm:$0xff] %vm1126, %v1118
      %1138 = vst.msk [vmem:[%s175 + $0x58] sm:$0xff] %vm1126, %v1119
      %1139 = vst.msk [vmem:[%s175 + $0x60] sm:$0xff] %vm1126, %v1120
      %1140 = vst.msk [vmem:[%s175 + $0x68] sm:$0xff] %vm1126, %v1121
      %1141 = vst.msk [vmem:[%s175 + $0x70] sm:$0xff] %vm1126, %v1122
      %1142 = vst.msk [vmem:[%s175 + $0x78] sm:$0xff] %vm1126, %v1123
      %1143 = vst.msk [vmem:[%s175 + $0x80] sm:$0xff] %vm1126, %v1124
      %1144 = vst.msk [vmem:[%s175 + $0x88] sm:$0xff] %vm1126, %v1125
      %s1145 = smul.u32 18, %s14
      %p1146 = scmp.lt.s32.totalorder %s1145, 35
      %s1147 = scalar_select %p1146, %s1145, 35
      %s1148 = smul.addr %s1147, 8
      %s1149 = scalar_lea.vmem %s3, %s1148
      // Predicated region
      $region33: #{_forward_dense.6} parent=31 // pred_check
        %p1150 = pneg %p100
      $region34: #{_forward_dense.6} parent=31 // pred_check_branch
        %1152 = sbr.rel (%p1150) target = $region36
      $region35: #{_forward_dense.6} parent=31 // pred_region
        %s1153 = smul.u32 18, %s14
      $region36: #{_forward_dense.6} parent=31 // pred_fallthru
        _
    $region32: #{_forward_dense.6} parent=5 // pred_fallthru
      _
    %p1154 = scmp.le.s32.totalorder 2, %s9
    // Predicated region
    $region37: #{_forward_dense.6} parent=5 // pred_check
      %p1155 = pneg %p1154
    $region38: #{_forward_dense.6} parent=5 // pred_check_branch
      %1157 = sbr.rel (%p1155) target = $region40
    $region39: #{_forward_dense.6} parent=5 // pred_region
      %s1158 = ssub.s32 %s9, 2
      // Predicated region
      $region41: #{_forward_dense.6} parent=39 // pred_check
        %p1159 = pneg %p106
      $region42: #{_forward_dense.6} parent=39 // pred_check_branch
        %1161 = sbr.rel (%p1159) target = $region44
      $region43: #{_forward_dense.6} parent=39 // pred_region
        %s1162 = smul.u32 18, %s15
        %p1163 = scmp.lt.s32.totalorder %s1162, 35
        %s1164 = scalar_select %p1163, %s1162, 35
        %s1165 = smul.addr %s1164, 8
        %s1166 = scalar_lea.vmem %s3, %s1165
      $region44: #{_forward_dense.6} parent=39 // pred_fallthru
        _
    $region40: #{_forward_dense.6} parent=5 // pred_fallthru
      _
  $region6: #{_forward_dense.6} parent=0 // loop_footer
    %s13 = sadd.s32 1, %s9
  $region7: #{_forward_dense.6} parent=0 // loop_footer_branch
    %8 = sbr.rel target = $region3
  $region8: #{_forward_dense.6} parent=0 // loop_exit
    _

// kernel: _forward_dense.7
$region0: #{_forward_dense.7}
  #allocation0 [shape = 'u32[]', space=smem, size = 0x4, offset = 0x4, fixed_abs, tag = 'smem constant byte address 0x4 - core index']
  #allocation1 [shape = 'u32[144,128]{1,0:T(1,128)}', space=vmem, size = 0x12000, scoped, tag = 'internal scratch']
  %s0 = inlined_call_operand.vmem [shape: bf16[56,1024], index: 0, kind: input, shape index: {}]
  %s1 = inlined_call_operand.vmem [shape: bf16[1024,128], index: 1, kind: input, shape index: {}]
  %s2 = inlined_call_operand.vmem [shape: f32[1,128], index: 2, kind: input, shape index: {}]
  %s3 = inlined_call_operand.vmem [shape: f32[56,128], index: 3, kind: output, shape index: {}]
  %s4 = sld [smem:[#allocation0]]
  $region22: #{_forward_dense.7} parent=0
    _
  %s6 = ssub.s32 1, %s4
  %s7 = scalar_select 0, %s6, %s4
  // Predicated region
  $region2: #{_forward_dense.7} parent=0 // pred_check
    _
  $region3: #{_forward_dense.7} parent=0 // pred_check_branch
    %9 = sbr.rel (0) target = $region5
  $region4: #{_forward_dense.7} parent=0 // pred_region
    _
  $region5: #{_forward_dense.7} parent=0 // pred_fallthru
    _
  // Predicated region
  $region6: #{_forward_dense.7} parent=0 // pred_check
    _
  $region7: #{_forward_dense.7} parent=0 // pred_check_branch
    %11 = sbr.rel (0) target = $region9
  $region8: #{_forward_dense.7} parent=0 // pred_region
    _
  $region9: #{_forward_dense.7} parent=0 // pred_fallthru
    _
  // Predicated region
  $region10: #{_forward_dense.7} parent=0 // pred_check
    _
  $region11: #{_forward_dense.7} parent=0 // pred_check_branch
    %13 = sbr.rel (0) target = $region13
  $region12: #{_forward_dense.7} parent=0 // pred_region
    _
  $region13: #{_forward_dense.7} parent=0 // pred_fallthru
    _
  %v15 = vld [vmem:[%s0] sm:$0xff]
  %v16 = vld [vmem:[%s0 + $0x8] sm:$0xff]
  %v17 = vld [vmem:[%s0 + $0x10] sm:$0xff]
  %v18 = vld [vmem:[%s0 + $0x18] sm:$0xff]
  %v19 = vld [vmem:[%s0 + $0x20] sm:$0xff]
  %v20 = vld [vmem:[%s0 + $0x28] sm:$0xff]
  %v21 = vld [vmem:[%s0 + $0x30] sm:$0xff]
  %v22 = vld [vmem:[%s0 + $0x38] sm:$0xff]
  %v23 = vld [vmem:[%s0 + $0x40] sm:$0xff]
  %v24 = vld [vmem:[%s0 + $0x48] sm:$0xff]
  %v25 = vld [vmem:[%s0 + $0x50] sm:$0xff]
  %v26 = vld [vmem:[%s0 + $0x58] sm:$0xff]
  %v27 = vld [vmem:[%s0 + $0x60] sm:$0xff]
  %v28 = vld [vmem:[%s0 + $0x68] sm:$0xff]
  %v29 = vld [vmem:[%s0 + $0x70] sm:$0xff]
  %v30 = vld [vmem:[%s0 + $0x78] sm:$0xff]
  %v31 = vld [vmem:[%s0 + $0x80] sm:$0xff]
  %v32 = vld [vmem:[%s0 + $0x88] sm:$0xff]
  %v33 = vld [vmem:[%s0 + $0x90] sm:$0xff]
  %v34 = vld [vmem:[%s0 + $0x98] sm:$0xff]
  %v35 = vld [vmem:[%s0 + $0xa0] sm:$0xff]
  %v36 = vld [vmem:[%s0 + $0xa8] sm:$0xff]
  %v37 = vld [vmem:[%s0 + $0xb0] sm:$0xff]
  %v38 = vld [vmem:[%s0 + $0xb8] sm:$0xff]
  %v39 = vld [vmem:[%s0 + $0xc0] sm:$0xff]
  %v40 = vld [vmem:[%s0 + $0xc8] sm:$0xff]
  %v41 = vld [vmem:[%s0 + $0xd0] sm:$0xff]
  %v42 = vld [vmem:[%s0 + $0xd8] sm:$0xff]
  %v43 = vld [vmem:[%s1] sm:$0xf]
  %v44 = vld [vmem:[%s1 + $0x4] sm:$0xf]
  %v45 = vld [vmem:[%s1 + $0x8] sm:$0xf]
  %v46 = vld [vmem:[%s1 + $0xc] sm:$0xf]
  %v47 = vld [vmem:[%s1 + $0x10] sm:$0xf]
  %v48 = vld [vmem:[%s1 + $0x14] sm:$0xf]
  %v49 = vld [vmem:[%s1 + $0x18] sm:$0xf]
  %v50 = vld [vmem:[%s1 + $0x1c] sm:$0xf]
  %v51 = vld [vmem:[%s1 + $0x20] sm:$0xf]
  %v52 = vld [vmem:[%s1 + $0x24] sm:$0xf]
  %v53 = vld [vmem:[%s1 + $0x28] sm:$0xf]
  %v54 = vld [vmem:[%s1 + $0x2c] sm:$0xf]
  %v55 = vld [vmem:[%s1 + $0x30] sm:$0xf]
  %v56 = vld [vmem:[%s1 + $0x34] sm:$0xf]
  %v57 = vld [vmem:[%s1 + $0x38] sm:$0xf]
  %v58 = vld [vmem:[%s1 + $0x3c] sm:$0xf]
  %v59 = vld [vmem:[%s1 + $0x40] sm:$0xf]
  %v60 = vld [vmem:[%s1 + $0x44] sm:$0xf]
  %v61 = vld [vmem:[%s1 + $0x48] sm:$0xf]
  %v62 = vld [vmem:[%s1 + $0x4c] sm:$0xf]
  %v63 = vld [vmem:[%s1 + $0x50] sm:$0xf]
  %v64 = vld [vmem:[%s1 + $0x54] sm:$0xf]
  %v65 = vld [vmem:[%s1 + $0x58] sm:$0xf]
  %v66 = vld [vmem:[%s1 + $0x5c] sm:$0xf]
  %v67 = vld [vmem:[%s1 + $0x60] sm:$0xf]
  %v68 = vld [vmem:[%s1 + $0x64] sm:$0xf]
  %v69 = vld [vmem:[%s1 + $0x68] sm:$0xf]
  %v70 = vld [vmem:[%s1 + $0x6c] sm:$0xf]
  %v71 = vld [vmem:[%s1 + $0x70] sm:$0xf]
  %v72 = vld [vmem:[%s1 + $0x74] sm:$0xf]
  %v73 = vld [vmem:[%s1 + $0x78] sm:$0xf]
  %v74 = vld [vmem:[%s1 + $0x7c] sm:$0xf]
  %v75 = vld [vmem:[%s1 + $0x80] sm:$0xf]
  %v76 = vld [vmem:[%s1 + $0x84] sm:$0xf]
  %v77 = vld [vmem:[%s1 + $0x88] sm:$0xf]
  %v78 = vld [vmem:[%s1 + $0x8c] sm:$0xf]
  %v79 = vld [vmem:[%s1 + $0x90] sm:$0xf]
  %v80 = vld [vmem:[%s1 + $0x94] sm:$0xf]
  %v81 = vld [vmem:[%s1 + $0x98] sm:$0xf]
  %v82 = vld [vmem:[%s1 + $0x9c] sm:$0xf]
  %v83 = vld [vmem:[%s1 + $0xa0] sm:$0xf]
  %v84 = vld [vmem:[%s1 + $0xa4] sm:$0xf]
  %v85 = vld [vmem:[%s1 + $0xa8] sm:$0xf]
  %v86 = vld [vmem:[%s1 + $0xac] sm:$0xf]
  %v87 = vld [vmem:[%s1 + $0xb0] sm:$0xf]
  %v88 = vld [vmem:[%s1 + $0xb4] sm:$0xf]
  %v89 = vld [vmem:[%s1 + $0xb8] sm:$0xf]
  %v90 = vld [vmem:[%s1 + $0xbc] sm:$0xf]
  %v91 = vld [vmem:[%s1 + $0xc0] sm:$0xf]
  %v92 = vld [vmem:[%s1 + $0xc4] sm:$0xf]
  %v93 = vld [vmem:[%s1 + $0xc8] sm:$0xf]
  %v94 = vld [vmem:[%s1 + $0xcc] sm:$0xf]
  %v95 = vld [vmem:[%s1 + $0xd0] sm:$0xf]
  %v96 = vld [vmem:[%s1 + $0xd4] sm:$0xf]
  %v97 = vld [vmem:[%s1 + $0xd8] sm:$0xf]
  %v98 = vld [vmem:[%s1 + $0xdc] sm:$0xf]
  %v99 = vld [vmem:[%s1 + $0xe0] sm:$0xf]
  %v100 = vld [vmem:[%s1 + $0xe4] sm:$0xf]
  %v101 = vld [vmem:[%s1 + $0xe8] sm:$0xf]
  %v102 = vld [vmem:[%s1 + $0xec] sm:$0xf]
  %v103 = vld [vmem:[%s1 + $0xf0] sm:$0xf]
  %v104 = vld [vmem:[%s1 + $0xf4] sm:$0xf]
  %v105 = vld [vmem:[%s1 + $0xf8] sm:$0xf]
  %v106 = vld [vmem:[%s1 + $0xfc] sm:$0xf]
  %v107 = vld [vmem:[%s1 + $0x100] sm:$0xf]
  %v108 = vld [vmem:[%s1 + $0x104] sm:$0xf]
  %v109 = vld [vmem:[%s1 + $0x108] sm:$0xf]
  %v110 = vld [vmem:[%s1 + $0x10c] sm:$0xf]
  %v111 = vld [vmem:[%s1 + $0x110] sm:$0xf]
  %v112 = vld [vmem:[%s1 + $0x114] sm:$0xf]
  %v113 = vld [vmem:[%s1 + $0x118] sm:$0xf]
  %v114 = vld [vmem:[%s1 + $0x11c] sm:$0xf]
  %v115 = vld [vmem:[%s1 + $0x120] sm:$0xf]
  %v116 = vld [vmem:[%s1 + $0x124] sm:$0xf]
  %v117 = vld [vmem:[%s1 + $0x128] sm:$0xf]
  %v118 = vld [vmem:[%s1 + $0x12c] sm:$0xf]
  %v119 = vld [vmem:[%s1 + $0x130] sm:$0xf]
  %v120 = vld [vmem:[%s1 + $0x134] sm:$0xf]
  %v121 = vld [vmem:[%s1 + $0x138] sm:$0xf]
  %v122 = vld [vmem:[%s1 + $0x13c] sm:$0xf]
  %v123 = vld [vmem:[%s1 + $0x140] sm:$0xf]
  %v124 = vld [vmem:[%s1 + $0x144] sm:$0xf]
  %v125 = vld [vmem:[%s1 + $0x148] sm:$0xf]
  %v126 = vld [vmem:[%s1 + $0x14c] sm:$0xf]
  %v127 = vld [vmem:[%s1 + $0x150] sm:$0xf]
  %v128 = vld [vmem:[%s1 + $0x154] sm:$0xf]
  %v129 = vld [vmem:[%s1 + $0x158] sm:$0xf]
  %v130 = vld [vmem:[%s1 + $0x15c] sm:$0xf]
  %v131 = vld [vmem:[%s1 + $0x160] sm:$0xf]
  %v132 = vld [vmem:[%s1 + $0x164] sm:$0xf]
  %v133 = vld [vmem:[%s1 + $0x168] sm:$0xf]
  %v134 = vld [vmem:[%s1 + $0x16c] sm:$0xf]
  %v135 = vld [vmem:[%s1 + $0x170] sm:$0xf]
  %v136 = vld [vmem:[%s1 + $0x174] sm:$0xf]
  %v137 = vld [vmem:[%s1 + $0x178] sm:$0xf]
  %v138 = vld [vmem:[%s1 + $0x17c] sm:$0xf]
  %v139 = vld [vmem:[%s1 + $0x180] sm:$0xf]
  %v140 = vld [vmem:[%s1 + $0x184] sm:$0xf]
  %v141 = vld [vmem:[%s1 + $0x188] sm:$0xf]
  %v142 = vld [vmem:[%s1 + $0x18c] sm:$0xf]
  %v143 = vld [vmem:[%s1 + $0x190] sm:$0xf]
  %v144 = vld [vmem:[%s1 + $0x194] sm:$0xf]
  %v145 = vld [vmem:[%s1 + $0x198] sm:$0xf]
  %v146 = vld [vmem:[%s1 + $0x19c] sm:$0xf]
  %v147 = vld [vmem:[%s1 + $0x1a0] sm:$0xf]
  %v148 = vld [vmem:[%s1 + $0x1a4] sm:$0xf]
  %v149 = vld [vmem:[%s1 + $0x1a8] sm:$0xf]
  %v150 = vld [vmem:[%s1 + $0x1ac] sm:$0xf]
  %v151 = vld [vmem:[%s1 + $0x1b0] sm:$0xf]
  %v152 = vld [vmem:[%s1 + $0x1b4] sm:$0xf]
  %v153 = vld [vmem:[%s1 + $0x1b8] sm:$0xf]
  %v154 = vld [vmem:[%s1 + $0x1bc] sm:$0xf]
  %v155 = vld [vmem:[%s1 + $0x1c0] sm:$0xf]
  %v156 = vld [vmem:[%s1 + $0x1c4] sm:$0xf]
  %v157 = vld [vmem:[%s1 + $0x1c8] sm:$0xf]
  %v158 = vld [vmem:[%s1 + $0x1cc] sm:$0xf]
  %v159 = vld [vmem:[%s1 + $0x1d0] sm:$0xf]
  %v160 = vld [vmem:[%s1 + $0x1d4] sm:$0xf]
  %v161 = vld [vmem:[%s1 + $0x1d8] sm:$0xf]
  %v162 = vld [vmem:[%s1 + $0x1dc] sm:$0xf]
  %v163 = vld [vmem:[%s1 + $0x1e0] sm:$0xf]
  %v164 = vld [vmem:[%s1 + $0x1e4] sm:$0xf]
  %v165 = vld [vmem:[%s1 + $0x1e8] sm:$0xf]
  %v166 = vld [vmem:[%s1 + $0x1ec] sm:$0xf]
  %v167 = vld [vmem:[%s1 + $0x1f0] sm:$0xf]
  %v168 = vld [vmem:[%s1 + $0x1f4] sm:$0xf]
  %v169 = vld [vmem:[%s1 + $0x1f8] sm:$0xf]
  %v170 = vld [vmem:[%s1 + $0x1fc] sm:$0xf]
  %v171 = vld [vmem:[%s2] sm:$0x1]
  %v173 = vlaneseq
  %v174 = vshrl.u32 %v173, 7
  %v175 = vsub.s32 0, %v174
  %v176 = vrot.slane %v171, %v175
  %v206 = vunpack.c.l.b16 %v15
  %v207 = vunpack.c.h.b16 %v15
  %v208 = vunpack.c.l.b16 %v16
  %v209 = vunpack.c.h.b16 %v16
  %v210 = vunpack.c.l.b16 %v17
  %v211 = vunpack.c.h.b16 %v17
  %v212 = vunpack.c.l.b16 %v18
  %v213 = vunpack.c.h.b16 %v18
  %v214 = vunpack.c.l.b16 %v19
  %v215 = vunpack.c.h.b16 %v19
  %v216 = vunpack.c.l.b16 %v20
  %v217 = vunpack.c.h.b16 %v20
  %v218 = vunpack.c.l.b16 %v21
  %v219 = vunpack.c.h.b16 %v21
  %v220 = vunpack.c.l.b16 %v22
  %v221 = vunpack.c.h.b16 %v22
  %v222 = vunpack.c.l.b16 %v23
  %v223 = vunpack.c.h.b16 %v23
  %v224 = vunpack.c.l.b16 %v24
  %v225 = vunpack.c.h.b16 %v24
  %v226 = vunpack.c.l.b16 %v25
  %v227 = vunpack.c.h.b16 %v25
  %v228 = vunpack.c.l.b16 %v26
  %v229 = vunpack.c.h.b16 %v26
  %v230 = vunpack.c.l.b16 %v27
  %v231 = vunpack.c.h.b16 %v27
  %v232 = vunpack.c.l.b16 %v28
  %v233 = vunpack.c.h.b16 %v28
  %v234 = vunpack.c.l.b16 %v29
  %v235 = vunpack.c.h.b16 %v29
  %v236 = vunpack.c.l.b16 %v30
  %v237 = vunpack.c.h.b16 %v30
  %v238 = vunpack.c.l.b16 %v31
  %v239 = vunpack.c.h.b16 %v31
  %v240 = vunpack.c.l.b16 %v32
  %v241 = vunpack.c.h.b16 %v32
  %v242 = vunpack.c.l.b16 %v33
  %v243 = vunpack.c.h.b16 %v33
  %v244 = vunpack.c.l.b16 %v34
  %v245 = vunpack.c.h.b16 %v34
  %v246 = vunpack.c.l.b16 %v35
  %v247 = vunpack.c.h.b16 %v35
  %v248 = vunpack.c.l.b16 %v36
  %v249 = vunpack.c.h.b16 %v36
  %v250 = vunpack.c.l.b16 %v37
  %v251 = vunpack.c.h.b16 %v37
  %v252 = vunpack.c.l.b16 %v38
  %v253 = vunpack.c.h.b16 %v38
  %v254 = vunpack.c.l.b16 %v39
  %v255 = vunpack.c.h.b16 %v39
  %v256 = vunpack.c.l.b16 %v40
  %v257 = vunpack.c.h.b16 %v40
  %v258 = vunpack.c.l.b16 %v41
  %v259 = vunpack.c.h.b16 %v41
  %v260 = vunpack.c.l.b16 %v42
  %v261 = vunpack.c.h.b16 %v42
  %v262 = vpack.c.b16 %v214, %v206
  %v263 = vpack.c.b16 %v215, %v207
  %v264 = vpack.c.b16 %v216, %v208
  %v265 = vpack.c.b16 %v217, %v209
  %v266 = vpack.c.b16 %v218, %v210
  %v267 = vpack.c.b16 %v219, %v211
  %v268 = vpack.c.b16 %v220, %v212
  %v269 = vpack.c.b16 %v221, %v213
  %v270 = vpack.c.b16 %v230, %v222
  %v271 = vpack.c.b16 %v231, %v223
  %v272 = vpack.c.b16 %v232, %v224
  %v273 = vpack.c.b16 %v233, %v225
  %v274 = vpack.c.b16 %v234, %v226
  %v275 = vpack.c.b16 %v235, %v227
  %v276 = vpack.c.b16 %v236, %v228
  %v277 = vpack.c.b16 %v237, %v229
  %v278 = vpack.c.b16 %v246, %v238
  %v279 = vpack.c.b16 %v247, %v239
  %v280 = vpack.c.b16 %v248, %v240
  %v281 = vpack.c.b16 %v249, %v241
  %v282 = vpack.c.b16 %v250, %v242
  %v283 = vpack.c.b16 %v251, %v243
  %v284 = vpack.c.b16 %v252, %v244
  %v285 = vpack.c.b16 %v253, %v245
  %v286 = vpack.c.b16 %v254, %v254
  %v287 = vpack.c.b16 %v255, %v255
  %v288 = vpack.c.b16 %v256, %v256
  %v289 = vpack.c.b16 %v257, %v257
  %v290 = vpack.c.b16 %v258, %v258
  %v291 = vpack.c.b16 %v259, %v259
  %v292 = vpack.c.b16 %v260, %v260
  %v293 = vpack.c.b16 %v261, %v261
  %v454 = vunpack.c.l.b16 %v43
  %v455 = vunpack.c.l.b16 %v44
  %v456 = vunpack.c.l.b16 %v45
  %v457 = vunpack.c.l.b16 %v46
  %v458 = vunpack.c.l.b16 %v47
  %v459 = vunpack.c.l.b16 %v48
  %v460 = vunpack.c.l.b16 %v49
  %v461 = vunpack.c.l.b16 %v50
  %v462 = vunpack.c.l.b16 %v51
  %v463 = vunpack.c.l.b16 %v52
  %v464 = vunpack.c.l.b16 %v53
  %v465 = vunpack.c.l.b16 %v54
  %v466 = vunpack.c.l.b16 %v55
  %v467 = vunpack.c.l.b16 %v56
  %v468 = vunpack.c.l.b16 %v57
  %v469 = vunpack.c.l.b16 %v58
  %v470 = vunpack.c.l.b16 %v59
  %v471 = vunpack.c.l.b16 %v60
  %v472 = vunpack.c.l.b16 %v61
  %v473 = vunpack.c.l.b16 %v62
  %v474 = vunpack.c.l.b16 %v63
  %v475 = vunpack.c.l.b16 %v64
  %v476 = vunpack.c.l.b16 %v65
  %v477 = vunpack.c.l.b16 %v66
  %v478 = vunpack.c.l.b16 %v67
  %v479 = vunpack.c.l.b16 %v68
  %v480 = vunpack.c.l.b16 %v69
  %v481 = vunpack.c.l.b16 %v70
  %v482 = vunpack.c.l.b16 %v71
  %v483 = vunpack.c.l.b16 %v72
  %v484 = vunpack.c.l.b16 %v73
  %v485 = vunpack.c.l.b16 %v74
  %v486 = vunpack.c.l.b16 %v75
  %v487 = vunpack.c.l.b16 %v76
  %v488 = vunpack.c.l.b16 %v77
  %v489 = vunpack.c.l.b16 %v78
  %v490 = vunpack.c.l.b16 %v79
  %v491 = vunpack.c.l.b16 %v80
  %v492 = vunpack.c.l.b16 %v81
  %v493 = vunpack.c.l.b16 %v82
  %v494 = vunpack.c.l.b16 %v83
  %v495 = vunpack.c.l.b16 %v84
  %v496 = vunpack.c.l.b16 %v85
  %v497 = vunpack.c.l.b16 %v86
  %v498 = vunpack.c.l.b16 %v87
  %v499 = vunpack.c.l.b16 %v88
  %v500 = vunpack.c.l.b16 %v89
  %v501 = vunpack.c.l.b16 %v90
  %v502 = vunpack.c.l.b16 %v91
  %v503 = vunpack.c.l.b16 %v92
  %v504 = vunpack.c.l.b16 %v93
  %v505 = vunpack.c.l.b16 %v94
  %v506 = vunpack.c.l.b16 %v95
  %v507 = vunpack.c.l.b16 %v96
  %v508 = vunpack.c.l.b16 %v97
  %v509 = vunpack.c.l.b16 %v98
  %v510 = vunpack.c.l.b16 %v99
  %v511 = vunpack.c.l.b16 %v100
  %v512 = vunpack.c.l.b16 %v101
  %v513 = vunpack.c.l.b16 %v102
  %v514 = vunpack.c.l.b16 %v103
  %v515 = vunpack.c.l.b16 %v104
  %v516 = vunpack.c.l.b16 %v105
  %v517 = vunpack.c.l.b16 %v106
  %v518 = vunpack.c.l.b16 %v107
  %v519 = vunpack.c.l.b16 %v108
  %v520 = vunpack.c.l.b16 %v109
  %v521 = vunpack.c.l.b16 %v110
  %v522 = vunpack.c.l.b16 %v111
  %v523 = vunpack.c.l.b16 %v112
  %v524 = vunpack.c.l.b16 %v113
  %v525 = vunpack.c.l.b16 %v114
  %v526 = vunpack.c.l.b16 %v115
  %v527 = vunpack.c.l.b16 %v116
  %v528 = vunpack.c.l.b16 %v117
  %v529 = vunpack.c.l.b16 %v118
  %v530 = vunpack.c.l.b16 %v119
  %v531 = vunpack.c.l.b16 %v120
  %v532 = vunpack.c.l.b16 %v121
  %v533 = vunpack.c.l.b16 %v122
  %v534 = vunpack.c.l.b16 %v123
  %v535 = vunpack.c.l.b16 %v124
  %v536 = vunpack.c.l.b16 %v125
  %v537 = vunpack.c.l.b16 %v126
  %v538 = vunpack.c.l.b16 %v127
  %v539 = vunpack.c.l.b16 %v128
  %v540 = vunpack.c.l.b16 %v129
  %v541 = vunpack.c.l.b16 %v130
  %v542 = vunpack.c.l.b16 %v131
  %v543 = vunpack.c.l.b16 %v132
  %v544 = vunpack.c.l.b16 %v133
  %v545 = vunpack.c.l.b16 %v134
  %v546 = vunpack.c.l.b16 %v135
  %v547 = vunpack.c.l.b16 %v136
  %v548 = vunpack.c.l.b16 %v137
  %v549 = vunpack.c.l.b16 %v138
  %v550 = vunpack.c.l.b16 %v139
  %v551 = vunpack.c.l.b16 %v140
  %v552 = vunpack.c.l.b16 %v141
  %v553 = vunpack.c.l.b16 %v142
  %v554 = vunpack.c.l.b16 %v143
  %v555 = vunpack.c.l.b16 %v144
  %v556 = vunpack.c.l.b16 %v145
  %v557 = vunpack.c.l.b16 %v146
  %v558 = vunpack.c.l.b16 %v147
  %v559 = vunpack.c.l.b16 %v148
  %v560 = vunpack.c.l.b16 %v149
  %v561 = vunpack.c.l.b16 %v150
  %v562 = vunpack.c.l.b16 %v151
  %v563 = vunpack.c.l.b16 %v152
  %v564 = vunpack.c.l.b16 %v153
  %v565 = vunpack.c.l.b16 %v154
  %v566 = vunpack.c.l.b16 %v155
  %v567 = vunpack.c.l.b16 %v156
  %v568 = vunpack.c.l.b16 %v157
  %v569 = vunpack.c.l.b16 %v158
  %v570 = vunpack.c.l.b16 %v159
  %v571 = vunpack.c.l.b16 %v160
  %v572 = vunpack.c.l.b16 %v161
  %v573 = vunpack.c.l.b16 %v162
  %v574 = vunpack.c.l.b16 %v163
  %v575 = vunpack.c.l.b16 %v164
  %v576 = vunpack.c.l.b16 %v165
  %v577 = vunpack.c.l.b16 %v166
  %v578 = vunpack.c.l.b16 %v167
  %v579 = vunpack.c.l.b16 %v168
  %v580 = vunpack.c.l.b16 %v169
  %v581 = vunpack.c.l.b16 %v170
  %v582 = vpack.c.b16 %v455, %v454
  %v583 = vpack.c.b16 %v457, %v456
  %v584 = vpack.c.b16 %v459, %v458
  %v585 = vpack.c.b16 %v461, %v460
  %v586 = vpack.c.b16 %v463, %v462
  %v587 = vpack.c.b16 %v465, %v464
  %v588 = vpack.c.b16 %v467, %v466
  %v589 = vpack.c.b16 %v469, %v468
  %v590 = vpack.c.b16 %v471, %v470
  %v591 = vpack.c.b16 %v473, %v472
  %v592 = vpack.c.b16 %v475, %v474
  %v593 = vpack.c.b16 %v477, %v476
  %v594 = vpack.c.b16 %v479, %v478
  %v595 = vpack.c.b16 %v481, %v480
  %v596 = vpack.c.b16 %v483, %v482
  %v597 = vpack.c.b16 %v485, %v484
  %v598 = vpack.c.b16 %v487, %v486
  %v599 = vpack.c.b16 %v489, %v488
  %v600 = vpack.c.b16 %v491, %v490
  %v601 = vpack.c.b16 %v493, %v492
  %v602 = vpack.c.b16 %v495, %v494
  %v603 = vpack.c.b16 %v497, %v496
  %v604 = vpack.c.b16 %v499, %v498
  %v605 = vpack.c.b16 %v501, %v500
  %v606 = vpack.c.b16 %v503, %v502
  %v607 = vpack.c.b16 %v505, %v504
  %v608 = vpack.c.b16 %v507, %v506
  %v609 = vpack.c.b16 %v509, %v508
  %v610 = vpack.c.b16 %v511, %v510
  %v611 = vpack.c.b16 %v513, %v512
  %v612 = vpack.c.b16 %v515, %v514
  %v613 = vpack.c.b16 %v517, %v516
  %v614 = vpack.c.b16 %v519, %v518
  %v615 = vpack.c.b16 %v521, %v520
  %v616 = vpack.c.b16 %v523, %v522
  %v617 = vpack.c.b16 %v525, %v524
  %v618 = vpack.c.b16 %v527, %v526
  %v619 = vpack.c.b16 %v529, %v528
  %v620 = vpack.c.b16 %v531, %v530
  %v621 = vpack.c.b16 %v533, %v532
  %v622 = vpack.c.b16 %v535, %v534
  %v623 = vpack.c.b16 %v537, %v536
  %v624 = vpack.c.b16 %v539, %v538
  %v625 = vpack.c.b16 %v541, %v540
  %v626 = vpack.c.b16 %v543, %v542
  %v627 = vpack.c.b16 %v545, %v544
  %v628 = vpack.c.b16 %v547, %v546
  %v629 = vpack.c.b16 %v549, %v548
  %v630 = vpack.c.b16 %v551, %v550
  %v631 = vpack.c.b16 %v553, %v552
  %v632 = vpack.c.b16 %v555, %v554
  %v633 = vpack.c.b16 %v557, %v556
  %v634 = vpack.c.b16 %v559, %v558
  %v635 = vpack.c.b16 %v561, %v560
  %v636 = vpack.c.b16 %v563, %v562
  %v637 = vpack.c.b16 %v565, %v564
  %v638 = vpack.c.b16 %v567, %v566
  %v639 = vpack.c.b16 %v569, %v568
  %v640 = vpack.c.b16 %v571, %v570
  %v641 = vpack.c.b16 %v573, %v572
  %v642 = vpack.c.b16 %v575, %v574
  %v643 = vpack.c.b16 %v577, %v576
  %v644 = vpack.c.b16 %v579, %v578
  %v645 = vpack.c.b16 %v581, %v580
  %710 = vmatprep.subr.bf16.mxu0 0
  %711 = vmatpush1.bf16.msra.mxu0 %v582
  %712 = vmatprep.subr.bf16.mxu0 0
  %713 = vmatpush1.bf16.msra.mxu0 %v583
  %714 = vmatprep.subr.bf16.mxu0 0
  %715 = vmatpush1.bf16.msra.mxu0 %v584
  %716 = vmatprep.subr.bf16.mxu0 0
  %717 = vmatpush1.bf16.msra.mxu0 %v585
  %718 = vmatprep.subr.bf16.mxu0 0
  %719 = vmatpush1.bf16.msra.mxu0 %v586
  %720 = vmatprep.subr.bf16.mxu0 0
  %721 = vmatpush1.bf16.msra.mxu0 %v587
  %722 = vmatprep.subr.bf16.mxu0 0
  %723 = vmatpush1.bf16.msra.mxu0 %v588
  %724 = vmatprep.subr.bf16.mxu0 0
  %725 = vmatpush1.bf16.msra.mxu0 %v589
  %726 = vmatprep.subr.bf16.mxu0 0
  %727 = vmatpush1.bf16.msra.mxu0 %v590
  %728 = vmatprep.subr.bf16.mxu0 0
  %729 = vmatpush1.bf16.msra.mxu0 %v591
  %730 = vmatprep.subr.bf16.mxu0 0
  %731 = vmatpush1.bf16.msra.mxu0 %v592
  %732 = vmatprep.subr.bf16.mxu0 0
  %733 = vmatpush1.bf16.msra.mxu0 %v593
  %734 = vmatprep.subr.bf16.mxu0 0
  %735 = vmatpush1.bf16.msra.mxu0 %v594
  %736 = vmatprep.subr.bf16.mxu0 0
  %737 = vmatpush1.bf16.msra.mxu0 %v595
  %738 = vmatprep.subr.bf16.mxu0 0
  %739 = vmatpush1.bf16.msra.mxu0 %v596
  %740 = vmatprep.subr.bf16.mxu0 0
  %741 = vmatpush1.bf16.msra.mxu0 %v597
  %742 = vmatprep.mubr.bf16.mxu0 %v263
  %743 = vmatmul.mubr.bf16.gmra.mrb[0].mxu0 %v262
  %v744 = vpop.f32.mrb[0].mxu0
  %v745 = vadd.f32 %v176, %v744
  %v746 = vpop.f32.mrb[0].mxu0
  %v747 = vpop.f32.mrb[0].mxu0
  %v748 = vadd.f32 %v176, %v747
  %v749 = vpop.f32.mrb[0].mxu0
  %750 = vmatprep.mubr.bf16.mxu0 %v271
  %751 = vmatmul.mubr.bf16.gmra.mrb[0].mxu0 %v270
  %v752 = vpop.f32.mrb[0].mxu0
  %v753 = vadd.f32 %v176, %v752
  %v754 = vpop.f32.mrb[0].mxu0
  %v755 = vpop.f32.mrb[0].mxu0
  %v756 = vadd.f32 %v176, %v755
  %v757 = vpop.f32.mrb[0].mxu0
  %758 = vmatprep.mubr.bf16.mxu0 %v279
  %759 = vmatmul.mubr.bf16.gmra.mrb[0].mxu0 %v278
  %v760 = vpop.f32.mrb[0].mxu0
  %v761 = vadd.f32 %v176, %v760
  %v762 = vpop.f32.mrb[0].mxu0
  %v763 = vpop.f32.mrb[0].mxu0
  %v764 = vadd.f32 %v176, %v763
  %v765 = vpop.f32.mrb[0].mxu0
  %766 = vmatprep.mubr.bf16.mxu0 %v287
  %767 = vmatmul.mubr.bf16.gmra.mrb[0].mxu0 %v286
  %v768 = vpop.f32.mrb[0].mxu0
  %v769 = vadd.f32 %v176, %v768
  %v770 = vpop.f32.mrb[0].mxu0
  %v771 = vpop.f32.mrb[0].mxu0
  %v772 = vpop.f32.mrb[0].mxu0
  %773 = vdwg.mxu0
  %774 = vmatprep.subr.bf16.mxu0 0
  %775 = vmatpush1.bf16.msra.mxu0 %v598
  %776 = vmatprep.subr.bf16.mxu0 0
  %777 = vmatpush1.bf16.msra.mxu0 %v599
  %778 = vmatprep.subr.bf16.mxu0 0
  %779 = vmatpush1.bf16.msra.mxu0 %v600
  %780 = vmatprep.subr.bf16.mxu0 0
  %781 = vmatpush1.bf16.msra.mxu0 %v601
  %782 = vmatprep.subr.bf16.mxu0 0
  %783 = vmatpush1.bf16.msra.mxu0 %v602
  %784 = vmatprep.subr.bf16.mxu0 0
  %785 = vmatpush1.bf16.msra.mxu0 %v603
  %786 = vmatprep.subr.bf16.mxu0 0
  %787 = vmatpush1.bf16.msra.mxu0 %v604
  %788 = vmatprep.subr.bf16.mxu0 0
  %789 = vmatpush1.bf16.msra.mxu0 %v605
  %790 = vmatprep.subr.bf16.mxu0 0
  %791 = vmatpush1.bf16.msra.mxu0 %v606
  %792 = vmatprep.subr.bf16.mxu0 0
  %793 = vmatpush1.bf16.msra.mxu0 %v607
  %794 = vmatprep.subr.bf16.mxu0 0
  %795 = vmatpush1.bf16.msra.mxu0 %v608
  %796 = vmatprep.subr.bf16.mxu0 0
  %797 = vmatpush1.bf16.msra.mxu0 %v609
  %798 = vmatprep.subr.bf16.mxu0 0
  %799 = vmatpush1.bf16.msra.mxu0 %v610
  %800 = vmatprep.subr.bf16.mxu0 0
  %801 = vmatpush1.bf16.msra.mxu0 %v611
  %802 = vmatprep.subr.bf16.mxu0 0
  %803 = vmatpush1.bf16.msra.mxu0 %v612
  %804 = vmatprep.subr.bf16.mxu0 0
  %805 = vmatpush1.bf16.msra.mxu0 %v613
  %806 = vmatprep.mubr.bf16.mxu0 %v265
  %807 = vmatmul.mubr.bf16.gmra.mrb[0].mxu0 %v264
  %v808 = vpop.f32.mrb[0].mxu0
  %v809 = vadd.f32 %v745, %v808
  %v810 = vpop.f32.mrb[0].mxu0
  %v811 = vpop.f32.mrb[0].mxu0
  %v812 = vadd.f32 %v748, %v811
  %v813 = vpop.f32.mrb[0].mxu0
  %814 = vmatprep.mubr.bf16.mxu0 %v273
  %815 = vmatmul.mubr.bf16.gmra.mrb[0].mxu0 %v272
  %v816 = vpop.f32.mrb[0].mxu0
  %v817 = vadd.f32 %v753, %v816
  %v818 = vpop.f32.mrb[0].mxu0
  %v819 = vpop.f32.mrb[0].mxu0
  %v820 = vadd.f32 %v756, %v819
  %v821 = vpop.f32.mrb[0].mxu0
  %822 = vmatprep.mubr.bf16.mxu0 %v281
  %823 = vmatmul.mubr.bf16.gmra.mrb[0].mxu0 %v280
  %v824 = vpop.f32.mrb[0].mxu0
  %v825 = vadd.f32 %v761, %v824
  %v826 = vpop.f32.mrb[0].mxu0
  %v827 = vpop.f32.mrb[0].mxu0
  %v828 = vadd.f32 %v764, %v827
  %v829 = vpop.f32.mrb[0].mxu0
  %830 = vmatprep.mubr.bf16.mxu0 %v289
  %831 = vmatmul.mubr.bf16.gmra.mrb[0].mxu0 %v288
  %v832 = vpop.f32.mrb[0].mxu0
  %v833 = vadd.f32 %v769, %v832
  %v834 = vpop.f32.mrb[0].mxu0
  %v835 = vpop.f32.mrb[0].mxu0
  %v836 = vpop.f32.mrb[0].mxu0
  %837 = vdwg.mxu0
  %838 = vmatprep.subr.bf16.mxu0 0
  %839 = vmatpush1.bf16.msra.mxu0 %v614
  %840 = vmatprep.subr.bf16.mxu0 0
  %841 = vmatpush1.bf16.msra.mxu0 %v615
  %842 = vmatprep.subr.bf16.mxu0 0
  %843 = vmatpush1.bf16.msra.mxu0 %v616
  %844 = vmatprep.subr.bf16.mxu0 0
  %845 = vmatpush1.bf16.msra.mxu0 %v617
  %846 = vmatprep.subr.bf16.mxu0 0
  %847 = vmatpush1.bf16.msra.mxu0 %v618
  %848 = vmatprep.subr.bf16.mxu0 0
  %849 = vmatpush1.bf16.msra.mxu0 %v619
  %850 = vmatprep.subr.bf16.mxu0 0
  %851 = vmatpush1.bf16.msra.mxu0 %v620
  %852 = vmatprep.subr.bf16.mxu0 0
  %853 = vmatpush1.bf16.msra.mxu0 %v621
  %854 = vmatprep.subr.bf16.mxu0 0
  %855 = vmatpush1.bf16.msra.mxu0 %v622
  %856 = vmatprep.subr.bf16.mxu0 0
  %857 = vmatpush1.bf16.msra.mxu0 %v623
  %858 = vmatprep.subr.bf16.mxu0 0
  %859 = vmatpush1.bf16.msra.mxu0 %v624
  %860 = vmatprep.subr.bf16.mxu0 0
  %861 = vmatpush1.bf16.msra.mxu0 %v625
  %862 = vmatprep.subr.bf16.mxu0 0
  %863 = vmatpush1.bf16.msra.mxu0 %v626
  %864 = vmatprep.subr.bf16.mxu0 0
  %865 = vmatpush1.bf16.msra.mxu0 %v627
  %866 = vmatprep.subr.bf16.mxu0 0
  %867 = vmatpush1.bf16.msra.mxu0 %v628
  %868 = vmatprep.subr.bf16.mxu0 0
  %869 = vmatpush1.bf16.msra.mxu0 %v629
  %870 = vmatprep.mubr.bf16.mxu0 %v267
  %871 = vmatmul.mubr.bf16.gmra.mrb[0].mxu0 %v266
  %v872 = vpop.f32.mrb[0].mxu0
  %v873 = vadd.f32 %v809, %v872
  %v874 = vpop.f32.mrb[0].mxu0
  %v875 = vpop.f32.mrb[0].mxu0
  %v876 = vadd.f32 %v812, %v875
  %v877 = vpop.f32.mrb[0].mxu0
  %878 = vmatprep.mubr.bf16.mxu0 %v275
  %879 = vmatmul.mubr.bf16.gmra.mrb[0].mxu0 %v274
  %v880 = vpop.f32.mrb[0].mxu0
  %v881 = vadd.f32 %v817, %v880
  %v882 = vpop.f32.mrb[0].mxu0
  %v883 = vpop.f32.mrb[0].mxu0
  %v884 = vadd.f32 %v820, %v883
  %v885 = vpop.f32.mrb[0].mxu0
  %886 = vmatprep.mubr.bf16.mxu0 %v283
  %887 = vmatmul.mubr.bf16.gmra.mrb[0].mxu0 %v282
  %v888 = vpop.f32.mrb[0].mxu0
  %v889 = vadd.f32 %v825, %v888
  %v890 = vpop.f32.mrb[0].mxu0
  %v891 = vpop.f32.mrb[0].mxu0
  %v892 = vadd.f32 %v828, %v891
  %v893 = vpop.f32.mrb[0].mxu0
  %894 = vmatprep.mubr.bf16.mxu0 %v291
  %895 = vmatmul.mubr.bf16.gmra.mrb[0].mxu0 %v290
  %v896 = vpop.f32.mrb[0].mxu0
  %v897 = vadd.f32 %v833, %v896
  %v898 = vpop.f32.mrb[0].mxu0
  %v899 = vpop.f32.mrb[0].mxu0
  %v900 = vpop.f32.mrb[0].mxu0
  %901 = vdwg.mxu0
  %902 = vmatprep.subr.bf16.mxu0 0
  %903 = vmatpush1.bf16.msra.mxu0 %v630
  %904 = vmatprep.subr.bf16.mxu0 0
  %905 = vmatpush1.bf16.msra.mxu0 %v631
  %906 = vmatprep.subr.bf16.mxu0 0
  %907 = vmatpush1.bf16.msra.mxu0 %v632
  %908 = vmatprep.subr.bf16.mxu0 0
  %909 = vmatpush1.bf16.msra.mxu0 %v633
  %910 = vmatprep.subr.bf16.mxu0 0
  %911 = vmatpush1.bf16.msra.mxu0 %v634
  %912 = vmatprep.subr.bf16.mxu0 0
  %913 = vmatpush1.bf16.msra.mxu0 %v635
  %914 = vmatprep.subr.bf16.mxu0 0
  %915 = vmatpush1.bf16.msra.mxu0 %v636
  %916 = vmatprep.subr.bf16.mxu0 0
  %917 = vmatpush1.bf16.msra.mxu0 %v637
  %918 = vmatprep.subr.bf16.mxu0 0
  %919 = vmatpush1.bf16.msra.mxu0 %v638
  %920 = vmatprep.subr.bf16.mxu0 0
  %921 = vmatpush1.bf16.msra.mxu0 %v639
  %922 = vmatprep.subr.bf16.mxu0 0
  %923 = vmatpush1.bf16.msra.mxu0 %v640
  %924 = vmatprep.subr.bf16.mxu0 0
  %925 = vmatpush1.bf16.msra.mxu0 %v641
  %926 = vmatprep.subr.bf16.mxu0 0
  %927 = vmatpush1.bf16.msra.mxu0 %v642
  %928 = vmatprep.subr.bf16.mxu0 0
  %929 = vmatpush1.bf16.msra.mxu0 %v643
  %930 = vmatprep.subr.bf16.mxu0 0
  %931 = vmatpush1.bf16.msra.mxu0 %v644
  %932 = vmatprep.subr.bf16.mxu0 0
  %933 = vmatpush1.bf16.msra.mxu0 %v645
  %934 = vmatprep.mubr.bf16.mxu0 %v269
  %935 = vmatmul.mubr.bf16.gmra.mrb[0].mxu0 %v268
  %v936 = vpop.f32.mrb[0].mxu0
  %v937 = vadd.f32 %v873, %v936
  %v938 = vpop.f32.mrb[0].mxu0
  %v939 = vpop.f32.mrb[0].mxu0
  %v940 = vadd.f32 %v876, %v939
  %v941 = vpop.f32.mrb[0].mxu0
  %942 = vmatprep.mubr.bf16.mxu0 %v277
  %943 = vmatmul.mubr.bf16.gmra.mrb[0].mxu0 %v276
  %v944 = vpop.f32.mrb[0].mxu0
  %v945 = vadd.f32 %v881, %v944
  %v946 = vpop.f32.mrb[0].mxu0
  %v947 = vpop.f32.mrb[0].mxu0
  %v948 = vadd.f32 %v884, %v947
  %v949 = vpop.f32.mrb[0].mxu0
  %950 = vmatprep.mubr.bf16.mxu0 %v285
  %951 = vmatmul.mubr.bf16.gmra.mrb[0].mxu0 %v284
  %v952 = vpop.f32.mrb[0].mxu0
  %v953 = vadd.f32 %v889, %v952
  %v954 = vpop.f32.mrb[0].mxu0
  %v955 = vpop.f32.mrb[0].mxu0
  %v956 = vadd.f32 %v892, %v955
  %v957 = vpop.f32.mrb[0].mxu0
  %958 = vmatprep.mubr.bf16.mxu0 %v293
  %959 = vmatmul.mubr.bf16.gmra.mrb[0].mxu0 %v292
  %v960 = vpop.f32.mrb[0].mxu0
  %v961 = vadd.f32 %v897, %v960
  %v962 = vpop.f32.mrb[0].mxu0
  %v963 = vpop.f32.mrb[0].mxu0
  %v964 = vpop.f32.mrb[0].mxu0
  %965 = vdwg.mxu0
  %v966 = vmax.f32 %v937, 0.0
  %v967 = vmax.f32 %v940, 0.0
  %v968 = vmax.f32 %v945, 0.0
  %v969 = vmax.f32 %v948, 0.0
  %v970 = vmax.f32 %v953, 0.0
  %v971 = vmax.f32 %v956, 0.0
  %v972 = vmax.f32 %v961, 0.0
  %973 = vst [vmem:[%s3] sm:$0xff] %v966
  %974 = vst [vmem:[%s3 + $0x8] sm:$0xff] %v967
  %975 = vst [vmem:[%s3 + $0x10] sm:$0xff] %v968
  %976 = vst [vmem:[%s3 + $0x18] sm:$0xff] %v969
  %977 = vst [vmem:[%s3 + $0x20] sm:$0xff] %v970
  %978 = vst [vmem:[%s3 + $0x28] sm:$0xff] %v971
  %979 = vst [vmem:[%s3 + $0x30] sm:$0xff] %v972
  // Predicated region
  $region14: #{_forward_dense.7} parent=0 // pred_check
    _
  $region15: #{_forward_dense.7} parent=0 // pred_check_branch
    %981 = sbr.rel (0) target = $region17
  $region16: #{_forward_dense.7} parent=0 // pred_region
    _
  $region17: #{_forward_dense.7} parent=0 // pred_fallthru
    _
  // Predicated region
  $region18: #{_forward_dense.7} parent=0 // pred_check
    _
  $region19: #{_forward_dense.7} parent=0 // pred_check_branch
    %983 = sbr.rel (0) target = $region21
  $region20: #{_forward_dense.7} parent=0 // pred_region
    _
  $region21: #{_forward_dense.7} parent=0 // pred_fallthru
    _

// kernel: _forward_dense.9
$region0: #{_forward_dense.9}
  #allocation0 [shape = 'u32[]', space=smem, size = 0x4, offset = 0x4, fixed_abs, tag = 'smem constant byte address 0x4 - core index']
  #allocation1 [shape = 'u32[144,128]{1,0:T(1,128)}', space=vmem, size = 0x12000, scoped, tag = 'internal scratch']
  %s0 = inlined_call_operand.vmem [shape: bf16[16,9], index: 0, kind: input, shape index: {}]
  %s1 = inlined_call_operand.vmem [shape: bf16[9,384], index: 1, kind: input, shape index: {}]
  %s2 = inlined_call_operand.vmem [shape: f32[1,384], index: 2, kind: input, shape index: {}]
  %s3 = inlined_call_operand.vmem [shape: f32[16,384], index: 3, kind: output, shape index: {}]
  %s4 = sld [smem:[#allocation0]]
  $region22: #{_forward_dense.9} parent=0
    _
  %s6 = ssub.s32 1, %s4
  %s7 = scalar_select 0, %s6, %s4
  // Predicated region
  $region2: #{_forward_dense.9} parent=0 // pred_check
    _
  $region3: #{_forward_dense.9} parent=0 // pred_check_branch
    %9 = sbr.rel (0) target = $region5
  $region4: #{_forward_dense.9} parent=0 // pred_region
    _
  $region5: #{_forward_dense.9} parent=0 // pred_fallthru
    _
  // Predicated region
  $region6: #{_forward_dense.9} parent=0 // pred_check
    _
  $region7: #{_forward_dense.9} parent=0 // pred_check_branch
    %11 = sbr.rel (0) target = $region9
  $region8: #{_forward_dense.9} parent=0 // pred_region
    _
  $region9: #{_forward_dense.9} parent=0 // pred_fallthru
    _
  // Predicated region
  $region10: #{_forward_dense.9} parent=0 // pred_check
    _
  $region11: #{_forward_dense.9} parent=0 // pred_check_branch
    %13 = sbr.rel (0) target = $region13
  $region12: #{_forward_dense.9} parent=0 // pred_region
    _
  $region13: #{_forward_dense.9} parent=0 // pred_fallthru
    _
  %v15 = vld [vmem:[%s0] sm:$0xf]
  %v16 = vld [vmem:[%s0 + $0x4] sm:$0xf]
  %v17 = vld [vmem:[%s1] sm:$0xff]
  %v18 = vld [vmem:[%s1 + $0x8] sm:$0xf]
  %v19 = vld [vmem:[%s1 + $0xc] sm:$0x11]
  %v20 = vld [vmem:[%s1 + $0x14] sm:$0x1]
  %v21 = vld [vmem:[%s2] sm:$0x7]
  %v23 = vlaneseq
  %v24 = vshrl.u32 %v23, 7
  %v25 = vsub.s32 0, %v24
  %v26 = vrot.slane %v21, %v25
  %v27 = vlaneseq
  %v28 = vshrl.u32 %v27, 7
  %v29 = vsub.s32 1, %v28
  %v30 = vrot.slane %v21, %v29
  %v31 = vlaneseq
  %v32 = vshrl.u32 %v31, 7
  %v33 = vsub.s32 2, %v32
  %v34 = vrot.slane %v21, %v33
  %v40 = vunpack.c.l.b16 %v15
  %v41 = vunpack.c.l.b16 %v16
  %v42 = vpack.c.b16 %v41, %v40
  %v47 = vunpack.c.l.b16 %v17
  %v48 = vunpack.c.h.b16 %v17
  %v49 = vunpack.c.l.b16 %v18
  %v50 = vunpack.c.l.b16 %v19
  %v51 = vunpack.c.h.b16 %v19
  %v52 = vunpack.c.l.b16 %v20
  %v53 = vpack.c.b16 %v50, %v47
  %v54 = vpack.c.b16 %v51, %v48
  %v55 = vpack.c.b16 %v52, %v49
  %vm56 = vcmask 72704
  %v58 = vsel %vm56, %v42, 0
  %vm60 = vcmask 1043456
  %vm61 = vcmask 1044480
  %v62 = vsel %vm60, 4294967295, 65535
  %v63 = vsel %vm61, %v62, 0
  %v65 = vand.u32 %v53, %v63
  %v68 = vand.u32 %v54, %v63
  %v71 = vand.u32 %v55, %v63
  %73 = vmatprep.subr.bf16.mxu0 %v68
  %74 = vmatpush1.bf16.msra.mxu0 %v65
  %75 = vmatprep.subr.bf16.mxu0 0
  %76 = vmatpush1.bf16.msra.mxu0 0
  %77 = vmatprep.subr.bf16.mxu0 0
  %78 = vmatpush1.bf16.msra.mxu0 0
  %79 = vmatprep.subr.bf16.mxu0 0
  %80 = vmatpush1.bf16.msra.mxu0 0
  %81 = vmatprep.subr.bf16.mxu0 0
  %82 = vmatpush1.bf16.msra.mxu0 0
  %83 = vmatprep.subr.bf16.mxu0 0
  %84 = vmatpush1.bf16.msra.mxu0 0
  %85 = vmatprep.subr.bf16.mxu0 0
  %86 = vmatpush1.bf16.msra.mxu0 0
  %87 = vmatprep.subr.bf16.mxu0 0
  %88 = vmatpush1.bf16.msra.mxu0 0
  %89 = vmatprep.subr.bf16.mxu0 0
  %90 = vmatpush1.bf16.msra.mxu0 0
  %91 = vmatprep.subr.bf16.mxu0 0
  %92 = vmatpush1.bf16.msra.mxu0 0
  %93 = vmatprep.subr.bf16.mxu0 0
  %94 = vmatpush1.bf16.msra.mxu0 0
  %95 = vmatprep.subr.bf16.mxu0 0
  %96 = vmatpush1.bf16.msra.mxu0 0
  %97 = vmatprep.subr.bf16.mxu0 0
  %98 = vmatpush1.bf16.msra.mxu0 0
  %99 = vmatprep.subr.bf16.mxu0 0
  %100 = vmatpush1.bf16.msra.mxu0 0
  %101 = vmatprep.subr.bf16.mxu0 0
  %102 = vmatpush1.bf16.msra.mxu0 0
  %103 = vmatprep.subr.bf16.mxu0 0
  %104 = vmatpush1.bf16.msra.mxu0 0
  %105 = vmatprep.mubr.bf16.mxu0 0
  %106 = vmatmul.mubr.bf16.gmra.mrb[0].mxu0 %v58
  %v107 = vpop.f32.mrb[0].mxu0
  %v108 = vadd.f32 %v26, %v107
  %v109 = vpop.f32.mrb[0].mxu0
  %v110 = vadd.f32 %v30, %v109
  %v111 = vpop.f32.mrb[0].mxu0
  %v112 = vadd.f32 %v26, %v111
  %v113 = vpop.f32.mrb[0].mxu0
  %v114 = vadd.f32 %v30, %v113
  %115 = vdwg.mxu0
  %116 = vmatprep.subr.bf16.mxu0 0
  %117 = vmatpush1.bf16.msra.mxu0 %v71
  %118 = vmatprep.subr.bf16.mxu0 0
  %119 = vmatpush1.bf16.msra.mxu0 0
  %120 = vmatprep.subr.bf16.mxu0 0
  %121 = vmatpush1.bf16.msra.mxu0 0
  %122 = vmatprep.subr.bf16.mxu0 0
  %123 = vmatpush1.bf16.msra.mxu0 0
  %124 = vmatprep.subr.bf16.mxu0 0
  %125 = vmatpush1.bf16.msra.mxu0 0
  %126 = vmatprep.subr.bf16.mxu0 0
  %127 = vmatpush1.bf16.msra.mxu0 0
  %128 = vmatprep.subr.bf16.mxu0 0
  %129 = vmatpush1.bf16.msra.mxu0 0
  %130 = vmatprep.subr.bf16.mxu0 0
  %131 = vmatpush1.bf16.msra.mxu0 0
  %132 = vmatprep.subr.bf16.mxu0 0
  %133 = vmatpush1.bf16.msra.mxu0 0
  %134 = vmatprep.subr.bf16.mxu0 0
  %135 = vmatpush1.bf16.msra.mxu0 0
  %136 = vmatprep.subr.bf16.mxu0 0
  %137 = vmatpush1.bf16.msra.mxu0 0
  %138 = vmatprep.subr.bf16.mxu0 0
  %139 = vmatpush1.bf16.msra.mxu0 0
  %140 = vmatprep.subr.bf16.mxu0 0
  %141 = vmatpush1.bf16.msra.mxu0 0
  %142 = vmatprep.subr.bf16.mxu0 0
  %143 = vmatpush1.bf16.msra.mxu0 0
  %144 = vmatprep.subr.bf16.mxu0 0
  %145 = vmatpush1.bf16.msra.mxu0 0
  %146 = vmatprep.subr.bf16.mxu0 0
  %147 = vmatpush1.bf16.msra.mxu0 0
  %148 = vmatprep.mubr.bf16.mxu0 0
  %149 = vmatmul.mubr.bf16.gmra.mrb[0].mxu0 %v58
  %v150 = vpop.f32.mrb[0].mxu0
  %v151 = vadd.f32 %v34, %v150
  %v152 = vpop.f32.mrb[0].mxu0
  %v153 = vpop.f32.mrb[0].mxu0
  %v154 = vadd.f32 %v34, %v153
  %v155 = vpop.f32.mrb[0].mxu0
  %156 = vdwg.mxu0
  %157 = vst [vmem:[%s3] sm:$0xff] %v108
  %158 = vst [vmem:[%s3 + $0x8] sm:$0xff] %v110
  %159 = vst [vmem:[%s3 + $0x10] sm:$0xff] %v151
  %160 = vst [vmem:[%s3 + $0x18] sm:$0xff] %v112
  %161 = vst [vmem:[%s3 + $0x20] sm:$0xff] %v114
  %162 = vst [vmem:[%s3 + $0x28] sm:$0xff] %v154
  // Predicated region
  $region14: #{_forward_dense.9} parent=0 // pred_check
    _
  $region15: #{_forward_dense.9} parent=0 // pred_check_branch
    %164 = sbr.rel (0) target = $region17
  $region16: #{_forward_dense.9} parent=0 // pred_region
    _
  $region17: #{_forward_dense.9} parent=0 // pred_fallthru
    _
  // Predicated region
  $region18: #{_forward_dense.9} parent=0 // pred_check
    _
  $region19: #{_forward_dense.9} parent=0 // pred_check_branch
    %166 = sbr.rel (0) target = $region21
  $region20: #{_forward_dense.9} parent=0 // pred_region
    _
  $region21: #{_forward_dense.9} parent=0 // pred_fallthru
    _

// kernel: _forward_dense.8
$region0: #{_forward_dense.8}
  #allocation0 [shape = 'u32[]', space=smem, size = 0x4, offset = 0x4, fixed_abs, tag = 'smem constant byte address 0x4 - core index']
  #allocation1 [shape = 'u32[144,128]{1,0:T(1,128)}', space=vmem, size = 0x12000, scoped, tag = 'internal scratch']
  %s0 = inlined_call_operand.vmem [shape: bf16[8,3200], index: 0, kind: input, shape index: {}]
  %s1 = inlined_call_operand.vmem [shape: bf16[3200,512], index: 1, kind: input, shape index: {}]
  %s2 = inlined_call_operand.vmem [shape: f32[1,512], index: 2, kind: input, shape index: {}]
  %s3 = inlined_call_operand.vmem [shape: f32[8,512], index: 3, kind: output, shape index: {}]
  %s4 = sld [smem:[#allocation0]]
  $region22: #{_forward_dense.8} parent=0
    _
  %s6 = ssub.s32 1, %s4
  %s7 = scalar_select 0, %s6, %s4
  // Predicated region
  $region2: #{_forward_dense.8} parent=0 // pred_check
    _
  $region3: #{_forward_dense.8} parent=0 // pred_check_branch
    %9 = sbr.rel (0) target = $region5
  $region4: #{_forward_dense.8} parent=0 // pred_region
    _
  $region5: #{_forward_dense.8} parent=0 // pred_fallthru
    _
  // Predicated region
  $region6: #{_forward_dense.8} parent=0 // pred_check
    _
  $region7: #{_forward_dense.8} parent=0 // pred_check_branch
    %11 = sbr.rel (0) target = $region9
  $region8: #{_forward_dense.8} parent=0 // pred_region
    _
  $region9: #{_forward_dense.8} parent=0 // pred_fallthru
    _
  // Predicated region
  $region10: #{_forward_dense.8} parent=0 // pred_check
    _
  $region11: #{_forward_dense.8} parent=0 // pred_check_branch
    %13 = sbr.rel (0) target = $region13
  $region12: #{_forward_dense.8} parent=0 // pred_region
    _
  $region13: #{_forward_dense.8} parent=0 // pred_fallthru
    _
  %v15 = vld [vmem:[%s0] sm:$0xff]
  %v16 = vld [vmem:[%s0 + $0x8] sm:$0xff]
  %v17 = vld [vmem:[%s0 + $0x10] sm:$0xff]
  %v18 = vld [vmem:[%s0 + $0x18] sm:$0xff]
  %v19 = vld [vmem:[%s0 + $0x20] sm:$0xff]
  %v20 = vld [vmem:[%s0 + $0x28] sm:$0xff]
  %v21 = vld [vmem:[%s0 + $0x30] sm:$0xff]
  %v22 = vld [vmem:[%s0 + $0x38] sm:$0xff]
  %v23 = vld [vmem:[%s0 + $0x40] sm:$0xff]
  %v24 = vld [vmem:[%s0 + $0x48] sm:$0xff]
  %v25 = vld [vmem:[%s0 + $0x50] sm:$0xff]
  %v26 = vld [vmem:[%s0 + $0x58] sm:$0xff]
  %v27 = vld [vmem:[%s0 + $0x60] sm:$0xf]
  %v28 = vld [vmem:[%s1] sm:$0xff]
  %v29 = vld [vmem:[%s1 + $0x8] sm:$0xff]
  %v30 = vld [vmem:[%s1 + $0x10] sm:$0xff]
  %v31 = vld [vmem:[%s1 + $0x18] sm:$0xff]
  %v32 = vld [vmem:[%s1 + $0x20] sm:$0xff]
  %v33 = vld [vmem:[%s1 + $0x28] sm:$0xff]
  %v34 = vld [vmem:[%s1 + $0x30] sm:$0xff]
  %v35 = vld [vmem:[%s1 + $0x38] sm:$0xff]
  %v36 = vld [vmem:[%s1 + $0x40] sm:$0xff]
  %v37 = vld [vmem:[%s1 + $0x48] sm:$0xff]
  %v38 = vld [vmem:[%s1 + $0x50] sm:$0xff]
  %v39 = vld [vmem:[%s1 + $0x58] sm:$0xff]
  %v40 = vld [vmem:[%s1 + $0x60] sm:$0xff]
  %v41 = vld [vmem:[%s1 + $0x68] sm:$0xff]
  %v42 = vld [vmem:[%s1 + $0x70] sm:$0xff]
  %v43 = vld [vmem:[%s1 + $0x78] sm:$0xff]
  %v44 = vld [vmem:[%s1 + $0x80] sm:$0xff]
  %v45 = vld [vmem:[%s1 + $0x88] sm:$0xff]
  %v46 = vld [vmem:[%s1 + $0x90] sm:$0xff]
  %v47 = vld [vmem:[%s1 + $0x98] sm:$0xff]
  %v48 = vld [vmem:[%s1 + $0xa0] sm:$0xff]
  %v49 = vld [vmem:[%s1 + $0xa8] sm:$0xff]
  %v50 = vld [vmem:[%s1 + $0xb0] sm:$0xff]
  %v51 = vld [vmem:[%s1 + $0xb8] sm:$0xff]
  %v52 = vld [vmem:[%s1 + $0xc0] sm:$0xff]
  %v53 = vld [vmem:[%s1 + $0xc8] sm:$0xff]
  %v54 = vld [vmem:[%s1 + $0xd0] sm:$0xff]
  %v55 = vld [vmem:[%s1 + $0xd8] sm:$0xff]
  %v56 = vld [vmem:[%s1 + $0xe0] sm:$0xff]
  %v57 = vld [vmem:[%s1 + $0xe8] sm:$0xff]
  %v58 = vld [vmem:[%s1 + $0xf0] sm:$0xff]
  %v59 = vld [vmem:[%s1 + $0xf8] sm:$0xff]
  %v60 = vld [vmem:[%s1 + $0x100] sm:$0xff]
  %v61 = vld [vmem:[%s1 + $0x108] sm:$0xff]
  %v62 = vld [vmem:[%s1 + $0x110] sm:$0xff]
  %v63 = vld [vmem:[%s1 + $0x118] sm:$0xff]
  %v64 = vld [vmem:[%s1 + $0x120] sm:$0xff]
  %v65 = vld [vmem:[%s1 + $0x128] sm:$0xff]
  %v66 = vld [vmem:[%s1 + $0x130] sm:$0xff]
  %v67 = vld [vmem:[%s1 + $0x138] sm:$0xff]
  %v68 = vld [vmem:[%s1 + $0x140] sm:$0xff]
  %v69 = vld [vmem:[%s1 + $0x148] sm:$0xff]
  %v70 = vld [vmem:[%s1 + $0x150] sm:$0xff]
  %v71 = vld [vmem:[%s1 + $0x158] sm:$0xff]
  %v72 = vld [vmem:[%s1 + $0x160] sm:$0xff]
  %v73 = vld [vmem:[%s1 + $0x168] sm:$0xff]
  %v74 = vld [vmem:[%s1 + $0x170] sm:$0xff]
  %v75 = vld [vmem:[%s1 + $0x178] sm:$0xff]
  %v76 = vld [vmem:[%s1 + $0x180] sm:$0xff]
  %v77 = vld [vmem:[%s1 + $0x188] sm:$0xff]
  %v78 = vld [vmem:[%s1 + $0x190] sm:$0xff]
  %v79 = vld [vmem:[%s1 + $0x198] sm:$0xff]
  %v80 = vld [vmem:[%s1 + $0x1a0] sm:$0xff]
  %v81 = vld [vmem:[%s1 + $0x1a8] sm:$0xff]
  %v82 = vld [vmem:[%s1 + $0x1b0] sm:$0xff]
  %v83 = vld [vmem:[%s1 + $0x1b8] sm:$0xff]
  %v84 = vld [vmem:[%s1 + $0x1c0] sm:$0xff]
  %v85 = vld [vmem:[%s1 + $0x1c8] sm:$0xff]
  %v86 = vld [vmem:[%s1 + $0x1d0] sm:$0xff]
  %v87 = vld [vmem:[%s1 + $0x1d8] sm:$0xff]
  %v88 = vld [vmem:[%s1 + $0x1e0] sm:$0xff]
  %v89 = vld [vmem:[%s1 + $0x1e8] sm:$0xff]
  %v90 = vld [vmem:[%s1 + $0x1f0] sm:$0xff]
  %v91 = vld [vmem:[%s1 + $0x1f8] sm:$0xff]
  %v92 = vld [vmem:[%s1 + $0x200] sm:$0xff]
  %v93 = vld [vmem:[%s1 + $0x208] sm:$0xff]
  %v94 = vld [vmem:[%s1 + $0x210] sm:$0xff]
  %v95 = vld [vmem:[%s1 + $0x218] sm:$0xff]
  %v96 = vld [vmem:[%s1 + $0x220] sm:$0xff]
  %v97 = vld [vmem:[%s1 + $0x228] sm:$0xff]
  %v98 = vld [vmem:[%s1 + $0x230] sm:$0xff]
  %v99 = vld [vmem:[%s1 + $0x238] sm:$0xff]
  %v100 = vld [vmem:[%s1 + $0x240] sm:$0xff]
  %v101 = vld [vmem:[%s1 + $0x248] sm:$0xff]
  %v102 = vld [vmem:[%s1 + $0x250] sm:$0xff]
  %v103 = vld [vmem:[%s1 + $0x258] sm:$0xff]
  %v104 = vld [vmem:[%s1 + $0x260] sm:$0xff]
  %v105 = vld [vmem:[%s1 + $0x268] sm:$0xff]
  %v106 = vld [vmem:[%s1 + $0x270] sm:$0xff]
  %v107 = vld [vmem:[%s1 + $0x278] sm:$0xff]
  %v108 = vld [vmem:[%s1 + $0x280] sm:$0xff]
  %v109 = vld [vmem:[%s1 + $0x288] sm:$0xff]
  %v110 = vld [vmem:[%s1 + $0x290] sm:$0xff]
  %v111 = vld [vmem:[%s1 + $0x298] sm:$0xff]
  %v112 = vld [vmem:[%s1 + $0x2a0] sm:$0xff]
  %v113 = vld [vmem:[%s1 + $0x2a8] sm:$0xff]
  %v114 = vld [vmem:[%s1 + $0x2b0] sm:$0xff]
  %v115 = vld [vmem:[%s1 + $0x2b8] sm:$0xff]
  %v116 = vld [vmem:[%s1 + $0x2c0] sm:$0xff]
  %v117 = vld [vmem:[%s1 + $0x2c8] sm:$0xff]
  %v118 = vld [vmem:[%s1 + $0x2d0] sm:$0xff]
  %v119 = vld [vmem:[%s1 + $0x2d8] sm:$0xff]
  %v120 = vld [vmem:[%s1 + $0x2e0] sm:$0xff]
  %v121 = vld [vmem:[%s1 + $0x2e8] sm:$0xff]
  %v122 = vld [vmem:[%s1 + $0x2f0] sm:$0xff]
  %v123 = vld [vmem:[%s1 + $0x2f8] sm:$0xff]
  %v124 = vld [vmem:[%s1 + $0x300] sm:$0xff]
  %v125 = vld [vmem:[%s1 + $0x308] sm:$0xff]
  %v126 = vld [vmem:[%s1 + $0x310] sm:$0xff]
  %v127 = vld [vmem:[%s1 + $0x318] sm:$0xff]
  %v128 = vld [vmem:[%s1 + $0x320] sm:$0xff]
  %v129 = vld [vmem:[%s1 + $0x328] sm:$0xff]
  %v130 = vld [vmem:[%s1 + $0x330] sm:$0xff]
  %v131 = vld [vmem:[%s1 + $0x338] sm:$0xff]
  %v132 = vld [vmem:[%s1 + $0x340] sm:$0xff]
  %v133 = vld [vmem:[%s1 + $0x348] sm:$0xff]
  %v134 = vld [vmem:[%s1 + $0x350] sm:$0xff]
  %v135 = vld [vmem:[%s1 + $0x358] sm:$0xff]
  %v136 = vld [vmem:[%s1 + $0x360] sm:$0xff]
  %v137 = vld [vmem:[%s1 + $0x368] sm:$0xff]
  %v138 = vld [vmem:[%s1 + $0x370] sm:$0xff]
  %v139 = vld [vmem:[%s1 + $0x378] sm:$0xff]
  %v140 = vld [vmem:[%s1 + $0x380] sm:$0xff]
  %v141 = vld [vmem:[%s1 + $0x388] sm:$0xff]
  %v142 = vld [vmem:[%s1 + $0x390] sm:$0xff]
  %v143 = vld [vmem:[%s1 + $0x398] sm:$0xff]
  %v144 = vld [vmem:[%s1 + $0x3a0] sm:$0xff]
  %v145 = vld [vmem:[%s1 + $0x3a8] sm:$0xff]
  %v146 = vld [vmem:[%s1 + $0x3b0] sm:$0xff]
  %v147 = vld [vmem:[%s1 + $0x3b8] sm:$0xff]
  %v148 = vld [vmem:[%s1 + $0x3c0] sm:$0xff]
  %v149 = vld [vmem:[%s1 + $0x3c8] sm:$0xff]
  %v150 = vld [vmem:[%s1 + $0x3d0] sm:$0xff]
  %v151 = vld [vmem:[%s1 + $0x3d8] sm:$0xff]
  %v152 = vld [vmem:[%s1 + $0x3e0] sm:$0xff]
  %v153 = vld [vmem:[%s1 + $0x3e8] sm:$0xff]
  %v154 = vld [vmem:[%s1 + $0x3f0] sm:$0xff]
  %v155 = vld [vmem:[%s1 + $0x3f8] sm:$0xff]
  %v156 = vld [vmem:[%s1 + $0x400] sm:$0xff]
  %v157 = vld [vmem:[%s1 + $0x408] sm:$0xff]
  %v158 = vld [vmem:[%s1 + $0x410] sm:$0xff]
  %v159 = vld [vmem:[%s1 + $0x418] sm:$0xff]
  %v160 = vld [vmem:[%s1 + $0x420] sm:$0xff]
  %v161 = vld [vmem:[%s1 + $0x428] sm:$0xff]
  %v162 = vld [vmem:[%s1 + $0x430] sm:$0xff]
  %v163 = vld [vmem:[%s1 + $0x438] sm:$0xff]
  %v164 = vld [vmem:[%s1 + $0x440] sm:$0xff]
  %v165 = vld [vmem:[%s1 + $0x448] sm:$0xff]
  %v166 = vld [vmem:[%s1 + $0x450] sm:$0xff]
  %v167 = vld [vmem:[%s1 + $0x458] sm:$0xff]
  %v168 = vld [vmem:[%s1 + $0x460] sm:$0xff]
  %v169 = vld [vmem:[%s1 + $0x468] sm:$0xff]
  %v170 = vld [vmem:[%s1 + $0x470] sm:$0xff]
  %v171 = vld [vmem:[%s1 + $0x478] sm:$0xff]
  %v172 = vld [vmem:[%s1 + $0x480] sm:$0xff]
  %v173 = vld [vmem:[%s1 + $0x488] sm:$0xff]
  %v174 = vld [vmem:[%s1 + $0x490] sm:$0xff]
  %v175 = vld [vmem:[%s1 + $0x498] sm:$0xff]
  %v176 = vld [vmem:[%s1 + $0x4a0] sm:$0xff]
  %v177 = vld [vmem:[%s1 + $0x4a8] sm:$0xff]
  %v178 = vld [vmem:[%s1 + $0x4b0] sm:$0xff]
  %v179 = vld [vmem:[%s1 + $0x4b8] sm:$0xff]
  %v180 = vld [vmem:[%s1 + $0x4c0] sm:$0xff]
  %v181 = vld [vmem:[%s1 + $0x4c8] sm:$0xff]
  %v182 = vld [vmem:[%s1 + $0x4d0] sm:$0xff]
  %v183 = vld [vmem:[%s1 + $0x4d8] sm:$0xff]
  %v184 = vld [vmem:[%s1 + $0x4e0] sm:$0xff]
  %v185 = vld [vmem:[%s1 + $0x4e8] sm:$0xff]
  %v186 = vld [vmem:[%s1 + $0x4f0] sm:$0xff]
  %v187 = vld [vmem:[%s1 + $0x4f8] sm:$0xff]
  %v188 = vld [vmem:[%s1 + $0x500] sm:$0xff]
  %v189 = vld [vmem:[%s1 + $0x508] sm:$0xff]
  %v190 = vld [vmem:[%s1 + $0x510] sm:$0xff]
  %v191 = vld [vmem:[%s1 + $0x518] sm:$0xff]
  %v192 = vld [vmem:[%s1 + $0x520] sm:$0xff]
  %v193 = vld [vmem:[%s1 + $0x528] sm:$0xff]
  %v194 = vld [vmem:[%s1 + $0x530] sm:$0xff]
  %v195 = vld [vmem:[%s1 + $0x538] sm:$0xff]
  %v196 = vld [vmem:[%s1 + $0x540] sm:$0xff]
  %v197 = vld [vmem:[%s1 + $0x548] sm:$0xff]
  %v198 = vld [vmem:[%s1 + $0x550] sm:$0xff]
  %v199 = vld [vmem:[%s1 + $0x558] sm:$0xff]
  %v200 = vld [vmem:[%s1 + $0x560] sm:$0xff]
  %v201 = vld [vmem:[%s1 + $0x568] sm:$0xff]
  %v202 = vld [vmem:[%s1 + $0x570] sm:$0xff]
  %v203 = vld [vmem:[%s1 + $0x578] sm:$0xff]
  %v204 = vld [vmem:[%s1 + $0x580] sm:$0xff]
  %v205 = vld [vmem:[%s1 + $0x588] sm:$0xff]
  %v206 = vld [vmem:[%s1 + $0x590] sm:$0xff]
  %v207 = vld [vmem:[%s1 + $0x598] sm:$0xff]
  %v208 = vld [vmem:[%s1 + $0x5a0] sm:$0xff]
  %v209 = vld [vmem:[%s1 + $0x5a8] sm:$0xff]
  %v210 = vld [vmem:[%s1 + $0x5b0] sm:$0xff]
  %v211 = vld [vmem:[%s1 + $0x5b8] sm:$0xff]
  %v212 = vld [vmem:[%s1 + $0x5c0] sm:$0xff]
  %v213 = vld [vmem:[%s1 + $0x5c8] sm:$0xff]
  %v214 = vld [vmem:[%s1 + $0x5d0] sm:$0xff]
  %v215 = vld [vmem:[%s1 + $0x5d8] sm:$0xff]
  %v216 = vld [vmem:[%s1 + $0x5e0] sm:$0xff]
  %v217 = vld [vmem:[%s1 + $0x5e8] sm:$0xff]
  %v218 = vld [vmem:[%s1 + $0x5f0] sm:$0xff]
  %v219 = vld [vmem:[%s1 + $0x5f8] sm:$0xff]
  %v220 = vld [vmem:[%s1 + $0x600] sm:$0xff]
  %v221 = vld [vmem:[%s1 + $0x608] sm:$0xff]
  %v222 = vld [vmem:[%s1 + $0x610] sm:$0xff]
  %v223 = vld [vmem:[%s1 + $0x618] sm:$0xff]
  %v224 = vld [vmem:[%s1 + $0x620] sm:$0xff]
  %v225 = vld [vmem:[%s1 + $0x628] sm:$0xff]
  %v226 = vld [vmem:[%s1 + $0x630] sm:$0xff]
  %v227 = vld [vmem:[%s1 + $0x638] sm:$0xff]
  %v228 = vld [vmem:[%s1 + $0x640] sm:$0xff]
  %v229 = vld [vmem:[%s1 + $0x648] sm:$0xff]
  %v230 = vld [vmem:[%s1 + $0x650] sm:$0xff]
  %v231 = vld [vmem:[%s1 + $0x658] sm:$0xff]
  %v232 = vld [vmem:[%s1 + $0x660] sm:$0xff]
  %v233 = vld [vmem:[%s1 + $0x668] sm:$0xff]
  %v234 = vld [vmem:[%s1 + $0x670] sm:$0xff]
  %v235 = vld [vmem:[%s1 + $0x678] sm:$0xff]
  %v236 = vld [vmem:[%s1 + $0x680] sm:$0xff]
  %v237 = vld [vmem:[%s1 + $0x688] sm:$0xff]
  %v238 = vld [vmem:[%s1 + $0x690] sm:$0xff]
  %v239 = vld [vmem:[%s1 + $0x698] sm:$0xff]
  %v240 = vld [vmem:[%s1 + $0x6a0] sm:$0xff]
  %v241 = vld [vmem:[%s1 + $0x6a8] sm:$0xff]
  %v242 = vld [vmem:[%s1 + $0x6b0] sm:$0xff]
  %v243 = vld [vmem:[%s1 + $0x6b8] sm:$0xff]
  %v244 = vld [vmem:[%s1 + $0x6c0] sm:$0xff]
  %v245 = vld [vmem:[%s1 + $0x6c8] sm:$0xff]
  %v246 = vld [vmem:[%s1 + $0x6d0] sm:$0xff]
  %v247 = vld [vmem:[%s1 + $0x6d8] sm:$0xff]
  %v248 = vld [vmem:[%s1 + $0x6e0] sm:$0xff]
  %v249 = vld [vmem:[%s1 + $0x6e8] sm:$0xff]
  %v250 = vld [vmem:[%s1 + $0x6f0] sm:$0xff]
  %v251 = vld [vmem:[%s1 + $0x6f8] sm:$0xff]
  %v252 = vld [vmem:[%s1 + $0x700] sm:$0xff]
  %v253 = vld [vmem:[%s1 + $0x708] sm:$0xff]
  %v254 = vld [vmem:[%s1 + $0x710] sm:$0xff]
  %v255 = vld [vmem:[%s1 + $0x718] sm:$0xff]
  %v256 = vld [vmem:[%s1 + $0x720] sm:$0xff]
  %v257 = vld [vmem:[%s1 + $0x728] sm:$0xff]
  %v258 = vld [vmem:[%s1 + $0x730] sm:$0xff]
  %v259 = vld [vmem:[%s1 + $0x738] sm:$0xff]
  %v260 = vld [vmem:[%s1 + $0x740] sm:$0xff]
  %v261 = vld [vmem:[%s1 + $0x748] sm:$0xff]
  %v262 = vld [vmem:[%s1 + $0x750] sm:$0xff]
  %v263 = vld [vmem:[%s1 + $0x758] sm:$0xff]
  %v264 = vld [vmem:[%s1 + $0x760] sm:$0xff]
  %v265 = vld [vmem:[%s1 + $0x768] sm:$0xff]
  %v266 = vld [vmem:[%s1 + $0x770] sm:$0xff]
  %v267 = vld [vmem:[%s1 + $0x778] sm:$0xff]
  %v268 = vld [vmem:[%s1 + $0x780] sm:$0xff]
  %v269 = vld [vmem:[%s1 + $0x788] sm:$0xff]
  %v270 = vld [vmem:[%s1 + $0x790] sm:$0xff]
  %v271 = vld [vmem:[%s1 + $0x798] sm:$0xff]
  %v272 = vld [vmem:[%s1 + $0x7a0] sm:$0xff]
  %v273 = vld [vmem:[%s1 + $0x7a8] sm:$0xff]
  %v274 = vld [vmem:[%s1 + $0x7b0] sm:$0xff]
  %v275 = vld [vmem:[%s1 + $0x7b8] sm:$0xff]
  %v276 = vld [vmem:[%s1 + $0x7c0] sm:$0xff]
  %v277 = vld [vmem:[%s1 + $0x7c8] sm:$0xff]
  %v278 = vld [vmem:[%s1 + $0x7d0] sm:$0xff]
  %v279 = vld [vmem:[%s1 + $0x7d8] sm:$0xff]
  %v280 = vld [vmem:[%s1 + $0x7e0] sm:$0xff]
  %v281 = vld [vmem:[%s1 + $0x7e8] sm:$0xff]
  %v282 = vld [vmem:[%s1 + $0x7f0] sm:$0xff]
  %v283 = vld [vmem:[%s1 + $0x7f8] sm:$0xff]
  %v284 = vld [vmem:[%s1 + $0x800] sm:$0xff]
  %v285 = vld [vmem:[%s1 + $0x808] sm:$0xff]
  %v286 = vld [vmem:[%s1 + $0x810] sm:$0xff]
  %v287 = vld [vmem:[%s1 + $0x818] sm:$0xff]
  %v288 = vld [vmem:[%s1 + $0x820] sm:$0xff]
  %v289 = vld [vmem:[%s1 + $0x828] sm:$0xff]
  %v290 = vld [vmem:[%s1 + $0x830] sm:$0xff]
  %v291 = vld [vmem:[%s1 + $0x838] sm:$0xff]
  %v292 = vld [vmem:[%s1 + $0x840] sm:$0xff]
  %v293 = vld [vmem:[%s1 + $0x848] sm:$0xff]
  %v294 = vld [vmem:[%s1 + $0x850] sm:$0xff]
  %v295 = vld [vmem:[%s1 + $0x858] sm:$0xff]
  %v296 = vld [vmem:[%s1 + $0x860] sm:$0xff]
  %v297 = vld [vmem:[%s1 + $0x868] sm:$0xff]
  %v298 = vld [vmem:[%s1 + $0x870] sm:$0xff]
  %v299 = vld [vmem:[%s1 + $0x878] sm:$0xff]
  %v300 = vld [vmem:[%s1 + $0x880] sm:$0xff]
  %v301 = vld [vmem:[%s1 + $0x888] sm:$0xff]
  %v302 = vld [vmem:[%s1 + $0x890] sm:$0xff]
  %v303 = vld [vmem:[%s1 + $0x898] sm:$0xff]
  %v304 = vld [vmem:[%s1 + $0x8a0] sm:$0xff]
  %v305 = vld [vmem:[%s1 + $0x8a8] sm:$0xff]
  %v306 = vld [vmem:[%s1 + $0x8b0] sm:$0xff]
  %v307 = vld [vmem:[%s1 + $0x8b8] sm:$0xff]
  %v308 = vld [vmem:[%s1 + $0x8c0] sm:$0xff]
  %v309 = vld [vmem:[%s1 + $0x8c8] sm:$0xff]
  %v310 = vld [vmem:[%s1 + $0x8d0] sm:$0xff]
  %v311 = vld [vmem:[%s1 + $0x8d8] sm:$0xff]
  %v312 = vld [vmem:[%s1 + $0x8e0] sm:$0xff]
  %v313 = vld [vmem:[%s1 + $0x8e8] sm:$0xff]
  %v314 = vld [vmem:[%s1 + $0x8f0] sm:$0xff]
  %v315 = vld [vmem:[%s1 + $0x8f8] sm:$0xff]
  %v316 = vld [vmem:[%s1 + $0x900] sm:$0xff]
  %v317 = vld [vmem:[%s1 + $0x908] sm:$0xff]
  %v318 = vld [vmem:[%s1 + $0x910] sm:$0xff]
  %v319 = vld [vmem:[%s1 + $0x918] sm:$0xff]
  %v320 = vld [vmem:[%s1 + $0x920] sm:$0xff]
  %v321 = vld [vmem:[%s1 + $0x928] sm:$0xff]
  %v322 = vld [vmem:[%s1 + $0x930] sm:$0xff]
  %v323 = vld [vmem:[%s1 + $0x938] sm:$0xff]
  %v324 = vld [vmem:[%s1 + $0x940] sm:$0xff]
  %v325 = vld [vmem:[%s1 + $0x948] sm:$0xff]
  %v326 = vld [vmem:[%s1 + $0x950] sm:$0xff]
  %v327 = vld [vmem:[%s1 + $0x958] sm:$0xff]
  %v328 = vld [vmem:[%s1 + $0x960] sm:$0xff]
  %v329 = vld [vmem:[%s1 + $0x968] sm:$0xff]
  %v330 = vld [vmem:[%s1 + $0x970] sm:$0xff]
  %v331 = vld [vmem:[%s1 + $0x978] sm:$0xff]
  %v332 = vld [vmem:[%s1 + $0x980] sm:$0xff]
  %v333 = vld [vmem:[%s1 + $0x988] sm:$0xff]
  %v334 = vld [vmem:[%s1 + $0x990] sm:$0xff]
  %v335 = vld [vmem:[%s1 + $0x998] sm:$0xff]
  %v336 = vld [vmem:[%s1 + $0x9a0] sm:$0xff]
  %v337 = vld [vmem:[%s1 + $0x9a8] sm:$0xff]
  %v338 = vld [vmem:[%s1 + $0x9b0] sm:$0xff]
  %v339 = vld [vmem:[%s1 + $0x9b8] sm:$0xff]
  %v340 = vld [vmem:[%s1 + $0x9c0] sm:$0xff]
  %v341 = vld [vmem:[%s1 + $0x9c8] sm:$0xff]
  %v342 = vld [vmem:[%s1 + $0x9d0] sm:$0xff]
  %v343 = vld [vmem:[%s1 + $0x9d8] sm:$0xff]
  %v344 = vld [vmem:[%s1 + $0x9e0] sm:$0xff]
  %v345 = vld [vmem:[%s1 + $0x9e8] sm:$0xff]
  %v346 = vld [vmem:[%s1 + $0x9f0] sm:$0xff]
  %v347 = vld [vmem:[%s1 + $0x9f8] sm:$0xff]
  %v348 = vld [vmem:[%s1 + $0xa00] sm:$0xff]
  %v349 = vld [vmem:[%s1 + $0xa08] sm:$0xff]
  %v350 = vld [vmem:[%s1 + $0xa10] sm:$0xff]
  %v351 = vld [vmem:[%s1 + $0xa18] sm:$0xff]
  %v352 = vld [vmem:[%s1 + $0xa20] sm:$0xff]
  %v353 = vld [vmem:[%s1 + $0xa28] sm:$0xff]
  %v354 = vld [vmem:[%s1 + $0xa30] sm:$0xff]
  %v355 = vld [vmem:[%s1 + $0xa38] sm:$0xff]
  %v356 = vld [vmem:[%s1 + $0xa40] sm:$0xff]
  %v357 = vld [vmem:[%s1 + $0xa48] sm:$0xff]
  %v358 = vld [vmem:[%s1 + $0xa50] sm:$0xff]
  %v359 = vld [vmem:[%s1 + $0xa58] sm:$0xff]
  %v360 = vld [vmem:[%s1 + $0xa60] sm:$0xff]
  %v361 = vld [vmem:[%s1 + $0xa68] sm:$0xff]
  %v362 = vld [vmem:[%s1 + $0xa70] sm:$0xff]
  %v363 = vld [vmem:[%s1 + $0xa78] sm:$0xff]
  %v364 = vld [vmem:[%s1 + $0xa80] sm:$0xff]
  %v365 = vld [vmem:[%s1 + $0xa88] sm:$0xff]
  %v366 = vld [vmem:[%s1 + $0xa90] sm:$0xff]
  %v367 = vld [vmem:[%s1 + $0xa98] sm:$0xff]
  %v368 = vld [vmem:[%s1 + $0xaa0] sm:$0xff]
  %v369 = vld [vmem:[%s1 + $0xaa8] sm:$0xff]
  %v370 = vld [vmem:[%s1 + $0xab0] sm:$0xff]
  %v371 = vld [vmem:[%s1 + $0xab8] sm:$0xff]
  %v372 = vld [vmem:[%s1 + $0xac0] sm:$0xff]
  %v373 = vld [vmem:[%s1 + $0xac8] sm:$0xff]
  %v374 = vld [vmem:[%s1 + $0xad0] sm:$0xff]
  %v375 = vld [vmem:[%s1 + $0xad8] sm:$0xff]
  %v376 = vld [vmem:[%s1 + $0xae0] sm:$0xff]
  %v377 = vld [vmem:[%s1 + $0xae8] sm:$0xff]
  %v378 = vld [vmem:[%s1 + $0xaf0] sm:$0xff]
  %v379 = vld [vmem:[%s1 + $0xaf8] sm:$0xff]
  %v380 = vld [vmem:[%s1 + $0xb00] sm:$0xff]
  %v381 = vld [vmem:[%s1 + $0xb08] sm:$0xff]
  %v382 = vld [vmem:[%s1 + $0xb10] sm:$0xff]
  %v383 = vld [vmem:[%s1 + $0xb18] sm:$0xff]
  %v384 = vld [vmem:[%s1 + $0xb20] sm:$0xff]
  %v385 = vld [vmem:[%s1 + $0xb28] sm:$0xff]
  %v386 = vld [vmem:[%s1 + $0xb30] sm:$0xff]
  %v387 = vld [vmem:[%s1 + $0xb38] sm:$0xff]
  %v388 = vld [vmem:[%s1 + $0xb40] sm:$0xff]
  %v389 = vld [vmem:[%s1 + $0xb48] sm:$0xff]
  %v390 = vld [vmem:[%s1 + $0xb50] sm:$0xff]
  %v391 = vld [vmem:[%s1 + $0xb58] sm:$0xff]
  %v392 = vld [vmem:[%s1 + $0xb60] sm:$0xff]
  %v393 = vld [vmem:[%s1 + $0xb68] sm:$0xff]
  %v394 = vld [vmem:[%s1 + $0xb70] sm:$0xff]
  %v395 = vld [vmem:[%s1 + $0xb78] sm:$0xff]
  %v396 = vld [vmem:[%s1 + $0xb80] sm:$0xff]
  %v397 = vld [vmem:[%s1 + $0xb88] sm:$0xff]
  %v398 = vld [vmem:[%s1 + $0xb90] sm:$0xff]
  %v399 = vld [vmem:[%s1 + $0xb98] sm:$0xff]
  %v400 = vld [vmem:[%s1 + $0xba0] sm:$0xff]
  %v401 = vld [vmem:[%s1 + $0xba8] sm:$0xff]
  %v402 = vld [vmem:[%s1 + $0xbb0] sm:$0xff]
  %v403 = vld [vmem:[%s1 + $0xbb8] sm:$0xff]
  %v404 = vld [vmem:[%s1 + $0xbc0] sm:$0xff]
  %v405 = vld [vmem:[%s1 + $0xbc8] sm:$0xff]
  %v406 = vld [vmem:[%s1 + $0xbd0] sm:$0xff]
  %v407 = vld [vmem:[%s1 + $0xbd8] sm:$0xff]
  %v408 = vld [vmem:[%s1 + $0xbe0] sm:$0xff]
  %v409 = vld [vmem:[%s1 + $0xbe8] sm:$0xff]
  %v410 = vld [vmem:[%s1 + $0xbf0] sm:$0xff]
  %v411 = vld [vmem:[%s1 + $0xbf8] sm:$0xff]
  %v412 = vld [vmem:[%s1 + $0xc00] sm:$0xff]
  %v413 = vld [vmem:[%s1 + $0xc08] sm:$0xff]
  %v414 = vld [vmem:[%s1 + $0xc10] sm:$0xff]
  %v415 = vld [vmem:[%s1 + $0xc18] sm:$0xff]
  %v416 = vld [vmem:[%s1 + $0xc20] sm:$0xff]
  %v417 = vld [vmem:[%s1 + $0xc28] sm:$0xff]
  %v418 = vld [vmem:[%s1 + $0xc30] sm:$0xff]
  %v419 = vld [vmem:[%s1 + $0xc38] sm:$0xff]
  %v420 = vld [vmem:[%s1 + $0xc40] sm:$0xff]
  %v421 = vld [vmem:[%s1 + $0xc48] sm:$0xff]
  %v422 = vld [vmem:[%s1 + $0xc50] sm:$0xff]
  %v423 = vld [vmem:[%s1 + $0xc58] sm:$0xff]
  %v424 = vld [vmem:[%s1 + $0xc60] sm:$0xff]
  %v425 = vld [vmem:[%s1 + $0xc68] sm:$0xff]
  %v426 = vld [vmem:[%s1 + $0xc70] sm:$0xff]
  %v427 = vld [vmem:[%s1 + $0xc78] sm:$0xff]
  %v428 = vld [vmem:[%s1 + $0xc80] sm:$0xff]
  %v429 = vld [vmem:[%s1 + $0xc88] sm:$0xff]
  %v430 = vld [vmem:[%s1 + $0xc90] sm:$0xff]
  %v431 = vld [vmem:[%s1 + $0xc98] sm:$0xff]
  %v432 = vld [vmem:[%s1 + $0xca0] sm:$0xff]
  %v433 = vld [vmem:[%s1 + $0xca8] sm:$0xff]
  %v434 = vld [vmem:[%s1 + $0xcb0] sm:$0xff]
  %v435 = vld [vmem:[%s1 + $0xcb8] sm:$0xff]
  %v436 = vld [vmem:[%s1 + $0xcc0] sm:$0xff]
  %v437 = vld [vmem:[%s1 + $0xcc8] sm:$0xff]
  %v438 = vld [vmem:[%s1 + $0xcd0] sm:$0xff]
  %v439 = vld [vmem:[%s1 + $0xcd8] sm:$0xff]
  %v440 = vld [vmem:[%s1 + $0xce0] sm:$0xff]
  %v441 = vld [vmem:[%s1 + $0xce8] sm:$0xff]
  %v442 = vld [vmem:[%s1 + $0xcf0] sm:$0xff]
  %v443 = vld [vmem:[%s1 + $0xcf8] sm:$0xff]
  %v444 = vld [vmem:[%s1 + $0xd00] sm:$0xff]
  %v445 = vld [vmem:[%s1 + $0xd08] sm:$0xff]
  %v446 = vld [vmem:[%s1 + $0xd10] sm:$0xff]
  %v447 = vld [vmem:[%s1 + $0xd18] sm:$0xff]
  %v448 = vld [vmem:[%s1 + $0xd20] sm:$0xff]
  %v449 = vld [vmem:[%s1 + $0xd28] sm:$0xff]
  %v450 = vld [vmem:[%s1 + $0xd30] sm:$0xff]
  %v451 = vld [vmem:[%s1 + $0xd38] sm:$0xff]
  %v452 = vld [vmem:[%s1 + $0xd40] sm:$0xff]
  %v453 = vld [vmem:[%s1 + $0xd48] sm:$0xff]
  %v454 = vld [vmem:[%s1 + $0xd50] sm:$0xff]
  %v455 = vld [vmem:[%s1 + $0xd58] sm:$0xff]
  %v456 = vld [vmem:[%s1 + $0xd60] sm:$0xff]
  %v457 = vld [vmem:[%s1 + $0xd68] sm:$0xff]
  %v458 = vld [vmem:[%s1 + $0xd70] sm:$0xff]
  %v459 = vld [vmem:[%s1 + $0xd78] sm:$0xff]
  %v460 = vld [vmem:[%s1 + $0xd80] sm:$0xff]
  %v461 = vld [vmem:[%s1 + $0xd88] sm:$0xff]
  %v462 = vld [vmem:[%s1 + $0xd90] sm:$0xff]
  %v463 = vld [vmem:[%s1 + $0xd98] sm:$0xff]
  %v464 = vld [vmem:[%s1 + $0xda0] sm:$0xff]
  %v465 = vld [vmem:[%s1 + $0xda8] sm:$0xff]
  %v466 = vld [vmem:[%s1 + $0xdb0] sm:$0xff]
  %v467 = vld [vmem:[%s1 + $0xdb8] sm:$0xff]
  %v468 = vld [vmem:[%s1 + $0xdc0] sm:$0xff]
  %v469 = vld [vmem:[%s1 + $0xdc8] sm:$0xff]
  %v470 = vld [vmem:[%s1 + $0xdd0] sm:$0xff]
  %v471 = vld [vmem:[%s1 + $0xdd8] sm:$0xff]
  %v472 = vld [vmem:[%s1 + $0xde0] sm:$0xff]
  %v473 = vld [vmem:[%s1 + $0xde8] sm:$0xff]
  %v474 = vld [vmem:[%s1 + $0xdf0] sm:$0xff]
  %v475 = vld [vmem:[%s1 + $0xdf8] sm:$0xff]
  %v476 = vld [vmem:[%s1 + $0xe00] sm:$0xff]
  %v477 = vld [vmem:[%s1 + $0xe08] sm:$0xff]
  %v478 = vld [vmem:[%s1 + $0xe10] sm:$0xff]
  %v479 = vld [vmem:[%s1 + $0xe18] sm:$0xff]
  %v480 = vld [vmem:[%s1 + $0xe20] sm:$0xff]
  %v481 = vld [vmem:[%s1 + $0xe28] sm:$0xff]
  %v482 = vld [vmem:[%s1 + $0xe30] sm:$0xff]
  %v483 = vld [vmem:[%s1 + $0xe38] sm:$0xff]
  %v484 = vld [vmem:[%s1 + $0xe40] sm:$0xff]
  %v485 = vld [vmem:[%s1 + $0xe48] sm:$0xff]
  %v486 = vld [vmem:[%s1 + $0xe50] sm:$0xff]
  %v487 = vld [vmem:[%s1 + $0xe58] sm:$0xff]
  %v488 = vld [vmem:[%s1 + $0xe60] sm:$0xff]
  %v489 = vld [vmem:[%s1 + $0xe68] sm:$0xff]
  %v490 = vld [vmem:[%s1 + $0xe70] sm:$0xff]
  %v491 = vld [vmem:[%s1 + $0xe78] sm:$0xff]
  %v492 = vld [vmem:[%s1 + $0xe80] sm:$0xff]
  %v493 = vld [vmem:[%s1 + $0xe88] sm:$0xff]
  %v494 = vld [vmem:[%s1 + $0xe90] sm:$0xff]
  %v495 = vld [vmem:[%s1 + $0xe98] sm:$0xff]
  %v496 = vld [vmem:[%s1 + $0xea0] sm:$0xff]
  %v497 = vld [vmem:[%s1 + $0xea8] sm:$0xff]
  %v498 = vld [vmem:[%s1 + $0xeb0] sm:$0xff]
  %v499 = vld [vmem:[%s1 + $0xeb8] sm:$0xff]
  %v500 = vld [vmem:[%s1 + $0xec0] sm:$0xff]
  %v501 = vld [vmem:[%s1 + $0xec8] sm:$0xff]
  %v502 = vld [vmem:[%s1 + $0xed0] sm:$0xff]
  %v503 = vld [vmem:[%s1 + $0xed8] sm:$0xff]
  %v504 = vld [vmem:[%s1 + $0xee0] sm:$0xff]
  %v505 = vld [vmem:[%s1 + $0xee8] sm:$0xff]
  %v506 = vld [vmem:[%s1 + $0xef0] sm:$0xff]
  %v507 = vld [vmem:[%s1 + $0xef8] sm:$0xff]
  %v508 = vld [vmem:[%s1 + $0xf00] sm:$0xff]
  %v509 = vld [vmem:[%s1 + $0xf08] sm:$0xff]
  %v510 = vld [vmem:[%s1 + $0xf10] sm:$0xff]
  %v511 = vld [vmem:[%s1 + $0xf18] sm:$0xff]
  %v512 = vld [vmem:[%s1 + $0xf20] sm:$0xff]
  %v513 = vld [vmem:[%s1 + $0xf28] sm:$0xff]
  %v514 = vld [vmem:[%s1 + $0xf30] sm:$0xff]
  %v515 = vld [vmem:[%s1 + $0xf38] sm:$0xff]
  %v516 = vld [vmem:[%s1 + $0xf40] sm:$0xff]
  %v517 = vld [vmem:[%s1 + $0xf48] sm:$0xff]
  %v518 = vld [vmem:[%s1 + $0xf50] sm:$0xff]
  %v519 = vld [vmem:[%s1 + $0xf58] sm:$0xff]
  %v520 = vld [vmem:[%s1 + $0xf60] sm:$0xff]
  %v521 = vld [vmem:[%s1 + $0xf68] sm:$0xff]
  %v522 = vld [vmem:[%s1 + $0xf70] sm:$0xff]
  %v523 = vld [vmem:[%s1 + $0xf78] sm:$0xff]
  %v524 = vld [vmem:[%s1 + $0xf80] sm:$0xff]
  %v525 = vld [vmem:[%s1 + $0xf88] sm:$0xff]
  %v526 = vld [vmem:[%s1 + $0xf90] sm:$0xff]
  %v527 = vld [vmem:[%s1 + $0xf98] sm:$0xff]
  %v528 = vld [vmem:[%s1 + $0xfa0] sm:$0xff]
  %v529 = vld [vmem:[%s1 + $0xfa8] sm:$0xff]
  %v530 = vld [vmem:[%s1 + $0xfb0] sm:$0xff]
  %v531 = vld [vmem:[%s1 + $0xfb8] sm:$0xff]
  %v532 = vld [vmem:[%s1 + $0xfc0] sm:$0xff]
  %v533 = vld [vmem:[%s1 + $0xfc8] sm:$0xff]
  %v534 = vld [vmem:[%s1 + $0xfd0] sm:$0xff]
  %v535 = vld [vmem:[%s1 + $0xfd8] sm:$0xff]
  %v536 = vld [vmem:[%s1 + $0xfe0] sm:$0xff]
  %v537 = vld [vmem:[%s1 + $0xfe8] sm:$0xff]
  %v538 = vld [vmem:[%s1 + $0xff0] sm:$0xff]
  %v539 = vld [vmem:[%s1 + $0xff8] sm:$0xff]
  %v540 = vld [vmem:[%s1 + $0x1000] sm:$0xff]
  %v541 = vld [vmem:[%s1 + $0x1008] sm:$0xff]
  %v542 = vld [vmem:[%s1 + $0x1010] sm:$0xff]
  %v543 = vld [vmem:[%s1 + $0x1018] sm:$0xff]
  %v544 = vld [vmem:[%s1 + $0x1020] sm:$0xff]
  %v545 = vld [vmem:[%s1 + $0x1028] sm:$0xff]
  %v546 = vld [vmem:[%s1 + $0x1030] sm:$0xff]
  %v547 = vld [vmem:[%s1 + $0x1038] sm:$0xff]
  %v548 = vld [vmem:[%s1 + $0x1040] sm:$0xff]
  %v549 = vld [vmem:[%s1 + $0x1048] sm:$0xff]
  %v550 = vld [vmem:[%s1 + $0x1050] sm:$0xff]
  %v551 = vld [vmem:[%s1 + $0x1058] sm:$0xff]
  %v552 = vld [vmem:[%s1 + $0x1060] sm:$0xff]
  %v553 = vld [vmem:[%s1 + $0x1068] sm:$0xff]
  %v554 = vld [vmem:[%s1 + $0x1070] sm:$0xff]
  %v555 = vld [vmem:[%s1 + $0x1078] sm:$0xff]
  %v556 = vld [vmem:[%s1 + $0x1080] sm:$0xff]
  %v557 = vld [vmem:[%s1 + $0x1088] sm:$0xff]
  %v558 = vld [vmem:[%s1 + $0x1090] sm:$0xff]
  %v559 = vld [vmem:[%s1 + $0x1098] sm:$0xff]
  %v560 = vld [vmem:[%s1 + $0x10a0] sm:$0xff]
  %v561 = vld [vmem:[%s1 + $0x10a8] sm:$0xff]
  %v562 = vld [vmem:[%s1 + $0x10b0] sm:$0xff]
  %v563 = vld [vmem:[%s1 + $0x10b8] sm:$0xff]
  %v564 = vld [vmem:[%s1 + $0x10c0] sm:$0xff]
  %v565 = vld [vmem:[%s1 + $0x10c8] sm:$0xff]
  %v566 = vld [vmem:[%s1 + $0x10d0] sm:$0xff]
  %v567 = vld [vmem:[%s1 + $0x10d8] sm:$0xff]
  %v568 = vld [vmem:[%s1 + $0x10e0] sm:$0xff]
  %v569 = vld [vmem:[%s1 + $0x10e8] sm:$0xff]
  %v570 = vld [vmem:[%s1 + $0x10f0] sm:$0xff]
  %v571 = vld [vmem:[%s1 + $0x10f8] sm:$0xff]
  %v572 = vld [vmem:[%s1 + $0x1100] sm:$0xff]
  %v573 = vld [vmem:[%s1 + $0x1108] sm:$0xff]
  %v574 = vld [vmem:[%s1 + $0x1110] sm:$0xff]
  %v575 = vld [vmem:[%s1 + $0x1118] sm:$0xff]
  %v576 = vld [vmem:[%s1 + $0x1120] sm:$0xff]
  %v577 = vld [vmem:[%s1 + $0x1128] sm:$0xff]
  %v578 = vld [vmem:[%s1 + $0x1130] sm:$0xff]
  %v579 = vld [vmem:[%s1 + $0x1138] sm:$0xff]
  %v580 = vld [vmem:[%s1 + $0x1140] sm:$0xff]
  %v581 = vld [vmem:[%s1 + $0x1148] sm:$0xff]
  %v582 = vld [vmem:[%s1 + $0x1150] sm:$0xff]
  %v583 = vld [vmem:[%s1 + $0x1158] sm:$0xff]
  %v584 = vld [vmem:[%s1 + $0x1160] sm:$0xff]
  %v585 = vld [vmem:[%s1 + $0x1168] sm:$0xff]
  %v586 = vld [vmem:[%s1 + $0x1170] sm:$0xff]
  %v587 = vld [vmem:[%s1 + $0x1178] sm:$0xff]
  %v588 = vld [vmem:[%s1 + $0x1180] sm:$0xff]
  %v589 = vld [vmem:[%s1 + $0x1188] sm:$0xff]
  %v590 = vld [vmem:[%s1 + $0x1190] sm:$0xff]
  %v591 = vld [vmem:[%s1 + $0x1198] sm:$0xff]
  %v592 = vld [vmem:[%s1 + $0x11a0] sm:$0xff]
  %v593 = vld [vmem:[%s1 + $0x11a8] sm:$0xff]
  %v594 = vld [vmem:[%s1 + $0x11b0] sm:$0xff]
  %v595 = vld [vmem:[%s1 + $0x11b8] sm:$0xff]
  %v596 = vld [vmem:[%s1 + $0x11c0] sm:$0xff]
  %v597 = vld [vmem:[%s1 + $0x11c8] sm:$0xff]
  %v598 = vld [vmem:[%s1 + $0x11d0] sm:$0xff]
  %v599 = vld [vmem:[%s1 + $0x11d8] sm:$0xff]
  %v600 = vld [vmem:[%s1 + $0x11e0] sm:$0xff]
  %v601 = vld [vmem:[%s1 + $0x11e8] sm:$0xff]
  %v602 = vld [vmem:[%s1 + $0x11f0] sm:$0xff]
  %v603 = vld [vmem:[%s1 + $0x11f8] sm:$0xff]
  %v604 = vld [vmem:[%s1 + $0x1200] sm:$0xff]
  %v605 = vld [vmem:[%s1 + $0x1208] sm:$0xff]
  %v606 = vld [vmem:[%s1 + $0x1210] sm:$0xff]
  %v607 = vld [vmem:[%s1 + $0x1218] sm:$0xff]
  %v608 = vld [vmem:[%s1 + $0x1220] sm:$0xff]
  %v609 = vld [vmem:[%s1 + $0x1228] sm:$0xff]
  %v610 = vld [vmem:[%s1 + $0x1230] sm:$0xff]
  %v611 = vld [vmem:[%s1 + $0x1238] sm:$0xff]
  %v612 = vld [vmem:[%s1 + $0x1240] sm:$0xff]
  %v613 = vld [vmem:[%s1 + $0x1248] sm:$0xff]
  %v614 = vld [vmem:[%s1 + $0x1250] sm:$0xff]
  %v615 = vld [vmem:[%s1 + $0x1258] sm:$0xff]
  %v616 = vld [vmem:[%s1 + $0x1260] sm:$0xff]
  %v617 = vld [vmem:[%s1 + $0x1268] sm:$0xff]
  %v618 = vld [vmem:[%s1 + $0x1270] sm:$0xff]
  %v619 = vld [vmem:[%s1 + $0x1278] sm:$0xff]
  %v620 = vld [vmem:[%s1 + $0x1280] sm:$0xff]
  %v621 = vld [vmem:[%s1 + $0x1288] sm:$0xff]
  %v622 = vld [vmem:[%s1 + $0x1290] sm:$0xff]
  %v623 = vld [vmem:[%s1 + $0x1298] sm:$0xff]
  %v624 = vld [vmem:[%s1 + $0x12a0] sm:$0xff]
  %v625 = vld [vmem:[%s1 + $0x12a8] sm:$0xff]
  %v626 = vld [vmem:[%s1 + $0x12b0] sm:$0xff]
  %v627 = vld [vmem:[%s1 + $0x12b8] sm:$0xff]
  %v628 = vld [vmem:[%s1 + $0x12c0] sm:$0xff]
  %v629 = vld [vmem:[%s1 + $0x12c8] sm:$0xff]
  %v630 = vld [vmem:[%s1 + $0x12d0] sm:$0xff]
  %v631 = vld [vmem:[%s1 + $0x12d8] sm:$0xff]
  %v632 = vld [vmem:[%s1 + $0x12e0] sm:$0xff]
  %v633 = vld [vmem:[%s1 + $0x12e8] sm:$0xff]
  %v634 = vld [vmem:[%s1 + $0x12f0] sm:$0xff]
  %v635 = vld [vmem:[%s1 + $0x12f8] sm:$0xff]
  %v636 = vld [vmem:[%s1 + $0x1300] sm:$0xff]
  %v637 = vld [vmem:[%s1 + $0x1308] sm:$0xff]
  %v638 = vld [vmem:[%s1 + $0x1310] sm:$0xff]
  %v639 = vld [vmem:[%s1 + $0x1318] sm:$0xff]
  %v640 = vld [vmem:[%s1 + $0x1320] sm:$0xff]
  %v641 = vld [vmem:[%s1 + $0x1328] sm:$0xff]
  %v642 = vld [vmem:[%s1 + $0x1330] sm:$0xff]
  %v643 = vld [vmem:[%s1 + $0x1338] sm:$0xff]
  %v644 = vld [vmem:[%s1 + $0x1340] sm:$0xff]
  %v645 = vld [vmem:[%s1 + $0x1348] sm:$0xff]
  %v646 = vld [vmem:[%s1 + $0x1350] sm:$0xff]
  %v647 = vld [vmem:[%s1 + $0x1358] sm:$0xff]
  %v648 = vld [vmem:[%s1 + $0x1360] sm:$0xff]
  %v649 = vld [vmem:[%s1 + $0x1368] sm:$0xff]
  %v650 = vld [vmem:[%s1 + $0x1370] sm:$0xff]
  %v651 = vld [vmem:[%s1 + $0x1378] sm:$0xff]
  %v652 = vld [vmem:[%s1 + $0x1380] sm:$0xff]
  %v653 = vld [vmem:[%s1 + $0x1388] sm:$0xff]
  %v654 = vld [vmem:[%s1 + $0x1390] sm:$0xff]
  %v655 = vld [vmem:[%s1 + $0x1398] sm:$0xff]
  %v656 = vld [vmem:[%s1 + $0x13a0] sm:$0xff]
  %v657 = vld [vmem:[%s1 + $0x13a8] sm:$0xff]
  %v658 = vld [vmem:[%s1 + $0x13b0] sm:$0xff]
  %v659 = vld [vmem:[%s1 + $0x13b8] sm:$0xff]
  %v660 = vld [vmem:[%s1 + $0x13c0] sm:$0xff]
  %v661 = vld [vmem:[%s1 + $0x13c8] sm:$0xff]
  %v662 = vld [vmem:[%s1 + $0x13d0] sm:$0xff]
  %v663 = vld [vmem:[%s1 + $0x13d8] sm:$0xff]
  %v664 = vld [vmem:[%s1 + $0x13e0] sm:$0xff]
  %v665 = vld [vmem:[%s1 + $0x13e8] sm:$0xff]
  %v666 = vld [vmem:[%s1 + $0x13f0] sm:$0xff]
  %v667 = vld [vmem:[%s1 + $0x13f8] sm:$0xff]
  %v668 = vld [vmem:[%s1 + $0x1400] sm:$0xff]
  %v669 = vld [vmem:[%s1 + $0x1408] sm:$0xff]
  %v670 = vld [vmem:[%s1 + $0x1410] sm:$0xff]
  %v671 = vld [vmem:[%s1 + $0x1418] sm:$0xff]
  %v672 = vld [vmem:[%s1 + $0x1420] sm:$0xff]
  %v673 = vld [vmem:[%s1 + $0x1428] sm:$0xff]
  %v674 = vld [vmem:[%s1 + $0x1430] sm:$0xff]
  %v675 = vld [vmem:[%s1 + $0x1438] sm:$0xff]
  %v676 = vld [vmem:[%s1 + $0x1440] sm:$0xff]
  %v677 = vld [vmem:[%s1 + $0x1448] sm:$0xff]
  %v678 = vld [vmem:[%s1 + $0x1450] sm:$0xff]
  %v679 = vld [vmem:[%s1 + $0x1458] sm:$0xff]
  %v680 = vld [vmem:[%s1 + $0x1460] sm:$0xff]
  %v681 = vld [vmem:[%s1 + $0x1468] sm:$0xff]
  %v682 = vld [vmem:[%s1 + $0x1470] sm:$0xff]
  %v683 = vld [vmem:[%s1 + $0x1478] sm:$0xff]
  %v684 = vld [vmem:[%s1 + $0x1480] sm:$0xff]
  %v685 = vld [vmem:[%s1 + $0x1488] sm:$0xff]
  %v686 = vld [vmem:[%s1 + $0x1490] sm:$0xff]
  %v687 = vld [vmem:[%s1 + $0x1498] sm:$0xff]
  %v688 = vld [vmem:[%s1 + $0x14a0] sm:$0xff]
  %v689 = vld [vmem:[%s1 + $0x14a8] sm:$0xff]
  %v690 = vld [vmem:[%s1 + $0x14b0] sm:$0xff]
  %v691 = vld [vmem:[%s1 + $0x14b8] sm:$0xff]
  %v692 = vld [vmem:[%s1 + $0x14c0] sm:$0xff]
  %v693 = vld [vmem:[%s1 + $0x14c8] sm:$0xff]
  %v694 = vld [vmem:[%s1 + $0x14d0] sm:$0xff]
  %v695 = vld [vmem:[%s1 + $0x14d8] sm:$0xff]
  %v696 = vld [vmem:[%s1 + $0x14e0] sm:$0xff]
  %v697 = vld [vmem:[%s1 + $0x14e8] sm:$0xff]
  %v698 = vld [vmem:[%s1 + $0x14f0] sm:$0xff]
  %v699 = vld [vmem:[%s1 + $0x14f8] sm:$0xff]
  %v700 = vld [vmem:[%s1 + $0x1500] sm:$0xff]
  %v701 = vld [vmem:[%s1 + $0x1508] sm:$0xff]
  %v702 = vld [vmem:[%s1 + $0x1510] sm:$0xff]
  %v703 = vld [vmem:[%s1 + $0x1518] sm:$0xff]
  %v704 = vld [vmem:[%s1 + $0x1520] sm:$0xff]
  %v705 = vld [vmem:[%s1 + $0x1528] sm:$0xff]
  %v706 = vld [vmem:[%s1 + $0x1530] sm:$0xff]
  %v707 = vld [vmem:[%s1 + $0x1538] sm:$0xff]
  %v708 = vld [vmem:[%s1 + $0x1540] sm:$0xff]
  %v709 = vld [vmem:[%s1 + $0x1548] sm:$0xff]
  %v710 = vld [vmem:[%s1 + $0x1550] sm:$0xff]
  %v711 = vld [vmem:[%s1 + $0x1558] sm:$0xff]
  %v712 = vld [vmem:[%s1 + $0x1560] sm:$0xff]
  %v713 = vld [vmem:[%s1 + $0x1568] sm:$0xff]
  %v714 = vld [vmem:[%s1 + $0x1570] sm:$0xff]
  %v715 = vld [vmem:[%s1 + $0x1578] sm:$0xff]
  %v716 = vld [vmem:[%s1 + $0x1580] sm:$0xff]
  %v717 = vld [vmem:[%s1 + $0x1588] sm:$0xff]
  %v718 = vld [vmem:[%s1 + $0x1590] sm:$0xff]
  %v719 = vld [vmem:[%s1 + $0x1598] sm:$0xff]
  %v720 = vld [vmem:[%s1 + $0x15a0] sm:$0xff]
  %v721 = vld [vmem:[%s1 + $0x15a8] sm:$0xff]
  %v722 = vld [vmem:[%s1 + $0x15b0] sm:$0xff]
  %v723 = vld [vmem:[%s1 + $0x15b8] sm:$0xff]
  %v724 = vld [vmem:[%s1 + $0x15c0] sm:$0xff]
  %v725 = vld [vmem:[%s1 + $0x15c8] sm:$0xff]
  %v726 = vld [vmem:[%s1 + $0x15d0] sm:$0xff]
  %v727 = vld [vmem:[%s1 + $0x15d8] sm:$0xff]
  %v728 = vld [vmem:[%s1 + $0x15e0] sm:$0xff]
  %v729 = vld [vmem:[%s1 + $0x15e8] sm:$0xff]
  %v730 = vld [vmem:[%s1 + $0x15f0] sm:$0xff]
  %v731 = vld [vmem:[%s1 + $0x15f8] sm:$0xff]
  %v732 = vld [vmem:[%s1 + $0x1600] sm:$0xff]
  %v733 = vld [vmem:[%s1 + $0x1608] sm:$0xff]
  %v734 = vld [vmem:[%s1 + $0x1610] sm:$0xff]
  %v735 = vld [vmem:[%s1 + $0x1618] sm:$0xff]
  %v736 = vld [vmem:[%s1 + $0x1620] sm:$0xff]
  %v737 = vld [vmem:[%s1 + $0x1628] sm:$0xff]
  %v738 = vld [vmem:[%s1 + $0x1630] sm:$0xff]
  %v739 = vld [vmem:[%s1 + $0x1638] sm:$0xff]
  %v740 = vld [vmem:[%s1 + $0x1640] sm:$0xff]
  %v741 = vld [vmem:[%s1 + $0x1648] sm:$0xff]
  %v742 = vld [vmem:[%s1 + $0x1650] sm:$0xff]
  %v743 = vld [vmem:[%s1 + $0x1658] sm:$0xff]
  %v744 = vld [vmem:[%s1 + $0x1660] sm:$0xff]
  %v745 = vld [vmem:[%s1 + $0x1668] sm:$0xff]
  %v746 = vld [vmem:[%s1 + $0x1670] sm:$0xff]
  %v747 = vld [vmem:[%s1 + $0x1678] sm:$0xff]
  %v748 = vld [vmem:[%s1 + $0x1680] sm:$0xff]
  %v749 = vld [vmem:[%s1 + $0x1688] sm:$0xff]
  %v750 = vld [vmem:[%s1 + $0x1690] sm:$0xff]
  %v751 = vld [vmem:[%s1 + $0x1698] sm:$0xff]
  %v752 = vld [vmem:[%s1 + $0x16a0] sm:$0xff]
  %v753 = vld [vmem:[%s1 + $0x16a8] sm:$0xff]
  %v754 = vld [vmem:[%s1 + $0x16b0] sm:$0xff]
  %v755 = vld [vmem:[%s1 + $0x16b8] sm:$0xff]
  %v756 = vld [vmem:[%s1 + $0x16c0] sm:$0xff]
  %v757 = vld [vmem:[%s1 + $0x16c8] sm:$0xff]
  %v758 = vld [vmem:[%s1 + $0x16d0] sm:$0xff]
  %v759 = vld [vmem:[%s1 + $0x16d8] sm:$0xff]
  %v760 = vld [vmem:[%s1 + $0x16e0] sm:$0xff]
  %v761 = vld [vmem:[%s1 + $0x16e8] sm:$0xff]
  %v762 = vld [vmem:[%s1 + $0x16f0] sm:$0xff]
  %v763 = vld [vmem:[%s1 + $0x16f8] sm:$0xff]
  %v764 = vld [vmem:[%s1 + $0x1700] sm:$0xff]
  %v765 = vld [vmem:[%s1 + $0x1708] sm:$0xff]
  %v766 = vld [vmem:[%s1 + $0x1710] sm:$0xff]
  %v767 = vld [vmem:[%s1 + $0x1718] sm:$0xff]
  %v768 = vld [vmem:[%s1 + $0x1720] sm:$0xff]
  %v769 = vld [vmem:[%s1 + $0x1728] sm:$0xff]
  %v770 = vld [vmem:[%s1 + $0x1730] sm:$0xff]
  %v771 = vld [vmem:[%s1 + $0x1738] sm:$0xff]
  %v772 = vld [vmem:[%s1 + $0x1740] sm:$0xff]
  %v773 = vld [vmem:[%s1 + $0x1748] sm:$0xff]
  %v774 = vld [vmem:[%s1 + $0x1750] sm:$0xff]
  %v775 = vld [vmem:[%s1 + $0x1758] sm:$0xff]
  %v776 = vld [vmem:[%s1 + $0x1760] sm:$0xff]
  %v777 = vld [vmem:[%s1 + $0x1768] sm:$0xff]
  %v778 = vld [vmem:[%s1 + $0x1770] sm:$0xff]
  %v779 = vld [vmem:[%s1 + $0x1778] sm:$0xff]
  %v780 = vld [vmem:[%s1 + $0x1780] sm:$0xff]
  %v781 = vld [vmem:[%s1 + $0x1788] sm:$0xff]
  %v782 = vld [vmem:[%s1 + $0x1790] sm:$0xff]
  %v783 = vld [vmem:[%s1 + $0x1798] sm:$0xff]
  %v784 = vld [vmem:[%s1 + $0x17a0] sm:$0xff]
  %v785 = vld [vmem:[%s1 + $0x17a8] sm:$0xff]
  %v786 = vld [vmem:[%s1 + $0x17b0] sm:$0xff]
  %v787 = vld [vmem:[%s1 + $0x17b8] sm:$0xff]
  %v788 = vld [vmem:[%s1 + $0x17c0] sm:$0xff]
  %v789 = vld [vmem:[%s1 + $0x17c8] sm:$0xff]
  %v790 = vld [vmem:[%s1 + $0x17d0] sm:$0xff]
  %v791 = vld [vmem:[%s1 + $0x17d8] sm:$0xff]
  %v792 = vld [vmem:[%s1 + $0x17e0] sm:$0xff]
  %v793 = vld [vmem:[%s1 + $0x17e8] sm:$0xff]
  %v794 = vld [vmem:[%s1 + $0x17f0] sm:$0xff]
  %v795 = vld [vmem:[%s1 + $0x17f8] sm:$0xff]
  %v796 = vld [vmem:[%s1 + $0x1800] sm:$0xff]
  %v797 = vld [vmem:[%s1 + $0x1808] sm:$0xff]
  %v798 = vld [vmem:[%s1 + $0x1810] sm:$0xff]
  %v799 = vld [vmem:[%s1 + $0x1818] sm:$0xff]
  %v800 = vld [vmem:[%s1 + $0x1820] sm:$0xff]
  %v801 = vld [vmem:[%s1 + $0x1828] sm:$0xff]
  %v802 = vld [vmem:[%s1 + $0x1830] sm:$0xff]
  %v803 = vld [vmem:[%s1 + $0x1838] sm:$0xff]
  %v804 = vld [vmem:[%s1 + $0x1840] sm:$0xff]
  %v805 = vld [vmem:[%s1 + $0x1848] sm:$0xff]
  %v806 = vld [vmem:[%s1 + $0x1850] sm:$0xff]
  %v807 = vld [vmem:[%s1 + $0x1858] sm:$0xff]
  %v808 = vld [vmem:[%s1 + $0x1860] sm:$0xff]
  %v809 = vld [vmem:[%s1 + $0x1868] sm:$0xff]
  %v810 = vld [vmem:[%s1 + $0x1870] sm:$0xff]
  %v811 = vld [vmem:[%s1 + $0x1878] sm:$0xff]
  %v812 = vld [vmem:[%s1 + $0x1880] sm:$0xff]
  %v813 = vld [vmem:[%s1 + $0x1888] sm:$0xff]
  %v814 = vld [vmem:[%s1 + $0x1890] sm:$0xff]
  %v815 = vld [vmem:[%s1 + $0x1898] sm:$0xff]
  %v816 = vld [vmem:[%s1 + $0x18a0] sm:$0xff]
  %v817 = vld [vmem:[%s1 + $0x18a8] sm:$0xff]
  %v818 = vld [vmem:[%s1 + $0x18b0] sm:$0xff]
  %v819 = vld [vmem:[%s1 + $0x18b8] sm:$0xff]
  %v820 = vld [vmem:[%s1 + $0x18c0] sm:$0xff]
  %v821 = vld [vmem:[%s1 + $0x18c8] sm:$0xff]
  %v822 = vld [vmem:[%s1 + $0x18d0] sm:$0xff]
  %v823 = vld [vmem:[%s1 + $0x18d8] sm:$0xff]
  %v824 = vld [vmem:[%s1 + $0x18e0] sm:$0xff]
  %v825 = vld [vmem:[%s1 + $0x18e8] sm:$0xff]
  %v826 = vld [vmem:[%s1 + $0x18f0] sm:$0xff]
  %v827 = vld [vmem:[%s1 + $0x18f8] sm:$0xff]
  %v828 = vld [vmem:[%s2] sm:$0xf]
  %v830 = vlaneseq
  %v831 = vshrl.u32 %v830, 7
  %v832 = vsub.s32 0, %v831
  %v833 = vrot.slane %v828, %v832
  %v834 = vlaneseq
  %v835 = vshrl.u32 %v834, 7
  %v836 = vsub.s32 1, %v835
  %v837 = vrot.slane %v828, %v836
  %v838 = vlaneseq
  %v839 = vshrl.u32 %v838, 7
  %v840 = vsub.s32 2, %v839
  %v841 = vrot.slane %v828, %v840
  %v842 = vlaneseq
  %v843 = vshrl.u32 %v842, 7
  %v844 = vsub.s32 3, %v843
  %v845 = vrot.slane %v828, %v844
  %v863 = vunpack.c.l.b16 %v15
  %v864 = vunpack.c.h.b16 %v15
  %v865 = vunpack.c.l.b16 %v16
  %v866 = vunpack.c.h.b16 %v16
  %v867 = vunpack.c.l.b16 %v17
  %v868 = vunpack.c.h.b16 %v17
  %v869 = vunpack.c.l.b16 %v18
  %v870 = vunpack.c.h.b16 %v18
  %v871 = vunpack.c.l.b16 %v19
  %v872 = vunpack.c.h.b16 %v19
  %v873 = vunpack.c.l.b16 %v20
  %v874 = vunpack.c.h.b16 %v20
  %v875 = vunpack.c.l.b16 %v21
  %v876 = vunpack.c.h.b16 %v21
  %v877 = vunpack.c.l.b16 %v22
  %v878 = vunpack.c.h.b16 %v22
  %v879 = vunpack.c.l.b16 %v23
  %v880 = vunpack.c.h.b16 %v23
  %v881 = vunpack.c.l.b16 %v24
  %v882 = vunpack.c.h.b16 %v24
  %v883 = vunpack.c.l.b16 %v25
  %v884 = vunpack.c.h.b16 %v25
  %v885 = vunpack.c.l.b16 %v26
  %v886 = vunpack.c.h.b16 %v26
  %v887 = vunpack.c.l.b16 %v27
  %v888 = vpack.c.b16 %v863, %v863
  %v889 = vpack.c.b16 %v864, %v864
  %v890 = vpack.c.b16 %v865, %v865
  %v891 = vpack.c.b16 %v866, %v866
  %v892 = vpack.c.b16 %v867, %v867
  %v893 = vpack.c.b16 %v868, %v868
  %v894 = vpack.c.b16 %v869, %v869
  %v895 = vpack.c.b16 %v870, %v870
  %v896 = vpack.c.b16 %v871, %v871
  %v897 = vpack.c.b16 %v872, %v872
  %v898 = vpack.c.b16 %v873, %v873
  %v899 = vpack.c.b16 %v874, %v874
  %v900 = vpack.c.b16 %v875, %v875
  %v901 = vpack.c.b16 %v876, %v876
  %v902 = vpack.c.b16 %v877, %v877
  %v903 = vpack.c.b16 %v878, %v878
  %v904 = vpack.c.b16 %v879, %v879
  %v905 = vpack.c.b16 %v880, %v880
  %v906 = vpack.c.b16 %v881, %v881
  %v907 = vpack.c.b16 %v882, %v882
  %v908 = vpack.c.b16 %v883, %v883
  %v909 = vpack.c.b16 %v884, %v884
  %v910 = vpack.c.b16 %v885, %v885
  %v911 = vpack.c.b16 %v886, %v886
  %v912 = vpack.c.b16 %v887, %v887
  %v1738 = vunpack.c.l.b16 %v28
  %v1739 = vunpack.c.h.b16 %v28
  %v1740 = vunpack.c.l.b16 %v29
  %v1741 = vunpack.c.h.b16 %v29
  %v1742 = vunpack.c.l.b16 %v30
  %v1743 = vunpack.c.h.b16 %v30
  %v1744 = vunpack.c.l.b16 %v31
  %v1745 = vunpack.c.h.b16 %v31
  %v1746 = vunpack.c.l.b16 %v32
  %v1747 = vunpack.c.h.b16 %v32
  %v1748 = vunpack.c.l.b16 %v33
  %v1749 = vunpack.c.h.b16 %v33
  %v1750 = vunpack.c.l.b16 %v34
  %v1751 = vunpack.c.h.b16 %v34
  %v1752 = vunpack.c.l.b16 %v35
  %v1753 = vunpack.c.h.b16 %v35
  %v1754 = vunpack.c.l.b16 %v36
  %v1755 = vunpack.c.h.b16 %v36
  %v1756 = vunpack.c.l.b16 %v37
  %v1757 = vunpack.c.h.b16 %v37
  %v1758 = vunpack.c.l.b16 %v38
  %v1759 = vunpack.c.h.b16 %v38
  %v1760 = vunpack.c.l.b16 %v39
  %v1761 = vunpack.c.h.b16 %v39
  %v1762 = vunpack.c.l.b16 %v40
  %v1763 = vunpack.c.h.b16 %v40
  %v1764 = vunpack.c.l.b16 %v41
  %v1765 = vunpack.c.h.b16 %v41
  %v1766 = vunpack.c.l.b16 %v42
  %v1767 = vunpack.c.h.b16 %v42
  %v1768 = vunpack.c.l.b16 %v43
  %v1769 = vunpack.c.h.b16 %v43
  %v1770 = vunpack.c.l.b16 %v44
  %v1771 = vunpack.c.h.b16 %v44
  %v1772 = vunpack.c.l.b16 %v45
  %v1773 = vunpack.c.h.b16 %v45
  %v1774 = vunpack.c.l.b16 %v46
  %v1775 = vunpack.c.h.b16 %v46
  %v1776 = vunpack.c.l.b16 %v47
  %v1777 = vunpack.c.h.b16 %v47
  %v1778 = vunpack.c.l.b16 %v48
  %v1779 = vunpack.c.h.b16 %v48
  %v1780 = vunpack.c.l.b16 %v49
  %v1781 = vunpack.c.h.b16 %v49
  %v1782 = vunpack.c.l.b16 %v50
  %v1783 = vunpack.c.h.b16 %v50
  %v1784 = vunpack.c.l.b16 %v51
  %v1785 = vunpack.c.h.b16 %v51
  %v1786 = vunpack.c.l.b16 %v52
  %v1787 = vunpack.c.h.b16 %v52
  %v1788 = vunpack.c.l.b16 %v53
  %v1789 = vunpack.c.h.b16 %v53
  %v1790 = vunpack.c.l.b16 %v54
  %v1791 = vunpack.c.h.b16 %v54
  %v1792 = vunpack.c.l.b16 %v55
  %v1793 = vunpack.c.h.b16 %v55
  %v1794 = vunpack.c.l.b16 %v56
  %v1795 = vunpack.c.h.b16 %v56
  %v1796 = vunpack.c.l.b16 %v57
  %v1797 = vunpack.c.h.b16 %v57
  %v1798 = vunpack.c.l.b16 %v58
  %v1799 = vunpack.c.h.b16 %v58
  %v1800 = vunpack.c.l.b16 %v59
  %v1801 = vunpack.c.h.b16 %v59
  %v1802 = vunpack.c.l.b16 %v60
  %v1803 = vunpack.c.h.b16 %v60
  %v1804 = vunpack.c.l.b16 %v61
  %v1805 = vunpack.c.h.b16 %v61
  %v1806 = vunpack.c.l.b16 %v62
  %v1807 = vunpack.c.h.b16 %v62
  %v1808 = vunpack.c.l.b16 %v63
  %v1809 = vunpack.c.h.b16 %v63
  %v1810 = vunpack.c.l.b16 %v64
  %v1811 = vunpack.c.h.b16 %v64
  %v1812 = vunpack.c.l.b16 %v65
  %v1813 = vunpack.c.h.b16 %v65
  %v1814 = vunpack.c.l.b16 %v66
  %v1815 = vunpack.c.h.b16 %v66
  %v1816 = vunpack.c.l.b16 %v67
  %v1817 = vunpack.c.h.b16 %v67
  %v1818 = vunpack.c.l.b16 %v68
  %v1819 = vunpack.c.h.b16 %v68
  %v1820 = vunpack.c.l.b16 %v69
  %v1821 = vunpack.c.h.b16 %v69
  %v1822 = vunpack.c.l.b16 %v70
  %v1823 = vunpack.c.h.b16 %v70
  %v1824 = vunpack.c.l.b16 %v71
  %v1825 = vunpack.c.h.b16 %v71
  %v1826 = vunpack.c.l.b16 %v72
  %v1827 = vunpack.c.h.b16 %v72
  %v1828 = vunpack.c.l.b16 %v73
  %v1829 = vunpack.c.h.b16 %v73
  %v1830 = vunpack.c.l.b16 %v74
  %v1831 = vunpack.c.h.b16 %v74
  %v1832 = vunpack.c.l.b16 %v75
  %v1833 = vunpack.c.h.b16 %v75
  %v1834 = vunpack.c.l.b16 %v76
  %v1835 = vunpack.c.h.b16 %v76
  %v1836 = vunpack.c.l.b16 %v77
  %v1837 = vunpack.c.h.b16 %v77
  %v1838 = vunpack.c.l.b16 %v78
  %v1839 = vunpack.c.h.b16 %v78
  %v1840 = vunpack.c.l.b16 %v79
  %v1841 = vunpack.c.h.b16 %v79
  %v1842 = vunpack.c.l.b16 %v80
  %v1843 = vunpack.c.h.b16 %v80
  %v1844 = vunpack.c.l.b16 %v81
  %v1845 = vunpack.c.h.b16 %v81
  %v1846 = vunpack.c.l.b16 %v82
  %v1847 = vunpack.c.h.b16 %v82
  %v1848 = vunpack.c.l.b16 %v83
  %v1849 = vunpack.c.h.b16 %v83
  %v1850 = vunpack.c.l.b16 %v84
  %v1851 = vunpack.c.h.b16 %v84
  %v1852 = vunpack.c.l.b16 %v85
  %v1853 = vunpack.c.h.b16 %v85
  %v1854 = vunpack.c.l.b16 %v86
  %v1855 = vunpack.c.h.b16 %v86
  %v1856 = vunpack.c.l.b16 %v87
  %v1857 = vunpack.c.h.b16 %v87
  %v1858 = vunpack.c.l.b16 %v88
  %v1859 = vunpack.c.h.b16 %v88
  %v1860 = vunpack.c.l.b16 %v89
  %v1861 = vunpack.c.h.b16 %v89
  %v1862 = vunpack.c.l.b16 %v90
  %v1863 = vunpack.c.h.b16 %v90
  %v1864 = vunpack.c.l.b16 %v91
  %v1865 = vunpack.c.h.b16 %v91
  %v1866 = vunpack.c.l.b16 %v92
  %v1867 = vunpack.c.h.b16 %v92
  %v1868 = vunpack.c.l.b16 %v93
  %v1869 = vunpack.c.h.b16 %v93
  %v1870 = vunpack.c.l.b16 %v94
  %v1871 = vunpack.c.h.b16 %v94
  %v1872 = vunpack.c.l.b16 %v95
  %v1873 = vunpack.c.h.b16 %v95
  %v1874 = vunpack.c.l.b16 %v96
  %v1875 = vunpack.c.h.b16 %v96
  %v1876 = vunpack.c.l.b16 %v97
  %v1877 = vunpack.c.h.b16 %v97
  %v1878 = vunpack.c.l.b16 %v98
  %v1879 = vunpack.c.h.b16 %v98
  %v1880 = vunpack.c.l.b16 %v99
  %v1881 = vunpack.c.h.b16 %v99
  %v1882 = vunpack.c.l.b16 %v100
  %v1883 = vunpack.c.h.b16 %v100
  %v1884 = vunpack.c.l.b16 %v101
  %v1885 = vunpack.c.h.b16 %v101
  %v1886 = vunpack.c.l.b16 %v102
  %v1887 = vunpack.c.h.b16 %v102
  %v1888 = vunpack.c.l.b16 %v103
  %v1889 = vunpack.c.h.b16 %v103
  %v1890 = vunpack.c.l.b16 %v104
  %v1891 = vunpack.c.h.b16 %v104
  %v1892 = vunpack.c.l.b16 %v105
  %v1893 = vunpack.c.h.b16 %v105
  %v1894 = vunpack.c.l.b16 %v106
  %v1895 = vunpack.c.h.b16 %v106
  %v1896 = vunpack.c.l.b16 %v107
  %v1897 = vunpack.c.h.b16 %v107
  %v1898 = vunpack.c.l.b16 %v108
  %v1899 = vunpack.c.h.b16 %v108
  %v1900 = vunpack.c.l.b16 %v109
  %v1901 = vunpack.c.h.b16 %v109
  %v1902 = vunpack.c.l.b16 %v110
  %v1903 = vunpack.c.h.b16 %v110
  %v1904 = vunpack.c.l.b16 %v111
  %v1905 = vunpack.c.h.b16 %v111
  %v1906 = vunpack.c.l.b16 %v112
  %v1907 = vunpack.c.h.b16 %v112
  %v1908 = vunpack.c.l.b16 %v113
  %v1909 = vunpack.c.h.b16 %v113
  %v1910 = vunpack.c.l.b16 %v114
  %v1911 = vunpack.c.h.b16 %v114
  %v1912 = vunpack.c.l.b16 %v115
  %v1913 = vunpack.c.h.b16 %v115
  %v1914 = vunpack.c.l.b16 %v116
  %v1915 = vunpack.c.h.b16 %v116
  %v1916 = vunpack.c.l.b16 %v117
  %v1917 = vunpack.c.h.b16 %v117
  %v1918 = vunpack.c.l.b16 %v118
  %v1919 = vunpack.c.h.b16 %v118
  %v1920 = vunpack.c.l.b16 %v119
  %v1921 = vunpack.c.h.b16 %v119
  %v1922 = vunpack.c.l.b16 %v120
  %v1923 = vunpack.c.h.b16 %v120
  %v1924 = vunpack.c.l.b16 %v121
  %v1925 = vunpack.c.h.b16 %v121
  %v1926 = vunpack.c.l.b16 %v122
  %v1927 = vunpack.c.h.b16 %v122
  %v1928 = vunpack.c.l.b16 %v123
  %v1929 = vunpack.c.h.b16 %v123
  %v1930 = vunpack.c.l.b16 %v124
  %v1931 = vunpack.c.h.b16 %v124
  %v1932 = vunpack.c.l.b16 %v125
  %v1933 = vunpack.c.h.b16 %v125
  %v1934 = vunpack.c.l.b16 %v126
  %v1935 = vunpack.c.h.b16 %v126
  %v1936 = vunpack.c.l.b16 %v127
  %v1937 = vunpack.c.h.b16 %v127
  %v1938 = vunpack.c.l.b16 %v128
  %v1939 = vunpack.c.h.b16 %v128
  %v1940 = vunpack.c.l.b16 %v129
  %v1941 = vunpack.c.h.b16 %v129
  %v1942 = vunpack.c.l.b16 %v130
  %v1943 = vunpack.c.h.b16 %v130
  %v1944 = vunpack.c.l.b16 %v131
  %v1945 = vunpack.c.h.b16 %v131
  %v1946 = vunpack.c.l.b16 %v132
  %v1947 = vunpack.c.h.b16 %v132
  %v1948 = vunpack.c.l.b16 %v133
  %v1949 = vunpack.c.h.b16 %v133
  %v1950 = vunpack.c.l.b16 %v134
  %v1951 = vunpack.c.h.b16 %v134
  %v1952 = vunpack.c.l.b16 %v135
  %v1953 = vunpack.c.h.b16 %v135
  %v1954 = vunpack.c.l.b16 %v136
  %v1955 = vunpack.c.h.b16 %v136
  %v1956 = vunpack.c.l.b16 %v137
  %v1957 = vunpack.c.h.b16 %v137
  %v1958 = vunpack.c.l.b16 %v138
  %v1959 = vunpack.c.h.b16 %v138
  %v1960 = vunpack.c.l.b16 %v139
  %v1961 = vunpack.c.h.b16 %v139
  %v1962 = vunpack.c.l.b16 %v140
  %v1963 = vunpack.c.h.b16 %v140
  %v1964 = vunpack.c.l.b16 %v141
  %v1965 = vunpack.c.h.b16 %v141
  %v1966 = vunpack.c.l.b16 %v142
  %v1967 = vunpack.c.h.b16 %v142
  %v1968 = vunpack.c.l.b16 %v143
  %v1969 = vunpack.c.h.b16 %v143
  %v1970 = vunpack.c.l.b16 %v144
  %v1971 = vunpack.c.h.b16 %v144
  %v1972 = vunpack.c.l.b16 %v145
  %v1973 = vunpack.c.h.b16 %v145
  %v1974 = vunpack.c.l.b16 %v146
  %v1975 = vunpack.c.h.b16 %v146
  %v1976 = vunpack.c.l.b16 %v147
  %v1977 = vunpack.c.h.b16 %v147
  %v1978 = vunpack.c.l.b16 %v148
  %v1979 = vunpack.c.h.b16 %v148
  %v1980 = vunpack.c.l.b16 %v149
  %v1981 = vunpack.c.h.b16 %v149
  %v1982 = vunpack.c.l.b16 %v150
  %v1983 = vunpack.c.h.b16 %v150
  %v1984 = vunpack.c.l.b16 %v151
  %v1985 = vunpack.c.h.b16 %v151
  %v1986 = vunpack.c.l.b16 %v152
  %v1987 = vunpack.c.h.b16 %v152
  %v1988 = vunpack.c.l.b16 %v153
  %v1989 = vunpack.c.h.b16 %v153
  %v1990 = vunpack.c.l.b16 %v154
  %v1991 = vunpack.c.h.b16 %v154
  %v1992 = vunpack.c.l.b16 %v155
  %v1993 = vunpack.c.h.b16 %v155
  %v1994 = vunpack.c.l.b16 %v156
  %v1995 = vunpack.c.h.b16 %v156
  %v1996 = vunpack.c.l.b16 %v157
  %v1997 = vunpack.c.h.b16 %v157
  %v1998 = vunpack.c.l.b16 %v158
  %v1999 = vunpack.c.h.b16 %v158
  %v2000 = vunpack.c.l.b16 %v159
  %v2001 = vunpack.c.h.b16 %v159
  %v2002 = vunpack.c.l.b16 %v160
  %v2003 = vunpack.c.h.b16 %v160
  %v2004 = vunpack.c.l.b16 %v161
  %v2005 = vunpack.c.h.b16 %v161
  %v2006 = vunpack.c.l.b16 %v162
  %v2007 = vunpack.c.h.b16 %v162
  %v2008 = vunpack.c.l.b16 %v163
  %v2009 = vunpack.c.h.b16 %v163
  %v2010 = vunpack.c.l.b16 %v164
  %v2011 = vunpack.c.h.b16 %v164
  %v2012 = vunpack.c.l.b16 %v165
  %v2013 = vunpack.c.h.b16 %v165
  %v2014 = vunpack.c.l.b16 %v166
  %v2015 = vunpack.c.h.b16 %v166
  %v2016 = vunpack.c.l.b16 %v167
  %v2017 = vunpack.c.h.b16 %v167
  %v2018 = vunpack.c.l.b16 %v168
  %v2019 = vunpack.c.h.b16 %v168
  %v2020 = vunpack.c.l.b16 %v169
  %v2021 = vunpack.c.h.b16 %v169
  %v2022 = vunpack.c.l.b16 %v170
  %v2023 = vunpack.c.h.b16 %v170
  %v2024 = vunpack.c.l.b16 %v171
  %v2025 = vunpack.c.h.b16 %v171
  %v2026 = vunpack.c.l.b16 %v172
  %v2027 = vunpack.c.h.b16 %v172
  %v2028 = vunpack.c.l.b16 %v173
  %v2029 = vunpack.c.h.b16 %v173
  %v2030 = vunpack.c.l.b16 %v174
  %v2031 = vunpack.c.h.b16 %v174
  %v2032 = vunpack.c.l.b16 %v175
  %v2033 = vunpack.c.h.b16 %v175
  %v2034 = vunpack.c.l.b16 %v176
  %v2035 = vunpack.c.h.b16 %v176
  %v2036 = vunpack.c.l.b16 %v177
  %v2037 = vunpack.c.h.b16 %v177
  %v2038 = vunpack.c.l.b16 %v178
  %v2039 = vunpack.c.h.b16 %v178
  %v2040 = vunpack.c.l.b16 %v179
  %v2041 = vunpack.c.h.b16 %v179
  %v2042 = vunpack.c.l.b16 %v180
  %v2043 = vunpack.c.h.b16 %v180
  %v2044 = vunpack.c.l.b16 %v181
  %v2045 = vunpack.c.h.b16 %v181
  %v2046 = vunpack.c.l.b16 %v182
  %v2047 = vunpack.c.h.b16 %v182
  %v2048 = vunpack.c.l.b16 %v183
  %v2049 = vunpack.c.h.b16 %v183
  %v2050 = vunpack.c.l.b16 %v184
  %v2051 = vunpack.c.h.b16 %v184
  %v2052 = vunpack.c.l.b16 %v185
  %v2053 = vunpack.c.h.b16 %v185
  %v2054 = vunpack.c.l.b16 %v186
  %v2055 = vunpack.c.h.b16 %v186
  %v2056 = vunpack.c.l.b16 %v187
  %v2057 = vunpack.c.h.b16 %v187
  %v2058 = vunpack.c.l.b16 %v188
  %v2059 = vunpack.c.h.b16 %v188
  %v2060 = vunpack.c.l.b16 %v189
  %v2061 = vunpack.c.h.b16 %v189
  %v2062 = vunpack.c.l.b16 %v190
  %v2063 = vunpack.c.h.b16 %v190
  %v2064 = vunpack.c.l.b16 %v191
  %v2065 = vunpack.c.h.b16 %v191
  %v2066 = vunpack.c.l.b16 %v192
  %v2067 = vunpack.c.h.b16 %v192
  %v2068 = vunpack.c.l.b16 %v193
  %v2069 = vunpack.c.h.b16 %v193
  %v2070 = vunpack.c.l.b16 %v194
  %v2071 = vunpack.c.h.b16 %v194
  %v2072 = vunpack.c.l.b16 %v195
  %v2073 = vunpack.c.h.b16 %v195
  %v2074 = vunpack.c.l.b16 %v196
  %v2075 = vunpack.c.h.b16 %v196
  %v2076 = vunpack.c.l.b16 %v197
  %v2077 = vunpack.c.h.b16 %v197
  %v2078 = vunpack.c.l.b16 %v198
  %v2079 = vunpack.c.h.b16 %v198
  %v2080 = vunpack.c.l.b16 %v199
  %v2081 = vunpack.c.h.b16 %v199
  %v2082 = vunpack.c.l.b16 %v200
  %v2083 = vunpack.c.h.b16 %v200
  %v2084 = vunpack.c.l.b16 %v201
  %v2085 = vunpack.c.h.b16 %v201
  %v2086 = vunpack.c.l.b16 %v202
  %v2087 = vunpack.c.h.b16 %v202
  %v2088 = vunpack.c.l.b16 %v203
  %v2089 = vunpack.c.h.b16 %v203
  %v2090 = vunpack.c.l.b16 %v204
  %v2091 = vunpack.c.h.b16 %v204
  %v2092 = vunpack.c.l.b16 %v205
  %v2093 = vunpack.c.h.b16 %v205
  %v2094 = vunpack.c.l.b16 %v206
  %v2095 = vunpack.c.h.b16 %v206
  %v2096 = vunpack.c.l.b16 %v207
  %v2097 = vunpack.c.h.b16 %v207
  %v2098 = vunpack.c.l.b16 %v208
  %v2099 = vunpack.c.h.b16 %v208
  %v2100 = vunpack.c.l.b16 %v209
  %v2101 = vunpack.c.h.b16 %v209
  %v2102 = vunpack.c.l.b16 %v210
  %v2103 = vunpack.c.h.b16 %v210
  %v2104 = vunpack.c.l.b16 %v211
  %v2105 = vunpack.c.h.b16 %v211
  %v2106 = vunpack.c.l.b16 %v212
  %v2107 = vunpack.c.h.b16 %v212
  %v2108 = vunpack.c.l.b16 %v213
  %v2109 = vunpack.c.h.b16 %v213
  %v2110 = vunpack.c.l.b16 %v214
  %v2111 = vunpack.c.h.b16 %v214
  %v2112 = vunpack.c.l.b16 %v215
  %v2113 = vunpack.c.h.b16 %v215
  %v2114 = vunpack.c.l.b16 %v216
  %v2115 = vunpack.c.h.b16 %v216
  %v2116 = vunpack.c.l.b16 %v217
  %v2117 = vunpack.c.h.b16 %v217
  %v2118 = vunpack.c.l.b16 %v218
  %v2119 = vunpack.c.h.b16 %v218
  %v2120 = vunpack.c.l.b16 %v219
  %v2121 = vunpack.c.h.b16 %v219
  %v2122 = vunpack.c.l.b16 %v220
  %v2123 = vunpack.c.h.b16 %v220
  %v2124 = vunpack.c.l.b16 %v221
  %v2125 = vunpack.c.h.b16 %v221
  %v2126 = vunpack.c.l.b16 %v222
  %v2127 = vunpack.c.h.b16 %v222
  %v2128 = vunpack.c.l.b16 %v223
  %v2129 = vunpack.c.h.b16 %v223
  %v2130 = vunpack.c.l.b16 %v224
  %v2131 = vunpack.c.h.b16 %v224
  %v2132 = vunpack.c.l.b16 %v225
  %v2133 = vunpack.c.h.b16 %v225
  %v2134 = vunpack.c.l.b16 %v226
  %v2135 = vunpack.c.h.b16 %v226
  %v2136 = vunpack.c.l.b16 %v227
  %v2137 = vunpack.c.h.b16 %v227
  %v2138 = vunpack.c.l.b16 %v228
  %v2139 = vunpack.c.h.b16 %v228
  %v2140 = vunpack.c.l.b16 %v229
  %v2141 = vunpack.c.h.b16 %v229
  %v2142 = vunpack.c.l.b16 %v230
  %v2143 = vunpack.c.h.b16 %v230
  %v2144 = vunpack.c.l.b16 %v231
  %v2145 = vunpack.c.h.b16 %v231
  %v2146 = vunpack.c.l.b16 %v232
  %v2147 = vunpack.c.h.b16 %v232
  %v2148 = vunpack.c.l.b16 %v233
  %v2149 = vunpack.c.h.b16 %v233
  %v2150 = vunpack.c.l.b16 %v234
  %v2151 = vunpack.c.h.b16 %v234
  %v2152 = vunpack.c.l.b16 %v235
  %v2153 = vunpack.c.h.b16 %v235
  %v2154 = vunpack.c.l.b16 %v236
  %v2155 = vunpack.c.h.b16 %v236
  %v2156 = vunpack.c.l.b16 %v237
  %v2157 = vunpack.c.h.b16 %v237
  %v2158 = vunpack.c.l.b16 %v238
  %v2159 = vunpack.c.h.b16 %v238
  %v2160 = vunpack.c.l.b16 %v239
  %v2161 = vunpack.c.h.b16 %v239
  %v2162 = vunpack.c.l.b16 %v240
  %v2163 = vunpack.c.h.b16 %v240
  %v2164 = vunpack.c.l.b16 %v241
  %v2165 = vunpack.c.h.b16 %v241
  %v2166 = vunpack.c.l.b16 %v242
  %v2167 = vunpack.c.h.b16 %v242
  %v2168 = vunpack.c.l.b16 %v243
  %v2169 = vunpack.c.h.b16 %v243
  %v2170 = vunpack.c.l.b16 %v244
  %v2171 = vunpack.c.h.b16 %v244
  %v2172 = vunpack.c.l.b16 %v245
  %v2173 = vunpack.c.h.b16 %v245
  %v2174 = vunpack.c.l.b16 %v246
  %v2175 = vunpack.c.h.b16 %v246
  %v2176 = vunpack.c.l.b16 %v247
  %v2177 = vunpack.c.h.b16 %v247
  %v2178 = vunpack.c.l.b16 %v248
  %v2179 = vunpack.c.h.b16 %v248
  %v2180 = vunpack.c.l.b16 %v249
  %v2181 = vunpack.c.h.b16 %v249
  %v2182 = vunpack.c.l.b16 %v250
  %v2183 = vunpack.c.h.b16 %v250
  %v2184 = vunpack.c.l.b16 %v251
  %v2185 = vunpack.c.h.b16 %v251
  %v2186 = vunpack.c.l.b16 %v252
  %v2187 = vunpack.c.h.b16 %v252
  %v2188 = vunpack.c.l.b16 %v253
  %v2189 = vunpack.c.h.b16 %v253
  %v2190 = vunpack.c.l.b16 %v254
  %v2191 = vunpack.c.h.b16 %v254
  %v2192 = vunpack.c.l.b16 %v255
  %v2193 = vunpack.c.h.b16 %v255
  %v2194 = vunpack.c.l.b16 %v256
  %v2195 = vunpack.c.h.b16 %v256
  %v2196 = vunpack.c.l.b16 %v257
  %v2197 = vunpack.c.h.b16 %v257
  %v2198 = vunpack.c.l.b16 %v258
  %v2199 = vunpack.c.h.b16 %v258
  %v2200 = vunpack.c.l.b16 %v259
  %v2201 = vunpack.c.h.b16 %v259
  %v2202 = vunpack.c.l.b16 %v260
  %v2203 = vunpack.c.h.b16 %v260
  %v2204 = vunpack.c.l.b16 %v261
  %v2205 = vunpack.c.h.b16 %v261
  %v2206 = vunpack.c.l.b16 %v262
  %v2207 = vunpack.c.h.b16 %v262
  %v2208 = vunpack.c.l.b16 %v263
  %v2209 = vunpack.c.h.b16 %v263
  %v2210 = vunpack.c.l.b16 %v264
  %v2211 = vunpack.c.h.b16 %v264
  %v2212 = vunpack.c.l.b16 %v265
  %v2213 = vunpack.c.h.b16 %v265
  %v2214 = vunpack.c.l.b16 %v266
  %v2215 = vunpack.c.h.b16 %v266
  %v2216 = vunpack.c.l.b16 %v267
  %v2217 = vunpack.c.h.b16 %v267
  %v2218 = vunpack.c.l.b16 %v268
  %v2219 = vunpack.c.h.b16 %v268
  %v2220 = vunpack.c.l.b16 %v269
  %v2221 = vunpack.c.h.b16 %v269
  %v2222 = vunpack.c.l.b16 %v270
  %v2223 = vunpack.c.h.b16 %v270
  %v2224 = vunpack.c.l.b16 %v271
  %v2225 = vunpack.c.h.b16 %v271
  %v2226 = vunpack.c.l.b16 %v272
  %v2227 = vunpack.c.h.b16 %v272
  %v2228 = vunpack.c.l.b16 %v273
  %v2229 = vunpack.c.h.b16 %v273
  %v2230 = vunpack.c.l.b16 %v274
  %v2231 = vunpack.c.h.b16 %v274
  %v2232 = vunpack.c.l.b16 %v275
  %v2233 = vunpack.c.h.b16 %v275
  %v2234 = vunpack.c.l.b16 %v276
  %v2235 = vunpack.c.h.b16 %v276
  %v2236 = vunpack.c.l.b16 %v277
  %v2237 = vunpack.c.h.b16 %v277
  %v2238 = vunpack.c.l.b16 %v278
  %v2239 = vunpack.c.h.b16 %v278
  %v2240 = vunpack.c.l.b16 %v279
  %v2241 = vunpack.c.h.b16 %v279
  %v2242 = vunpack.c.l.b16 %v280
  %v2243 = vunpack.c.h.b16 %v280
  %v2244 = vunpack.c.l.b16 %v281
  %v2245 = vunpack.c.h.b16 %v281
  %v2246 = vunpack.c.l.b16 %v282
  %v2247 = vunpack.c.h.b16 %v282
  %v2248 = vunpack.c.l.b16 %v283
  %v2249 = vunpack.c.h.b16 %v283
  %v2250 = vunpack.c.l.b16 %v284
  %v2251 = vunpack.c.h.b16 %v284
  %v2252 = vunpack.c.l.b16 %v285
  %v2253 = vunpack.c.h.b16 %v285
  %v2254 = vunpack.c.l.b16 %v286
  %v2255 = vunpack.c.h.b16 %v286
  %v2256 = vunpack.c.l.b16 %v287
  %v2257 = vunpack.c.h.b16 %v287
  %v2258 = vunpack.c.l.b16 %v288
  %v2259 = vunpack.c.h.b16 %v288
  %v2260 = vunpack.c.l.b16 %v289
  %v2261 = vunpack.c.h.b16 %v289
  %v2262 = vunpack.c.l.b16 %v290
  %v2263 = vunpack.c.h.b16 %v290
  %v2264 = vunpack.c.l.b16 %v291
  %v2265 = vunpack.c.h.b16 %v291
  %v2266 = vunpack.c.l.b16 %v292
  %v2267 = vunpack.c.h.b16 %v292
  %v2268 = vunpack.c.l.b16 %v293
  %v2269 = vunpack.c.h.b16 %v293
  %v2270 = vunpack.c.l.b16 %v294
  %v2271 = vunpack.c.h.b16 %v294
  %v2272 = vunpack.c.l.b16 %v295
  %v2273 = vunpack.c.h.b16 %v295
  %v2274 = vunpack.c.l.b16 %v296
  %v2275 = vunpack.c.h.b16 %v296
  %v2276 = vunpack.c.l.b16 %v297
  %v2277 = vunpack.c.h.b16 %v297
  %v2278 = vunpack.c.l.b16 %v298
  %v2279 = vunpack.c.h.b16 %v298
  %v2280 = vunpack.c.l.b16 %v299
  %v2281 = vunpack.c.h.b16 %v299
  %v2282 = vunpack.c.l.b16 %v300
  %v2283 = vunpack.c.h.b16 %v300
  %v2284 = vunpack.c.l.b16 %v301
  %v2285 = vunpack.c.h.b16 %v301
  %v2286 = vunpack.c.l.b16 %v302
  %v2287 = vunpack.c.h.b16 %v302
  %v2288 = vunpack.c.l.b16 %v303
  %v2289 = vunpack.c.h.b16 %v303
  %v2290 = vunpack.c.l.b16 %v304
  %v2291 = vunpack.c.h.b16 %v304
  %v2292 = vunpack.c.l.b16 %v305
  %v2293 = vunpack.c.h.b16 %v305
  %v2294 = vunpack.c.l.b16 %v306
  %v2295 = vunpack.c.h.b16 %v306
  %v2296 = vunpack.c.l.b16 %v307
  %v2297 = vunpack.c.h.b16 %v307
  %v2298 = vunpack.c.l.b16 %v308
  %v2299 = vunpack.c.h.b16 %v308
  %v2300 = vunpack.c.l.b16 %v309
  %v2301 = vunpack.c.h.b16 %v309
  %v2302 = vunpack.c.l.b16 %v310
  %v2303 = vunpack.c.h.b16 %v310
  %v2304 = vunpack.c.l.b16 %v311
  %v2305 = vunpack.c.h.b16 %v311
  %v2306 = vunpack.c.l.b16 %v312
  %v2307 = vunpack.c.h.b16 %v312
  %v2308 = vunpack.c.l.b16 %v313
  %v2309 = vunpack.c.h.b16 %v313
  %v2310 = vunpack.c.l.b16 %v314
  %v2311 = vunpack.c.h.b16 %v314
  %v2312 = vunpack.c.l.b16 %v315
  %v2313 = vunpack.c.h.b16 %v315
  %v2314 = vunpack.c.l.b16 %v316
  %v2315 = vunpack.c.h.b16 %v316
  %v2316 = vunpack.c.l.b16 %v317
  %v2317 = vunpack.c.h.b16 %v317
  %v2318 = vunpack.c.l.b16 %v318
  %v2319 = vunpack.c.h.b16 %v318
  %v2320 = vunpack.c.l.b16 %v319
  %v2321 = vunpack.c.h.b16 %v319
  %v2322 = vunpack.c.l.b16 %v320
  %v2323 = vunpack.c.h.b16 %v320
  %v2324 = vunpack.c.l.b16 %v321
  %v2325 = vunpack.c.h.b16 %v321
  %v2326 = vunpack.c.l.b16 %v322
  %v2327 = vunpack.c.h.b16 %v322
  %v2328 = vunpack.c.l.b16 %v323
  %v2329 = vunpack.c.h.b16 %v323
  %v2330 = vunpack.c.l.b16 %v324
  %v2331 = vunpack.c.h.b16 %v324
  %v2332 = vunpack.c.l.b16 %v325
  %v2333 = vunpack.c.h.b16 %v325
  %v2334 = vunpack.c.l.b16 %v326
  %v2335 = vunpack.c.h.b16 %v326
  %v2336 = vunpack.c.l.b16 %v327
  %v2337 = vunpack.c.h.b16 %v327
  %v2338 = vunpack.c.l.b16 %v328
  %v2339 = vunpack.c.h.b16 %v328
  %v2340 = vunpack.c.l.b16 %v329
  %v2341 = vunpack.c.h.b16 %v329
  %v2342 = vunpack.c.l.b16 %v330
  %v2343 = vunpack.c.h.b16 %v330
  %v2344 = vunpack.c.l.b16 %v331
  %v2345 = vunpack.c.h.b16 %v331
  %v2346 = vunpack.c.l.b16 %v332
  %v2347 = vunpack.c.h.b16 %v332
  %v2348 = vunpack.c.l.b16 %v333
  %v2349 = vunpack.c.h.b16 %v333
  %v2350 = vunpack.c.l.b16 %v334
  %v2351 = vunpack.c.h.b16 %v334
  %v2352 = vunpack.c.l.b16 %v335
  %v2353 = vunpack.c.h.b16 %v335
  %v2354 = vunpack.c.l.b16 %v336
  %v2355 = vunpack.c.h.b16 %v336
  %v2356 = vunpack.c.l.b16 %v337
  %v2357 = vunpack.c.h.b16 %v337
  %v2358 = vunpack.c.l.b16 %v338
  %v2359 = vunpack.c.h.b16 %v338
  %v2360 = vunpack.c.l.b16 %v339
  %v2361 = vunpack.c.h.b16 %v339
  %v2362 = vunpack.c.l.b16 %v340
  %v2363 = vunpack.c.h.b16 %v340
  %v2364 = vunpack.c.l.b16 %v341
  %v2365 = vunpack.c.h.b16 %v341
  %v2366 = vunpack.c.l.b16 %v342
  %v2367 = vunpack.c.h.b16 %v342
  %v2368 = vunpack.c.l.b16 %v343
  %v2369 = vunpack.c.h.b16 %v343
  %v2370 = vunpack.c.l.b16 %v344
  %v2371 = vunpack.c.h.b16 %v344
  %v2372 = vunpack.c.l.b16 %v345
  %v2373 = vunpack.c.h.b16 %v345
  %v2374 = vunpack.c.l.b16 %v346
  %v2375 = vunpack.c.h.b16 %v346
  %v2376 = vunpack.c.l.b16 %v347
  %v2377 = vunpack.c.h.b16 %v347
  %v2378 = vunpack.c.l.b16 %v348
  %v2379 = vunpack.c.h.b16 %v348
  %v2380 = vunpack.c.l.b16 %v349
  %v2381 = vunpack.c.h.b16 %v349
  %v2382 = vunpack.c.l.b16 %v350
  %v2383 = vunpack.c.h.b16 %v350
  %v2384 = vunpack.c.l.b16 %v351
  %v2385 = vunpack.c.h.b16 %v351
  %v2386 = vunpack.c.l.b16 %v352
  %v2387 = vunpack.c.h.b16 %v352
  %v2388 = vunpack.c.l.b16 %v353
  %v2389 = vunpack.c.h.b16 %v353
  %v2390 = vunpack.c.l.b16 %v354
  %v2391 = vunpack.c.h.b16 %v354
  %v2392 = vunpack.c.l.b16 %v355
  %v2393 = vunpack.c.h.b16 %v355
  %v2394 = vunpack.c.l.b16 %v356
  %v2395 = vunpack.c.h.b16 %v356
  %v2396 = vunpack.c.l.b16 %v357
  %v2397 = vunpack.c.h.b16 %v357
  %v2398 = vunpack.c.l.b16 %v358
  %v2399 = vunpack.c.h.b16 %v358
  %v2400 = vunpack.c.l.b16 %v359
  %v2401 = vunpack.c.h.b16 %v359
  %v2402 = vunpack.c.l.b16 %v360
  %v2403 = vunpack.c.h.b16 %v360
  %v2404 = vunpack.c.l.b16 %v361
  %v2405 = vunpack.c.h.b16 %v361
  %v2406 = vunpack.c.l.b16 %v362
  %v2407 = vunpack.c.h.b16 %v362
  %v2408 = vunpack.c.l.b16 %v363
  %v2409 = vunpack.c.h.b16 %v363
  %v2410 = vunpack.c.l.b16 %v364
  %v2411 = vunpack.c.h.b16 %v364
  %v2412 = vunpack.c.l.b16 %v365
  %v2413 = vunpack.c.h.b16 %v365
  %v2414 = vunpack.c.l.b16 %v366
  %v2415 = vunpack.c.h.b16 %v366
  %v2416 = vunpack.c.l.b16 %v367
  %v2417 = vunpack.c.h.b16 %v367
  %v2418 = vunpack.c.l.b16 %v368
  %v2419 = vunpack.c.h.b16 %v368
  %v2420 = vunpack.c.l.b16 %v369
  %v2421 = vunpack.c.h.b16 %v369
  %v2422 = vunpack.c.l.b16 %v370
  %v2423 = vunpack.c.h.b16 %v370
  %v2424 = vunpack.c.l.b16 %v371
  %v2425 = vunpack.c.h.b16 %v371
  %v2426 = vunpack.c.l.b16 %v372
  %v2427 = vunpack.c.h.b16 %v372
  %v2428 = vunpack.c.l.b16 %v373
  %v2429 = vunpack.c.h.b16 %v373
  %v2430 = vunpack.c.l.b16 %v374
  %v2431 = vunpack.c.h.b16 %v374
  %v2432 = vunpack.c.l.b16 %v375
  %v2433 = vunpack.c.h.b16 %v375
  %v2434 = vunpack.c.l.b16 %v376
  %v2435 = vunpack.c.h.b16 %v376
  %v2436 = vunpack.c.l.b16 %v377
  %v2437 = vunpack.c.h.b16 %v377
  %v2438 = vunpack.c.l.b16 %v378
  %v2439 = vunpack.c.h.b16 %v378
  %v2440 = vunpack.c.l.b16 %v379
  %v2441 = vunpack.c.h.b16 %v379
  %v2442 = vunpack.c.l.b16 %v380
  %v2443 = vunpack.c.h.b16 %v380
  %v2444 = vunpack.c.l.b16 %v381
  %v2445 = vunpack.c.h.b16 %v381
  %v2446 = vunpack.c.l.b16 %v382
  %v2447 = vunpack.c.h.b16 %v382
  %v2448 = vunpack.c.l.b16 %v383
  %v2449 = vunpack.c.h.b16 %v383
  %v2450 = vunpack.c.l.b16 %v384
  %v2451 = vunpack.c.h.b16 %v384
  %v2452 = vunpack.c.l.b16 %v385
  %v2453 = vunpack.c.h.b16 %v385
  %v2454 = vunpack.c.l.b16 %v386
  %v2455 = vunpack.c.h.b16 %v386
  %v2456 = vunpack.c.l.b16 %v387
  %v2457 = vunpack.c.h.b16 %v387
  %v2458 = vunpack.c.l.b16 %v388
  %v2459 = vunpack.c.h.b16 %v388
  %v2460 = vunpack.c.l.b16 %v389
  %v2461 = vunpack.c.h.b16 %v389
  %v2462 = vunpack.c.l.b16 %v390
  %v2463 = vunpack.c.h.b16 %v390
  %v2464 = vunpack.c.l.b16 %v391
  %v2465 = vunpack.c.h.b16 %v391
  %v2466 = vunpack.c.l.b16 %v392
  %v2467 = vunpack.c.h.b16 %v392
  %v2468 = vunpack.c.l.b16 %v393
  %v2469 = vunpack.c.h.b16 %v393
  %v2470 = vunpack.c.l.b16 %v394
  %v2471 = vunpack.c.h.b16 %v394
  %v2472 = vunpack.c.l.b16 %v395
  %v2473 = vunpack.c.h.b16 %v395
  %v2474 = vunpack.c.l.b16 %v396
  %v2475 = vunpack.c.h.b16 %v396
  %v2476 = vunpack.c.l.b16 %v397
  %v2477 = vunpack.c.h.b16 %v397
  %v2478 = vunpack.c.l.b16 %v398
  %v2479 = vunpack.c.h.b16 %v398
  %v2480 = vunpack.c.l.b16 %v399
  %v2481 = vunpack.c.h.b16 %v399
  %v2482 = vunpack.c.l.b16 %v400
  %v2483 = vunpack.c.h.b16 %v400
  %v2484 = vunpack.c.l.b16 %v401
  %v2485 = vunpack.c.h.b16 %v401
  %v2486 = vunpack.c.l.b16 %v402
  %v2487 = vunpack.c.h.b16 %v402
  %v2488 = vunpack.c.l.b16 %v403
  %v2489 = vunpack.c.h.b16 %v403
  %v2490 = vunpack.c.l.b16 %v404
  %v2491 = vunpack.c.h.b16 %v404
  %v2492 = vunpack.c.l.b16 %v405
  %v2493 = vunpack.c.h.b16 %v405
  %v2494 = vunpack.c.l.b16 %v406
  %v2495 = vunpack.c.h.b16 %v406
  %v2496 = vunpack.c.l.b16 %v407
  %v2497 = vunpack.c.h.b16 %v407
  %v2498 = vunpack.c.l.b16 %v408
  %v2499 = vunpack.c.h.b16 %v408
  %v2500 = vunpack.c.l.b16 %v409
  %v2501 = vunpack.c.h.b16 %v409
  %v2502 = vunpack.c.l.b16 %v410
  %v2503 = vunpack.c.h.b16 %v410
  %v2504 = vunpack.c.l.b16 %v411
  %v2505 = vunpack.c.h.b16 %v411
  %v2506 = vunpack.c.l.b16 %v412
  %v2507 = vunpack.c.h.b16 %v412
  %v2508 = vunpack.c.l.b16 %v413
  %v2509 = vunpack.c.h.b16 %v413
  %v2510 = vunpack.c.l.b16 %v414
  %v2511 = vunpack.c.h.b16 %v414
  %v2512 = vunpack.c.l.b16 %v415
  %v2513 = vunpack.c.h.b16 %v415
  %v2514 = vunpack.c.l.b16 %v416
  %v2515 = vunpack.c.h.b16 %v416
  %v2516 = vunpack.c.l.b16 %v417
  %v2517 = vunpack.c.h.b16 %v417
  %v2518 = vunpack.c.l.b16 %v418
  %v2519 = vunpack.c.h.b16 %v418
  %v2520 = vunpack.c.l.b16 %v419
  %v2521 = vunpack.c.h.b16 %v419
  %v2522 = vunpack.c.l.b16 %v420
  %v2523 = vunpack.c.h.b16 %v420
  %v2524 = vunpack.c.l.b16 %v421
  %v2525 = vunpack.c.h.b16 %v421
  %v2526 = vunpack.c.l.b16 %v422
  %v2527 = vunpack.c.h.b16 %v422
  %v2528 = vunpack.c.l.b16 %v423
  %v2529 = vunpack.c.h.b16 %v423
  %v2530 = vunpack.c.l.b16 %v424
  %v2531 = vunpack.c.h.b16 %v424
  %v2532 = vunpack.c.l.b16 %v425
  %v2533 = vunpack.c.h.b16 %v425
  %v2534 = vunpack.c.l.b16 %v426
  %v2535 = vunpack.c.h.b16 %v426
  %v2536 = vunpack.c.l.b16 %v427
  %v2537 = vunpack.c.h.b16 %v427
  %v2538 = vunpack.c.l.b16 %v428
  %v2539 = vunpack.c.h.b16 %v428
  %v2540 = vunpack.c.l.b16 %v429
  %v2541 = vunpack.c.h.b16 %v429
  %v2542 = vunpack.c.l.b16 %v430
  %v2543 = vunpack.c.h.b16 %v430
  %v2544 = vunpack.c.l.b16 %v431
  %v2545 = vunpack.c.h.b16 %v431
  %v2546 = vunpack.c.l.b16 %v432
  %v2547 = vunpack.c.h.b16 %v432
  %v2548 = vunpack.c.l.b16 %v433
  %v2549 = vunpack.c.h.b16 %v433
  %v2550 = vunpack.c.l.b16 %v434
  %v2551 = vunpack.c.h.b16 %v434
  %v2552 = vunpack.c.l.b16 %v435
  %v2553 = vunpack.c.h.b16 %v435
  %v2554 = vunpack.c.l.b16 %v436
  %v2555 = vunpack.c.h.b16 %v436
  %v2556 = vunpack.c.l.b16 %v437
  %v2557 = vunpack.c.h.b16 %v437
  %v2558 = vunpack.c.l.b16 %v438
  %v2559 = vunpack.c.h.b16 %v438
  %v2560 = vunpack.c.l.b16 %v439
  %v2561 = vunpack.c.h.b16 %v439
  %v2562 = vunpack.c.l.b16 %v440
  %v2563 = vunpack.c.h.b16 %v440
  %v2564 = vunpack.c.l.b16 %v441
  %v2565 = vunpack.c.h.b16 %v441
  %v2566 = vunpack.c.l.b16 %v442
  %v2567 = vunpack.c.h.b16 %v442
  %v2568 = vunpack.c.l.b16 %v443
  %v2569 = vunpack.c.h.b16 %v443
  %v2570 = vunpack.c.l.b16 %v444
  %v2571 = vunpack.c.h.b16 %v444
  %v2572 = vunpack.c.l.b16 %v445
  %v2573 = vunpack.c.h.b16 %v445
  %v2574 = vunpack.c.l.b16 %v446
  %v2575 = vunpack.c.h.b16 %v446
  %v2576 = vunpack.c.l.b16 %v447
  %v2577 = vunpack.c.h.b16 %v447
  %v2578 = vunpack.c.l.b16 %v448
  %v2579 = vunpack.c.h.b16 %v448
  %v2580 = vunpack.c.l.b16 %v449
  %v2581 = vunpack.c.h.b16 %v449
  %v2582 = vunpack.c.l.b16 %v450
  %v2583 = vunpack.c.h.b16 %v450
  %v2584 = vunpack.c.l.b16 %v451
  %v2585 = vunpack.c.h.b16 %v451
  %v2586 = vunpack.c.l.b16 %v452
  %v2587 = vunpack.c.h.b16 %v452
  %v2588 = vunpack.c.l.b16 %v453
  %v2589 = vunpack.c.h.b16 %v453
  %v2590 = vunpack.c.l.b16 %v454
  %v2591 = vunpack.c.h.b16 %v454
  %v2592 = vunpack.c.l.b16 %v455
  %v2593 = vunpack.c.h.b16 %v455
  %v2594 = vunpack.c.l.b16 %v456
  %v2595 = vunpack.c.h.b16 %v456
  %v2596 = vunpack.c.l.b16 %v457
  %v2597 = vunpack.c.h.b16 %v457
  %v2598 = vunpack.c.l.b16 %v458
  %v2599 = vunpack.c.h.b16 %v458
  %v2600 = vunpack.c.l.b16 %v459
  %v2601 = vunpack.c.h.b16 %v459
  %v2602 = vunpack.c.l.b16 %v460
  %v2603 = vunpack.c.h.b16 %v460
  %v2604 = vunpack.c.l.b16 %v461
  %v2605 = vunpack.c.h.b16 %v461
  %v2606 = vunpack.c.l.b16 %v462
  %v2607 = vunpack.c.h.b16 %v462
  %v2608 = vunpack.c.l.b16 %v463
  %v2609 = vunpack.c.h.b16 %v463
  %v2610 = vunpack.c.l.b16 %v464
  %v2611 = vunpack.c.h.b16 %v464
  %v2612 = vunpack.c.l.b16 %v465
  %v2613 = vunpack.c.h.b16 %v465
  %v2614 = vunpack.c.l.b16 %v466
  %v2615 = vunpack.c.h.b16 %v466
  %v2616 = vunpack.c.l.b16 %v467
  %v2617 = vunpack.c.h.b16 %v467
  %v2618 = vunpack.c.l.b16 %v468
  %v2619 = vunpack.c.h.b16 %v468
  %v2620 = vunpack.c.l.b16 %v469
  %v2621 = vunpack.c.h.b16 %v469
  %v2622 = vunpack.c.l.b16 %v470
  %v2623 = vunpack.c.h.b16 %v470
  %v2624 = vunpack.c.l.b16 %v471
  %v2625 = vunpack.c.h.b16 %v471
  %v2626 = vunpack.c.l.b16 %v472
  %v2627 = vunpack.c.h.b16 %v472
  %v2628 = vunpack.c.l.b16 %v473
  %v2629 = vunpack.c.h.b16 %v473
  %v2630 = vunpack.c.l.b16 %v474
  %v2631 = vunpack.c.h.b16 %v474
  %v2632 = vunpack.c.l.b16 %v475
  %v2633 = vunpack.c.h.b16 %v475
  %v2634 = vunpack.c.l.b16 %v476
  %v2635 = vunpack.c.h.b16 %v476
  %v2636 = vunpack.c.l.b16 %v477
  %v2637 = vunpack.c.h.b16 %v477
  %v2638 = vunpack.c.l.b16 %v478
  %v2639 = vunpack.c.h.b16 %v478
  %v2640 = vunpack.c.l.b16 %v479
  %v2641 = vunpack.c.h.b16 %v479
  %v2642 = vunpack.c.l.b16 %v480
  %v2643 = vunpack.c.h.b16 %v480
  %v2644 = vunpack.c.l.b16 %v481
  %v2645 = vunpack.c.h.b16 %v481
  %v2646 = vunpack.c.l.b16 %v482
  %v2647 = vunpack.c.h.b16 %v482
  %v2648 = vunpack.c.l.b16 %v483
  %v2649 = vunpack.c.h.b16 %v483
  %v2650 = vunpack.c.l.b16 %v484
  %v2651 = vunpack.c.h.b16 %v484
  %v2652 = vunpack.c.l.b16 %v485
  %v2653 = vunpack.c.h.b16 %v485
  %v2654 = vunpack.c.l.b16 %v486
  %v2655 = vunpack.c.h.b16 %v486
  %v2656 = vunpack.c.l.b16 %v487
  %v2657 = vunpack.c.h.b16 %v487
  %v2658 = vunpack.c.l.b16 %v488
  %v2659 = vunpack.c.h.b16 %v488
  %v2660 = vunpack.c.l.b16 %v489
  %v2661 = vunpack.c.h.b16 %v489
  %v2662 = vunpack.c.l.b16 %v490
  %v2663 = vunpack.c.h.b16 %v490
  %v2664 = vunpack.c.l.b16 %v491
  %v2665 = vunpack.c.h.b16 %v491
  %v2666 = vunpack.c.l.b16 %v492
  %v2667 = vunpack.c.h.b16 %v492
  %v2668 = vunpack.c.l.b16 %v493
  %v2669 = vunpack.c.h.b16 %v493
  %v2670 = vunpack.c.l.b16 %v494
  %v2671 = vunpack.c.h.b16 %v494
  %v2672 = vunpack.c.l.b16 %v495
  %v2673 = vunpack.c.h.b16 %v495
  %v2674 = vunpack.c.l.b16 %v496
  %v2675 = vunpack.c.h.b16 %v496
  %v2676 = vunpack.c.l.b16 %v497
  %v2677 = vunpack.c.h.b16 %v497
  %v2678 = vunpack.c.l.b16 %v498
  %v2679 = vunpack.c.h.b16 %v498
  %v2680 = vunpack.c.l.b16 %v499
  %v2681 = vunpack.c.h.b16 %v499
  %v2682 = vunpack.c.l.b16 %v500
  %v2683 = vunpack.c.h.b16 %v500
  %v2684 = vunpack.c.l.b16 %v501
  %v2685 = vunpack.c.h.b16 %v501
  %v2686 = vunpack.c.l.b16 %v502
  %v2687 = vunpack.c.h.b16 %v502
  %v2688 = vunpack.c.l.b16 %v503
  %v2689 = vunpack.c.h.b16 %v503
  %v2690 = vunpack.c.l.b16 %v504
  %v2691 = vunpack.c.h.b16 %v504
  %v2692 = vunpack.c.l.b16 %v505
  %v2693 = vunpack.c.h.b16 %v505
  %v2694 = vunpack.c.l.b16 %v506
  %v2695 = vunpack.c.h.b16 %v506
  %v2696 = vunpack.c.l.b16 %v507
  %v2697 = vunpack.c.h.b16 %v507
  %v2698 = vunpack.c.l.b16 %v508
  %v2699 = vunpack.c.h.b16 %v508
  %v2700 = vunpack.c.l.b16 %v509
  %v2701 = vunpack.c.h.b16 %v509
  %v2702 = vunpack.c.l.b16 %v510
  %v2703 = vunpack.c.h.b16 %v510
  %v2704 = vunpack.c.l.b16 %v511
  %v2705 = vunpack.c.h.b16 %v511
  %v2706 = vunpack.c.l.b16 %v512
  %v2707 = vunpack.c.h.b16 %v512
  %v2708 = vunpack.c.l.b16 %v513
  %v2709 = vunpack.c.h.b16 %v513
  %v2710 = vunpack.c.l.b16 %v514
  %v2711 = vunpack.c.h.b16 %v514
  %v2712 = vunpack.c.l.b16 %v515
  %v2713 = vunpack.c.h.b16 %v515
  %v2714 = vunpack.c.l.b16 %v516
  %v2715 = vunpack.c.h.b16 %v516
  %v2716 = vunpack.c.l.b16 %v517
  %v2717 = vunpack.c.h.b16 %v517
  %v2718 = vunpack.c.l.b16 %v518
  %v2719 = vunpack.c.h.b16 %v518
  %v2720 = vunpack.c.l.b16 %v519
  %v2721 = vunpack.c.h.b16 %v519
  %v2722 = vunpack.c.l.b16 %v520
  %v2723 = vunpack.c.h.b16 %v520
  %v2724 = vunpack.c.l.b16 %v521
  %v2725 = vunpack.c.h.b16 %v521
  %v2726 = vunpack.c.l.b16 %v522
  %v2727 = vunpack.c.h.b16 %v522
  %v2728 = vunpack.c.l.b16 %v523
  %v2729 = vunpack.c.h.b16 %v523
  %v2730 = vunpack.c.l.b16 %v524
  %v2731 = vunpack.c.h.b16 %v524
  %v2732 = vunpack.c.l.b16 %v525
  %v2733 = vunpack.c.h.b16 %v525
  %v2734 = vunpack.c.l.b16 %v526
  %v2735 = vunpack.c.h.b16 %v526
  %v2736 = vunpack.c.l.b16 %v527
  %v2737 = vunpack.c.h.b16 %v527
  %v2738 = vunpack.c.l.b16 %v528
  %v2739 = vunpack.c.h.b16 %v528
  %v2740 = vunpack.c.l.b16 %v529
  %v2741 = vunpack.c.h.b16 %v529
  %v2742 = vunpack.c.l.b16 %v530
  %v2743 = vunpack.c.h.b16 %v530
  %v2744 = vunpack.c.l.b16 %v531
  %v2745 = vunpack.c.h.b16 %v531
  %v2746 = vunpack.c.l.b16 %v532
  %v2747 = vunpack.c.h.b16 %v532
  %v2748 = vunpack.c.l.b16 %v533
  %v2749 = vunpack.c.h.b16 %v533
  %v2750 = vunpack.c.l.b16 %v534
  %v2751 = vunpack.c.h.b16 %v534
  %v2752 = vunpack.c.l.b16 %v535
  %v2753 = vunpack.c.h.b16 %v535
  %v2754 = vunpack.c.l.b16 %v536
  %v2755 = vunpack.c.h.b16 %v536
  %v2756 = vunpack.c.l.b16 %v537
  %v2757 = vunpack.c.h.b16 %v537
  %v2758 = vunpack.c.l.b16 %v538
  %v2759 = vunpack.c.h.b16 %v538
  %v2760 = vunpack.c.l.b16 %v539
  %v2761 = vunpack.c.h.b16 %v539
  %v2762 = vunpack.c.l.b16 %v540
  %v2763 = vunpack.c.h.b16 %v540
  %v2764 = vunpack.c.l.b16 %v541
  %v2765 = vunpack.c.h.b16 %v541
  %v2766 = vunpack.c.l.b16 %v542
  %v2767 = vunpack.c.h.b16 %v542
  %v2768 = vunpack.c.l.b16 %v543
  %v2769 = vunpack.c.h.b16 %v543
  %v2770 = vunpack.c.l.b16 %v544
  %v2771 = vunpack.c.h.b16 %v544
  %v2772 = vunpack.c.l.b16 %v545
  %v2773 = vunpack.c.h.b16 %v545
  %v2774 = vunpack.c.l.b16 %v546
  %v2775 = vunpack.c.h.b16 %v546
  %v2776 = vunpack.c.l.b16 %v547
  %v2777 = vunpack.c.h.b16 %v547
  %v2778 = vunpack.c.l.b16 %v548
  %v2779 = vunpack.c.h.b16 %v548
  %v2780 = vunpack.c.l.b16 %v549
  %v2781 = vunpack.c.h.b16 %v549
  %v2782 = vunpack.c.l.b16 %v550
  %v2783 = vunpack.c.h.b16 %v550
  %v2784 = vunpack.c.l.b16 %v551
  %v2785 = vunpack.c.h.b16 %v551
  %v2786 = vunpack.c.l.b16 %v552
  %v2787 = vunpack.c.h.b16 %v552
  %v2788 = vunpack.c.l.b16 %v553
  %v2789 = vunpack.c.h.b16 %v553
  %v2790 = vunpack.c.l.b16 %v554
  %v2791 = vunpack.c.h.b16 %v554
  %v2792 = vunpack.c.l.b16 %v555
  %v2793 = vunpack.c.h.b16 %v555
  %v2794 = vunpack.c.l.b16 %v556
  %v2795 = vunpack.c.h.b16 %v556
  %v2796 = vunpack.c.l.b16 %v557
  %v2797 = vunpack.c.h.b16 %v557
  %v2798 = vunpack.c.l.b16 %v558
  %v2799 = vunpack.c.h.b16 %v558
  %v2800 = vunpack.c.l.b16 %v559
  %v2801 = vunpack.c.h.b16 %v559
  %v2802 = vunpack.c.l.b16 %v560
  %v2803 = vunpack.c.h.b16 %v560
  %v2804 = vunpack.c.l.b16 %v561
  %v2805 = vunpack.c.h.b16 %v561
  %v2806 = vunpack.c.l.b16 %v562
  %v2807 = vunpack.c.h.b16 %v562
  %v2808 = vunpack.c.l.b16 %v563
  %v2809 = vunpack.c.h.b16 %v563
  %v2810 = vunpack.c.l.b16 %v564
  %v2811 = vunpack.c.h.b16 %v564
  %v2812 = vunpack.c.l.b16 %v565
  %v2813 = vunpack.c.h.b16 %v565
  %v2814 = vunpack.c.l.b16 %v566
  %v2815 = vunpack.c.h.b16 %v566
  %v2816 = vunpack.c.l.b16 %v567
  %v2817 = vunpack.c.h.b16 %v567
  %v2818 = vunpack.c.l.b16 %v568
  %v2819 = vunpack.c.h.b16 %v568
  %v2820 = vunpack.c.l.b16 %v569
  %v2821 = vunpack.c.h.b16 %v569
  %v2822 = vunpack.c.l.b16 %v570
  %v2823 = vunpack.c.h.b16 %v570
  %v2824 = vunpack.c.l.b16 %v571
  %v2825 = vunpack.c.h.b16 %v571
  %v2826 = vunpack.c.l.b16 %v572
  %v2827 = vunpack.c.h.b16 %v572
  %v2828 = vunpack.c.l.b16 %v573
  %v2829 = vunpack.c.h.b16 %v573
  %v2830 = vunpack.c.l.b16 %v574
  %v2831 = vunpack.c.h.b16 %v574
  %v2832 = vunpack.c.l.b16 %v575
  %v2833 = vunpack.c.h.b16 %v575
  %v2834 = vunpack.c.l.b16 %v576
  %v2835 = vunpack.c.h.b16 %v576
  %v2836 = vunpack.c.l.b16 %v577
  %v2837 = vunpack.c.h.b16 %v577
  %v2838 = vunpack.c.l.b16 %v578
  %v2839 = vunpack.c.h.b16 %v578
  %v2840 = vunpack.c.l.b16 %v579
  %v2841 = vunpack.c.h.b16 %v579
  %v2842 = vunpack.c.l.b16 %v580
  %v2843 = vunpack.c.h.b16 %v580
  %v2844 = vunpack.c.l.b16 %v581
  %v2845 = vunpack.c.h.b16 %v581
  %v2846 = vunpack.c.l.b16 %v582
  %v2847 = vunpack.c.h.b16 %v582
  %v2848 = vunpack.c.l.b16 %v583
  %v2849 = vunpack.c.h.b16 %v583
  %v2850 = vunpack.c.l.b16 %v584
  %v2851 = vunpack.c.h.b16 %v584
  %v2852 = vunpack.c.l.b16 %v585
  %v2853 = vunpack.c.h.b16 %v585
  %v2854 = vunpack.c.l.b16 %v586
  %v2855 = vunpack.c.h.b16 %v586
  %v2856 = vunpack.c.l.b16 %v587
  %v2857 = vunpack.c.h.b16 %v587
  %v2858 = vunpack.c.l.b16 %v588
  %v2859 = vunpack.c.h.b16 %v588
  %v2860 = vunpack.c.l.b16 %v589
  %v2861 = vunpack.c.h.b16 %v589
  %v2862 = vunpack.c.l.b16 %v590
  %v2863 = vunpack.c.h.b16 %v590
  %v2864 = vunpack.c.l.b16 %v591
  %v2865 = vunpack.c.h.b16 %v591
  %v2866 = vunpack.c.l.b16 %v592
  %v2867 = vunpack.c.h.b16 %v592
  %v2868 = vunpack.c.l.b16 %v593
  %v2869 = vunpack.c.h.b16 %v593
  %v2870 = vunpack.c.l.b16 %v594
  %v2871 = vunpack.c.h.b16 %v594
  %v2872 = vunpack.c.l.b16 %v595
  %v2873 = vunpack.c.h.b16 %v595
  %v2874 = vunpack.c.l.b16 %v596
  %v2875 = vunpack.c.h.b16 %v596
  %v2876 = vunpack.c.l.b16 %v597
  %v2877 = vunpack.c.h.b16 %v597
  %v2878 = vunpack.c.l.b16 %v598
  %v2879 = vunpack.c.h.b16 %v598
  %v2880 = vunpack.c.l.b16 %v599
  %v2881 = vunpack.c.h.b16 %v599
  %v2882 = vunpack.c.l.b16 %v600
  %v2883 = vunpack.c.h.b16 %v600
  %v2884 = vunpack.c.l.b16 %v601
  %v2885 = vunpack.c.h.b16 %v601
  %v2886 = vunpack.c.l.b16 %v602
  %v2887 = vunpack.c.h.b16 %v602
  %v2888 = vunpack.c.l.b16 %v603
  %v2889 = vunpack.c.h.b16 %v603
  %v2890 = vunpack.c.l.b16 %v604
  %v2891 = vunpack.c.h.b16 %v604
  %v2892 = vunpack.c.l.b16 %v605
  %v2893 = vunpack.c.h.b16 %v605
  %v2894 = vunpack.c.l.b16 %v606
  %v2895 = vunpack.c.h.b16 %v606
  %v2896 = vunpack.c.l.b16 %v607
  %v2897 = vunpack.c.h.b16 %v607
  %v2898 = vunpack.c.l.b16 %v608
  %v2899 = vunpack.c.h.b16 %v608
  %v2900 = vunpack.c.l.b16 %v609
  %v2901 = vunpack.c.h.b16 %v609
  %v2902 = vunpack.c.l.b16 %v610
  %v2903 = vunpack.c.h.b16 %v610
  %v2904 = vunpack.c.l.b16 %v611
  %v2905 = vunpack.c.h.b16 %v611
  %v2906 = vunpack.c.l.b16 %v612
  %v2907 = vunpack.c.h.b16 %v612
  %v2908 = vunpack.c.l.b16 %v613
  %v2909 = vunpack.c.h.b16 %v613
  %v2910 = vunpack.c.l.b16 %v614
  %v2911 = vunpack.c.h.b16 %v614
  %v2912 = vunpack.c.l.b16 %v615
  %v2913 = vunpack.c.h.b16 %v615
  %v2914 = vunpack.c.l.b16 %v616
  %v2915 = vunpack.c.h.b16 %v616
  %v2916 = vunpack.c.l.b16 %v617
  %v2917 = vunpack.c.h.b16 %v617
  %v2918 = vunpack.c.l.b16 %v618
  %v2919 = vunpack.c.h.b16 %v618
  %v2920 = vunpack.c.l.b16 %v619
  %v2921 = vunpack.c.h.b16 %v619
  %v2922 = vunpack.c.l.b16 %v620
  %v2923 = vunpack.c.h.b16 %v620
  %v2924 = vunpack.c.l.b16 %v621
  %v2925 = vunpack.c.h.b16 %v621
  %v2926 = vunpack.c.l.b16 %v622
  %v2927 = vunpack.c.h.b16 %v622
  %v2928 = vunpack.c.l.b16 %v623
  %v2929 = vunpack.c.h.b16 %v623
  %v2930 = vunpack.c.l.b16 %v624
  %v2931 = vunpack.c.h.b16 %v624
  %v2932 = vunpack.c.l.b16 %v625
  %v2933 = vunpack.c.h.b16 %v625
  %v2934 = vunpack.c.l.b16 %v626
  %v2935 = vunpack.c.h.b16 %v626
  %v2936 = vunpack.c.l.b16 %v627
  %v2937 = vunpack.c.h.b16 %v627
  %v2938 = vunpack.c.l.b16 %v628
  %v2939 = vunpack.c.h.b16 %v628
  %v2940 = vunpack.c.l.b16 %v629
  %v2941 = vunpack.c.h.b16 %v629
  %v2942 = vunpack.c.l.b16 %v630
  %v2943 = vunpack.c.h.b16 %v630
  %v2944 = vunpack.c.l.b16 %v631
  %v2945 = vunpack.c.h.b16 %v631
  %v2946 = vunpack.c.l.b16 %v632
  %v2947 = vunpack.c.h.b16 %v632
  %v2948 = vunpack.c.l.b16 %v633
  %v2949 = vunpack.c.h.b16 %v633
  %v2950 = vunpack.c.l.b16 %v634
  %v2951 = vunpack.c.h.b16 %v634
  %v2952 = vunpack.c.l.b16 %v635
  %v2953 = vunpack.c.h.b16 %v635
  %v2954 = vunpack.c.l.b16 %v636
  %v2955 = vunpack.c.h.b16 %v636
  %v2956 = vunpack.c.l.b16 %v637
  %v2957 = vunpack.c.h.b16 %v637
  %v2958 = vunpack.c.l.b16 %v638
  %v2959 = vunpack.c.h.b16 %v638
  %v2960 = vunpack.c.l.b16 %v639
  %v2961 = vunpack.c.h.b16 %v639
  %v2962 = vunpack.c.l.b16 %v640
  %v2963 = vunpack.c.h.b16 %v640
  %v2964 = vunpack.c.l.b16 %v641
  %v2965 = vunpack.c.h.b16 %v641
  %v2966 = vunpack.c.l.b16 %v642
  %v2967 = vunpack.c.h.b16 %v642
  %v2968 = vunpack.c.l.b16 %v643
  %v2969 = vunpack.c.h.b16 %v643
  %v2970 = vunpack.c.l.b16 %v644
  %v2971 = vunpack.c.h.b16 %v644
  %v2972 = vunpack.c.l.b16 %v645
  %v2973 = vunpack.c.h.b16 %v645
  %v2974 = vunpack.c.l.b16 %v646
  %v2975 = vunpack.c.h.b16 %v646
  %v2976 = vunpack.c.l.b16 %v647
  %v2977 = vunpack.c.h.b16 %v647
  %v2978 = vunpack.c.l.b16 %v648
  %v2979 = vunpack.c.h.b16 %v648
  %v2980 = vunpack.c.l.b16 %v649
  %v2981 = vunpack.c.h.b16 %v649
  %v2982 = vunpack.c.l.b16 %v650
  %v2983 = vunpack.c.h.b16 %v650
  %v2984 = vunpack.c.l.b16 %v651
  %v2985 = vunpack.c.h.b16 %v651
  %v2986 = vunpack.c.l.b16 %v652
  %v2987 = vunpack.c.h.b16 %v652
  %v2988 = vunpack.c.l.b16 %v653
  %v2989 = vunpack.c.h.b16 %v653
  %v2990 = vunpack.c.l.b16 %v654
  %v2991 = vunpack.c.h.b16 %v654
  %v2992 = vunpack.c.l.b16 %v655
  %v2993 = vunpack.c.h.b16 %v655
  %v2994 = vunpack.c.l.b16 %v656
  %v2995 = vunpack.c.h.b16 %v656
  %v2996 = vunpack.c.l.b16 %v657
  %v2997 = vunpack.c.h.b16 %v657
  %v2998 = vunpack.c.l.b16 %v658
  %v2999 = vunpack.c.h.b16 %v658
  %v3000 = vunpack.c.l.b16 %v659
  %v3001 = vunpack.c.h.b16 %v659
  %v3002 = vunpack.c.l.b16 %v660
  %v3003 = vunpack.c.h.b16 %v660
  %v3004 = vunpack.c.l.b16 %v661
  %v3005 = vunpack.c.h.b16 %v661
  %v3006 = vunpack.c.l.b16 %v662
  %v3007 = vunpack.c.h.b16 %v662
  %v3008 = vunpack.c.l.b16 %v663
  %v3009 = vunpack.c.h.b16 %v663
  %v3010 = vunpack.c.l.b16 %v664
  %v3011 = vunpack.c.h.b16 %v664
  %v3012 = vunpack.c.l.b16 %v665
  %v3013 = vunpack.c.h.b16 %v665
  %v3014 = vunpack.c.l.b16 %v666
  %v3015 = vunpack.c.h.b16 %v666
  %v3016 = vunpack.c.l.b16 %v667
  %v3017 = vunpack.c.h.b16 %v667
  %v3018 = vunpack.c.l.b16 %v668
  %v3019 = vunpack.c.h.b16 %v668
  %v3020 = vunpack.c.l.b16 %v669
  %v3021 = vunpack.c.h.b16 %v669
  %v3022 = vunpack.c.l.b16 %v670
  %v3023 = vunpack.c.h.b16 %v670
  %v3024 = vunpack.c.l.b16 %v671
  %v3025 = vunpack.c.h.b16 %v671
  %v3026 = vunpack.c.l.b16 %v672
  %v3027 = vunpack.c.h.b16 %v672
  %v3028 = vunpack.c.l.b16 %v673
  %v3029 = vunpack.c.h.b16 %v673
  %v3030 = vunpack.c.l.b16 %v674
  %v3031 = vunpack.c.h.b16 %v674
  %v3032 = vunpack.c.l.b16 %v675
  %v3033 = vunpack.c.h.b16 %v675
  %v3034 = vunpack.c.l.b16 %v676
  %v3035 = vunpack.c.h.b16 %v676
  %v3036 = vunpack.c.l.b16 %v677
  %v3037 = vunpack.c.h.b16 %v677
  %v3038 = vunpack.c.l.b16 %v678
  %v3039 = vunpack.c.h.b16 %v678
  %v3040 = vunpack.c.l.b16 %v679
  %v3041 = vunpack.c.h.b16 %v679
  %v3042 = vunpack.c.l.b16 %v680
  %v3043 = vunpack.c.h.b16 %v680
  %v3044 = vunpack.c.l.b16 %v681
  %v3045 = vunpack.c.h.b16 %v681
  %v3046 = vunpack.c.l.b16 %v682
  %v3047 = vunpack.c.h.b16 %v682
  %v3048 = vunpack.c.l.b16 %v683
  %v3049 = vunpack.c.h.b16 %v683
  %v3050 = vunpack.c.l.b16 %v684
  %v3051 = vunpack.c.h.b16 %v684
  %v3052 = vunpack.c.l.b16 %v685
  %v3053 = vunpack.c.h.b16 %v685
  %v3054 = vunpack.c.l.b16 %v686
  %v3055 = vunpack.c.h.b16 %v686
  %v3056 = vunpack.c.l.b16 %v687
  %v3057 = vunpack.c.h.b16 %v687
  %v3058 = vunpack.c.l.b16 %v688
  %v3059 = vunpack.c.h.b16 %v688
  %v3060 = vunpack.c.l.b16 %v689
  %v3061 = vunpack.c.h.b16 %v689
  %v3062 = vunpack.c.l.b16 %v690
  %v3063 = vunpack.c.h.b16 %v690
  %v3064 = vunpack.c.l.b16 %v691
  %v3065 = vunpack.c.h.b16 %v691
  %v3066 = vunpack.c.l.b16 %v692
  %v3067 = vunpack.c.h.b16 %v692
  %v3068 = vunpack.c.l.b16 %v693
  %v3069 = vunpack.c.h.b16 %v693
  %v3070 = vunpack.c.l.b16 %v694
  %v3071 = vunpack.c.h.b16 %v694
  %v3072 = vunpack.c.l.b16 %v695
  %v3073 = vunpack.c.h.b16 %v695
  %v3074 = vunpack.c.l.b16 %v696
  %v3075 = vunpack.c.h.b16 %v696
  %v3076 = vunpack.c.l.b16 %v697
  %v3077 = vunpack.c.h.b16 %v697
  %v3078 = vunpack.c.l.b16 %v698
  %v3079 = vunpack.c.h.b16 %v698
  %v3080 = vunpack.c.l.b16 %v699
  %v3081 = vunpack.c.h.b16 %v699
  %v3082 = vunpack.c.l.b16 %v700
  %v3083 = vunpack.c.h.b16 %v700
  %v3084 = vunpack.c.l.b16 %v701
  %v3085 = vunpack.c.h.b16 %v701
  %v3086 = vunpack.c.l.b16 %v702
  %v3087 = vunpack.c.h.b16 %v702
  %v3088 = vunpack.c.l.b16 %v703
  %v3089 = vunpack.c.h.b16 %v703
  %v3090 = vunpack.c.l.b16 %v704
  %v3091 = vunpack.c.h.b16 %v704
  %v3092 = vunpack.c.l.b16 %v705
  %v3093 = vunpack.c.h.b16 %v705
  %v3094 = vunpack.c.l.b16 %v706
  %v3095 = vunpack.c.h.b16 %v706
  %v3096 = vunpack.c.l.b16 %v707
  %v3097 = vunpack.c.h.b16 %v707
  %v3098 = vunpack.c.l.b16 %v708
  %v3099 = vunpack.c.h.b16 %v708
  %v3100 = vunpack.c.l.b16 %v709
  %v3101 = vunpack.c.h.b16 %v709
  %v3102 = vunpack.c.l.b16 %v710
  %v3103 = vunpack.c.h.b16 %v710
  %v3104 = vunpack.c.l.b16 %v711
  %v3105 = vunpack.c.h.b16 %v711
  %v3106 = vunpack.c.l.b16 %v712
  %v3107 = vunpack.c.h.b16 %v712
  %v3108 = vunpack.c.l.b16 %v713
  %v3109 = vunpack.c.h.b16 %v713
  %v3110 = vunpack.c.l.b16 %v714
  %v3111 = vunpack.c.h.b16 %v714
  %v3112 = vunpack.c.l.b16 %v715
  %v3113 = vunpack.c.h.b16 %v715
  %v3114 = vunpack.c.l.b16 %v716
  %v3115 = vunpack.c.h.b16 %v716
  %v3116 = vunpack.c.l.b16 %v717
  %v3117 = vunpack.c.h.b16 %v717
  %v3118 = vunpack.c.l.b16 %v718
  %v3119 = vunpack.c.h.b16 %v718
  %v3120 = vunpack.c.l.b16 %v719
  %v3121 = vunpack.c.h.b16 %v719
  %v3122 = vunpack.c.l.b16 %v720
  %v3123 = vunpack.c.h.b16 %v720
  %v3124 = vunpack.c.l.b16 %v721
  %v3125 = vunpack.c.h.b16 %v721
  %v3126 = vunpack.c.l.b16 %v722
  %v3127 = vunpack.c.h.b16 %v722
  %v3128 = vunpack.c.l.b16 %v723
  %v3129 = vunpack.c.h.b16 %v723
  %v3130 = vunpack.c.l.b16 %v724
  %v3131 = vunpack.c.h.b16 %v724
  %v3132 = vunpack.c.l.b16 %v725
  %v3133 = vunpack.c.h.b16 %v725
  %v3134 = vunpack.c.l.b16 %v726
  %v3135 = vunpack.c.h.b16 %v726
  %v3136 = vunpack.c.l.b16 %v727
  %v3137 = vunpack.c.h.b16 %v727
  %v3138 = vunpack.c.l.b16 %v728
  %v3139 = vunpack.c.h.b16 %v728
  %v3140 = vunpack.c.l.b16 %v729
  %v3141 = vunpack.c.h.b16 %v729
  %v3142 = vunpack.c.l.b16 %v730
  %v3143 = vunpack.c.h.b16 %v730
  %v3144 = vunpack.c.l.b16 %v731
  %v3145 = vunpack.c.h.b16 %v731
  %v3146 = vunpack.c.l.b16 %v732
  %v3147 = vunpack.c.h.b16 %v732
  %v3148 = vunpack.c.l.b16 %v733
  %v3149 = vunpack.c.h.b16 %v733
  %v3150 = vunpack.c.l.b16 %v734
  %v3151 = vunpack.c.h.b16 %v734
  %v3152 = vunpack.c.l.b16 %v735
  %v3153 = vunpack.c.h.b16 %v735
  %v3154 = vunpack.c.l.b16 %v736
  %v3155 = vunpack.c.h.b16 %v736
  %v3156 = vunpack.c.l.b16 %v737
  %v3157 = vunpack.c.h.b16 %v737
  %v3158 = vunpack.c.l.b16 %v738
  %v3159 = vunpack.c.h.b16 %v738
  %v3160 = vunpack.c.l.b16 %v739
  %v3161 = vunpack.c.h.b16 %v739
  %v3162 = vunpack.c.l.b16 %v740
  %v3163 = vunpack.c.h.b16 %v740
  %v3164 = vunpack.c.l.b16 %v741
  %v3165 = vunpack.c.h.b16 %v741
  %v3166 = vunpack.c.l.b16 %v742
  %v3167 = vunpack.c.h.b16 %v742
  %v3168 = vunpack.c.l.b16 %v743
  %v3169 = vunpack.c.h.b16 %v743
  %v3170 = vunpack.c.l.b16 %v744
  %v3171 = vunpack.c.h.b16 %v744
  %v3172 = vunpack.c.l.b16 %v745
  %v3173 = vunpack.c.h.b16 %v745
  %v3174 = vunpack.c.l.b16 %v746
  %v3175 = vunpack.c.h.b16 %v746
  %v3176 = vunpack.c.l.b16 %v747
  %v3177 = vunpack.c.h.b16 %v747
  %v3178 = vunpack.c.l.b16 %v748
  %v3179 = vunpack.c.h.b16 %v748
  %v3180 = vunpack.c.l.b16 %v749
  %v3181 = vunpack.c.h.b16 %v749
  %v3182 = vunpack.c.l.b16 %v750
  %v3183 = vunpack.c.h.b16 %v750
  %v3184 = vunpack.c.l.b16 %v751
  %v3185 = vunpack.c.h.b16 %v751
  %v3186 = vunpack.c.l.b16 %v752
  %v3187 = vunpack.c.h.b16 %v752
  %v3188 = vunpack.c.l.b16 %v753
  %v3189 = vunpack.c.h.b16 %v753
  %v3190 = vunpack.c.l.b16 %v754
  %v3191 = vunpack.c.h.b16 %v754
  %v3192 = vunpack.c.l.b16 %v755
  %v3193 = vunpack.c.h.b16 %v755
  %v3194 = vunpack.c.l.b16 %v756
  %v3195 = vunpack.c.h.b16 %v756
  %v3196 = vunpack.c.l.b16 %v757
  %v3197 = vunpack.c.h.b16 %v757
  %v3198 = vunpack.c.l.b16 %v758
  %v3199 = vunpack.c.h.b16 %v758
  %v3200 = vunpack.c.l.b16 %v759
  %v3201 = vunpack.c.h.b16 %v759
  %v3202 = vunpack.c.l.b16 %v760
  %v3203 = vunpack.c.h.b16 %v760
  %v3204 = vunpack.c.l.b16 %v761
  %v3205 = vunpack.c.h.b16 %v761
  %v3206 = vunpack.c.l.b16 %v762
  %v3207 = vunpack.c.h.b16 %v762
  %v3208 = vunpack.c.l.b16 %v763
  %v3209 = vunpack.c.h.b16 %v763
  %v3210 = vunpack.c.l.b16 %v764
  %v3211 = vunpack.c.h.b16 %v764
  %v3212 = vunpack.c.l.b16 %v765
  %v3213 = vunpack.c.h.b16 %v765
  %v3214 = vunpack.c.l.b16 %v766
  %v3215 = vunpack.c.h.b16 %v766
  %v3216 = vunpack.c.l.b16 %v767
  %v3217 = vunpack.c.h.b16 %v767
  %v3218 = vunpack.c.l.b16 %v768
  %v3219 = vunpack.c.h.b16 %v768
  %v3220 = vunpack.c.l.b16 %v769
  %v3221 = vunpack.c.h.b16 %v769
  %v3222 = vunpack.c.l.b16 %v770
  %v3223 = vunpack.c.h.b16 %v770
  %v3224 = vunpack.c.l.b16 %v771
  %v3225 = vunpack.c.h.b16 %v771
  %v3226 = vunpack.c.l.b16 %v772
  %v3227 = vunpack.c.h.b16 %v772
  %v3228 = vunpack.c.l.b16 %v773
  %v3229 = vunpack.c.h.b16 %v773
  %v3230 = vunpack.c.l.b16 %v774
  %v3231 = vunpack.c.h.b16 %v774
  %v3232 = vunpack.c.l.b16 %v775
  %v3233 = vunpack.c.h.b16 %v775
  %v3234 = vunpack.c.l.b16 %v776
  %v3235 = vunpack.c.h.b16 %v776
  %v3236 = vunpack.c.l.b16 %v777
  %v3237 = vunpack.c.h.b16 %v777
  %v3238 = vunpack.c.l.b16 %v778
  %v3239 = vunpack.c.h.b16 %v778
  %v3240 = vunpack.c.l.b16 %v779
  %v3241 = vunpack.c.h.b16 %v779
  %v3242 = vunpack.c.l.b16 %v780
  %v3243 = vunpack.c.h.b16 %v780
  %v3244 = vunpack.c.l.b16 %v781
  %v3245 = vunpack.c.h.b16 %v781
  %v3246 = vunpack.c.l.b16 %v782
  %v3247 = vunpack.c.h.b16 %v782
  %v3248 = vunpack.c.l.b16 %v783
  %v3249 = vunpack.c.h.b16 %v783
  %v3250 = vunpack.c.l.b16 %v784
  %v3251 = vunpack.c.h.b16 %v784
  %v3252 = vunpack.c.l.b16 %v785
  %v3253 = vunpack.c.h.b16 %v785
  %v3254 = vunpack.c.l.b16 %v786
  %v3255 = vunpack.c.h.b16 %v786
  %v3256 = vunpack.c.l.b16 %v787
  %v3257 = vunpack.c.h.b16 %v787
  %v3258 = vunpack.c.l.b16 %v788
  %v3259 = vunpack.c.h.b16 %v788
  %v3260 = vunpack.c.l.b16 %v789
  %v3261 = vunpack.c.h.b16 %v789
  %v3262 = vunpack.c.l.b16 %v790
  %v3263 = vunpack.c.h.b16 %v790
  %v3264 = vunpack.c.l.b16 %v791
  %v3265 = vunpack.c.h.b16 %v791
  %v3266 = vunpack.c.l.b16 %v792
  %v3267 = vunpack.c.h.b16 %v792
  %v3268 = vunpack.c.l.b16 %v793
  %v3269 = vunpack.c.h.b16 %v793
  %v3270 = vunpack.c.l.b16 %v794
  %v3271 = vunpack.c.h.b16 %v794
  %v3272 = vunpack.c.l.b16 %v795
  %v3273 = vunpack.c.h.b16 %v795
  %v3274 = vunpack.c.l.b16 %v796
  %v3275 = vunpack.c.h.b16 %v796
  %v3276 = vunpack.c.l.b16 %v797
  %v3277 = vunpack.c.h.b16 %v797
  %v3278 = vunpack.c.l.b16 %v798
  %v3279 = vunpack.c.h.b16 %v798
  %v3280 = vunpack.c.l.b16 %v799
  %v3281 = vunpack.c.h.b16 %v799
  %v3282 = vunpack.c.l.b16 %v800
  %v3283 = vunpack.c.h.b16 %v800
  %v3284 = vunpack.c.l.b16 %v801
  %v3285 = vunpack.c.h.b16 %v801
  %v3286 = vunpack.c.l.b16 %v802
  %v3287 = vunpack.c.h.b16 %v802
  %v3288 = vunpack.c.l.b16 %v803
  %v3289 = vunpack.c.h.b16 %v803
  %v3290 = vunpack.c.l.b16 %v804
  %v3291 = vunpack.c.h.b16 %v804
  %v3292 = vunpack.c.l.b16 %v805
  %v3293 = vunpack.c.h.b16 %v805
  %v3294 = vunpack.c.l.b16 %v806
  %v3295 = vunpack.c.h.b16 %v806
  %v3296 = vunpack.c.l.b16 %v807
  %v3297 = vunpack.c.h.b16 %v807
  %v3298 = vunpack.c.l.b16 %v808
  %v3299 = vunpack.c.h.b16 %v808
  %v3300 = vunpack.c.l.b16 %v809
  %v3301 = vunpack.c.h.b16 %v809
  %v3302 = vunpack.c.l.b16 %v810
  %v3303 = vunpack.c.h.b16 %v810
  %v3304 = vunpack.c.l.b16 %v811
  %v3305 = vunpack.c.h.b16 %v811
  %v3306 = vunpack.c.l.b16 %v812
  %v3307 = vunpack.c.h.b16 %v812
  %v3308 = vunpack.c.l.b16 %v813
  %v3309 = vunpack.c.h.b16 %v813
  %v3310 = vunpack.c.l.b16 %v814
  %v3311 = vunpack.c.h.b16 %v814
  %v3312 = vunpack.c.l.b16 %v815
  %v3313 = vunpack.c.h.b16 %v815
  %v3314 = vunpack.c.l.b16 %v816
  %v3315 = vunpack.c.h.b16 %v816
  %v3316 = vunpack.c.l.b16 %v817
  %v3317 = vunpack.c.h.b16 %v817
  %v3318 = vunpack.c.l.b16 %v818
  %v3319 = vunpack.c.h.b16 %v818
  %v3320 = vunpack.c.l.b16 %v819
  %v3321 = vunpack.c.h.b16 %v819
  %v3322 = vunpack.c.l.b16 %v820
  %v3323 = vunpack.c.h.b16 %v820
  %v3324 = vunpack.c.l.b16 %v821
  %v3325 = vunpack.c.h.b16 %v821
  %v3326 = vunpack.c.l.b16 %v822
  %v3327 = vunpack.c.h.b16 %v822
  %v3328 = vunpack.c.l.b16 %v823
  %v3329 = vunpack.c.h.b16 %v823
  %v3330 = vunpack.c.l.b16 %v824
  %v3331 = vunpack.c.h.b16 %v824
  %v3332 = vunpack.c.l.b16 %v825
  %v3333 = vunpack.c.h.b16 %v825
  %v3334 = vunpack.c.l.b16 %v826
  %v3335 = vunpack.c.h.b16 %v826
  %v3336 = vunpack.c.l.b16 %v827
  %v3337 = vunpack.c.h.b16 %v827
  %v3338 = vpack.c.b16 %v1742, %v1738
  %v3339 = vpack.c.b16 %v1743, %v1739
  %v3340 = vpack.c.b16 %v1744, %v1740
  %v3341 = vpack.c.b16 %v1745, %v1741
  %v3342 = vpack.c.b16 %v1750, %v1746
  %v3343 = vpack.c.b16 %v1751, %v1747
  %v3344 = vpack.c.b16 %v1752, %v1748
  %v3345 = vpack.c.b16 %v1753, %v1749
  %v3346 = vpack.c.b16 %v1758, %v1754
  %v3347 = vpack.c.b16 %v1759, %v1755
  %v3348 = vpack.c.b16 %v1760, %v1756
  %v3349 = vpack.c.b16 %v1761, %v1757
  %v3350 = vpack.c.b16 %v1766, %v1762
  %v3351 = vpack.c.b16 %v1767, %v1763
  %v3352 = vpack.c.b16 %v1768, %v1764
  %v3353 = vpack.c.b16 %v1769, %v1765
  %v3354 = vpack.c.b16 %v1774, %v1770
  %v3355 = vpack.c.b16 %v1775, %v1771
  %v3356 = vpack.c.b16 %v1776, %v1772
  %v3357 = vpack.c.b16 %v1777, %v1773
  %v3358 = vpack.c.b16 %v1782, %v1778
  %v3359 = vpack.c.b16 %v1783, %v1779
  %v3360 = vpack.c.b16 %v1784, %v1780
  %v3361 = vpack.c.b16 %v1785, %v1781
  %v3362 = vpack.c.b16 %v1790, %v1786
  %v3363 = vpack.c.b16 %v1791, %v1787
  %v3364 = vpack.c.b16 %v1792, %v1788
  %v3365 = vpack.c.b16 %v1793, %v1789
  %v3366 = vpack.c.b16 %v1798, %v1794
  %v3367 = vpack.c.b16 %v1799, %v1795
  %v3368 = vpack.c.b16 %v1800, %v1796
  %v3369 = vpack.c.b16 %v1801, %v1797
  %v3370 = vpack.c.b16 %v1806, %v1802
  %v3371 = vpack.c.b16 %v1807, %v1803
  %v3372 = vpack.c.b16 %v1808, %v1804
  %v3373 = vpack.c.b16 %v1809, %v1805
  %v3374 = vpack.c.b16 %v1814, %v1810
  %v3375 = vpack.c.b16 %v1815, %v1811
  %v3376 = vpack.c.b16 %v1816, %v1812
  %v3377 = vpack.c.b16 %v1817, %v1813
  %v3378 = vpack.c.b16 %v1822, %v1818
  %v3379 = vpack.c.b16 %v1823, %v1819
  %v3380 = vpack.c.b16 %v1824, %v1820
  %v3381 = vpack.c.b16 %v1825, %v1821
  %v3382 = vpack.c.b16 %v1830, %v1826
  %v3383 = vpack.c.b16 %v1831, %v1827
  %v3384 = vpack.c.b16 %v1832, %v1828
  %v3385 = vpack.c.b16 %v1833, %v1829
  %v3386 = vpack.c.b16 %v1838, %v1834
  %v3387 = vpack.c.b16 %v1839, %v1835
  %v3388 = vpack.c.b16 %v1840, %v1836
  %v3389 = vpack.c.b16 %v1841, %v1837
  %v3390 = vpack.c.b16 %v1846, %v1842
  %v3391 = vpack.c.b16 %v1847, %v1843
  %v3392 = vpack.c.b16 %v1848, %v1844
  %v3393 = vpack.c.b16 %v1849, %v1845
  %v3394 = vpack.c.b16 %v1854, %v1850
  %v3395 = vpack.c.b16 %v1855, %v1851
  %v3396 = vpack.c.b16 %v1856, %v1852
  %v3397 = vpack.c.b16 %v1857, %v1853
  %v3398 = vpack.c.b16 %v1862, %v1858
  %v3399 = vpack.c.b16 %v1863, %v1859
  %v3400 = vpack.c.b16 %v1864, %v1860
  %v3401 = vpack.c.b16 %v1865, %v1861
  %v3402 = vpack.c.b16 %v1870, %v1866
  %v3403 = vpack.c.b16 %v1871, %v1867
  %v3404 = vpack.c.b16 %v1872, %v1868
  %v3405 = vpack.c.b16 %v1873, %v1869
  %v3406 = vpack.c.b16 %v1878, %v1874
  %v3407 = vpack.c.b16 %v1879, %v1875
  %v3408 = vpack.c.b16 %v1880, %v1876
  %v3409 = vpack.c.b16 %v1881, %v1877
  %v3410 = vpack.c.b16 %v1886, %v1882
  %v3411 = vpack.c.b16 %v1887, %v1883
  %v3412 = vpack.c.b16 %v1888, %v1884
  %v3413 = vpack.c.b16 %v1889, %v1885
  %v3414 = vpack.c.b16 %v1894, %v1890
  %v3415 = vpack.c.b16 %v1895, %v1891
  %v3416 = vpack.c.b16 %v1896, %v1892
  %v3417 = vpack.c.b16 %v1897, %v1893
  %v3418 = vpack.c.b16 %v1902, %v1898
  %v3419 = vpack.c.b16 %v1903, %v1899
  %v3420 = vpack.c.b16 %v1904, %v1900
  %v3421 = vpack.c.b16 %v1905, %v1901
  %v3422 = vpack.c.b16 %v1910, %v1906
  %v3423 = vpack.c.b16 %v1911, %v1907
  %v3424 = vpack.c.b16 %v1912, %v1908
  %v3425 = vpack.c.b16 %v1913, %v1909
  %v3426 = vpack.c.b16 %v1918, %v1914
  %v3427 = vpack.c.b16 %v1919, %v1915
  %v3428 = vpack.c.b16 %v1920, %v1916
  %v3429 = vpack.c.b16 %v1921, %v1917
  %v3430 = vpack.c.b16 %v1926, %v1922
  %v3431 = vpack.c.b16 %v1927, %v1923
  %v3432 = vpack.c.b16 %v1928, %v1924
  %v3433 = vpack.c.b16 %v1929, %v1925
  %v3434 = vpack.c.b16 %v1934, %v1930
  %v3435 = vpack.c.b16 %v1935, %v1931
  %v3436 = vpack.c.b16 %v1936, %v1932
  %v3437 = vpack.c.b16 %v1937, %v1933
  %v3438 = vpack.c.b16 %v1942, %v1938
  %v3439 = vpack.c.b16 %v1943, %v1939
  %v3440 = vpack.c.b16 %v1944, %v1940
  %v3441 = vpack.c.b16 %v1945, %v1941
  %v3442 = vpack.c.b16 %v1950, %v1946
  %v3443 = vpack.c.b16 %v1951, %v1947
  %v3444 = vpack.c.b16 %v1952, %v1948
  %v3445 = vpack.c.b16 %v1953, %v1949
  %v3446 = vpack.c.b16 %v1958, %v1954
  %v3447 = vpack.c.b16 %v1959, %v1955
  %v3448 = vpack.c.b16 %v1960, %v1956
  %v3449 = vpack.c.b16 %v1961, %v1957
  %v3450 = vpack.c.b16 %v1966, %v1962
  %v3451 = vpack.c.b16 %v1967, %v1963
  %v3452 = vpack.c.b16 %v1968, %v1964
  %v3453 = vpack.c.b16 %v1969, %v1965
  %v3454 = vpack.c.b16 %v1974, %v1970
  %v3455 = vpack.c.b16 %v1975, %v1971
  %v3456 = vpack.c.b16 %v1976, %v1972
  %v3457 = vpack.c.b16 %v1977, %v1973
  %v3458 = vpack.c.b16 %v1982, %v1978
  %v3459 = vpack.c.b16 %v1983, %v1979
  %v3460 = vpack.c.b16 %v1984, %v1980
  %v3461 = vpack.c.b16 %v1985, %v1981
  %v3462 = vpack.c.b16 %v1990, %v1986
  %v3463 = vpack.c.b16 %v1991, %v1987
  %v3464 = vpack.c.b16 %v1992, %v1988
  %v3465 = vpack.c.b16 %v1993, %v1989
  %v3466 = vpack.c.b16 %v1998, %v1994
  %v3467 = vpack.c.b16 %v1999, %v1995
  %v3468 = vpack.c.b16 %v2000, %v1996
  %v3469 = vpack.c.b16 %v2001, %v1997
  %v3470 = vpack.c.b16 %v2006, %v2002
  %v3471 = vpack.c.b16 %v2007, %v2003
  %v3472 = vpack.c.b16 %v2008, %v2004
  %v3473 = vpack.c.b16 %v2009, %v2005
  %v3474 = vpack.c.b16 %v2014, %v2010
  %v3475 = vpack.c.b16 %v2015, %v2011
  %v3476 = vpack.c.b16 %v2016, %v2012
  %v3477 = vpack.c.b16 %v2017, %v2013
  %v3478 = vpack.c.b16 %v2022, %v2018
  %v3479 = vpack.c.b16 %v2023, %v2019
  %v3480 = vpack.c.b16 %v2024, %v2020
  %v3481 = vpack.c.b16 %v2025, %v2021
  %v3482 = vpack.c.b16 %v2030, %v2026
  %v3483 = vpack.c.b16 %v2031, %v2027
  %v3484 = vpack.c.b16 %v2032, %v2028
  %v3485 = vpack.c.b16 %v2033, %v2029
  %v3486 = vpack.c.b16 %v2038, %v2034
  %v3487 = vpack.c.b16 %v2039, %v2035
  %v3488 = vpack.c.b16 %v2040, %v2036
  %v3489 = vpack.c.b16 %v2041, %v2037
  %v3490 = vpack.c.b16 %v2046, %v2042
  %v3491 = vpack.c.b16 %v2047, %v2043
  %v3492 = vpack.c.b16 %v2048, %v2044
  %v3493 = vpack.c.b16 %v2049, %v2045
  %v3494 = vpack.c.b16 %v2054, %v2050
  %v3495 = vpack.c.b16 %v2055, %v2051
  %v3496 = vpack.c.b16 %v2056, %v2052
  %v3497 = vpack.c.b16 %v2057, %v2053
  %v3498 = vpack.c.b16 %v2062, %v2058
  %v3499 = vpack.c.b16 %v2063, %v2059
  %v3500 = vpack.c.b16 %v2064, %v2060
  %v3501 = vpack.c.b16 %v2065, %v2061
  %v3502 = vpack.c.b16 %v2070, %v2066
  %v3503 = vpack.c.b16 %v2071, %v2067
  %v3504 = vpack.c.b16 %v2072, %v2068
  %v3505 = vpack.c.b16 %v2073, %v2069
  %v3506 = vpack.c.b16 %v2078, %v2074
  %v3507 = vpack.c.b16 %v2079, %v2075
  %v3508 = vpack.c.b16 %v2080, %v2076
  %v3509 = vpack.c.b16 %v2081, %v2077
  %v3510 = vpack.c.b16 %v2086, %v2082
  %v3511 = vpack.c.b16 %v2087, %v2083
  %v3512 = vpack.c.b16 %v2088, %v2084
  %v3513 = vpack.c.b16 %v2089, %v2085
  %v3514 = vpack.c.b16 %v2094, %v2090
  %v3515 = vpack.c.b16 %v2095, %v2091
  %v3516 = vpack.c.b16 %v2096, %v2092
  %v3517 = vpack.c.b16 %v2097, %v2093
  %v3518 = vpack.c.b16 %v2102, %v2098
  %v3519 = vpack.c.b16 %v2103, %v2099
  %v3520 = vpack.c.b16 %v2104, %v2100
  %v3521 = vpack.c.b16 %v2105, %v2101
  %v3522 = vpack.c.b16 %v2110, %v2106
  %v3523 = vpack.c.b16 %v2111, %v2107
  %v3524 = vpack.c.b16 %v2112, %v2108
  %v3525 = vpack.c.b16 %v2113, %v2109
  %v3526 = vpack.c.b16 %v2118, %v2114
  %v3527 = vpack.c.b16 %v2119, %v2115
  %v3528 = vpack.c.b16 %v2120, %v2116
  %v3529 = vpack.c.b16 %v2121, %v2117
  %v3530 = vpack.c.b16 %v2126, %v2122
  %v3531 = vpack.c.b16 %v2127, %v2123
  %v3532 = vpack.c.b16 %v2128, %v2124
  %v3533 = vpack.c.b16 %v2129, %v2125
  %v3534 = vpack.c.b16 %v2134, %v2130
  %v3535 = vpack.c.b16 %v2135, %v2131
  %v3536 = vpack.c.b16 %v2136, %v2132
  %v3537 = vpack.c.b16 %v2137, %v2133
  %v3538 = vpack.c.b16 %v2142, %v2138
  %v3539 = vpack.c.b16 %v2143, %v2139
  %v3540 = vpack.c.b16 %v2144, %v2140
  %v3541 = vpack.c.b16 %v2145, %v2141
  %v3542 = vpack.c.b16 %v2150, %v2146
  %v3543 = vpack.c.b16 %v2151, %v2147
  %v3544 = vpack.c.b16 %v2152, %v2148
  %v3545 = vpack.c.b16 %v2153, %v2149
  %v3546 = vpack.c.b16 %v2158, %v2154
  %v3547 = vpack.c.b16 %v2159, %v2155
  %v3548 = vpack.c.b16 %v2160, %v2156
  %v3549 = vpack.c.b16 %v2161, %v2157
  %v3550 = vpack.c.b16 %v2166, %v2162
  %v3551 = vpack.c.b16 %v2167, %v2163
  %v3552 = vpack.c.b16 %v2168, %v2164
  %v3553 = vpack.c.b16 %v2169, %v2165
  %v3554 = vpack.c.b16 %v2174, %v2170
  %v3555 = vpack.c.b16 %v2175, %v2171
  %v3556 = vpack.c.b16 %v2176, %v2172
  %v3557 = vpack.c.b16 %v2177, %v2173
  %v3558 = vpack.c.b16 %v2182, %v2178
  %v3559 = vpack.c.b16 %v2183, %v2179
  %v3560 = vpack.c.b16 %v2184, %v2180
  %v3561 = vpack.c.b16 %v2185, %v2181
  %v3562 = vpack.c.b16 %v2190, %v2186
  %v3563 = vpack.c.b16 %v2191, %v2187
  %v3564 = vpack.c.b16 %v2192, %v2188
  %v3565 = vpack.c.b16 %v2193, %v2189
  %v3566 = vpack.c.b16 %v2198, %v2194
  %v3567 = vpack.c.b16 %v2199, %v2195
  %v3568 = vpack.c.b16 %v2200, %v2196
  %v3569 = vpack.c.b16 %v2201, %v2197
  %v3570 = vpack.c.b16 %v2206, %v2202
  %v3571 = vpack.c.b16 %v2207, %v2203
  %v3572 = vpack.c.b16 %v2208, %v2204
  %v3573 = vpack.c.b16 %v2209, %v2205
  %v3574 = vpack.c.b16 %v2214, %v2210
  %v3575 = vpack.c.b16 %v2215, %v2211
  %v3576 = vpack.c.b16 %v2216, %v2212
  %v3577 = vpack.c.b16 %v2217, %v2213
  %v3578 = vpack.c.b16 %v2222, %v2218
  %v3579 = vpack.c.b16 %v2223, %v2219
  %v3580 = vpack.c.b16 %v2224, %v2220
  %v3581 = vpack.c.b16 %v2225, %v2221
  %v3582 = vpack.c.b16 %v2230, %v2226
  %v3583 = vpack.c.b16 %v2231, %v2227
  %v3584 = vpack.c.b16 %v2232, %v2228
  %v3585 = vpack.c.b16 %v2233, %v2229
  %v3586 = vpack.c.b16 %v2238, %v2234
  %v3587 = vpack.c.b16 %v2239, %v2235
  %v3588 = vpack.c.b16 %v2240, %v2236
  %v3589 = vpack.c.b16 %v2241, %v2237
  %v3590 = vpack.c.b16 %v2246, %v2242
  %v3591 = vpack.c.b16 %v2247, %v2243
  %v3592 = vpack.c.b16 %v2248, %v2244
  %v3593 = vpack.c.b16 %v2249, %v2245
  %v3594 = vpack.c.b16 %v2254, %v2250
  %v3595 = vpack.c.b16 %v2255, %v2251
  %v3596 = vpack.c.b16 %v2256, %v2252
  %v3597 = vpack.c.b16 %v2257, %v2253
  %v3598 = vpack.c.b16 %v2262, %v2258
  %v3599 = vpack.c.b16 %v2263, %v2259
  %v3600 = vpack.c.b16 %v2264, %v2260
  %v3601 = vpack.c.b16 %v2265, %v2261
  %v3602 = vpack.c.b16 %v2270, %v2266
  %v3603 = vpack.c.b16 %v2271, %v2267
  %v3604 = vpack.c.b16 %v2272, %v2268
  %v3605 = vpack.c.b16 %v2273, %v2269
  %v3606 = vpack.c.b16 %v2278, %v2274
  %v3607 = vpack.c.b16 %v2279, %v2275
  %v3608 = vpack.c.b16 %v2280, %v2276
  %v3609 = vpack.c.b16 %v2281, %v2277
  %v3610 = vpack.c.b16 %v2286, %v2282
  %v3611 = vpack.c.b16 %v2287, %v2283
  %v3612 = vpack.c.b16 %v2288, %v2284
  %v3613 = vpack.c.b16 %v2289, %v2285
  %v3614 = vpack.c.b16 %v2294, %v2290
  %v3615 = vpack.c.b16 %v2295, %v2291
  %v3616 = vpack.c.b16 %v2296, %v2292
  %v3617 = vpack.c.b16 %v2297, %v2293
  %v3618 = vpack.c.b16 %v2302, %v2298
  %v3619 = vpack.c.b16 %v2303, %v2299
  %v3620 = vpack.c.b16 %v2304, %v2300
  %v3621 = vpack.c.b16 %v2305, %v2301
  %v3622 = vpack.c.b16 %v2310, %v2306
  %v3623 = vpack.c.b16 %v2311, %v2307
  %v3624 = vpack.c.b16 %v2312, %v2308
  %v3625 = vpack.c.b16 %v2313, %v2309
  %v3626 = vpack.c.b16 %v2318, %v2314
  %v3627 = vpack.c.b16 %v2319, %v2315
  %v3628 = vpack.c.b16 %v2320, %v2316
  %v3629 = vpack.c.b16 %v2321, %v2317
  %v3630 = vpack.c.b16 %v2326, %v2322
  %v3631 = vpack.c.b16 %v2327, %v2323
  %v3632 = vpack.c.b16 %v2328, %v2324
  %v3633 = vpack.c.b16 %v2329, %v2325
  %v3634 = vpack.c.b16 %v2334, %v2330
  %v3635 = vpack.c.b16 %v2335, %v2331
  %v3636 = vpack.c.b16 %v2336, %v2332
  %v3637 = vpack.c.b16 %v2337, %v2333
  %v3638 = vpack.c.b16 %v2342, %v2338
  %v3639 = vpack.c.b16 %v2343, %v2339
  %v3640 = vpack.c.b16 %v2344, %v2340
  %v3641 = vpack.c.b16 %v2345, %v2341
  %v3642 = vpack.c.b16 %v2350, %v2346
  %v3643 = vpack.c.b16 %v2351, %v2347
  %v3644 = vpack.c.b16 %v2352, %v2348
  %v3645 = vpack.c.b16 %v2353, %v2349
  %v3646 = vpack.c.b16 %v2358, %v2354
  %v3647 = vpack.c.b16 %v2359, %v2355
  %v3648 = vpack.c.b16 %v2360, %v2356
  %v3649 = vpack.c.b16 %v2361, %v2357
  %v3650 = vpack.c.b16 %v2366, %v2362
  %v3651 = vpack.c.b16 %v2367, %v2363
  %v3652 = vpack.c.b16 %v2368, %v2364
  %v3653 = vpack.c.b16 %v2369, %v2365
  %v3654 = vpack.c.b16 %v2374, %v2370
  %v3655 = vpack.c.b16 %v2375, %v2371
  %v3656 = vpack.c.b16 %v2376, %v2372
  %v3657 = vpack.c.b16 %v2377, %v2373
  %v3658 = vpack.c.b16 %v2382, %v2378
  %v3659 = vpack.c.b16 %v2383, %v2379
  %v3660 = vpack.c.b16 %v2384, %v2380
  %v3661 = vpack.c.b16 %v2385, %v2381
  %v3662 = vpack.c.b16 %v2390, %v2386
  %v3663 = vpack.c.b16 %v2391, %v2387
  %v3664 = vpack.c.b16 %v2392, %v2388
  %v3665 = vpack.c.b16 %v2393, %v2389
  %v3666 = vpack.c.b16 %v2398, %v2394
  %v3667 = vpack.c.b16 %v2399, %v2395
  %v3668 = vpack.c.b16 %v2400, %v2396
  %v3669 = vpack.c.b16 %v2401, %v2397
  %v3670 = vpack.c.b16 %v2406, %v2402
  %v3671 = vpack.c.b16 %v2407, %v2403
  %v3672 = vpack.c.b16 %v2408, %v2404
  %v3673 = vpack.c.b16 %v2409, %v2405
  %v3674 = vpack.c.b16 %v2414, %v2410
  %v3675 = vpack.c.b16 %v2415, %v2411
  %v3676 = vpack.c.b16 %v2416, %v2412
  %v3677 = vpack.c.b16 %v2417, %v2413
  %v3678 = vpack.c.b16 %v2422, %v2418
  %v3679 = vpack.c.b16 %v2423, %v2419
  %v3680 = vpack.c.b16 %v2424, %v2420
  %v3681 = vpack.c.b16 %v2425, %v2421
  %v3682 = vpack.c.b16 %v2430, %v2426
  %v3683 = vpack.c.b16 %v2431, %v2427
  %v3684 = vpack.c.b16 %v2432, %v2428
  %v3685 = vpack.c.b16 %v2433, %v2429
  %v3686 = vpack.c.b16 %v2438, %v2434
  %v3687 = vpack.c.b16 %v2439, %v2435
  %v3688 = vpack.c.b16 %v2440, %v2436
  %v3689 = vpack.c.b16 %v2441, %v2437
  %v3690 = vpack.c.b16 %v2446, %v2442
  %v3691 = vpack.c.b16 %v2447, %v2443
  %v3692 = vpack.c.b16 %v2448, %v2444
  %v3693 = vpack.c.b16 %v2449, %v2445
  %v3694 = vpack.c.b16 %v2454, %v2450
  %v3695 = vpack.c.b16 %v2455, %v2451
  %v3696 = vpack.c.b16 %v2456, %v2452
  %v3697 = vpack.c.b16 %v2457, %v2453
  %v3698 = vpack.c.b16 %v2462, %v2458
  %v3699 = vpack.c.b16 %v2463, %v2459
  %v3700 = vpack.c.b16 %v2464, %v2460
  %v3701 = vpack.c.b16 %v2465, %v2461
  %v3702 = vpack.c.b16 %v2470, %v2466
  %v3703 = vpack.c.b16 %v2471, %v2467
  %v3704 = vpack.c.b16 %v2472, %v2468
  %v3705 = vpack.c.b16 %v2473, %v2469
  %v3706 = vpack.c.b16 %v2478, %v2474
  %v3707 = vpack.c.b16 %v2479, %v2475
  %v3708 = vpack.c.b16 %v2480, %v2476
  %v3709 = vpack.c.b16 %v2481, %v2477
  %v3710 = vpack.c.b16 %v2486, %v2482
  %v3711 = vpack.c.b16 %v2487, %v2483
  %v3712 = vpack.c.b16 %v2488, %v2484
  %v3713 = vpack.c.b16 %v2489, %v2485
  %v3714 = vpack.c.b16 %v2494, %v2490
  %v3715 = vpack.c.b16 %v2495, %v2491
  %v3716 = vpack.c.b16 %v2496, %v2492
  %v3717 = vpack.c.b16 %v2497, %v2493
  %v3718 = vpack.c.b16 %v2502, %v2498
  %v3719 = vpack.c.b16 %v2503, %v2499
  %v3720 = vpack.c.b16 %v2504, %v2500
  %v3721 = vpack.c.b16 %v2505, %v2501
  %v3722 = vpack.c.b16 %v2510, %v2506
  %v3723 = vpack.c.b16 %v2511, %v2507
  %v3724 = vpack.c.b16 %v2512, %v2508
  %v3725 = vpack.c.b16 %v2513, %v2509
  %v3726 = vpack.c.b16 %v2518, %v2514
  %v3727 = vpack.c.b16 %v2519, %v2515
  %v3728 = vpack.c.b16 %v2520, %v2516
  %v3729 = vpack.c.b16 %v2521, %v2517
  %v3730 = vpack.c.b16 %v2526, %v2522
  %v3731 = vpack.c.b16 %v2527, %v2523
  %v3732 = vpack.c.b16 %v2528, %v2524
  %v3733 = vpack.c.b16 %v2529, %v2525
  %v3734 = vpack.c.b16 %v2534, %v2530
  %v3735 = vpack.c.b16 %v2535, %v2531
  %v3736 = vpack.c.b16 %v2536, %v2532
  %v3737 = vpack.c.b16 %v2537, %v2533
  %v3738 = vpack.c.b16 %v2542, %v2538
  %v3739 = vpack.c.b16 %v2543, %v2539
  %v3740 = vpack.c.b16 %v2544, %v2540
  %v3741 = vpack.c.b16 %v2545, %v2541
  %v3742 = vpack.c.b16 %v2550, %v2546
  %v3743 = vpack.c.b16 %v2551, %v2547
  %v3744 = vpack.c.b16 %v2552, %v2548
  %v3745 = vpack.c.b16 %v2553, %v2549
  %v3746 = vpack.c.b16 %v2558, %v2554
  %v3747 = vpack.c.b16 %v2559, %v2555
  %v3748 = vpack.c.b16 %v2560, %v2556
  %v3749 = vpack.c.b16 %v2561, %v2557
  %v3750 = vpack.c.b16 %v2566, %v2562
  %v3751 = vpack.c.b16 %v2567, %v2563
  %v3752 = vpack.c.b16 %v2568, %v2564
  %v3753 = vpack.c.b16 %v2569, %v2565
  %v3754 = vpack.c.b16 %v2574, %v2570
  %v3755 = vpack.c.b16 %v2575, %v2571
  %v3756 = vpack.c.b16 %v2576, %v2572
  %v3757 = vpack.c.b16 %v2577, %v2573
  %v3758 = vpack.c.b16 %v2582, %v2578
  %v3759 = vpack.c.b16 %v2583, %v2579
  %v3760 = vpack.c.b16 %v2584, %v2580
  %v3761 = vpack.c.b16 %v2585, %v2581
  %v3762 = vpack.c.b16 %v2590, %v2586
  %v3763 = vpack.c.b16 %v2591, %v2587
  %v3764 = vpack.c.b16 %v2592, %v2588
  %v3765 = vpack.c.b16 %v2593, %v2589
  %v3766 = vpack.c.b16 %v2598, %v2594
  %v3767 = vpack.c.b16 %v2599, %v2595
  %v3768 = vpack.c.b16 %v2600, %v2596
  %v3769 = vpack.c.b16 %v2601, %v2597
  %v3770 = vpack.c.b16 %v2606, %v2602
  %v3771 = vpack.c.b16 %v2607, %v2603
  %v3772 = vpack.c.b16 %v2608, %v2604
  %v3773 = vpack.c.b16 %v2609, %v2605
  %v3774 = vpack.c.b16 %v2614, %v2610
  %v3775 = vpack.c.b16 %v2615, %v2611
  %v3776 = vpack.c.b16 %v2616, %v2612
  %v3777 = vpack.c.b16 %v2617, %v2613
  %v3778 = vpack.c.b16 %v2622, %v2618
  %v3779 = vpack.c.b16 %v2623, %v2619
  %v3780 = vpack.c.b16 %v2624, %v2620
  %v3781 = vpack.c.b16 %v2625, %v2621
  %v3782 = vpack.c.b16 %v2630, %v2626
  %v3783 = vpack.c.b16 %v2631, %v2627
  %v3784 = vpack.c.b16 %v2632, %v2628
  %v3785 = vpack.c.b16 %v2633, %v2629
  %v3786 = vpack.c.b16 %v2638, %v2634
  %v3787 = vpack.c.b16 %v2639, %v2635
  %v3788 = vpack.c.b16 %v2640, %v2636
  %v3789 = vpack.c.b16 %v2641, %v2637
  %v3790 = vpack.c.b16 %v2646, %v2642
  %v3791 = vpack.c.b16 %v2647, %v2643
  %v3792 = vpack.c.b16 %v2648, %v2644
  %v3793 = vpack.c.b16 %v2649, %v2645
  %v3794 = vpack.c.b16 %v2654, %v2650
  %v3795 = vpack.c.b16 %v2655, %v2651
  %v3796 = vpack.c.b16 %v2656, %v2652
  %v3797 = vpack.c.b16 %v2657, %v2653
  %v3798 = vpack.c.b16 %v2662, %v2658
  %v3799 = vpack.c.b16 %v2663, %v2659
  %v3800 = vpack.c.b16 %v2664, %v2660
  %v3801 = vpack.c.b16 %v2665, %v2661
  %v3802 = vpack.c.b16 %v2670, %v2666
  %v3803 = vpack.c.b16 %v2671, %v2667
  %v3804 = vpack.c.b16 %v2672, %v2668
  %v3805 = vpack.c.b16 %v2673, %v2669
  %v3806 = vpack.c.b16 %v2678, %v2674
  %v3807 = vpack.c.b16 %v2679, %v2675
  %v3808 = vpack.c.b16 %v2680, %v2676
  %v3809 = vpack.c.b16 %v2681, %v2677
  %v3810 = vpack.c.b16 %v2686, %v2682
  %v3811 = vpack.c.b16 %v2687, %v2683
  %v3812 = vpack.c.b16 %v2688, %v2684
  %v3813 = vpack.c.b16 %v2689, %v2685
  %v3814 = vpack.c.b16 %v2694, %v2690
  %v3815 = vpack.c.b16 %v2695, %v2691
  %v3816 = vpack.c.b16 %v2696, %v2692
  %v3817 = vpack.c.b16 %v2697, %v2693
  %v3818 = vpack.c.b16 %v2702, %v2698
  %v3819 = vpack.c.b16 %v2703, %v2699
  %v3820 = vpack.c.b16 %v2704, %v2700
  %v3821 = vpack.c.b16 %v2705, %v2701
  %v3822 = vpack.c.b16 %v2710, %v2706
  %v3823 = vpack.c.b16 %v2711, %v2707
  %v3824 = vpack.c.b16 %v2712, %v2708
  %v3825 = vpack.c.b16 %v2713, %v2709
  %v3826 = vpack.c.b16 %v2718, %v2714
  %v3827 = vpack.c.b16 %v2719, %v2715
  %v3828 = vpack.c.b16 %v2720, %v2716
  %v3829 = vpack.c.b16 %v2721, %v2717
  %v3830 = vpack.c.b16 %v2726, %v2722
  %v3831 = vpack.c.b16 %v2727, %v2723
  %v3832 = vpack.c.b16 %v2728, %v2724
  %v3833 = vpack.c.b16 %v2729, %v2725
  %v3834 = vpack.c.b16 %v2734, %v2730
  %v3835 = vpack.c.b16 %v2735, %v2731
  %v3836 = vpack.c.b16 %v2736, %v2732
  %v3837 = vpack.c.b16 %v2737, %v2733
  %v3838 = vpack.c.b16 %v2742, %v2738
  %v3839 = vpack.c.b16 %v2743, %v2739
  %v3840 = vpack.c.b16 %v2744, %v2740
  %v3841 = vpack.c.b16 %v2745, %v2741
  %v3842 = vpack.c.b16 %v2750, %v2746
  %v3843 = vpack.c.b16 %v2751, %v2747
  %v3844 = vpack.c.b16 %v2752, %v2748
  %v3845 = vpack.c.b16 %v2753, %v2749
  %v3846 = vpack.c.b16 %v2758, %v2754
  %v3847 = vpack.c.b16 %v2759, %v2755
  %v3848 = vpack.c.b16 %v2760, %v2756
  %v3849 = vpack.c.b16 %v2761, %v2757
  %v3850 = vpack.c.b16 %v2766, %v2762
  %v3851 = vpack.c.b16 %v2767, %v2763
  %v3852 = vpack.c.b16 %v2768, %v2764
  %v3853 = vpack.c.b16 %v2769, %v2765
  %v3854 = vpack.c.b16 %v2774, %v2770
  %v3855 = vpack.c.b16 %v2775, %v2771
  %v3856 = vpack.c.b16 %v2776, %v2772
  %v3857 = vpack.c.b16 %v2777, %v2773
  %v3858 = vpack.c.b16 %v2782, %v2778
  %v3859 = vpack.c.b16 %v2783, %v2779
  %v3860 = vpack.c.b16 %v2784, %v2780
  %v3861 = vpack.c.b16 %v2785, %v2781
  %v3862 = vpack.c.b16 %v2790, %v2786
  %v3863 = vpack.c.b16 %v2791, %v2787
  %v3864 = vpack.c.b16 %v2792, %v2788
  %v3865 = vpack.c.b16 %v2793, %v2789
  %v3866 = vpack.c.b16 %v2798, %v2794
  %v3867 = vpack.c.b16 %v2799, %v2795
  %v3868 = vpack.c.b16 %v2800, %v2796
  %v3869 = vpack.c.b16 %v2801, %v2797
  %v3870 = vpack.c.b16 %v2806, %v2802
  %v3871 = vpack.c.b16 %v2807, %v2803
  %v3872 = vpack.c.b16 %v2808, %v2804
  %v3873 = vpack.c.b16 %v2809, %v2805
  %v3874 = vpack.c.b16 %v2814, %v2810
  %v3875 = vpack.c.b16 %v2815, %v2811
  %v3876 = vpack.c.b16 %v2816, %v2812
  %v3877 = vpack.c.b16 %v2817, %v2813
  %v3878 = vpack.c.b16 %v2822, %v2818
  %v3879 = vpack.c.b16 %v2823, %v2819
  %v3880 = vpack.c.b16 %v2824, %v2820
  %v3881 = vpack.c.b16 %v2825, %v2821
  %v3882 = vpack.c.b16 %v2830, %v2826
  %v3883 = vpack.c.b16 %v2831, %v2827
  %v3884 = vpack.c.b16 %v2832, %v2828
  %v3885 = vpack.c.b16 %v2833, %v2829
  %v3886 = vpack.c.b16 %v2838, %v2834
  %v3887 = vpack.c.b16 %v2839, %v2835
  %v3888 = vpack.c.b16 %v2840, %v2836
  %v3889 = vpack.c.b16 %v2841, %v2837
  %v3890 = vpack.c.b16 %v2846, %v2842
  %v3891 = vpack.c.b16 %v2847, %v2843
  %v3892 = vpack.c.b16 %v2848, %v2844
  %v3893 = vpack.c.b16 %v2849, %v2845
  %v3894 = vpack.c.b16 %v2854, %v2850
  %v3895 = vpack.c.b16 %v2855, %v2851
  %v3896 = vpack.c.b16 %v2856, %v2852
  %v3897 = vpack.c.b16 %v2857, %v2853
  %v3898 = vpack.c.b16 %v2862, %v2858
  %v3899 = vpack.c.b16 %v2863, %v2859
  %v3900 = vpack.c.b16 %v2864, %v2860
  %v3901 = vpack.c.b16 %v2865, %v2861
  %v3902 = vpack.c.b16 %v2870, %v2866
  %v3903 = vpack.c.b16 %v2871, %v2867
  %v3904 = vpack.c.b16 %v2872, %v2868
  %v3905 = vpack.c.b16 %v2873, %v2869
  %v3906 = vpack.c.b16 %v2878, %v2874
  %v3907 = vpack.c.b16 %v2879, %v2875
  %v3908 = vpack.c.b16 %v2880, %v2876
  %v3909 = vpack.c.b16 %v2881, %v2877
  %v3910 = vpack.c.b16 %v2886, %v2882
  %v3911 = vpack.c.b16 %v2887, %v2883
  %v3912 = vpack.c.b16 %v2888, %v2884
  %v3913 = vpack.c.b16 %v2889, %v2885
  %v3914 = vpack.c.b16 %v2894, %v2890
  %v3915 = vpack.c.b16 %v2895, %v2891
  %v3916 = vpack.c.b16 %v2896, %v2892
  %v3917 = vpack.c.b16 %v2897, %v2893
  %v3918 = vpack.c.b16 %v2902, %v2898
  %v3919 = vpack.c.b16 %v2903, %v2899
  %v3920 = vpack.c.b16 %v2904, %v2900
  %v3921 = vpack.c.b16 %v2905, %v2901
  %v3922 = vpack.c.b16 %v2910, %v2906
  %v3923 = vpack.c.b16 %v2911, %v2907
  %v3924 = vpack.c.b16 %v2912, %v2908
  %v3925 = vpack.c.b16 %v2913, %v2909
  %v3926 = vpack.c.b16 %v2918, %v2914
  %v3927 = vpack.c.b16 %v2919, %v2915
  %v3928 = vpack.c.b16 %v2920, %v2916
  %v3929 = vpack.c.b16 %v2921, %v2917
  %v3930 = vpack.c.b16 %v2926, %v2922
  %v3931 = vpack.c.b16 %v2927, %v2923
  %v3932 = vpack.c.b16 %v2928, %v2924
  %v3933 = vpack.c.b16 %v2929, %v2925
  %v3934 = vpack.c.b16 %v2934, %v2930
  %v3935 = vpack.c.b16 %v2935, %v2931
  %v3936 = vpack.c.b16 %v2936, %v2932
  %v3937 = vpack.c.b16 %v2937, %v2933
  %v3938 = vpack.c.b16 %v2942, %v2938
  %v3939 = vpack.c.b16 %v2943, %v2939
  %v3940 = vpack.c.b16 %v2944, %v2940
  %v3941 = vpack.c.b16 %v2945, %v2941
  %v3942 = vpack.c.b16 %v2950, %v2946
  %v3943 = vpack.c.b16 %v2951, %v2947
  %v3944 = vpack.c.b16 %v2952, %v2948
  %v3945 = vpack.c.b16 %v2953, %v2949
  %v3946 = vpack.c.b16 %v2958, %v2954
  %v3947 = vpack.c.b16 %v2959, %v2955
  %v3948 = vpack.c.b16 %v2960, %v2956
  %v3949 = vpack.c.b16 %v2961, %v2957
  %v3950 = vpack.c.b16 %v2966, %v2962
  %v3951 = vpack.c.b16 %v2967, %v2963
  %v3952 = vpack.c.b16 %v2968, %v2964
  %v3953 = vpack.c.b16 %v2969, %v2965
  %v3954 = vpack.c.b16 %v2974, %v2970
  %v3955 = vpack.c.b16 %v2975, %v2971
  %v3956 = vpack.c.b16 %v2976, %v2972
  %v3957 = vpack.c.b16 %v2977, %v2973
  %v3958 = vpack.c.b16 %v2982, %v2978
  %v3959 = vpack.c.b16 %v2983, %v2979
  %v3960 = vpack.c.b16 %v2984, %v2980
  %v3961 = vpack.c.b16 %v2985, %v2981
  %v3962 = vpack.c.b16 %v2990, %v2986
  %v3963 = vpack.c.b16 %v2991, %v2987
  %v3964 = vpack.c.b16 %v2992, %v2988
  %v3965 = vpack.c.b16 %v2993, %v2989
  %v3966 = vpack.c.b16 %v2998, %v2994
  %v3967 = vpack.c.b16 %v2999, %v2995
  %v3968 = vpack.c.b16 %v3000, %v2996
  %v3969 = vpack.c.b16 %v3001, %v2997
  %v3970 = vpack.c.b16 %v3006, %v3002
  %v3971 = vpack.c.b16 %v3007, %v3003
  %v3972 = vpack.c.b16 %v3008, %v3004
  %v3973 = vpack.c.b16 %v3009, %v3005
  %v3974 = vpack.c.b16 %v3014, %v3010
  %v3975 = vpack.c.b16 %v3015, %v3011
  %v3976 = vpack.c.b16 %v3016, %v3012
  %v3977 = vpack.c.b16 %v3017, %v3013
  %v3978 = vpack.c.b16 %v3022, %v3018
  %v3979 = vpack.c.b16 %v3023, %v3019
  %v3980 = vpack.c.b16 %v3024, %v3020
  %v3981 = vpack.c.b16 %v3025, %v3021
  %v3982 = vpack.c.b16 %v3030, %v3026
  %v3983 = vpack.c.b16 %v3031, %v3027
  %v3984 = vpack.c.b16 %v3032, %v3028
  %v3985 = vpack.c.b16 %v3033, %v3029
  %v3986 = vpack.c.b16 %v3038, %v3034
  %v3987 = vpack.c.b16 %v3039, %v3035
  %v3988 = vpack.c.b16 %v3040, %v3036
  %v3989 = vpack.c.b16 %v3041, %v3037
  %v3990 = vpack.c.b16 %v3046, %v3042
  %v3991 = vpack.c.b16 %v3047, %v3043
  %v3992 = vpack.c.b16 %v3048, %v3044
  %v3993 = vpack.c.b16 %v3049, %v3045
  %v3994 = vpack.c.b16 %v3054, %v3050
  %v3995 = vpack.c.b16 %v3055, %v3051
  %v3996 = vpack.c.b16 %v3056, %v3052
  %v3997 = vpack.c.b16 %v3057, %v3053
  %v3998 = vpack.c.b16 %v3062, %v3058
  %v3999 = vpack.c.b16 %v3063, %v3059
  %v4000 = vpack.c.b16 %v3064, %v3060
  %v4001 = vpack.c.b16 %v3065, %v3061
  %v4002 = vpack.c.b16 %v3070, %v3066
  %v4003 = vpack.c.b16 %v3071, %v3067
  %v4004 = vpack.c.b16 %v3072, %v3068
  %v4005 = vpack.c.b16 %v3073, %v3069
  %v4006 = vpack.c.b16 %v3078, %v3074
  %v4007 = vpack.c.b16 %v3079, %v3075
  %v4008 = vpack.c.b16 %v3080, %v3076
  %v4009 = vpack.c.b16 %v3081, %v3077
  %v4010 = vpack.c.b16 %v3086, %v3082
  %v4011 = vpack.c.b16 %v3087, %v3083
  %v4012 = vpack.c.b16 %v3088, %v3084
  %v4013 = vpack.c.b16 %v3089, %v3085
  %v4014 = vpack.c.b16 %v3094, %v3090
  %v4015 = vpack.c.b16 %v3095, %v3091
  %v4016 = vpack.c.b16 %v3096, %v3092
  %v4017 = vpack.c.b16 %v3097, %v3093
  %v4018 = vpack.c.b16 %v3102, %v3098
  %v4019 = vpack.c.b16 %v3103, %v3099
  %v4020 = vpack.c.b16 %v3104, %v3100
  %v4021 = vpack.c.b16 %v3105, %v3101
  %v4022 = vpack.c.b16 %v3110, %v3106
  %v4023 = vpack.c.b16 %v3111, %v3107
  %v4024 = vpack.c.b16 %v3112, %v3108
  %v4025 = vpack.c.b16 %v3113, %v3109
  %v4026 = vpack.c.b16 %v3118, %v3114
  %v4027 = vpack.c.b16 %v3119, %v3115
  %v4028 = vpack.c.b16 %v3120, %v3116
  %v4029 = vpack.c.b16 %v3121, %v3117
  %v4030 = vpack.c.b16 %v3126, %v3122
  %v4031 = vpack.c.b16 %v3127, %v3123
  %v4032 = vpack.c.b16 %v3128, %v3124
  %v4033 = vpack.c.b16 %v3129, %v3125
  %v4034 = vpack.c.b16 %v3134, %v3130
  %v4035 = vpack.c.b16 %v3135, %v3131
  %v4036 = vpack.c.b16 %v3136, %v3132
  %v4037 = vpack.c.b16 %v3137, %v3133
  %v4038 = vpack.c.b16 %v3142, %v3138
  %v4039 = vpack.c.b16 %v3143, %v3139
  %v4040 = vpack.c.b16 %v3144, %v3140
  %v4041 = vpack.c.b16 %v3145, %v3141
  %v4042 = vpack.c.b16 %v3150, %v3146
  %v4043 = vpack.c.b16 %v3151, %v3147
  %v4044 = vpack.c.b16 %v3152, %v3148
  %v4045 = vpack.c.b16 %v3153, %v3149
  %v4046 = vpack.c.b16 %v3158, %v3154
  %v4047 = vpack.c.b16 %v3159, %v3155
  %v4048 = vpack.c.b16 %v3160, %v3156
  %v4049 = vpack.c.b16 %v3161, %v3157
  %v4050 = vpack.c.b16 %v3166, %v3162
  %v4051 = vpack.c.b16 %v3167, %v3163
  %v4052 = vpack.c.b16 %v3168, %v3164
  %v4053 = vpack.c.b16 %v3169, %v3165
  %v4054 = vpack.c.b16 %v3174, %v3170
  %v4055 = vpack.c.b16 %v3175, %v3171
  %v4056 = vpack.c.b16 %v3176, %v3172
  %v4057 = vpack.c.b16 %v3177, %v3173
  %v4058 = vpack.c.b16 %v3182, %v3178
  %v4059 = vpack.c.b16 %v3183, %v3179
  %v4060 = vpack.c.b16 %v3184, %v3180
  %v4061 = vpack.c.b16 %v3185, %v3181
  %v4062 = vpack.c.b16 %v3190, %v3186
  %v4063 = vpack.c.b16 %v3191, %v3187
  %v4064 = vpack.c.b16 %v3192, %v3188
  %v4065 = vpack.c.b16 %v3193, %v3189
  %v4066 = vpack.c.b16 %v3198, %v3194
  %v4067 = vpack.c.b16 %v3199, %v3195
  %v4068 = vpack.c.b16 %v3200, %v3196
  %v4069 = vpack.c.b16 %v3201, %v3197
  %v4070 = vpack.c.b16 %v3206, %v3202
  %v4071 = vpack.c.b16 %v3207, %v3203
  %v4072 = vpack.c.b16 %v3208, %v3204
  %v4073 = vpack.c.b16 %v3209, %v3205
  %v4074 = vpack.c.b16 %v3214, %v3210
  %v4075 = vpack.c.b16 %v3215, %v3211
  %v4076 = vpack.c.b16 %v3216, %v3212
  %v4077 = vpack.c.b16 %v3217, %v3213
  %v4078 = vpack.c.b16 %v3222, %v3218
  %v4079 = vpack.c.b16 %v3223, %v3219
  %v4080 = vpack.c.b16 %v3224, %v3220
  %v4081 = vpack.c.b16 %v3225, %v3221
  %v4082 = vpack.c.b16 %v3230, %v3226
  %v4083 = vpack.c.b16 %v3231, %v3227
  %v4084 = vpack.c.b16 %v3232, %v3228
  %v4085 = vpack.c.b16 %v3233, %v3229
  %v4086 = vpack.c.b16 %v3238, %v3234
  %v4087 = vpack.c.b16 %v3239, %v3235
  %v4088 = vpack.c.b16 %v3240, %v3236
  %v4089 = vpack.c.b16 %v3241, %v3237
  %v4090 = vpack.c.b16 %v3246, %v3242
  %v4091 = vpack.c.b16 %v3247, %v3243
  %v4092 = vpack.c.b16 %v3248, %v3244
  %v4093 = vpack.c.b16 %v3249, %v3245
  %v4094 = vpack.c.b16 %v3254, %v3250
  %v4095 = vpack.c.b16 %v3255, %v3251
  %v4096 = vpack.c.b16 %v3256, %v3252
  %v4097 = vpack.c.b16 %v3257, %v3253
  %v4098 = vpack.c.b16 %v3262, %v3258
  %v4099 = vpack.c.b16 %v3263, %v3259
  %v4100 = vpack.c.b16 %v3264, %v3260
  %v4101 = vpack.c.b16 %v3265, %v3261
  %v4102 = vpack.c.b16 %v3270, %v3266
  %v4103 = vpack.c.b16 %v3271, %v3267
  %v4104 = vpack.c.b16 %v3272, %v3268
  %v4105 = vpack.c.b16 %v3273, %v3269
  %v4106 = vpack.c.b16 %v3278, %v3274
  %v4107 = vpack.c.b16 %v3279, %v3275
  %v4108 = vpack.c.b16 %v3280, %v3276
  %v4109 = vpack.c.b16 %v3281, %v3277
  %v4110 = vpack.c.b16 %v3286, %v3282
  %v4111 = vpack.c.b16 %v3287, %v3283
  %v4112 = vpack.c.b16 %v3288, %v3284
  %v4113 = vpack.c.b16 %v3289, %v3285
  %v4114 = vpack.c.b16 %v3294, %v3290
  %v4115 = vpack.c.b16 %v3295, %v3291
  %v4116 = vpack.c.b16 %v3296, %v3292
  %v4117 = vpack.c.b16 %v3297, %v3293
  %v4118 = vpack.c.b16 %v3302, %v3298
  %v4119 = vpack.c.b16 %v3303, %v3299
  %v4120 = vpack.c.b16 %v3304, %v3300
  %v4121 = vpack.c.b16 %v3305, %v3301
  %v4122 = vpack.c.b16 %v3310, %v3306
  %v4123 = vpack.c.b16 %v3311, %v3307
  %v4124 = vpack.c.b16 %v3312, %v3308
  %v4125 = vpack.c.b16 %v3313, %v3309
  %v4126 = vpack.c.b16 %v3318, %v3314
  %v4127 = vpack.c.b16 %v3319, %v3315
  %v4128 = vpack.c.b16 %v3320, %v3316
  %v4129 = vpack.c.b16 %v3321, %v3317
  %v4130 = vpack.c.b16 %v3326, %v3322
  %v4131 = vpack.c.b16 %v3327, %v3323
  %v4132 = vpack.c.b16 %v3328, %v3324
  %v4133 = vpack.c.b16 %v3329, %v3325
  %v4134 = vpack.c.b16 %v3334, %v3330
  %v4135 = vpack.c.b16 %v3335, %v3331
  %v4136 = vpack.c.b16 %v3336, %v3332
  %v4137 = vpack.c.b16 %v3337, %v3333
  %4938 = vmatprep.subr.bf16.mxu0 %v3339
  %4939 = vmatpush1.bf16.msra.mxu0 %v3338
  %4940 = vmatprep.subr.bf16.mxu0 %v3343
  %4941 = vmatpush1.bf16.msra.mxu0 %v3342
  %4942 = vmatprep.subr.bf16.mxu0 %v3347
  %4943 = vmatpush1.bf16.msra.mxu0 %v3346
  %4944 = vmatprep.subr.bf16.mxu0 %v3351
  %4945 = vmatpush1.bf16.msra.mxu0 %v3350
  %4946 = vmatprep.subr.bf16.mxu0 %v3355
  %4947 = vmatpush1.bf16.msra.mxu0 %v3354
  %4948 = vmatprep.subr.bf16.mxu0 %v3359
  %4949 = vmatpush1.bf16.msra.mxu0 %v3358
  %4950 = vmatprep.subr.bf16.mxu0 %v3363
  %4951 = vmatpush1.bf16.msra.mxu0 %v3362
  %4952 = vmatprep.subr.bf16.mxu0 %v3367
  %4953 = vmatpush1.bf16.msra.mxu0 %v3366
  %4954 = vmatprep.subr.bf16.mxu0 %v3371
  %4955 = vmatpush1.bf16.msra.mxu0 %v3370
  %4956 = vmatprep.subr.bf16.mxu0 %v3375
  %4957 = vmatpush1.bf16.msra.mxu0 %v3374
  %4958 = vmatprep.subr.bf16.mxu0 %v3379
  %4959 = vmatpush1.bf16.msra.mxu0 %v3378
  %4960 = vmatprep.subr.bf16.mxu0 %v3383
  %4961 = vmatpush1.bf16.msra.mxu0 %v3382
  %4962 = vmatprep.subr.bf16.mxu0 %v3387
  %4963 = vmatpush1.bf16.msra.mxu0 %v3386
  %4964 = vmatprep.subr.bf16.mxu0 %v3391
  %4965 = vmatpush1.bf16.msra.mxu0 %v3390
  %4966 = vmatprep.subr.bf16.mxu0 %v3395
  %4967 = vmatpush1.bf16.msra.mxu0 %v3394
  %4968 = vmatprep.subr.bf16.mxu0 %v3399
  %4969 = vmatpush1.bf16.msra.mxu0 %v3398
  %4970 = vmatprep.mubr.bf16.mxu0 %v889
  %4971 = vmatmul.mubr.bf16.gmra.mrb[0].mxu0 %v888
  %v4972 = vpop.f32.mrb[0].mxu0
  %v4973 = vadd.f32 %v833, %v4972
  %v4974 = vpop.f32.mrb[0].mxu0
  %v4975 = vadd.f32 %v837, %v4974
  %v4976 = vpop.f32.mrb[0].mxu0
  %v4977 = vpop.f32.mrb[0].mxu0
  %4978 = vdwg.mxu0
  %4979 = vmatprep.subr.bf16.mxu0 %v3403
  %4980 = vmatpush1.bf16.msra.mxu0 %v3402
  %4981 = vmatprep.subr.bf16.mxu0 %v3407
  %4982 = vmatpush1.bf16.msra.mxu0 %v3406
  %4983 = vmatprep.subr.bf16.mxu0 %v3411
  %4984 = vmatpush1.bf16.msra.mxu0 %v3410
  %4985 = vmatprep.subr.bf16.mxu0 %v3415
  %4986 = vmatpush1.bf16.msra.mxu0 %v3414
  %4987 = vmatprep.subr.bf16.mxu0 %v3419
  %4988 = vmatpush1.bf16.msra.mxu0 %v3418
  %4989 = vmatprep.subr.bf16.mxu0 %v3423
  %4990 = vmatpush1.bf16.msra.mxu0 %v3422
  %4991 = vmatprep.subr.bf16.mxu0 %v3427
  %4992 = vmatpush1.bf16.msra.mxu0 %v3426
  %4993 = vmatprep.subr.bf16.mxu0 %v3431
  %4994 = vmatpush1.bf16.msra.mxu0 %v3430
  %4995 = vmatprep.subr.bf16.mxu0 %v3435
  %4996 = vmatpush1.bf16.msra.mxu0 %v3434
  %4997 = vmatprep.subr.bf16.mxu0 %v3439
  %4998 = vmatpush1.bf16.msra.mxu0 %v3438
  %4999 = vmatprep.subr.bf16.mxu0 %v3443
  %5000 = vmatpush1.bf16.msra.mxu0 %v3442
  %5001 = vmatprep.subr.bf16.mxu0 %v3447
  %5002 = vmatpush1.bf16.msra.mxu0 %v3446
  %5003 = vmatprep.subr.bf16.mxu0 %v3451
  %5004 = vmatpush1.bf16.msra.mxu0 %v3450
  %5005 = vmatprep.subr.bf16.mxu0 %v3455
  %5006 = vmatpush1.bf16.msra.mxu0 %v3454
  %5007 = vmatprep.subr.bf16.mxu0 %v3459
  %5008 = vmatpush1.bf16.msra.mxu0 %v3458
  %5009 = vmatprep.subr.bf16.mxu0 %v3463
  %5010 = vmatpush1.bf16.msra.mxu0 %v3462
  %5011 = vmatprep.mubr.bf16.mxu0 %v891
  %5012 = vmatmul.mubr.bf16.gmra.mrb[0].mxu0 %v890
  %v5013 = vpop.f32.mrb[0].mxu0
  %v5014 = vadd.f32 %v4973, %v5013
  %v5015 = vpop.f32.mrb[0].mxu0
  %v5016 = vadd.f32 %v4975, %v5015
  %v5017 = vpop.f32.mrb[0].mxu0
  %v5018 = vpop.f32.mrb[0].mxu0
  %5019 = vdwg.mxu0
  %5020 = vmatprep.subr.bf16.mxu0 %v3467
  %5021 = vmatpush1.bf16.msra.mxu0 %v3466
  %5022 = vmatprep.subr.bf16.mxu0 %v3471
  %5023 = vmatpush1.bf16.msra.mxu0 %v3470
  %5024 = vmatprep.subr.bf16.mxu0 %v3475
  %5025 = vmatpush1.bf16.msra.mxu0 %v3474
  %5026 = vmatprep.subr.bf16.mxu0 %v3479
  %5027 = vmatpush1.bf16.msra.mxu0 %v3478
  %5028 = vmatprep.subr.bf16.mxu0 %v3483
  %5029 = vmatpush1.bf16.msra.mxu0 %v3482
  %5030 = vmatprep.subr.bf16.mxu0 %v3487
  %5031 = vmatpush1.bf16.msra.mxu0 %v3486
  %5032 = vmatprep.subr.bf16.mxu0 %v3491
  %5033 = vmatpush1.bf16.msra.mxu0 %v3490
  %5034 = vmatprep.subr.bf16.mxu0 %v3495
  %5035 = vmatpush1.bf16.msra.mxu0 %v3494
  %5036 = vmatprep.subr.bf16.mxu0 %v3499
  %5037 = vmatpush1.bf16.msra.mxu0 %v3498
  %5038 = vmatprep.subr.bf16.mxu0 %v3503
  %5039 = vmatpush1.bf16.msra.mxu0 %v3502
  %5040 = vmatprep.subr.bf16.mxu0 %v3507
  %5041 = vmatpush1.bf16.msra.mxu0 %v3506
  %5042 = vmatprep.subr.bf16.mxu0 %v3511
  %5043 = vmatpush1.bf16.msra.mxu0 %v3510
  %5044 = vmatprep.subr.bf16.mxu0 %v3515
  %5045 = vmatpush1.bf16.msra.mxu0 %v3514
  %5046 = vmatprep.subr.bf16.mxu0 %v3519
  %5047 = vmatpush1.bf16.msra.mxu0 %v3518
  %5048 = vmatprep.subr.bf16.mxu0 %v3523
  %5049 = vmatpush1.bf16.msra.mxu0 %v3522
  %5050 = vmatprep.subr.bf16.mxu0 %v3527
  %5051 = vmatpush1.bf16.msra.mxu0 %v3526
  %5052 = vmatprep.mubr.bf16.mxu0 %v893
  %5053 = vmatmul.mubr.bf16.gmra.mrb[0].mxu0 %v892
  %v5054 = vpop.f32.mrb[0].mxu0
  %v5055 = vadd.f32 %v5014, %v5054
  %v5056 = vpop.f32.mrb[0].mxu0
  %v5057 = vadd.f32 %v5016, %v5056
  %v5058 = vpop.f32.mrb[0].mxu0
  %v5059 = vpop.f32.mrb[0].mxu0
  %5060 = vdwg.mxu0
  %5061 = vmatprep.subr.bf16.mxu0 %v3531
  %5062 = vmatpush1.bf16.msra.mxu0 %v3530
  %5063 = vmatprep.subr.bf16.mxu0 %v3535
  %5064 = vmatpush1.bf16.msra.mxu0 %v3534
  %5065 = vmatprep.subr.bf16.mxu0 %v3539
  %5066 = vmatpush1.bf16.msra.mxu0 %v3538
  %5067 = vmatprep.subr.bf16.mxu0 %v3543
  %5068 = vmatpush1.bf16.msra.mxu0 %v3542
  %5069 = vmatprep.subr.bf16.mxu0 %v3547
  %5070 = vmatpush1.bf16.msra.mxu0 %v3546
  %5071 = vmatprep.subr.bf16.mxu0 %v3551
  %5072 = vmatpush1.bf16.msra.mxu0 %v3550
  %5073 = vmatprep.subr.bf16.mxu0 %v3555
  %5074 = vmatpush1.bf16.msra.mxu0 %v3554
  %5075 = vmatprep.subr.bf16.mxu0 %v3559
  %5076 = vmatpush1.bf16.msra.mxu0 %v3558
  %5077 = vmatprep.subr.bf16.mxu0 %v3563
  %5078 = vmatpush1.bf16.msra.mxu0 %v3562
  %5079 = vmatprep.subr.bf16.mxu0 %v3567
  %5080 = vmatpush1.bf16.msra.mxu0 %v3566
  %5081 = vmatprep.subr.bf16.mxu0 %v3571
  %5082 = vmatpush1.bf16.msra.mxu0 %v3570
  %5083 = vmatprep.subr.bf16.mxu0 %v3575
  %5084 = vmatpush1.bf16.msra.mxu0 %v3574
  %5085 = vmatprep.subr.bf16.mxu0 %v3579
  %5086 = vmatpush1.bf16.msra.mxu0 %v3578
  %5087 = vmatprep.subr.bf16.mxu0 %v3583
  %5088 = vmatpush1.bf16.msra.mxu0 %v3582
  %5089 = vmatprep.subr.bf16.mxu0 %v3587
  %5090 = vmatpush1.bf16.msra.mxu0 %v3586
  %5091 = vmatprep.subr.bf16.mxu0 %v3591
  %5092 = vmatpush1.bf16.msra.mxu0 %v3590
  %5093 = vmatprep.mubr.bf16.mxu0 %v895
  %5094 = vmatmul.mubr.bf16.gmra.mrb[0].mxu0 %v894
  %v5095 = vpop.f32.mrb[0].mxu0
  %v5096 = vadd.f32 %v5055, %v5095
  %v5097 = vpop.f32.mrb[0].mxu0
  %v5098 = vadd.f32 %v5057, %v5097
  %v5099 = vpop.f32.mrb[0].mxu0
  %v5100 = vpop.f32.mrb[0].mxu0
  %5101 = vdwg.mxu0
  %5102 = vmatprep.subr.bf16.mxu0 %v3595
  %5103 = vmatpush1.bf16.msra.mxu0 %v3594
  %5104 = vmatprep.subr.bf16.mxu0 %v3599
  %5105 = vmatpush1.bf16.msra.mxu0 %v3598
  %5106 = vmatprep.subr.bf16.mxu0 %v3603
  %5107 = vmatpush1.bf16.msra.mxu0 %v3602
  %5108 = vmatprep.subr.bf16.mxu0 %v3607
  %5109 = vmatpush1.bf16.msra.mxu0 %v3606
  %5110 = vmatprep.subr.bf16.mxu0 %v3611
  %5111 = vmatpush1.bf16.msra.mxu0 %v3610
  %5112 = vmatprep.subr.bf16.mxu0 %v3615
  %5113 = vmatpush1.bf16.msra.mxu0 %v3614
  %5114 = vmatprep.subr.bf16.mxu0 %v3619
  %5115 = vmatpush1.bf16.msra.mxu0 %v3618
  %5116 = vmatprep.subr.bf16.mxu0 %v3623
  %5117 = vmatpush1.bf16.msra.mxu0 %v3622
  %5118 = vmatprep.subr.bf16.mxu0 %v3627
  %5119 = vmatpush1.bf16.msra.mxu0 %v3626
  %5120 = vmatprep.subr.bf16.mxu0 %v3631
  %5121 = vmatpush1.bf16.msra.mxu0 %v3630
  %5122 = vmatprep.subr.bf16.mxu0 %v3635
  %5123 = vmatpush1.bf16.msra.mxu0 %v3634
  %5124 = vmatprep.subr.bf16.mxu0 %v3639
  %5125 = vmatpush1.bf16.msra.mxu0 %v3638
  %5126 = vmatprep.subr.bf16.mxu0 %v3643
  %5127 = vmatpush1.bf16.msra.mxu0 %v3642
  %5128 = vmatprep.subr.bf16.mxu0 %v3647
  %5129 = vmatpush1.bf16.msra.mxu0 %v3646
  %5130 = vmatprep.subr.bf16.mxu0 %v3651
  %5131 = vmatpush1.bf16.msra.mxu0 %v3650
  %5132 = vmatprep.subr.bf16.mxu0 %v3655
  %5133 = vmatpush1.bf16.msra.mxu0 %v3654
  %5134 = vmatprep.mubr.bf16.mxu0 %v897
  %5135 = vmatmul.mubr.bf16.gmra.mrb[0].mxu0 %v896
  %v5136 = vpop.f32.mrb[0].mxu0
  %v5137 = vadd.f32 %v5096, %v5136
  %v5138 = vpop.f32.mrb[0].mxu0
  %v5139 = vadd.f32 %v5098, %v5138
  %v5140 = vpop.f32.mrb[0].mxu0
  %v5141 = vpop.f32.mrb[0].mxu0
  %5142 = vdwg.mxu0
  %5143 = vmatprep.subr.bf16.mxu0 %v3659
  %5144 = vmatpush1.bf16.msra.mxu0 %v3658
  %5145 = vmatprep.subr.bf16.mxu0 %v3663
  %5146 = vmatpush1.bf16.msra.mxu0 %v3662
  %5147 = vmatprep.subr.bf16.mxu0 %v3667
  %5148 = vmatpush1.bf16.msra.mxu0 %v3666
  %5149 = vmatprep.subr.bf16.mxu0 %v3671
  %5150 = vmatpush1.bf16.msra.mxu0 %v3670
  %5151 = vmatprep.subr.bf16.mxu0 %v3675
  %5152 = vmatpush1.bf16.msra.mxu0 %v3674
  %5153 = vmatprep.subr.bf16.mxu0 %v3679
  %5154 = vmatpush1.bf16.msra.mxu0 %v3678
  %5155 = vmatprep.subr.bf16.mxu0 %v3683
  %5156 = vmatpush1.bf16.msra.mxu0 %v3682
  %5157 = vmatprep.subr.bf16.mxu0 %v3687
  %5158 = vmatpush1.bf16.msra.mxu0 %v3686
  %5159 = vmatprep.subr.bf16.mxu0 %v3691
  %5160 = vmatpush1.bf16.msra.mxu0 %v3690
  %5161 = vmatprep.subr.bf16.mxu0 %v3695
  %5162 = vmatpush1.bf16.msra.mxu0 %v3694
  %5163 = vmatprep.subr.bf16.mxu0 %v3699
  %5164 = vmatpush1.bf16.msra.mxu0 %v3698
  %5165 = vmatprep.subr.bf16.mxu0 %v3703
  %5166 = vmatpush1.bf16.msra.mxu0 %v3702
  %5167 = vmatprep.subr.bf16.mxu0 %v3707
  %5168 = vmatpush1.bf16.msra.mxu0 %v3706
  %5169 = vmatprep.subr.bf16.mxu0 %v3711
  %5170 = vmatpush1.bf16.msra.mxu0 %v3710
  %5171 = vmatprep.subr.bf16.mxu0 %v3715
  %5172 = vmatpush1.bf16.msra.mxu0 %v3714
  %5173 = vmatprep.subr.bf16.mxu0 %v3719
  %5174 = vmatpush1.bf16.msra.mxu0 %v3718
  %5175 = vmatprep.mubr.bf16.mxu0 %v899
  %5176 = vmatmul.mubr.bf16.gmra.mrb[0].mxu0 %v898
  %v5177 = vpop.f32.mrb[0].mxu0
  %v5178 = vadd.f32 %v5137, %v5177
  %v5179 = vpop.f32.mrb[0].mxu0
  %v5180 = vadd.f32 %v5139, %v5179
  %v5181 = vpop.f32.mrb[0].mxu0
  %v5182 = vpop.f32.mrb[0].mxu0
  %5183 = vdwg.mxu0
  %5184 = vmatprep.subr.bf16.mxu0 %v3723
  %5185 = vmatpush1.bf16.msra.mxu0 %v3722
  %5186 = vmatprep.subr.bf16.mxu0 %v3727
  %5187 = vmatpush1.bf16.msra.mxu0 %v3726
  %5188 = vmatprep.subr.bf16.mxu0 %v3731
  %5189 = vmatpush1.bf16.msra.mxu0 %v3730
  %5190 = vmatprep.subr.bf16.mxu0 %v3735
  %5191 = vmatpush1.bf16.msra.mxu0 %v3734
  %5192 = vmatprep.subr.bf16.mxu0 %v3739
  %5193 = vmatpush1.bf16.msra.mxu0 %v3738
  %5194 = vmatprep.subr.bf16.mxu0 %v3743
  %5195 = vmatpush1.bf16.msra.mxu0 %v3742
  %5196 = vmatprep.subr.bf16.mxu0 %v3747
  %5197 = vmatpush1.bf16.msra.mxu0 %v3746
  %5198 = vmatprep.subr.bf16.mxu0 %v3751
  %5199 = vmatpush1.bf16.msra.mxu0 %v3750
  %5200 = vmatprep.subr.bf16.mxu0 %v3755
  %5201 = vmatpush1.bf16.msra.mxu0 %v3754
  %5202 = vmatprep.subr.bf16.mxu0 %v3759
  %5203 = vmatpush1.bf16.msra.mxu0 %v3758
  %5204 = vmatprep.subr.bf16.mxu0 %v3763
  %5205 = vmatpush1.bf16.msra.mxu0 %v3762
  %5206 = vmatprep.subr.bf16.mxu0 %v3767
  %5207 = vmatpush1.bf16.msra.mxu0 %v3766
  %5208 = vmatprep.subr.bf16.mxu0 %v3771
  %5209 = vmatpush1.bf16.msra.mxu0 %v3770
  %5210 = vmatprep.subr.bf16.mxu0 %v3775
  %5211 = vmatpush1.bf16.msra.mxu0 %v3774
  %5212 = vmatprep.subr.bf16.mxu0 %v3779
  %5213 = vmatpush1.bf16.msra.mxu0 %v3778
  %5214 = vmatprep.subr.bf16.mxu0 %v3783
  %5215 = vmatpush1.bf16.msra.mxu0 %v3782
  %5216 = vmatprep.mubr.bf16.mxu0 %v901
  %5217 = vmatmul.mubr.bf16.gmra.mrb[0].mxu0 %v900
  %v5218 = vpop.f32.mrb[0].mxu0
  %v5219 = vadd.f32 %v5178, %v5218
  %v5220 = vpop.f32.mrb[0].mxu0
  %v5221 = vadd.f32 %v5180, %v5220
  %v5222 = vpop.f32.mrb[0].mxu0
  %v5223 = vpop.f32.mrb[0].mxu0
  %5224 = vdwg.mxu0
  %5225 = vmatprep.subr.bf16.mxu0 %v3787
  %5226 = vmatpush1.bf16.msra.mxu0 %v3786
  %5227 = vmatprep.subr.bf16.mxu0 %v3791
  %5228 = vmatpush1.bf16.msra.mxu0 %v3790
  %5229 = vmatprep.subr.bf16.mxu0 %v3795
  %5230 = vmatpush1.bf16.msra.mxu0 %v3794
  %5231 = vmatprep.subr.bf16.mxu0 %v3799
  %5232 = vmatpush1.bf16.msra.mxu0 %v3798
  %5233 = vmatprep.subr.bf16.mxu0 %v3803
  %5234 = vmatpush1.bf16.msra.mxu0 %v3802
  %5235 = vmatprep.subr.bf16.mxu0 %v3807
  %5236 = vmatpush1.bf16.msra.mxu0 %v3806
  %5237 = vmatprep.subr.bf16.mxu0 %v3811
  %5238 = vmatpush1.bf16.msra.mxu0 %v3810
  %5239 = vmatprep.subr.bf16.mxu0 %v3815
  %5240 = vmatpush1.bf16.msra.mxu0 %v3814
  %5241 = vmatprep.subr.bf16.mxu0 %v3819
  %5242 = vmatpush1.bf16.msra.mxu0 %v3818
  %5243 = vmatprep.subr.bf16.mxu0 %v3823
  %5244 = vmatpush1.bf16.msra.mxu0 %v3822
  %5245 = vmatprep.subr.bf16.mxu0 %v3827
  %5246 = vmatpush1.bf16.msra.mxu0 %v3826
  %5247 = vmatprep.subr.bf16.mxu0 %v3831
  %5248 = vmatpush1.bf16.msra.mxu0 %v3830
  %5249 = vmatprep.subr.bf16.mxu0 %v3835
  %5250 = vmatpush1.bf16.msra.mxu0 %v3834
  %5251 = vmatprep.subr.bf16.mxu0 %v3839
  %5252 = vmatpush1.bf16.msra.mxu0 %v3838
  %5253 = vmatprep.subr.bf16.mxu0 %v3843
  %5254 = vmatpush1.bf16.msra.mxu0 %v3842
  %5255 = vmatprep.subr.bf16.mxu0 %v3847
  %5256 = vmatpush1.bf16.msra.mxu0 %v3846
  %5257 = vmatprep.mubr.bf16.mxu0 %v903
  %5258 = vmatmul.mubr.bf16.gmra.mrb[0].mxu0 %v902
  %v5259 = vpop.f32.mrb[0].mxu0
  %v5260 = vadd.f32 %v5219, %v5259
  %v5261 = vpop.f32.mrb[0].mxu0
  %v5262 = vadd.f32 %v5221, %v5261
  %v5263 = vpop.f32.mrb[0].mxu0
  %v5264 = vpop.f32.mrb[0].mxu0
  %5265 = vdwg.mxu0
  %5266 = vmatprep.subr.bf16.mxu0 %v3851
  %5267 = vmatpush1.bf16.msra.mxu0 %v3850
  %5268 = vmatprep.subr.bf16.mxu0 %v3855
  %5269 = vmatpush1.bf16.msra.mxu0 %v3854
  %5270 = vmatprep.subr.bf16.mxu0 %v3859
  %5271 = vmatpush1.bf16.msra.mxu0 %v3858
  %5272 = vmatprep.subr.bf16.mxu0 %v3863
  %5273 = vmatpush1.bf16.msra.mxu0 %v3862
  %5274 = vmatprep.subr.bf16.mxu0 %v3867
  %5275 = vmatpush1.bf16.msra.mxu0 %v3866
  %5276 = vmatprep.subr.bf16.mxu0 %v3871
  %5277 = vmatpush1.bf16.msra.mxu0 %v3870
  %5278 = vmatprep.subr.bf16.mxu0 %v3875
  %5279 = vmatpush1.bf16.msra.mxu0 %v3874
  %5280 = vmatprep.subr.bf16.mxu0 %v3879
  %5281 = vmatpush1.bf16.msra.mxu0 %v3878
  %5282 = vmatprep.subr.bf16.mxu0 %v3883
  %5283 = vmatpush1.bf16.msra.mxu0 %v3882
  %5284 = vmatprep.subr.bf16.mxu0 %v3887
  %5285 = vmatpush1.bf16.msra.mxu0 %v3886
  %5286 = vmatprep.subr.bf16.mxu0 %v3891
  %5287 = vmatpush1.bf16.msra.mxu0 %v3890
  %5288 = vmatprep.subr.bf16.mxu0 %v3895
  %5289 = vmatpush1.bf16.msra.mxu0 %v3894
  %5290 = vmatprep.subr.bf16.mxu0 %v3899
  %5291 = vmatpush1.bf16.msra.mxu0 %v3898
  %5292 = vmatprep.subr.bf16.mxu0 %v3903
  %5293 = vmatpush1.bf16.msra.mxu0 %v3902
  %5294 = vmatprep.subr.bf16.mxu0 %v3907
  %5295 = vmatpush1.bf16.msra.mxu0 %v3906
  %5296 = vmatprep.subr.bf16.mxu0 %v3911
  %5297 = vmatpush1.bf16.msra.mxu0 %v3910
  %5298 = vmatprep.mubr.bf16.mxu0 %v905
  %5299 = vmatmul.mubr.bf16.gmra.mrb[0].mxu0 %v904
  %v5300 = vpop.f32.mrb[0].mxu0
  %v5301 = vadd.f32 %v5260, %v5300
  %v5302 = vpop.f32.mrb[0].mxu0
  %v5303 = vadd.f32 %v5262, %v5302
  %v5304 = vpop.f32.mrb[0].mxu0
  %v5305 = vpop.f32.mrb[0].mxu0
  %5306 = vdwg.mxu0
  %5307 = vmatprep.subr.bf16.mxu0 %v3915
  %5308 = vmatpush1.bf16.msra.mxu0 %v3914
  %5309 = vmatprep.subr.bf16.mxu0 %v3919
  %5310 = vmatpush1.bf16.msra.mxu0 %v3918
  %5311 = vmatprep.subr.bf16.mxu0 %v3923
  %5312 = vmatpush1.bf16.msra.mxu0 %v3922
  %5313 = vmatprep.subr.bf16.mxu0 %v3927
  %5314 = vmatpush1.bf16.msra.mxu0 %v3926
  %5315 = vmatprep.subr.bf16.mxu0 %v3931
  %5316 = vmatpush1.bf16.msra.mxu0 %v3930
  %5317 = vmatprep.subr.bf16.mxu0 %v3935
  %5318 = vmatpush1.bf16.msra.mxu0 %v3934
  %5319 = vmatprep.subr.bf16.mxu0 %v3939
  %5320 = vmatpush1.bf16.msra.mxu0 %v3938
  %5321 = vmatprep.subr.bf16.mxu0 %v3943
  %5322 = vmatpush1.bf16.msra.mxu0 %v3942
  %5323 = vmatprep.subr.bf16.mxu0 %v3947
  %5324 = vmatpush1.bf16.msra.mxu0 %v3946
  %5325 = vmatprep.subr.bf16.mxu0 %v3951
  %5326 = vmatpush1.bf16.msra.mxu0 %v3950
  %5327 = vmatprep.subr.bf16.mxu0 %v3955
  %5328 = vmatpush1.bf16.msra.mxu0 %v3954
  %5329 = vmatprep.subr.bf16.mxu0 %v3959
  %5330 = vmatpush1.bf16.msra.mxu0 %v3958
  %5331 = vmatprep.subr.bf16.mxu0 %v3963
  %5332 = vmatpush1.bf16.msra.mxu0 %v3962
  %5333 = vmatprep.subr.bf16.mxu0 %v3967
  %5334 = vmatpush1.bf16.msra.mxu0 %v3966
  %5335 = vmatprep.subr.bf16.mxu0 %v3971
  %5336 = vmatpush1.bf16.msra.mxu0 %v3970
  %5337 = vmatprep.subr.bf16.mxu0 %v3975
  %5338 = vmatpush1.bf16.msra.mxu0 %v3974
  %5339 = vmatprep.mubr.bf16.mxu0 %v907
  %5340 = vmatmul.mubr.bf16.gmra.mrb[0].mxu0 %v906
  %v5341 = vpop.f32.mrb[0].mxu0
  %v5342 = vadd.f32 %v5301, %v5341
  %v5343 = vpop.f32.mrb[0].mxu0
  %v5344 = vadd.f32 %v5303, %v5343
  %v5345 = vpop.f32.mrb[0].mxu0
  %v5346 = vpop.f32.mrb[0].mxu0
  %5347 = vdwg.mxu0
  %5348 = vmatprep.subr.bf16.mxu0 %v3979
  %5349 = vmatpush1.bf16.msra.mxu0 %v3978
  %5350 = vmatprep.subr.bf16.mxu0 %v3983
  %5351 = vmatpush1.bf16.msra.mxu0 %v3982
  %5352 = vmatprep.subr.bf16.mxu0 %v3987
  %5353 = vmatpush1.bf16.msra.mxu0 %v3986
  %5354 = vmatprep.subr.bf16.mxu0 %v3991
  %5355 = vmatpush1.bf16.msra.mxu0 %v3990
  %5356 = vmatprep.subr.bf16.mxu0 %v3995
  %5357 = vmatpush1.bf16.msra.mxu0 %v3994
  %5358 = vmatprep.subr.bf16.mxu0 %v3999
  %5359 = vmatpush1.bf16.msra.mxu0 %v3998
  %5360 = vmatprep.subr.bf16.mxu0 %v4003
  %5361 = vmatpush1.bf16.msra.mxu0 %v4002
  %5362 = vmatprep.subr.bf16.mxu0 %v4007
  %5363 = vmatpush1.bf16.msra.mxu0 %v4006
  %5364 = vmatprep.subr.bf16.mxu0 %v4011
  %5365 = vmatpush1.bf16.msra.mxu0 %v4010
  %5366 = vmatprep.subr.bf16.mxu0 %v4015
  %5367 = vmatpush1.bf16.msra.mxu0 %v4014
  %5368 = vmatprep.subr.bf16.mxu0 %v4019
  %5369 = vmatpush1.bf16.msra.mxu0 %v4018
  %5370 = vmatprep.subr.bf16.mxu0 %v4023
  %5371 = vmatpush1.bf16.msra.mxu0 %v4022
  %5372 = vmatprep.subr.bf16.mxu0 %v4027
  %5373 = vmatpush1.bf16.msra.mxu0 %v4026
  %5374 = vmatprep.subr.bf16.mxu0 %v4031
  %5375 = vmatpush1.bf16.msra.mxu0 %v4030
  %5376 = vmatprep.subr.bf16.mxu0 %v4035
  %5377 = vmatpush1.bf16.msra.mxu0 %v4034
  %5378 = vmatprep.subr.bf16.mxu0 %v4039
  %5379 = vmatpush1.bf16.msra.mxu0 %v4038
  %5380 = vmatprep.mubr.bf16.mxu0 %v909
  %5381 = vmatmul.mubr.bf16.gmra.mrb[0].mxu0 %v908
  %v5382 = vpop.f32.mrb[0].mxu0
  %v5383 = vadd.f32 %v5342, %v5382
  %v5384 = vpop.f32.mrb[0].mxu0
  %v5385 = vadd.f32 %v5344, %v5384
  %v5386 = vpop.f32.mrb[0].mxu0
  %v5387 = vpop.f32.mrb[0].mxu0
  %5388 = vdwg.mxu0
  %5389 = vmatprep.subr.bf16.mxu0 %v4043
  %5390 = vmatpush1.bf16.msra.mxu0 %v4042
  %5391 = vmatprep.subr.bf16.mxu0 %v4047
  %5392 = vmatpush1.bf16.msra.mxu0 %v4046
  %5393 = vmatprep.subr.bf16.mxu0 %v4051
  %5394 = vmatpush1.bf16.msra.mxu0 %v4050
  %5395 = vmatprep.subr.bf16.mxu0 %v4055
  %5396 = vmatpush1.bf16.msra.mxu0 %v4054
  %5397 = vmatprep.subr.bf16.mxu0 %v4059
  %5398 = vmatpush1.bf16.msra.mxu0 %v4058
  %5399 = vmatprep.subr.bf16.mxu0 %v4063
  %5400 = vmatpush1.bf16.msra.mxu0 %v4062
  %5401 = vmatprep.subr.bf16.mxu0 %v4067
  %5402 = vmatpush1.bf16.msra.mxu0 %v4066
  %5403 = vmatprep.subr.bf16.mxu0 %v4071
  %5404 = vmatpush1.bf16.msra.mxu0 %v4070
  %5405 = vmatprep.subr.bf16.mxu0 %v4075
  %5406 = vmatpush1.bf16.msra.mxu0 %v4074
  %5407 = vmatprep.subr.bf16.mxu0 %v4079
  %5408 = vmatpush1.bf16.msra.mxu0 %v4078
  %5409 = vmatprep.subr.bf16.mxu0 %v4083
  %5410 = vmatpush1.bf16.msra.mxu0 %v4082
  %5411 = vmatprep.subr.bf16.mxu0 %v4087
  %5412 = vmatpush1.bf16.msra.mxu0 %v4086
  %5413 = vmatprep.subr.bf16.mxu0 %v4091
  %5414 = vmatpush1.bf16.msra.mxu0 %v4090
  %5415 = vmatprep.subr.bf16.mxu0 %v4095
  %5416 = vmatpush1.bf16.msra.mxu0 %v4094
  %5417 = vmatprep.subr.bf16.mxu0 %v4099
  %5418 = vmatpush1.bf16.msra.mxu0 %v4098
  %5419 = vmatprep.subr.bf16.mxu0 %v4103
  %5420 = vmatpush1.bf16.msra.mxu0 %v4102
  %5421 = vmatprep.mubr.bf16.mxu0 %v911
  %5422 = vmatmul.mubr.bf16.gmra.mrb[0].mxu0 %v910
  %v5423 = vpop.f32.mrb[0].mxu0
  %v5424 = vadd.f32 %v5383, %v5423
  %v5425 = vpop.f32.mrb[0].mxu0
  %v5426 = vadd.f32 %v5385, %v5425
  %v5427 = vpop.f32.mrb[0].mxu0
  %v5428 = vpop.f32.mrb[0].mxu0
  %5429 = vdwg.mxu0
  %5430 = vmatprep.subr.bf16.mxu0 %v4107
  %5431 = vmatpush1.bf16.msra.mxu0 %v4106
  %5432 = vmatprep.subr.bf16.mxu0 %v4111
  %5433 = vmatpush1.bf16.msra.mxu0 %v4110
  %5434 = vmatprep.subr.bf16.mxu0 %v4115
  %5435 = vmatpush1.bf16.msra.mxu0 %v4114
  %5436 = vmatprep.subr.bf16.mxu0 %v4119
  %5437 = vmatpush1.bf16.msra.mxu0 %v4118
  %5438 = vmatprep.subr.bf16.mxu0 %v4123
  %5439 = vmatpush1.bf16.msra.mxu0 %v4122
  %5440 = vmatprep.subr.bf16.mxu0 %v4127
  %5441 = vmatpush1.bf16.msra.mxu0 %v4126
  %5442 = vmatprep.subr.bf16.mxu0 %v4131
  %5443 = vmatpush1.bf16.msra.mxu0 %v4130
  %5444 = vmatprep.subr.bf16.mxu0 %v4135
  %5445 = vmatpush1.bf16.msra.mxu0 %v4134
  %5446 = vmatprep.subr.bf16.mxu0 0
  %5447 = vmatpush1.bf16.msra.mxu0 0
  %5448 = vmatprep.subr.bf16.mxu0 0
  %5449 = vmatpush1.bf16.msra.mxu0 0
  %5450 = vmatprep.subr.bf16.mxu0 0
  %5451 = vmatpush1.bf16.msra.mxu0 0
  %5452 = vmatprep.subr.bf16.mxu0 0
  %5453 = vmatpush1.bf16.msra.mxu0 0
  %5454 = vmatprep.subr.bf16.mxu0 0
  %5455 = vmatpush1.bf16.msra.mxu0 0
  %5456 = vmatprep.subr.bf16.mxu0 0
  %5457 = vmatpush1.bf16.msra.mxu0 0
  %5458 = vmatprep.subr.bf16.mxu0 0
  %5459 = vmatpush1.bf16.msra.mxu0 0
  %5460 = vmatprep.subr.bf16.mxu0 0
  %5461 = vmatpush1.bf16.msra.mxu0 0
  %5462 = vmatprep.mubr.bf16.mxu0 0
  %5463 = vmatmul.mubr.bf16.gmra.mrb[0].mxu0 %v912
  %v5464 = vpop.f32.mrb[0].mxu0
  %v5465 = vadd.f32 %v5424, %v5464
  %v5466 = vpop.f32.mrb[0].mxu0
  %v5467 = vadd.f32 %v5426, %v5466
  %v5468 = vpop.f32.mrb[0].mxu0
  %v5469 = vpop.f32.mrb[0].mxu0
  %5470 = vdwg.mxu0
  %5471 = vmatprep.subr.bf16.mxu0 %v3341
  %5472 = vmatpush1.bf16.msra.mxu0 %v3340
  %5473 = vmatprep.subr.bf16.mxu0 %v3345
  %5474 = vmatpush1.bf16.msra.mxu0 %v3344
  %5475 = vmatprep.subr.bf16.mxu0 %v3349
  %5476 = vmatpush1.bf16.msra.mxu0 %v3348
  %5477 = vmatprep.subr.bf16.mxu0 %v3353
  %5478 = vmatpush1.bf16.msra.mxu0 %v3352
  %5479 = vmatprep.subr.bf16.mxu0 %v3357
  %5480 = vmatpush1.bf16.msra.mxu0 %v3356
  %5481 = vmatprep.subr.bf16.mxu0 %v3361
  %5482 = vmatpush1.bf16.msra.mxu0 %v3360
  %5483 = vmatprep.subr.bf16.mxu0 %v3365
  %5484 = vmatpush1.bf16.msra.mxu0 %v3364
  %5485 = vmatprep.subr.bf16.mxu0 %v3369
  %5486 = vmatpush1.bf16.msra.mxu0 %v3368
  %5487 = vmatprep.subr.bf16.mxu0 %v3373
  %5488 = vmatpush1.bf16.msra.mxu0 %v3372
  %5489 = vmatprep.subr.bf16.mxu0 %v3377
  %5490 = vmatpush1.bf16.msra.mxu0 %v3376
  %5491 = vmatprep.subr.bf16.mxu0 %v3381
  %5492 = vmatpush1.bf16.msra.mxu0 %v3380
  %5493 = vmatprep.subr.bf16.mxu0 %v3385
  %5494 = vmatpush1.bf16.msra.mxu0 %v3384
  %5495 = vmatprep.subr.bf16.mxu0 %v3389
  %5496 = vmatpush1.bf16.msra.mxu0 %v3388
  %5497 = vmatprep.subr.bf16.mxu0 %v3393
  %5498 = vmatpush1.bf16.msra.mxu0 %v3392
  %5499 = vmatprep.subr.bf16.mxu0 %v3397
  %5500 = vmatpush1.bf16.msra.mxu0 %v3396
  %5501 = vmatprep.subr.bf16.mxu0 %v3401
  %5502 = vmatpush1.bf16.msra.mxu0 %v3400
  %5503 = vmatprep.mubr.bf16.mxu0 %v889
  %5504 = vmatmul.mubr.bf16.gmra.mrb[0].mxu0 %v888
  %v5505 = vpop.f32.mrb[0].mxu0
  %v5506 = vadd.f32 %v841, %v5505
  %v5507 = vpop.f32.mrb[0].mxu0
  %v5508 = vadd.f32 %v845, %v5507
  %v5509 = vpop.f32.mrb[0].mxu0
  %v5510 = vpop.f32.mrb[0].mxu0
  %5511 = vdwg.mxu0
  %5512 = vmatprep.subr.bf16.mxu0 %v3405
  %5513 = vmatpush1.bf16.msra.mxu0 %v3404
  %5514 = vmatprep.subr.bf16.mxu0 %v3409
  %5515 = vmatpush1.bf16.msra.mxu0 %v3408
  %5516 = vmatprep.subr.bf16.mxu0 %v3413
  %5517 = vmatpush1.bf16.msra.mxu0 %v3412
  %5518 = vmatprep.subr.bf16.mxu0 %v3417
  %5519 = vmatpush1.bf16.msra.mxu0 %v3416
  %5520 = vmatprep.subr.bf16.mxu0 %v3421
  %5521 = vmatpush1.bf16.msra.mxu0 %v3420
  %5522 = vmatprep.subr.bf16.mxu0 %v3425
  %5523 = vmatpush1.bf16.msra.mxu0 %v3424
  %5524 = vmatprep.subr.bf16.mxu0 %v3429
  %5525 = vmatpush1.bf16.msra.mxu0 %v3428
  %5526 = vmatprep.subr.bf16.mxu0 %v3433
  %5527 = vmatpush1.bf16.msra.mxu0 %v3432
  %5528 = vmatprep.subr.bf16.mxu0 %v3437
  %5529 = vmatpush1.bf16.msra.mxu0 %v3436
  %5530 = vmatprep.subr.bf16.mxu0 %v3441
  %5531 = vmatpush1.bf16.msra.mxu0 %v3440
  %5532 = vmatprep.subr.bf16.mxu0 %v3445
  %5533 = vmatpush1.bf16.msra.mxu0 %v3444
  %5534 = vmatprep.subr.bf16.mxu0 %v3449
  %5535 = vmatpush1.bf16.msra.mxu0 %v3448
  %5536 = vmatprep.subr.bf16.mxu0 %v3453
  %5537 = vmatpush1.bf16.msra.mxu0 %v3452
  %5538 = vmatprep.subr.bf16.mxu0 %v3457
  %5539 = vmatpush1.bf16.msra.mxu0 %v3456
  %5540 = vmatprep.subr.bf16.mxu0 %v3461
  %5541 = vmatpush1.bf16.msra.mxu0 %v3460
  %5542 = vmatprep.subr.bf16.mxu0 %v3465
  %5543 = vmatpush1.bf16.msra.mxu0 %v3464
  %5544 = vmatprep.mubr.bf16.mxu0 %v891
  %5545 = vmatmul.mubr.bf16.gmra.mrb[0].mxu0 %v890
  %v5546 = vpop.f32.mrb[0].mxu0
  %v5547 = vadd.f32 %v5506, %v5546
  %v5548 = vpop.f32.mrb[0].mxu0
  %v5549 = vadd.f32 %v5508, %v5548
  %v5550 = vpop.f32.mrb[0].mxu0
  %v5551 = vpop.f32.mrb[0].mxu0
  %5552 = vdwg.mxu0
  %5553 = vmatprep.subr.bf16.mxu0 %v3469
  %5554 = vmatpush1.bf16.msra.mxu0 %v3468
  %5555 = vmatprep.subr.bf16.mxu0 %v3473
  %5556 = vmatpush1.bf16.msra.mxu0 %v3472
  %5557 = vmatprep.subr.bf16.mxu0 %v3477
  %5558 = vmatpush1.bf16.msra.mxu0 %v3476
  %5559 = vmatprep.subr.bf16.mxu0 %v3481
  %5560 = vmatpush1.bf16.msra.mxu0 %v3480
  %5561 = vmatprep.subr.bf16.mxu0 %v3485
  %5562 = vmatpush1.bf16.msra.mxu0 %v3484
  %5563 = vmatprep.subr.bf16.mxu0 %v3489
  %5564 = vmatpush1.bf16.msra.mxu0 %v3488
  %5565 = vmatprep.subr.bf16.mxu0 %v3493
  %5566 = vmatpush1.bf16.msra.mxu0 %v3492
  %5567 = vmatprep.subr.bf16.mxu0 %v3497
  %5568 = vmatpush1.bf16.msra.mxu0 %v3496
  %5569 = vmatprep.subr.bf16.mxu0 %v3501
  %5570 = vmatpush1.bf16.msra.mxu0 %v3500
  %5571 = vmatprep.subr.bf16.mxu0 %v3505
  %5572 = vmatpush1.bf16.msra.mxu0 %v3504
  %5573 = vmatprep.subr.bf16.mxu0 %v3509
  %5574 = vmatpush1.bf16.msra.mxu0 %v3508
  %5575 = vmatprep.subr.bf16.mxu0 %v3513
  %5576 = vmatpush1.bf16.msra.mxu0 %v3512
  %5577 = vmatprep.subr.bf16.mxu0 %v3517
  %5578 = vmatpush1.bf16.msra.mxu0 %v3516
  %5579 = vmatprep.subr.bf16.mxu0 %v3521
  %5580 = vmatpush1.bf16.msra.mxu0 %v3520
  %5581 = vmatprep.subr.bf16.mxu0 %v3525
  %5582 = vmatpush1.bf16.msra.mxu0 %v3524
  %5583 = vmatprep.subr.bf16.mxu0 %v3529
  %5584 = vmatpush1.bf16.msra.mxu0 %v3528
  %5585 = vmatprep.mubr.bf16.mxu0 %v893
  %5586 = vmatmul.mubr.bf16.gmra.mrb[0].mxu0 %v892
  %v5587 = vpop.f32.mrb[0].mxu0
  %v5588 = vadd.f32 %v5547, %v5587
  %v5589 = vpop.f32.mrb[0].mxu0
  %v5590 = vadd.f32 %v5549, %v5589
  %v5591 = vpop.f32.mrb[0].mxu0
  %v5592 = vpop.f32.mrb[0].mxu0
  %5593 = vdwg.mxu0
  %5594 = vmatprep.subr.bf16.mxu0 %v3533
  %5595 = vmatpush1.bf16.msra.mxu0 %v3532
  %5596 = vmatprep.subr.bf16.mxu0 %v3537
  %5597 = vmatpush1.bf16.msra.mxu0 %v3536
  %5598 = vmatprep.subr.bf16.mxu0 %v3541
  %5599 = vmatpush1.bf16.msra.mxu0 %v3540
  %5600 = vmatprep.subr.bf16.mxu0 %v3545
  %5601 = vmatpush1.bf16.msra.mxu0 %v3544
  %5602 = vmatprep.subr.bf16.mxu0 %v3549
  %5603 = vmatpush1.bf16.msra.mxu0 %v3548
  %5604 = vmatprep.subr.bf16.mxu0 %v3553
  %5605 = vmatpush1.bf16.msra.mxu0 %v3552
  %5606 = vmatprep.subr.bf16.mxu0 %v3557
  %5607 = vmatpush1.bf16.msra.mxu0 %v3556
  %5608 = vmatprep.subr.bf16.mxu0 %v3561
  %5609 = vmatpush1.bf16.msra.mxu0 %v3560
  %5610 = vmatprep.subr.bf16.mxu0 %v3565
  %5611 = vmatpush1.bf16.msra.mxu0 %v3564
  %5612 = vmatprep.subr.bf16.mxu0 %v3569
  %5613 = vmatpush1.bf16.msra.mxu0 %v3568
  %5614 = vmatprep.subr.bf16.mxu0 %v3573
  %5615 = vmatpush1.bf16.msra.mxu0 %v3572
  %5616 = vmatprep.subr.bf16.mxu0 %v3577
  %5617 = vmatpush1.bf16.msra.mxu0 %v3576
  %5618 = vmatprep.subr.bf16.mxu0 %v3581
  %5619 = vmatpush1.bf16.msra.mxu0 %v3580
  %5620 = vmatprep.subr.bf16.mxu0 %v3585
  %5621 = vmatpush1.bf16.msra.mxu0 %v3584
  %5622 = vmatprep.subr.bf16.mxu0 %v3589
  %5623 = vmatpush1.bf16.msra.mxu0 %v3588
  %5624 = vmatprep.subr.bf16.mxu0 %v3593
  %5625 = vmatpush1.bf16.msra.mxu0 %v3592
  %5626 = vmatprep.mubr.bf16.mxu0 %v895
  %5627 = vmatmul.mubr.bf16.gmra.mrb[0].mxu0 %v894
  %v5628 = vpop.f32.mrb[0].mxu0
  %v5629 = vadd.f32 %v5588, %v5628
  %v5630 = vpop.f32.mrb[0].mxu0
  %v5631 = vadd.f32 %v5590, %v5630
  %v5632 = vpop.f32.mrb[0].mxu0
  %v5633 = vpop.f32.mrb[0].mxu0
  %5634 = vdwg.mxu0
  %5635 = vmatprep.subr.bf16.mxu0 %v3597
  %5636 = vmatpush1.bf16.msra.mxu0 %v3596
  %5637 = vmatprep.subr.bf16.mxu0 %v3601
  %5638 = vmatpush1.bf16.msra.mxu0 %v3600
  %5639 = vmatprep.subr.bf16.mxu0 %v3605
  %5640 = vmatpush1.bf16.msra.mxu0 %v3604
  %5641 = vmatprep.subr.bf16.mxu0 %v3609
  %5642 = vmatpush1.bf16.msra.mxu0 %v3608
  %5643 = vmatprep.subr.bf16.mxu0 %v3613
  %5644 = vmatpush1.bf16.msra.mxu0 %v3612
  %5645 = vmatprep.subr.bf16.mxu0 %v3617
  %5646 = vmatpush1.bf16.msra.mxu0 %v3616
  %5647 = vmatprep.subr.bf16.mxu0 %v3621
  %5648 = vmatpush1.bf16.msra.mxu0 %v3620
  %5649 = vmatprep.subr.bf16.mxu0 %v3625
  %5650 = vmatpush1.bf16.msra.mxu0 %v3624
  %5651 = vmatprep.subr.bf16.mxu0 %v3629
  %5652 = vmatpush1.bf16.msra.mxu0 %v3628
  %5653 = vmatprep.subr.bf16.mxu0 %v3633
  %5654 = vmatpush1.bf16.msra.mxu0 %v3632
  %5655 = vmatprep.subr.bf16.mxu0 %v3637
  %5656 = vmatpush1.bf16.msra.mxu0 %v3636
  %5657 = vmatprep.subr.bf16.mxu0 %v3641
  %5658 = vmatpush1.bf16.msra.mxu0 %v3640
  %5659 = vmatprep.subr.bf16.mxu0 %v3645
  %5660 = vmatpush1.bf16.msra.mxu0 %v3644
  %5661 = vmatprep.subr.bf16.mxu0 %v3649
  %5662 = vmatpush1.bf16.msra.mxu0 %v3648
  %5663 = vmatprep.subr.bf16.mxu0 %v3653
  %5664 = vmatpush1.bf16.msra.mxu0 %v3652
  %5665 = vmatprep.subr.bf16.mxu0 %v3657
  %5666 = vmatpush1.bf16.msra.mxu0 %v3656
  %5667 = vmatprep.mubr.bf16.mxu0 %v897
  %5668 = vmatmul.mubr.bf16.gmra.mrb[0].mxu0 %v896
  %v5669 = vpop.f32.mrb[0].mxu0
  %v5670 = vadd.f32 %v5629, %v5669
  %v5671 = vpop.f32.mrb[0].mxu0
  %v5672 = vadd.f32 %v5631, %v5671
  %v5673 = vpop.f32.mrb[0].mxu0
  %v5674 = vpop.f32.mrb[0].mxu0
  %5675 = vdwg.mxu0
  %5676 = vmatprep.subr.bf16.mxu0 %v3661
  %5677 = vmatpush1.bf16.msra.mxu0 %v3660
  %5678 = vmatprep.subr.bf16.mxu0 %v3665
  %5679 = vmatpush1.bf16.msra.mxu0 %v3664
  %5680 = vmatprep.subr.bf16.mxu0 %v3669
  %5681 = vmatpush1.bf16.msra.mxu0 %v3668
  %5682 = vmatprep.subr.bf16.mxu0 %v3673
  %5683 = vmatpush1.bf16.msra.mxu0 %v3672
  %5684 = vmatprep.subr.bf16.mxu0 %v3677
  %5685 = vmatpush1.bf16.msra.mxu0 %v3676
  %5686 = vmatprep.subr.bf16.mxu0 %v3681
  %5687 = vmatpush1.bf16.msra.mxu0 %v3680
  %5688 = vmatprep.subr.bf16.mxu0 %v3685
  %5689 = vmatpush1.bf16.msra.mxu0 %v3684
  %5690 = vmatprep.subr.bf16.mxu0 %v3689
  %5691 = vmatpush1.bf16.msra.mxu0 %v3688
  %5692 = vmatprep.subr.bf16.mxu0 %v3693
  %5693 = vmatpush1.bf16.msra.mxu0 %v3692
  %5694 = vmatprep.subr.bf16.mxu0 %v3697
  %5695 = vmatpush1.bf16.msra.mxu0 %v3696
  %5696 = vmatprep.subr.bf16.mxu0 %v3701
  %5697 = vmatpush1.bf16.msra.mxu0 %v3700
  %5698 = vmatprep.subr.bf16.mxu0 %v3705
  %5699 = vmatpush1.bf16.msra.mxu0 %v3704
  %5700 = vmatprep.subr.bf16.mxu0 %v3709
  %5701 = vmatpush1.bf16.msra.mxu0 %v3708
  %5702 = vmatprep.subr.bf16.mxu0 %v3713
  %5703 = vmatpush1.bf16.msra.mxu0 %v3712
  %5704 = vmatprep.subr.bf16.mxu0 %v3717
  %5705 = vmatpush1.bf16.msra.mxu0 %v3716
  %5706 = vmatprep.subr.bf16.mxu0 %v3721
  %5707 = vmatpush1.bf16.msra.mxu0 %v3720
  %5708 = vmatprep.mubr.bf16.mxu0 %v899
  %5709 = vmatmul.mubr.bf16.gmra.mrb[0].mxu0 %v898
  %v5710 = vpop.f32.mrb[0].mxu0
  %v5711 = vadd.f32 %v5670, %v5710
  %v5712 = vpop.f32.mrb[0].mxu0
  %v5713 = vadd.f32 %v5672, %v5712
  %v5714 = vpop.f32.mrb[0].mxu0
  %v5715 = vpop.f32.mrb[0].mxu0
  %5716 = vdwg.mxu0
  %5717 = vmatprep.subr.bf16.mxu0 %v3725
  %5718 = vmatpush1.bf16.msra.mxu0 %v3724
  %5719 = vmatprep.subr.bf16.mxu0 %v3729
  %5720 = vmatpush1.bf16.msra.mxu0 %v3728
  %5721 = vmatprep.subr.bf16.mxu0 %v3733
  %5722 = vmatpush1.bf16.msra.mxu0 %v3732
  %5723 = vmatprep.subr.bf16.mxu0 %v3737
  %5724 = vmatpush1.bf16.msra.mxu0 %v3736
  %5725 = vmatprep.subr.bf16.mxu0 %v3741
  %5726 = vmatpush1.bf16.msra.mxu0 %v3740
  %5727 = vmatprep.subr.bf16.mxu0 %v3745
  %5728 = vmatpush1.bf16.msra.mxu0 %v3744
  %5729 = vmatprep.subr.bf16.mxu0 %v3749
  %5730 = vmatpush1.bf16.msra.mxu0 %v3748
  %5731 = vmatprep.subr.bf16.mxu0 %v3753
  %5732 = vmatpush1.bf16.msra.mxu0 %v3752
  %5733 = vmatprep.subr.bf16.mxu0 %v3757
  %5734 = vmatpush1.bf16.msra.mxu0 %v3756
  %5735 = vmatprep.subr.bf16.mxu0 %v3761
  %5736 = vmatpush1.bf16.msra.mxu0 %v3760
  %5737 = vmatprep.subr.bf16.mxu0 %v3765
  %5738 = vmatpush1.bf16.msra.mxu0 %v3764
  %5739 = vmatprep.subr.bf16.mxu0 %v3769
  %5740 = vmatpush1.bf16.msra.mxu0 %v3768
  %5741 = vmatprep.subr.bf16.mxu0 %v3773
  %5742 = vmatpush1.bf16.msra.mxu0 %v3772
  %5743 = vmatprep.subr.bf16.mxu0 %v3777
  %5744 = vmatpush1.bf16.msra.mxu0 %v3776
  %5745 = vmatprep.subr.bf16.mxu0 %v3781
  %5746 = vmatpush1.bf16.msra.mxu0 %v3780
  %5747 = vmatprep.subr.bf16.mxu0 %v3785
  %5748 = vmatpush1.bf16.msra.mxu0 %v3784
  %5749 = vmatprep.mubr.bf16.mxu0 %v901
  %5750 = vmatmul.mubr.bf16.gmra.mrb[0].mxu0 %v900
  %v5751 = vpop.f32.mrb[0].mxu0
  %v5752 = vadd.f32 %v5711, %v5751
  %v5753 = vpop.f32.mrb[0].mxu0
  %v5754 = vadd.f32 %v5713, %v5753
  %v5755 = vpop.f32.mrb[0].mxu0
  %v5756 = vpop.f32.mrb[0].mxu0
  %5757 = vdwg.mxu0
  %5758 = vmatprep.subr.bf16.mxu0 %v3789
  %5759 = vmatpush1.bf16.msra.mxu0 %v3788
  %5760 = vmatprep.subr.bf16.mxu0 %v3793
  %5761 = vmatpush1.bf16.msra.mxu0 %v3792
  %5762 = vmatprep.subr.bf16.mxu0 %v3797
  %5763 = vmatpush1.bf16.msra.mxu0 %v3796
  %5764 = vmatprep.subr.bf16.mxu0 %v3801
  %5765 = vmatpush1.bf16.msra.mxu0 %v3800
  %5766 = vmatprep.subr.bf16.mxu0 %v3805
  %5767 = vmatpush1.bf16.msra.mxu0 %v3804
  %5768 = vmatprep.subr.bf16.mxu0 %v3809
  %5769 = vmatpush1.bf16.msra.mxu0 %v3808
  %5770 = vmatprep.subr.bf16.mxu0 %v3813
  %5771 = vmatpush1.bf16.msra.mxu0 %v3812
  %5772 = vmatprep.subr.bf16.mxu0 %v3817
  %5773 = vmatpush1.bf16.msra.mxu0 %v3816
  %5774 = vmatprep.subr.bf16.mxu0 %v3821
  %5775 = vmatpush1.bf16.msra.mxu0 %v3820
  %5776 = vmatprep.subr.bf16.mxu0 %v3825
  %5777 = vmatpush1.bf16.msra.mxu0 %v3824
  %5778 = vmatprep.subr.bf16.mxu0 %v3829
  %5779 = vmatpush1.bf16.msra.mxu0 %v3828
  %5780 = vmatprep.subr.bf16.mxu0 %v3833
  %5781 = vmatpush1.bf16.msra.mxu0 %v3832
  %5782 = vmatprep.subr.bf16.mxu0 %v3837
  %5783 = vmatpush1.bf16.msra.mxu0 %v3836
  %5784 = vmatprep.subr.bf16.mxu0 %v3841
  %5785 = vmatpush1.bf16.msra.mxu0 %v3840
  %5786 = vmatprep.subr.bf16.mxu0 %v3845
  %5787 = vmatpush1.bf16.msra.mxu0 %v3844
  %5788 = vmatprep.subr.bf16.mxu0 %v3849
  %5789 = vmatpush1.bf16.msra.mxu0 %v3848
  %5790 = vmatprep.mubr.bf16.mxu0 %v903
  %5791 = vmatmul.mubr.bf16.gmra.mrb[0].mxu0 %v902
  %v5792 = vpop.f32.mrb[0].mxu0
  %v5793 = vadd.f32 %v5752, %v5792
  %v5794 = vpop.f32.mrb[0].mxu0
  %v5795 = vadd.f32 %v5754, %v5794
  %v5796 = vpop.f32.mrb[0].mxu0
  %v5797 = vpop.f32.mrb[0].mxu0
  %5798 = vdwg.mxu0
  %5799 = vmatprep.subr.bf16.mxu0 %v3853
  %5800 = vmatpush1.bf16.msra.mxu0 %v3852
  %5801 = vmatprep.subr.bf16.mxu0 %v3857
  %5802 = vmatpush1.bf16.msra.mxu0 %v3856
  %5803 = vmatprep.subr.bf16.mxu0 %v3861
  %5804 = vmatpush1.bf16.msra.mxu0 %v3860
  %5805 = vmatprep.subr.bf16.mxu0 %v3865
  %5806 = vmatpush1.bf16.msra.mxu0 %v3864
  %5807 = vmatprep.subr.bf16.mxu0 %v3869
  %5808 = vmatpush1.bf16.msra.mxu0 %v3868
  %5809 = vmatprep.subr.bf16.mxu0 %v3873
  %5810 = vmatpush1.bf16.msra.mxu0 %v3872
  %5811 = vmatprep.subr.bf16.mxu0 %v3877
  %5812 = vmatpush1.bf16.msra.mxu0 %v3876
  %5813 = vmatprep.subr.bf16.mxu0 %v3881
  %5814 = vmatpush1.bf16.msra.mxu0 %v3880
  %5815 = vmatprep.subr.bf16.mxu0 %v3885
  %5816 = vmatpush1.bf16.msra.mxu0 %v3884
  %5817 = vmatprep.subr.bf16.mxu0 %v3889
  %5818 = vmatpush1.bf16.msra.mxu0 %v3888
  %5819 = vmatprep.subr.bf16.mxu0 %v3893
  %5820 = vmatpush1.bf16.msra.mxu0 %v3892
  %5821 = vmatprep.subr.bf16.mxu0 %v3897
  %5822 = vmatpush1.bf16.msra.mxu0 %v3896
  %5823 = vmatprep.subr.bf16.mxu0 %v3901
  %5824 = vmatpush1.bf16.msra.mxu0 %v3900
  %5825 = vmatprep.subr.bf16.mxu0 %v3905
  %5826 = vmatpush1.bf16.msra.mxu0 %v3904
  %5827 = vmatprep.subr.bf16.mxu0 %v3909
  %5828 = vmatpush1.bf16.msra.mxu0 %v3908
  %5829 = vmatprep.subr.bf16.mxu0 %v3913
  %5830 = vmatpush1.bf16.msra.mxu0 %v3912
  %5831 = vmatprep.mubr.bf16.mxu0 %v905
  %5832 = vmatmul.mubr.bf16.gmra.mrb[0].mxu0 %v904
  %v5833 = vpop.f32.mrb[0].mxu0
  %v5834 = vadd.f32 %v5793, %v5833
  %v5835 = vpop.f32.mrb[0].mxu0
  %v5836 = vadd.f32 %v5795, %v5835
  %v5837 = vpop.f32.mrb[0].mxu0
  %v5838 = vpop.f32.mrb[0].mxu0
  %5839 = vdwg.mxu0
  %5840 = vmatprep.subr.bf16.mxu0 %v3917
  %5841 = vmatpush1.bf16.msra.mxu0 %v3916
  %5842 = vmatprep.subr.bf16.mxu0 %v3921
  %5843 = vmatpush1.bf16.msra.mxu0 %v3920
  %5844 = vmatprep.subr.bf16.mxu0 %v3925
  %5845 = vmatpush1.bf16.msra.mxu0 %v3924
  %5846 = vmatprep.subr.bf16.mxu0 %v3929
  %5847 = vmatpush1.bf16.msra.mxu0 %v3928
  %5848 = vmatprep.subr.bf16.mxu0 %v3933
  %5849 = vmatpush1.bf16.msra.mxu0 %v3932
  %5850 = vmatprep.subr.bf16.mxu0 %v3937
  %5851 = vmatpush1.bf16.msra.mxu0 %v3936
  %5852 = vmatprep.subr.bf16.mxu0 %v3941
  %5853 = vmatpush1.bf16.msra.mxu0 %v3940
  %5854 = vmatprep.subr.bf16.mxu0 %v3945
  %5855 = vmatpush1.bf16.msra.mxu0 %v3944
  %5856 = vmatprep.subr.bf16.mxu0 %v3949
  %5857 = vmatpush1.bf16.msra.mxu0 %v3948
  %5858 = vmatprep.subr.bf16.mxu0 %v3953
  %5859 = vmatpush1.bf16.msra.mxu0 %v3952
  %5860 = vmatprep.subr.bf16.mxu0 %v3957
  %5861 = vmatpush1.bf16.msra.mxu0 %v3956
  %5862 = vmatprep.subr.bf16.mxu0 %v3961
  %5863 = vmatpush1.bf16.msra.mxu0 %v3960
  %5864 = vmatprep.subr.bf16.mxu0 %v3965
  %5865 = vmatpush1.bf16.msra.mxu0 %v3964
  %5866 = vmatprep.subr.bf16.mxu0 %v3969
  %5867 = vmatpush1.bf16.msra.mxu0 %v3968
  %5868 = vmatprep.subr.bf16.mxu0 %v3973
  %5869 = vmatpush1.bf16.msra.mxu0 %v3972
  %5870 = vmatprep.subr.bf16.mxu0 %v3977
  %5871 = vmatpush1.bf16.msra.mxu0 %v3976
  %5872 = vmatprep.mubr.bf16.mxu0 %v907
  %5873 = vmatmul.mubr.bf16.gmra.mrb[0].mxu0 %v906
  %v5874 = vpop.f32.mrb[0].mxu0
  %v5875 = vadd.f32 %v5834, %v5874
  %v5876 = vpop.f32.mrb[0].mxu0
  %v5877 = vadd.f32 %v5836, %v5876
  %v5878 = vpop.f32.mrb[0].mxu0
  %v5879 = vpop.f32.mrb[0].mxu0
  %5880 = vdwg.mxu0
  %5881 = vmatprep.subr.bf16.mxu0 %v3981
  %5882 = vmatpush1.bf16.msra.mxu0 %v3980
  %5883 = vmatprep.subr.bf16.mxu0 %v3985
  %5884 = vmatpush1.bf16.msra.mxu0 %v3984
  %5885 = vmatprep.subr.bf16.mxu0 %v3989
  %5886 = vmatpush1.bf16.msra.mxu0 %v3988
  %5887 = vmatprep.subr.bf16.mxu0 %v3993
  %5888 = vmatpush1.bf16.msra.mxu0 %v3992
  %5889 = vmatprep.subr.bf16.mxu0 %v3997
  %5890 = vmatpush1.bf16.msra.mxu0 %v3996
  %5891 = vmatprep.subr.bf16.mxu0 %v4001
  %5892 = vmatpush1.bf16.msra.mxu0 %v4000
  %5893 = vmatprep.subr.bf16.mxu0 %v4005
  %5894 = vmatpush1.bf16.msra.mxu0 %v4004
  %5895 = vmatprep.subr.bf16.mxu0 %v4009
  %5896 = vmatpush1.bf16.msra.mxu0 %v4008
  %5897 = vmatprep.subr.bf16.mxu0 %v4013
  %5898 = vmatpush1.bf16.msra.mxu0 %v4012
  %5899 = vmatprep.subr.bf16.mxu0 %v4017
  %5900 = vmatpush1.bf16.msra.mxu0 %v4016
  %5901 = vmatprep.subr.bf16.mxu0 %v4021
  %5902 = vmatpush1.bf16.msra.mxu0 %v4020
  %5903 = vmatprep.subr.bf16.mxu0 %v4025
  %5904 = vmatpush1.bf16.msra.mxu0 %v4024
  %5905 = vmatprep.subr.bf16.mxu0 %v4029
  %5906 = vmatpush1.bf16.msra.mxu0 %v4028
  %5907 = vmatprep.subr.bf16.mxu0 %v4033
  %5908 = vmatpush1.bf16.msra.mxu0 %v4032
  %5909 = vmatprep.subr.bf16.mxu0 %v4037
  %5910 = vmatpush1.bf16.msra.mxu0 %v4036
  %5911 = vmatprep.subr.bf16.mxu0 %v4041
  %5912 = vmatpush1.bf16.msra.mxu0 %v4040
  %5913 = vmatprep.mubr.bf16.mxu0 %v909
  %5914 = vmatmul.mubr.bf16.gmra.mrb[0].mxu0 %v908
  %v5915 = vpop.f32.mrb[0].mxu0
  %v5916 = vadd.f32 %v5875, %v5915
  %v5917 = vpop.f32.mrb[0].mxu0
  %v5918 = vadd.f32 %v5877, %v5917
  %v5919 = vpop.f32.mrb[0].mxu0
  %v5920 = vpop.f32.mrb[0].mxu0
  %5921 = vdwg.mxu0
  %5922 = vmatprep.subr.bf16.mxu0 %v4045
  %5923 = vmatpush1.bf16.msra.mxu0 %v4044
  %5924 = vmatprep.subr.bf16.mxu0 %v4049
  %5925 = vmatpush1.bf16.msra.mxu0 %v4048
  %5926 = vmatprep.subr.bf16.mxu0 %v4053
  %5927 = vmatpush1.bf16.msra.mxu0 %v4052
  %5928 = vmatprep.subr.bf16.mxu0 %v4057
  %5929 = vmatpush1.bf16.msra.mxu0 %v4056
  %5930 = vmatprep.subr.bf16.mxu0 %v4061
  %5931 = vmatpush1.bf16.msra.mxu0 %v4060
  %5932 = vmatprep.subr.bf16.mxu0 %v4065
  %5933 = vmatpush1.bf16.msra.mxu0 %v4064
  %5934 = vmatprep.subr.bf16.mxu0 %v4069
  %5935 = vmatpush1.bf16.msra.mxu0 %v4068
  %5936 = vmatprep.subr.bf16.mxu0 %v4073
  %5937 = vmatpush1.bf16.msra.mxu0 %v4072
  %5938 = vmatprep.subr.bf16.mxu0 %v4077
  %5939 = vmatpush1.bf16.msra.mxu0 %v4076
  %5940 = vmatprep.subr.bf16.mxu0 %v4081
  %5941 = vmatpush1.bf16.msra.mxu0 %v4080
  %5942 = vmatprep.subr.bf16.mxu0 %v4085
  %5943 = vmatpush1.bf16.msra.mxu0 %v4084
  %5944 = vmatprep.subr.bf16.mxu0 %v4089
  %5945 = vmatpush1.bf16.msra.mxu0 %v4088
  %5946 = vmatprep.subr.bf16.mxu0 %v4093
  %5947 = vmatpush1.bf16.msra.mxu0 %v4092
  %5948 = vmatprep.subr.bf16.mxu0 %v4097
  %5949 = vmatpush1.bf16.msra.mxu0 %v4096
  %5950 = vmatprep.subr.bf16.mxu0 %v4101
  %5951 = vmatpush1.bf16.msra.mxu0 %v4100
  %5952 = vmatprep.subr.bf16.mxu0 %v4105
  %5953 = vmatpush1.bf16.msra.mxu0 %v4104
  %5954 = vmatprep.mubr.bf16.mxu0 %v911
  %5955 = vmatmul.mubr.bf16.gmra.mrb[0].mxu0 %v910
  %v5956 = vpop.f32.mrb[0].mxu0
  %v5957 = vadd.f32 %v5916, %v5956
  %v5958 = vpop.f32.mrb[0].mxu0
  %v5959 = vadd.f32 %v5918, %v5958
  %v5960 = vpop.f32.mrb[0].mxu0
  %v5961 = vpop.f32.mrb[0].mxu0
  %5962 = vdwg.mxu0
  %5963 = vmatprep.subr.bf16.mxu0 %v4109
  %5964 = vmatpush1.bf16.msra.mxu0 %v4108
  %5965 = vmatprep.subr.bf16.mxu0 %v4113
  %5966 = vmatpush1.bf16.msra.mxu0 %v4112
  %5967 = vmatprep.subr.bf16.mxu0 %v4117
  %5968 = vmatpush1.bf16.msra.mxu0 %v4116
  %5969 = vmatprep.subr.bf16.mxu0 %v4121
  %5970 = vmatpush1.bf16.msra.mxu0 %v4120
  %5971 = vmatprep.subr.bf16.mxu0 %v4125
  %5972 = vmatpush1.bf16.msra.mxu0 %v4124
  %5973 = vmatprep.subr.bf16.mxu0 %v4129
  %5974 = vmatpush1.bf16.msra.mxu0 %v4128
  %5975 = vmatprep.subr.bf16.mxu0 %v4133
  %5976 = vmatpush1.bf16.msra.mxu0 %v4132
  %5977 = vmatprep.subr.bf16.mxu0 %v4137
  %5978 = vmatpush1.bf16.msra.mxu0 %v4136
  %5979 = vmatprep.subr.bf16.mxu0 0
  %5980 = vmatpush1.bf16.msra.mxu0 0
  %5981 = vmatprep.subr.bf16.mxu0 0
  %5982 = vmatpush1.bf16.msra.mxu0 0
  %5983 = vmatprep.subr.bf16.mxu0 0
  %5984 = vmatpush1.bf16.msra.mxu0 0
  %5985 = vmatprep.subr.bf16.mxu0 0
  %5986 = vmatpush1.bf16.msra.mxu0 0
  %5987 = vmatprep.subr.bf16.mxu0 0
  %5988 = vmatpush1.bf16.msra.mxu0 0
  %5989 = vmatprep.subr.bf16.mxu0 0
  %5990 = vmatpush1.bf16.msra.mxu0 0
  %5991 = vmatprep.subr.bf16.mxu0 0
  %5992 = vmatpush1.bf16.msra.mxu0 0
  %5993 = vmatprep.subr.bf16.mxu0 0
  %5994 = vmatpush1.bf16.msra.mxu0 0
  %5995 = vmatprep.mubr.bf16.mxu0 0
  %5996 = vmatmul.mubr.bf16.gmra.mrb[0].mxu0 %v912
  %v5997 = vpop.f32.mrb[0].mxu0
  %v5998 = vadd.f32 %v5957, %v5997
  %v5999 = vpop.f32.mrb[0].mxu0
  %v6000 = vadd.f32 %v5959, %v5999
  %v6001 = vpop.f32.mrb[0].mxu0
  %v6002 = vpop.f32.mrb[0].mxu0
  %6003 = vdwg.mxu0
  %6004 = vst [vmem:[%s3] sm:$0xff] %v5465
  %6005 = vst [vmem:[%s3 + $0x8] sm:$0xff] %v5467
  %6006 = vst [vmem:[%s3 + $0x10] sm:$0xff] %v5998
  %6007 = vst [vmem:[%s3 + $0x18] sm:$0xff] %v6000
  // Predicated region
  $region14: #{_forward_dense.8} parent=0 // pred_check
    _
  $region15: #{_forward_dense.8} parent=0 // pred_check_branch
    %6009 = sbr.rel (0) target = $region17
  $region16: #{_forward_dense.8} parent=0 // pred_region
    _
  $region17: #{_forward_dense.8} parent=0 // pred_fallthru
    _
  // Predicated region
  $region18: #{_forward_dense.8} parent=0 // pred_check
    _
  $region19: #{_forward_dense.8} parent=0 // pred_check_branch
    %6011 = sbr.rel (0) target = $region21
  $region20: #{_forward_dense.8} parent=0 // pred_region
    _
  $region21: #{_forward_dense.8} parent=0 // pred_fallthru
    _

// kernel: _forward_dense.10
$region0: #{_forward_dense.10}
  #allocation0 [shape = 'u32[]', space=smem, size = 0x4, offset = 0x4, fixed_abs, tag = 'smem constant byte address 0x4 - core index']
  #allocation1 [shape = 'u32[144,128]{1,0:T(1,128)}', space=vmem, size = 0x12000, scoped, tag = 'internal scratch']
  %s0 = inlined_call_operand.vmem [shape: f32[8,8,384], index: 0, kind: input, shape index: {}]
  %s1 = inlined_call_operand.vmem [shape: bf16[128,384], index: 1, kind: input, shape index: {}]
  %s2 = inlined_call_operand.vmem [shape: f32[1,384], index: 2, kind: input, shape index: {}]
  %s3 = inlined_call_operand.vmem [shape: bf16[128,384], index: 3, kind: input, shape index: {}]
  %s4 = inlined_call_operand.vmem [shape: f32[1,384], index: 4, kind: input, shape index: {}]
  %s5 = inlined_call_operand.vmem [shape: bf16[128,384], index: 5, kind: input, shape index: {}]
  %s6 = inlined_call_operand.vmem [shape: f32[1,384], index: 6, kind: input, shape index: {}]
  %s7 = inlined_call_operand.vmem [shape: f32[8,8,128], index: 7, kind: output, shape index: {}]
  %s8 = sld [smem:[#allocation0]]
  $region38: #{_forward_dense.10} parent=0
    _
  %s10 = ssub.s32 1, %s8
  %s11 = scalar_select 0, %s10, %s8
  // Predicated region
  $region2: #{_forward_dense.10} parent=0 // pred_check
    _
  $region3: #{_forward_dense.10} parent=0 // pred_check_branch
    %13 = sbr.rel (0) target = $region5
  $region4: #{_forward_dense.10} parent=0 // pred_region
    _
  $region5: #{_forward_dense.10} parent=0 // pred_fallthru
    _
  // Predicated region
  $region6: #{_forward_dense.10} parent=0 // pred_check
    _
  $region7: #{_forward_dense.10} parent=0 // pred_check_branch
    %15 = sbr.rel (0) target = $region9
  $region8: #{_forward_dense.10} parent=0 // pred_region
    _
  $region9: #{_forward_dense.10} parent=0 // pred_fallthru
    _
  // Predicated region
  $region10: #{_forward_dense.10} parent=0 // pred_check
    _
  $region11: #{_forward_dense.10} parent=0 // pred_check_branch
    %17 = sbr.rel (0) target = $region13
  $region12: #{_forward_dense.10} parent=0 // pred_region
    _
  $region13: #{_forward_dense.10} parent=0 // pred_fallthru
    _
  // Predicated region
  $region14: #{_forward_dense.10} parent=0 // pred_check
    _
  $region15: #{_forward_dense.10} parent=0 // pred_check_branch
    %19 = sbr.rel (0) target = $region17
  $region16: #{_forward_dense.10} parent=0 // pred_region
    _
  $region17: #{_forward_dense.10} parent=0 // pred_fallthru
    _
  // Predicated region
  $region18: #{_forward_dense.10} parent=0 // pred_check
    _
  $region19: #{_forward_dense.10} parent=0 // pred_check_branch
    %21 = sbr.rel (0) target = $region21
  $region20: #{_forward_dense.10} parent=0 // pred_region
    _
  $region21: #{_forward_dense.10} parent=0 // pred_fallthru
    _
  // Predicated region
  $region22: #{_forward_dense.10} parent=0 // pred_check
    _
  $region23: #{_forward_dense.10} parent=0 // pred_check_branch
    %23 = sbr.rel (0) target = $region25
  $region24: #{_forward_dense.10} parent=0 // pred_region
    _
  $region25: #{_forward_dense.10} parent=0 // pred_fallthru
    _
  // Predicated region
  $region26: #{_forward_dense.10} parent=0 // pred_check
    _
  $region27: #{_forward_dense.10} parent=0 // pred_check_branch
    %25 = sbr.rel (0) target = $region29
  $region28: #{_forward_dense.10} parent=0 // pred_region
    _
  $region29: #{_forward_dense.10} parent=0 // pred_fallthru
    _
  %v27 = vld [vmem:[%s1] sm:$0xff]
  %v28 = vld [vmem:[%s1 + $0x8] sm:$0xf]
  %v29 = vld [vmem:[%s1 + $0xc] sm:$0xff]
  %v30 = vld [vmem:[%s1 + $0x14] sm:$0xf]
  %v31 = vld [vmem:[%s1 + $0x18] sm:$0xff]
  %v32 = vld [vmem:[%s1 + $0x20] sm:$0xf]
  %v33 = vld [vmem:[%s1 + $0x24] sm:$0xff]
  %v34 = vld [vmem:[%s1 + $0x2c] sm:$0xf]
  %v35 = vld [vmem:[%s1 + $0x30] sm:$0xff]
  %v36 = vld [vmem:[%s1 + $0x38] sm:$0xf]
  %v37 = vld [vmem:[%s1 + $0x3c] sm:$0xff]
  %v38 = vld [vmem:[%s1 + $0x44] sm:$0xf]
  %v39 = vld [vmem:[%s1 + $0x48] sm:$0xff]
  %v40 = vld [vmem:[%s1 + $0x50] sm:$0xf]
  %v41 = vld [vmem:[%s1 + $0x54] sm:$0xff]
  %v42 = vld [vmem:[%s1 + $0x5c] sm:$0xf]
  %v43 = vld [vmem:[%s1 + $0x60] sm:$0xff]
  %v44 = vld [vmem:[%s1 + $0x68] sm:$0xf]
  %v45 = vld [vmem:[%s1 + $0x6c] sm:$0xff]
  %v46 = vld [vmem:[%s1 + $0x74] sm:$0xf]
  %v47 = vld [vmem:[%s1 + $0x78] sm:$0xff]
  %v48 = vld [vmem:[%s1 + $0x80] sm:$0xf]
  %v49 = vld [vmem:[%s1 + $0x84] sm:$0xff]
  %v50 = vld [vmem:[%s1 + $0x8c] sm:$0xf]
  %v51 = vld [vmem:[%s1 + $0x90] sm:$0xff]
  %v52 = vld [vmem:[%s1 + $0x98] sm:$0xf]
  %v53 = vld [vmem:[%s1 + $0x9c] sm:$0xff]
  %v54 = vld [vmem:[%s1 + $0xa4] sm:$0xf]
  %v55 = vld [vmem:[%s1 + $0xa8] sm:$0xff]
  %v56 = vld [vmem:[%s1 + $0xb0] sm:$0xf]
  %v57 = vld [vmem:[%s1 + $0xb4] sm:$0xff]
  %v58 = vld [vmem:[%s1 + $0xbc] sm:$0xf]
  %v59 = vld [vmem:[%s3] sm:$0xff]
  %v60 = vld [vmem:[%s3 + $0x8] sm:$0xf]
  %v61 = vld [vmem:[%s3 + $0xc] sm:$0xff]
  %v62 = vld [vmem:[%s3 + $0x14] sm:$0xf]
  %v63 = vld [vmem:[%s3 + $0x18] sm:$0xff]
  %v64 = vld [vmem:[%s3 + $0x20] sm:$0xf]
  %v65 = vld [vmem:[%s3 + $0x24] sm:$0xff]
  %v66 = vld [vmem:[%s3 + $0x2c] sm:$0xf]
  %v67 = vld [vmem:[%s3 + $0x30] sm:$0xff]
  %v68 = vld [vmem:[%s3 + $0x38] sm:$0xf]
  %v69 = vld [vmem:[%s3 + $0x3c] sm:$0xff]
  %v70 = vld [vmem:[%s3 + $0x44] sm:$0xf]
  %v71 = vld [vmem:[%s3 + $0x48] sm:$0xff]
  %v72 = vld [vmem:[%s3 + $0x50] sm:$0xf]
  %v73 = vld [vmem:[%s3 + $0x54] sm:$0xff]
  %v74 = vld [vmem:[%s3 + $0x5c] sm:$0xf]
  %v75 = vld [vmem:[%s3 + $0x60] sm:$0xff]
  %v76 = vld [vmem:[%s3 + $0x68] sm:$0xf]
  %v77 = vld [vmem:[%s3 + $0x6c] sm:$0xff]
  %v78 = vld [vmem:[%s3 + $0x74] sm:$0xf]
  %v79 = vld [vmem:[%s3 + $0x78] sm:$0xff]
  %v80 = vld [vmem:[%s3 + $0x80] sm:$0xf]
  %v81 = vld [vmem:[%s3 + $0x84] sm:$0xff]
  %v82 = vld [vmem:[%s3 + $0x8c] sm:$0xf]
  %v83 = vld [vmem:[%s3 + $0x90] sm:$0xff]
  %v84 = vld [vmem:[%s3 + $0x98] sm:$0xf]
  %v85 = vld [vmem:[%s3 + $0x9c] sm:$0xff]
  %v86 = vld [vmem:[%s3 + $0xa4] sm:$0xf]
  %v87 = vld [vmem:[%s3 + $0xa8] sm:$0xff]
  %v88 = vld [vmem:[%s3 + $0xb0] sm:$0xf]
  %v89 = vld [vmem:[%s3 + $0xb4] sm:$0xff]
  %v90 = vld [vmem:[%s3 + $0xbc] sm:$0xf]
  %v91 = vld [vmem:[%s5] sm:$0xff]
  %v92 = vld [vmem:[%s5 + $0x8] sm:$0xf]
  %v93 = vld [vmem:[%s5 + $0xc] sm:$0xff]
  %v94 = vld [vmem:[%s5 + $0x14] sm:$0xf]
  %v95 = vld [vmem:[%s5 + $0x18] sm:$0xff]
  %v96 = vld [vmem:[%s5 + $0x20] sm:$0xf]
  %v97 = vld [vmem:[%s5 + $0x24] sm:$0xff]
  %v98 = vld [vmem:[%s5 + $0x2c] sm:$0xf]
  %v99 = vld [vmem:[%s5 + $0x30] sm:$0xff]
  %v100 = vld [vmem:[%s5 + $0x38] sm:$0xf]
  %v101 = vld [vmem:[%s5 + $0x3c] sm:$0xff]
  %v102 = vld [vmem:[%s5 + $0x44] sm:$0xf]
  %v103 = vld [vmem:[%s5 + $0x48] sm:$0xff]
  %v104 = vld [vmem:[%s5 + $0x50] sm:$0xf]
  %v105 = vld [vmem:[%s5 + $0x54] sm:$0xff]
  %v106 = vld [vmem:[%s5 + $0x5c] sm:$0xf]
  %v107 = vld [vmem:[%s5 + $0x60] sm:$0xff]
  %v108 = vld [vmem:[%s5 + $0x68] sm:$0xf]
  %v109 = vld [vmem:[%s5 + $0x6c] sm:$0xff]
  %v110 = vld [vmem:[%s5 + $0x74] sm:$0xf]
  %v111 = vld [vmem:[%s5 + $0x78] sm:$0xff]
  %v112 = vld [vmem:[%s5 + $0x80] sm:$0xf]
  %v113 = vld [vmem:[%s5 + $0x84] sm:$0xff]
  %v114 = vld [vmem:[%s5 + $0x8c] sm:$0xf]
  %v115 = vld [vmem:[%s5 + $0x90] sm:$0xff]
  %v116 = vld [vmem:[%s5 + $0x98] sm:$0xf]
  %v117 = vld [vmem:[%s5 + $0x9c] sm:$0xff]
  %v118 = vld [vmem:[%s5 + $0xa4] sm:$0xf]
  %v119 = vld [vmem:[%s5 + $0xa8] sm:$0xff]
  %v120 = vld [vmem:[%s5 + $0xb0] sm:$0xf]
  %v121 = vld [vmem:[%s5 + $0xb4] sm:$0xff]
  %v122 = vld [vmem:[%s5 + $0xbc] sm:$0xf]
  %v123 = vld [vmem:[%s2] sm:$0x7]
  %v124 = vld [vmem:[%s4] sm:$0x7]
  %v125 = vld [vmem:[%s6] sm:$0x7]
  %v127 = vlaneseq
  %v128 = vshrl.u32 %v127, 7
  %v129 = vsub.s32 0, %v128
  %v130 = vrot.slane %v123, %v129
  %v131 = vlaneseq
  %v132 = vshrl.u32 %v131, 7
  %v133 = vsub.s32 1, %v132
  %v134 = vrot.slane %v123, %v133
  %v135 = vlaneseq
  %v136 = vshrl.u32 %v135, 7
  %v137 = vsub.s32 2, %v136
  %v138 = vrot.slane %v123, %v137
  %v174 = vunpack.c.l.b16 %v27
  %v175 = vunpack.c.h.b16 %v27
  %v176 = vunpack.c.l.b16 %v28
  %v177 = vunpack.c.l.b16 %v29
  %v178 = vunpack.c.h.b16 %v29
  %v179 = vunpack.c.l.b16 %v30
  %v180 = vunpack.c.l.b16 %v31
  %v181 = vunpack.c.h.b16 %v31
  %v182 = vunpack.c.l.b16 %v32
  %v183 = vunpack.c.l.b16 %v33
  %v184 = vunpack.c.h.b16 %v33
  %v185 = vunpack.c.l.b16 %v34
  %v186 = vunpack.c.l.b16 %v35
  %v187 = vunpack.c.h.b16 %v35
  %v188 = vunpack.c.l.b16 %v36
  %v189 = vunpack.c.l.b16 %v37
  %v190 = vunpack.c.h.b16 %v37
  %v191 = vunpack.c.l.b16 %v38
  %v192 = vunpack.c.l.b16 %v39
  %v193 = vunpack.c.h.b16 %v39
  %v194 = vunpack.c.l.b16 %v40
  %v195 = vunpack.c.l.b16 %v41
  %v196 = vunpack.c.h.b16 %v41
  %v197 = vunpack.c.l.b16 %v42
  %v198 = vunpack.c.l.b16 %v43
  %v199 = vunpack.c.h.b16 %v43
  %v200 = vunpack.c.l.b16 %v44
  %v201 = vunpack.c.l.b16 %v45
  %v202 = vunpack.c.h.b16 %v45
  %v203 = vunpack.c.l.b16 %v46
  %v204 = vunpack.c.l.b16 %v47
  %v205 = vunpack.c.h.b16 %v47
  %v206 = vunpack.c.l.b16 %v48
  %v207 = vunpack.c.l.b16 %v49
  %v208 = vunpack.c.h.b16 %v49
  %v209 = vunpack.c.l.b16 %v50
  %v210 = vunpack.c.l.b16 %v51
  %v211 = vunpack.c.h.b16 %v51
  %v212 = vunpack.c.l.b16 %v52
  %v213 = vunpack.c.l.b16 %v53
  %v214 = vunpack.c.h.b16 %v53
  %v215 = vunpack.c.l.b16 %v54
  %v216 = vunpack.c.l.b16 %v55
  %v217 = vunpack.c.h.b16 %v55
  %v218 = vunpack.c.l.b16 %v56
  %v219 = vunpack.c.l.b16 %v57
  %v220 = vunpack.c.h.b16 %v57
  %v221 = vunpack.c.l.b16 %v58
  %v222 = vpack.c.b16 %v177, %v174
  %v223 = vpack.c.b16 %v178, %v175
  %v224 = vpack.c.b16 %v179, %v176
  %v225 = vpack.c.b16 %v183, %v180
  %v226 = vpack.c.b16 %v184, %v181
  %v227 = vpack.c.b16 %v185, %v182
  %v228 = vpack.c.b16 %v189, %v186
  %v229 = vpack.c.b16 %v190, %v187
  %v230 = vpack.c.b16 %v191, %v188
  %v231 = vpack.c.b16 %v195, %v192
  %v232 = vpack.c.b16 %v196, %v193
  %v233 = vpack.c.b16 %v197, %v194
  %v234 = vpack.c.b16 %v201, %v198
  %v235 = vpack.c.b16 %v202, %v199
  %v236 = vpack.c.b16 %v203, %v200
  %v237 = vpack.c.b16 %v207, %v204
  %v238 = vpack.c.b16 %v208, %v205
  %v239 = vpack.c.b16 %v209, %v206
  %v240 = vpack.c.b16 %v213, %v210
  %v241 = vpack.c.b16 %v214, %v211
  %v242 = vpack.c.b16 %v215, %v212
  %v243 = vpack.c.b16 %v219, %v216
  %v244 = vpack.c.b16 %v220, %v217
  %v245 = vpack.c.b16 %v221, %v218
  %270 = vmatprep.subr.bf16.mxu0 %v223
  %271 = vmatpush1.bf16.msra.mxu0 %v222
  %272 = vmatprep.subr.bf16.mxu0 %v226
  %273 = vmatpush1.bf16.msra.mxu0 %v225
  %274 = vmatprep.subr.bf16.mxu0 %v229
  %275 = vmatpush1.bf16.msra.mxu0 %v228
  %276 = vmatprep.subr.bf16.mxu0 %v232
  %277 = vmatpush1.bf16.msra.mxu0 %v231
  %278 = vmatprep.subr.bf16.mxu0 %v235
  %279 = vmatpush1.bf16.msra.mxu0 %v234
  %280 = vmatprep.subr.bf16.mxu0 %v238
  %281 = vmatpush1.bf16.msra.mxu0 %v237
  %282 = vmatprep.subr.bf16.mxu0 %v241
  %283 = vmatpush1.bf16.msra.mxu0 %v240
  %284 = vmatprep.subr.bf16.mxu0 %v244
  %285 = vmatpush1.bf16.msra.mxu0 %v243
  %286 = vmatprep.subr.bf16.mxu0 0
  %287 = vmatpush1.bf16.msra.mxu0 0
  %288 = vmatprep.subr.bf16.mxu0 0
  %289 = vmatpush1.bf16.msra.mxu0 0
  %290 = vmatprep.subr.bf16.mxu0 0
  %291 = vmatpush1.bf16.msra.mxu0 0
  %292 = vmatprep.subr.bf16.mxu0 0
  %293 = vmatpush1.bf16.msra.mxu0 0
  %294 = vmatprep.subr.bf16.mxu0 0
  %295 = vmatpush1.bf16.msra.mxu0 0
  %296 = vmatprep.subr.bf16.mxu0 0
  %297 = vmatpush1.bf16.msra.mxu0 0
  %298 = vmatprep.subr.bf16.mxu0 0
  %299 = vmatpush1.bf16.msra.mxu0 0
  %300 = vmatprep.subr.bf16.mxu0 0
  %301 = vmatpush1.bf16.msra.mxu0 0
  %302 = vmatprep.mubr.bf16.mxu0 0
  %303 = vmatmul.mubr.bf16.gmra.mrb[0].mxu0 0
  %v304 = vpop.f32.mrb[0].mxu0
  %v305 = vadd.f32 %v130, %v304
  %v306 = vpop.f32.mrb[0].mxu0
  %v307 = vadd.f32 %v134, %v306
  %v308 = vpop.f32.mrb[0].mxu0
  %v309 = vpop.f32.mrb[0].mxu0
  %310 = vdwg.mxu0
  %311 = vmatprep.subr.bf16.mxu0 0
  %312 = vmatpush1.bf16.msra.mxu0 %v224
  %313 = vmatprep.subr.bf16.mxu0 0
  %314 = vmatpush1.bf16.msra.mxu0 %v227
  %315 = vmatprep.subr.bf16.mxu0 0
  %316 = vmatpush1.bf16.msra.mxu0 %v230
  %317 = vmatprep.subr.bf16.mxu0 0
  %318 = vmatpush1.bf16.msra.mxu0 %v233
  %319 = vmatprep.subr.bf16.mxu0 0
  %320 = vmatpush1.bf16.msra.mxu0 %v236
  %321 = vmatprep.subr.bf16.mxu0 0
  %322 = vmatpush1.bf16.msra.mxu0 %v239
  %323 = vmatprep.subr.bf16.mxu0 0
  %324 = vmatpush1.bf16.msra.mxu0 %v242
  %325 = vmatprep.subr.bf16.mxu0 0
  %326 = vmatpush1.bf16.msra.mxu0 %v245
  %327 = vmatprep.subr.bf16.mxu0 0
  %328 = vmatpush1.bf16.msra.mxu0 0
  %329 = vmatprep.subr.bf16.mxu0 0
  %330 = vmatpush1.bf16.msra.mxu0 0
  %331 = vmatprep.subr.bf16.mxu0 0
  %332 = vmatpush1.bf16.msra.mxu0 0
  %333 = vmatprep.subr.bf16.mxu0 0
  %334 = vmatpush1.bf16.msra.mxu0 0
  %335 = vmatprep.subr.bf16.mxu0 0
  %336 = vmatpush1.bf16.msra.mxu0 0
  %337 = vmatprep.subr.bf16.mxu0 0
  %338 = vmatpush1.bf16.msra.mxu0 0
  %339 = vmatprep.subr.bf16.mxu0 0
  %340 = vmatpush1.bf16.msra.mxu0 0
  %341 = vmatprep.subr.bf16.mxu0 0
  %342 = vmatpush1.bf16.msra.mxu0 0
  %343 = vmatprep.mubr.bf16.mxu0 0
  %344 = vmatmul.mubr.bf16.gmra.mrb[0].mxu0 0
  %v345 = vpop.f32.mrb[0].mxu0
  %v346 = vadd.f32 %v138, %v345
  %v347 = vpop.f32.mrb[0].mxu0
  %v348 = vpop.f32.mrb[0].mxu0
  %v349 = vpop.f32.mrb[0].mxu0
  %350 = vdwg.mxu0
  %v351 = vld [vmem:[%s0] sm:$0xff]
  %v352 = vld [vmem:[%s0 + $0x8] sm:$0xff]
  %v353 = vld [vmem:[%s0 + $0x10] sm:$0xff]
  %v354 = vadd.f32 %v351, %v305
  %v355 = vxor.u32 %v354, 2147483648
  %v356 = vmul.f32 %v355, 1.442695
  %v357 = vpow.pop %v356
  %v358 = vadd.f32 %v357, 1.0
  %v359 = vrcp.pop %v358
  %v360 = vmul.f32 1.0, %v359
  %v361 = vadd.f32 %v352, %v307
  %v362 = vxor.u32 %v361, 2147483648
  %v363 = vmul.f32 %v362, 1.442695
  %v364 = vpow.pop %v363
  %v365 = vadd.f32 %v364, 1.0
  %v366 = vrcp.pop %v365
  %v367 = vmul.f32 1.0, %v366
  %v368 = vmul.f32 %v360, %v346
  %v369 = vadd.f32 %v353, %v368
  %v370 = vtanh.pop %v369
  %v371 = vsub.f32 1.0, %v367
  %v372 = vmul.f32 %v371, %v370
  %v373 = vmul.f32 %v367, 0.0
  %v374 = vadd.f32 %v372, %v373
  %v375 = vpack.c.bf16 %v374, %v374
  %v377 = vlaneseq
  %v378 = vshrl.u32 %v377, 7
  %v379 = vsub.s32 0, %v378
  %v380 = vrot.slane %v124, %v379
  %v381 = vlaneseq
  %v382 = vshrl.u32 %v381, 7
  %v383 = vsub.s32 1, %v382
  %v384 = vrot.slane %v124, %v383
  %v385 = vlaneseq
  %v386 = vshrl.u32 %v385, 7
  %v387 = vsub.s32 2, %v386
  %v388 = vrot.slane %v124, %v387
  %v424 = vunpack.c.l.b16 %v59
  %v425 = vunpack.c.h.b16 %v59
  %v426 = vunpack.c.l.b16 %v60
  %v427 = vunpack.c.l.b16 %v61
  %v428 = vunpack.c.h.b16 %v61
  %v429 = vunpack.c.l.b16 %v62
  %v430 = vunpack.c.l.b16 %v63
  %v431 = vunpack.c.h.b16 %v63
  %v432 = vunpack.c.l.b16 %v64
  %v433 = vunpack.c.l.b16 %v65
  %v434 = vunpack.c.h.b16 %v65
  %v435 = vunpack.c.l.b16 %v66
  %v436 = vunpack.c.l.b16 %v67
  %v437 = vunpack.c.h.b16 %v67
  %v438 = vunpack.c.l.b16 %v68
  %v439 = vunpack.c.l.b16 %v69
  %v440 = vunpack.c.h.b16 %v69
  %v441 = vunpack.c.l.b16 %v70
  %v442 = vunpack.c.l.b16 %v71
  %v443 = vunpack.c.h.b16 %v71
  %v444 = vunpack.c.l.b16 %v72
  %v445 = vunpack.c.l.b16 %v73
  %v446 = vunpack.c.h.b16 %v73
  %v447 = vunpack.c.l.b16 %v74
  %v448 = vunpack.c.l.b16 %v75
  %v449 = vunpack.c.h.b16 %v75
  %v450 = vunpack.c.l.b16 %v76
  %v451 = vunpack.c.l.b16 %v77
  %v452 = vunpack.c.h.b16 %v77
  %v453 = vunpack.c.l.b16 %v78
  %v454 = vunpack.c.l.b16 %v79
  %v455 = vunpack.c.h.b16 %v79
  %v456 = vunpack.c.l.b16 %v80
  %v457 = vunpack.c.l.b16 %v81
  %v458 = vunpack.c.h.b16 %v81
  %v459 = vunpack.c.l.b16 %v82
  %v460 = vunpack.c.l.b16 %v83
  %v461 = vunpack.c.h.b16 %v83
  %v462 = vunpack.c.l.b16 %v84
  %v463 = vunpack.c.l.b16 %v85
  %v464 = vunpack.c.h.b16 %v85
  %v465 = vunpack.c.l.b16 %v86
  %v466 = vunpack.c.l.b16 %v87
  %v467 = vunpack.c.h.b16 %v87
  %v468 = vunpack.c.l.b16 %v88
  %v469 = vunpack.c.l.b16 %v89
  %v470 = vunpack.c.h.b16 %v89
  %v471 = vunpack.c.l.b16 %v90
  %v472 = vpack.c.b16 %v427, %v424
  %v473 = vpack.c.b16 %v428, %v425
  %v474 = vpack.c.b16 %v429, %v426
  %v475 = vpack.c.b16 %v433, %v430
  %v476 = vpack.c.b16 %v434, %v431
  %v477 = vpack.c.b16 %v435, %v432
  %v478 = vpack.c.b16 %v439, %v436
  %v479 = vpack.c.b16 %v440, %v437
  %v480 = vpack.c.b16 %v441, %v438
  %v481 = vpack.c.b16 %v445, %v442
  %v482 = vpack.c.b16 %v446, %v443
  %v483 = vpack.c.b16 %v447, %v444
  %v484 = vpack.c.b16 %v451, %v448
  %v485 = vpack.c.b16 %v452, %v449
  %v486 = vpack.c.b16 %v453, %v450
  %v487 = vpack.c.b16 %v457, %v454
  %v488 = vpack.c.b16 %v458, %v455
  %v489 = vpack.c.b16 %v459, %v456
  %v490 = vpack.c.b16 %v463, %v460
  %v491 = vpack.c.b16 %v464, %v461
  %v492 = vpack.c.b16 %v465, %v462
  %v493 = vpack.c.b16 %v469, %v466
  %v494 = vpack.c.b16 %v470, %v467
  %v495 = vpack.c.b16 %v471, %v468
  %520 = vmatprep.subr.bf16.mxu0 %v473
  %521 = vmatpush1.bf16.msra.mxu0 %v472
  %522 = vmatprep.subr.bf16.mxu0 %v476
  %523 = vmatpush1.bf16.msra.mxu0 %v475
  %524 = vmatprep.subr.bf16.mxu0 %v479
  %525 = vmatpush1.bf16.msra.mxu0 %v478
  %526 = vmatprep.subr.bf16.mxu0 %v482
  %527 = vmatpush1.bf16.msra.mxu0 %v481
  %528 = vmatprep.subr.bf16.mxu0 %v485
  %529 = vmatpush1.bf16.msra.mxu0 %v484
  %530 = vmatprep.subr.bf16.mxu0 %v488
  %531 = vmatpush1.bf16.msra.mxu0 %v487
  %532 = vmatprep.subr.bf16.mxu0 %v491
  %533 = vmatpush1.bf16.msra.mxu0 %v490
  %534 = vmatprep.subr.bf16.mxu0 %v494
  %535 = vmatpush1.bf16.msra.mxu0 %v493
  %536 = vmatprep.subr.bf16.mxu0 0
  %537 = vmatpush1.bf16.msra.mxu0 0
  %538 = vmatprep.subr.bf16.mxu0 0
  %539 = vmatpush1.bf16.msra.mxu0 0
  %540 = vmatprep.subr.bf16.mxu0 0
  %541 = vmatpush1.bf16.msra.mxu0 0
  %542 = vmatprep.subr.bf16.mxu0 0
  %543 = vmatpush1.bf16.msra.mxu0 0
  %544 = vmatprep.subr.bf16.mxu0 0
  %545 = vmatpush1.bf16.msra.mxu0 0
  %546 = vmatprep.subr.bf16.mxu0 0
  %547 = vmatpush1.bf16.msra.mxu0 0
  %548 = vmatprep.subr.bf16.mxu0 0
  %549 = vmatpush1.bf16.msra.mxu0 0
  %550 = vmatprep.subr.bf16.mxu0 0
  %551 = vmatpush1.bf16.msra.mxu0 0
  %552 = vmatprep.mubr.bf16.mxu0 0
  %553 = vmatmul.mubr.bf16.gmra.mrb[0].mxu0 %v375
  %v554 = vpop.f32.mrb[0].mxu0
  %v555 = vadd.f32 %v380, %v554
  %v556 = vpop.f32.mrb[0].mxu0
  %v557 = vadd.f32 %v384, %v556
  %v558 = vpop.f32.mrb[0].mxu0
  %v559 = vpop.f32.mrb[0].mxu0
  %560 = vdwg.mxu0
  %561 = vmatprep.subr.bf16.mxu0 0
  %562 = vmatpush1.bf16.msra.mxu0 %v474
  %563 = vmatprep.subr.bf16.mxu0 0
  %564 = vmatpush1.bf16.msra.mxu0 %v477
  %565 = vmatprep.subr.bf16.mxu0 0
  %566 = vmatpush1.bf16.msra.mxu0 %v480
  %567 = vmatprep.subr.bf16.mxu0 0
  %568 = vmatpush1.bf16.msra.mxu0 %v483
  %569 = vmatprep.subr.bf16.mxu0 0
  %570 = vmatpush1.bf16.msra.mxu0 %v486
  %571 = vmatprep.subr.bf16.mxu0 0
  %572 = vmatpush1.bf16.msra.mxu0 %v489
  %573 = vmatprep.subr.bf16.mxu0 0
  %574 = vmatpush1.bf16.msra.mxu0 %v492
  %575 = vmatprep.subr.bf16.mxu0 0
  %576 = vmatpush1.bf16.msra.mxu0 %v495
  %577 = vmatprep.subr.bf16.mxu0 0
  %578 = vmatpush1.bf16.msra.mxu0 0
  %579 = vmatprep.subr.bf16.mxu0 0
  %580 = vmatpush1.bf16.msra.mxu0 0
  %581 = vmatprep.subr.bf16.mxu0 0
  %582 = vmatpush1.bf16.msra.mxu0 0
  %583 = vmatprep.subr.bf16.mxu0 0
  %584 = vmatpush1.bf16.msra.mxu0 0
  %585 = vmatprep.subr.bf16.mxu0 0
  %586 = vmatpush1.bf16.msra.mxu0 0
  %587 = vmatprep.subr.bf16.mxu0 0
  %588 = vmatpush1.bf16.msra.mxu0 0
  %589 = vmatprep.subr.bf16.mxu0 0
  %590 = vmatpush1.bf16.msra.mxu0 0
  %591 = vmatprep.subr.bf16.mxu0 0
  %592 = vmatpush1.bf16.msra.mxu0 0
  %593 = vmatprep.mubr.bf16.mxu0 0
  %594 = vmatmul.mubr.bf16.gmra.mrb[0].mxu0 %v375
  %v595 = vpop.f32.mrb[0].mxu0
  %v596 = vadd.f32 %v388, %v595
  %v597 = vpop.f32.mrb[0].mxu0
  %v598 = vpop.f32.mrb[0].mxu0
  %v599 = vpop.f32.mrb[0].mxu0
  %600 = vdwg.mxu0
  %v602 = vlaneseq
  %v603 = vshrl.u32 %v602, 7
  %v604 = vsub.s32 0, %v603
  %v605 = vrot.slane %v125, %v604
  %v606 = vlaneseq
  %v607 = vshrl.u32 %v606, 7
  %v608 = vsub.s32 1, %v607
  %v609 = vrot.slane %v125, %v608
  %v610 = vlaneseq
  %v611 = vshrl.u32 %v610, 7
  %v612 = vsub.s32 2, %v611
  %v613 = vrot.slane %v125, %v612
  %v649 = vunpack.c.l.b16 %v91
  %v650 = vunpack.c.h.b16 %v91
  %v651 = vunpack.c.l.b16 %v92
  %v652 = vunpack.c.l.b16 %v93
  %v653 = vunpack.c.h.b16 %v93
  %v654 = vunpack.c.l.b16 %v94
  %v655 = vunpack.c.l.b16 %v95
  %v656 = vunpack.c.h.b16 %v95
  %v657 = vunpack.c.l.b16 %v96
  %v658 = vunpack.c.l.b16 %v97
  %v659 = vunpack.c.h.b16 %v97
  %v660 = vunpack.c.l.b16 %v98
  %v661 = vunpack.c.l.b16 %v99
  %v662 = vunpack.c.h.b16 %v99
  %v663 = vunpack.c.l.b16 %v100
  %v664 = vunpack.c.l.b16 %v101
  %v665 = vunpack.c.h.b16 %v101
  %v666 = vunpack.c.l.b16 %v102
  %v667 = vunpack.c.l.b16 %v103
  %v668 = vunpack.c.h.b16 %v103
  %v669 = vunpack.c.l.b16 %v104
  %v670 = vunpack.c.l.b16 %v105
  %v671 = vunpack.c.h.b16 %v105
  %v672 = vunpack.c.l.b16 %v106
  %v673 = vunpack.c.l.b16 %v107
  %v674 = vunpack.c.h.b16 %v107
  %v675 = vunpack.c.l.b16 %v108
  %v676 = vunpack.c.l.b16 %v109
  %v677 = vunpack.c.h.b16 %v109
  %v678 = vunpack.c.l.b16 %v110
  %v679 = vunpack.c.l.b16 %v111
  %v680 = vunpack.c.h.b16 %v111
  %v681 = vunpack.c.l.b16 %v112
  %v682 = vunpack.c.l.b16 %v113
  %v683 = vunpack.c.h.b16 %v113
  %v684 = vunpack.c.l.b16 %v114
  %v685 = vunpack.c.l.b16 %v115
  %v686 = vunpack.c.h.b16 %v115
  %v687 = vunpack.c.l.b16 %v116
  %v688 = vunpack.c.l.b16 %v117
  %v689 = vunpack.c.h.b16 %v117
  %v690 = vunpack.c.l.b16 %v118
  %v691 = vunpack.c.l.b16 %v119
  %v692 = vunpack.c.h.b16 %v119
  %v693 = vunpack.c.l.b16 %v120
  %v694 = vunpack.c.l.b16 %v121
  %v695 = vunpack.c.h.b16 %v121
  %v696 = vunpack.c.l.b16 %v122
  %v697 = vpack.c.b16 %v652, %v649
  %v698 = vpack.c.b16 %v653, %v650
  %v699 = vpack.c.b16 %v654, %v651
  %v700 = vpack.c.b16 %v658, %v655
  %v701 = vpack.c.b16 %v659, %v656
  %v702 = vpack.c.b16 %v660, %v657
  %v703 = vpack.c.b16 %v664, %v661
  %v704 = vpack.c.b16 %v665, %v662
  %v705 = vpack.c.b16 %v666, %v663
  %v706 = vpack.c.b16 %v670, %v667
  %v707 = vpack.c.b16 %v671, %v668
  %v708 = vpack.c.b16 %v672, %v669
  %v709 = vpack.c.b16 %v676, %v673
  %v710 = vpack.c.b16 %v677, %v674
  %v711 = vpack.c.b16 %v678, %v675
  %v712 = vpack.c.b16 %v682, %v679
  %v713 = vpack.c.b16 %v683, %v680
  %v714 = vpack.c.b16 %v684, %v681
  %v715 = vpack.c.b16 %v688, %v685
  %v716 = vpack.c.b16 %v689, %v686
  %v717 = vpack.c.b16 %v690, %v687
  %v718 = vpack.c.b16 %v694, %v691
  %v719 = vpack.c.b16 %v695, %v692
  %v720 = vpack.c.b16 %v696, %v693
  %745 = vmatprep.subr.bf16.mxu0 %v698
  %746 = vmatpush1.bf16.msra.mxu0 %v697
  %747 = vmatprep.subr.bf16.mxu0 %v701
  %748 = vmatpush1.bf16.msra.mxu0 %v700
  %749 = vmatprep.subr.bf16.mxu0 %v704
  %750 = vmatpush1.bf16.msra.mxu0 %v703
  %751 = vmatprep.subr.bf16.mxu0 %v707
  %752 = vmatpush1.bf16.msra.mxu0 %v706
  %753 = vmatprep.subr.bf16.mxu0 %v710
  %754 = vmatpush1.bf16.msra.mxu0 %v709
  %755 = vmatprep.subr.bf16.mxu0 %v713
  %756 = vmatpush1.bf16.msra.mxu0 %v712
  %757 = vmatprep.subr.bf16.mxu0 %v716
  %758 = vmatpush1.bf16.msra.mxu0 %v715
  %759 = vmatprep.subr.bf16.mxu0 %v719
  %760 = vmatpush1.bf16.msra.mxu0 %v718
  %761 = vmatprep.subr.bf16.mxu0 0
  %762 = vmatpush1.bf16.msra.mxu0 0
  %763 = vmatprep.subr.bf16.mxu0 0
  %764 = vmatpush1.bf16.msra.mxu0 0
  %765 = vmatprep.subr.bf16.mxu0 0
  %766 = vmatpush1.bf16.msra.mxu0 0
  %767 = vmatprep.subr.bf16.mxu0 0
  %768 = vmatpush1.bf16.msra.mxu0 0
  %769 = vmatprep.subr.bf16.mxu0 0
  %770 = vmatpush1.bf16.msra.mxu0 0
  %771 = vmatprep.subr.bf16.mxu0 0
  %772 = vmatpush1.bf16.msra.mxu0 0
  %773 = vmatprep.subr.bf16.mxu0 0
  %774 = vmatpush1.bf16.msra.mxu0 0
  %775 = vmatprep.subr.bf16.mxu0 0
  %776 = vmatpush1.bf16.msra.mxu0 0
  %777 = vmatprep.mubr.bf16.mxu0 0
  %778 = vmatmul.mubr.bf16.gmra.mrb[0].mxu0 0
  %v779 = vpop.f32.mrb[0].mxu0
  %v780 = vadd.f32 %v605, %v779
  %v781 = vpop.f32.mrb[0].mxu0
  %v782 = vadd.f32 %v609, %v781
  %v783 = vpop.f32.mrb[0].mxu0
  %v784 = vpop.f32.mrb[0].mxu0
  %785 = vdwg.mxu0
  %786 = vmatprep.subr.bf16.mxu0 0
  %787 = vmatpush1.bf16.msra.mxu0 %v699
  %788 = vmatprep.subr.bf16.mxu0 0
  %789 = vmatpush1.bf16.msra.mxu0 %v702
  %790 = vmatprep.subr.bf16.mxu0 0
  %791 = vmatpush1.bf16.msra.mxu0 %v705
  %792 = vmatprep.subr.bf16.mxu0 0
  %793 = vmatpush1.bf16.msra.mxu0 %v708
  %794 = vmatprep.subr.bf16.mxu0 0
  %795 = vmatpush1.bf16.msra.mxu0 %v711
  %796 = vmatprep.subr.bf16.mxu0 0
  %797 = vmatpush1.bf16.msra.mxu0 %v714
  %798 = vmatprep.subr.bf16.mxu0 0
  %799 = vmatpush1.bf16.msra.mxu0 %v717
  %800 = vmatprep.subr.bf16.mxu0 0
  %801 = vmatpush1.bf16.msra.mxu0 %v720
  %802 = vmatprep.subr.bf16.mxu0 0
  %803 = vmatpush1.bf16.msra.mxu0 0
  %804 = vmatprep.subr.bf16.mxu0 0
  %805 = vmatpush1.bf16.msra.mxu0 0
  %806 = vmatprep.subr.bf16.mxu0 0
  %807 = vmatpush1.bf16.msra.mxu0 0
  %808 = vmatprep.subr.bf16.mxu0 0
  %809 = vmatpush1.bf16.msra.mxu0 0
  %810 = vmatprep.subr.bf16.mxu0 0
  %811 = vmatpush1.bf16.msra.mxu0 0
  %812 = vmatprep.subr.bf16.mxu0 0
  %813 = vmatpush1.bf16.msra.mxu0 0
  %814 = vmatprep.subr.bf16.mxu0 0
  %815 = vmatpush1.bf16.msra.mxu0 0
  %816 = vmatprep.subr.bf16.mxu0 0
  %817 = vmatpush1.bf16.msra.mxu0 0
  %818 = vmatprep.mubr.bf16.mxu0 0
  %819 = vmatmul.mubr.bf16.gmra.mrb[0].mxu0 0
  %v820 = vpop.f32.mrb[0].mxu0
  %v821 = vadd.f32 %v613, %v820
  %v822 = vpop.f32.mrb[0].mxu0
  %v823 = vpop.f32.mrb[0].mxu0
  %v824 = vpop.f32.mrb[0].mxu0
  %825 = vdwg.mxu0
  %v826 = vadd.f32 %v555, %v780
  %v827 = vxor.u32 %v826, 2147483648
  %v828 = vmul.f32 %v827, 1.442695
  %v829 = vpow.pop %v828
  %v830 = vadd.f32 %v829, 1.0
  %v831 = vrcp.pop %v830
  %v832 = vmul.f32 1.0, %v831
  %v833 = vadd.f32 %v557, %v782
  %v834 = vxor.u32 %v833, 2147483648
  %v835 = vmul.f32 %v834, 1.442695
  %v836 = vpow.pop %v835
  %v837 = vadd.f32 %v836, 1.0
  %v838 = vrcp.pop %v837
  %v839 = vmul.f32 1.0, %v838
  %v840 = vmul.f32 %v832, %v821
  %v841 = vadd.f32 %v596, %v840
  %v842 = vtanh.pop %v841
  %v843 = vsub.f32 1.0, %v839
  %v844 = vmul.f32 %v843, %v842
  %v845 = vmul.f32 %v839, 0.0
  %v846 = vadd.f32 %v844, %v845
  %847 = vst [vmem:[%s7] sm:$0xff] %v846
  %848 = vmatprep.subr.bf16.mxu0 %v223
  %849 = vmatpush1.bf16.msra.mxu0 %v222
  %850 = vmatprep.subr.bf16.mxu0 %v226
  %851 = vmatpush1.bf16.msra.mxu0 %v225
  %852 = vmatprep.subr.bf16.mxu0 %v229
  %853 = vmatpush1.bf16.msra.mxu0 %v228
  %854 = vmatprep.subr.bf16.mxu0 %v232
  %855 = vmatpush1.bf16.msra.mxu0 %v231
  %856 = vmatprep.subr.bf16.mxu0 %v235
  %857 = vmatpush1.bf16.msra.mxu0 %v234
  %858 = vmatprep.subr.bf16.mxu0 %v238
  %859 = vmatpush1.bf16.msra.mxu0 %v237
  %860 = vmatprep.subr.bf16.mxu0 %v241
  %861 = vmatpush1.bf16.msra.mxu0 %v240
  %862 = vmatprep.subr.bf16.mxu0 %v244
  %863 = vmatpush1.bf16.msra.mxu0 %v243
  %864 = vmatprep.subr.bf16.mxu0 0
  %865 = vmatpush1.bf16.msra.mxu0 0
  %866 = vmatprep.subr.bf16.mxu0 0
  %867 = vmatpush1.bf16.msra.mxu0 0
  %868 = vmatprep.subr.bf16.mxu0 0
  %869 = vmatpush1.bf16.msra.mxu0 0
  %870 = vmatprep.subr.bf16.mxu0 0
  %871 = vmatpush1.bf16.msra.mxu0 0
  %872 = vmatprep.subr.bf16.mxu0 0
  %873 = vmatpush1.bf16.msra.mxu0 0
  %874 = vmatprep.subr.bf16.mxu0 0
  %875 = vmatpush1.bf16.msra.mxu0 0
  %876 = vmatprep.subr.bf16.mxu0 0
  %877 = vmatpush1.bf16.msra.mxu0 0
  %878 = vmatprep.subr.bf16.mxu0 0
  %879 = vmatpush1.bf16.msra.mxu0 0
  %880 = vmatprep.mubr.bf16.mxu0 0
  %881 = vmatmul.mubr.bf16.gmra.mrb[0].mxu0 %v375
  %v882 = vpop.f32.mrb[0].mxu0
  %v883 = vadd.f32 %v130, %v882
  %v884 = vpop.f32.mrb[0].mxu0
  %v885 = vadd.f32 %v134, %v884
  %v886 = vpop.f32.mrb[0].mxu0
  %v887 = vpop.f32.mrb[0].mxu0
  %888 = vdwg.mxu0
  %889 = vmatprep.subr.bf16.mxu0 0
  %890 = vmatpush1.bf16.msra.mxu0 %v224
  %891 = vmatprep.subr.bf16.mxu0 0
  %892 = vmatpush1.bf16.msra.mxu0 %v227
  %893 = vmatprep.subr.bf16.mxu0 0
  %894 = vmatpush1.bf16.msra.mxu0 %v230
  %895 = vmatprep.subr.bf16.mxu0 0
  %896 = vmatpush1.bf16.msra.mxu0 %v233
  %897 = vmatprep.subr.bf16.mxu0 0
  %898 = vmatpush1.bf16.msra.mxu0 %v236
  %899 = vmatprep.subr.bf16.mxu0 0
  %900 = vmatpush1.bf16.msra.mxu0 %v239
  %901 = vmatprep.subr.bf16.mxu0 0
  %902 = vmatpush1.bf16.msra.mxu0 %v242
  %903 = vmatprep.subr.bf16.mxu0 0
  %904 = vmatpush1.bf16.msra.mxu0 %v245
  %905 = vmatprep.subr.bf16.mxu0 0
  %906 = vmatpush1.bf16.msra.mxu0 0
  %907 = vmatprep.subr.bf16.mxu0 0
  %908 = vmatpush1.bf16.msra.mxu0 0
  %909 = vmatprep.subr.bf16.mxu0 0
  %910 = vmatpush1.bf16.msra.mxu0 0
  %911 = vmatprep.subr.bf16.mxu0 0
  %912 = vmatpush1.bf16.msra.mxu0 0
  %913 = vmatprep.subr.bf16.mxu0 0
  %914 = vmatpush1.bf16.msra.mxu0 0
  %915 = vmatprep.subr.bf16.mxu0 0
  %916 = vmatpush1.bf16.msra.mxu0 0
  %917 = vmatprep.subr.bf16.mxu0 0
  %918 = vmatpush1.bf16.msra.mxu0 0
  %919 = vmatprep.subr.bf16.mxu0 0
  %920 = vmatpush1.bf16.msra.mxu0 0
  %921 = vmatprep.mubr.bf16.mxu0 0
  %922 = vmatmul.mubr.bf16.gmra.mrb[0].mxu0 %v375
  %v923 = vpop.f32.mrb[0].mxu0
  %v924 = vadd.f32 %v138, %v923
  %v925 = vpop.f32.mrb[0].mxu0
  %v926 = vpop.f32.mrb[0].mxu0
  %v927 = vpop.f32.mrb[0].mxu0
  %928 = vdwg.mxu0
  %s929 = scalar_lea.vmem %s0, 24
  %v930 = vld [vmem:[%s929] sm:$0xff]
  %v931 = vld [vmem:[%s929 + $0x8] sm:$0xff]
  %v932 = vld [vmem:[%s929 + $0x10] sm:$0xff]
  %v933 = vadd.f32 %v930, %v883
  %v934 = vxor.u32 %v933, 2147483648
  %v935 = vmul.f32 %v934, 1.442695
  %v936 = vpow.pop %v935
  %v937 = vadd.f32 %v936, 1.0
  %v938 = vrcp.pop %v937
  %v939 = vmul.f32 1.0, %v938
  %v940 = vadd.f32 %v931, %v885
  %v941 = vxor.u32 %v940, 2147483648
  %v942 = vmul.f32 %v941, 1.442695
  %v943 = vpow.pop %v942
  %v944 = vadd.f32 %v943, 1.0
  %v945 = vrcp.pop %v944
  %v946 = vmul.f32 1.0, %v945
  %v947 = vmul.f32 %v939, %v924
  %v948 = vadd.f32 %v932, %v947
  %v949 = vtanh.pop %v948
  %v950 = vsub.f32 1.0, %v946
  %v951 = vmul.f32 %v950, %v949
  %v952 = vmul.f32 %v946, %v374
  %v953 = vadd.f32 %v951, %v952
  %v954 = vpack.c.bf16 %v953, %v953
  %955 = vmatprep.subr.bf16.mxu0 %v473
  %956 = vmatpush1.bf16.msra.mxu0 %v472
  %957 = vmatprep.subr.bf16.mxu0 %v476
  %958 = vmatpush1.bf16.msra.mxu0 %v475
  %959 = vmatprep.subr.bf16.mxu0 %v479
  %960 = vmatpush1.bf16.msra.mxu0 %v478
  %961 = vmatprep.subr.bf16.mxu0 %v482
  %962 = vmatpush1.bf16.msra.mxu0 %v481
  %963 = vmatprep.subr.bf16.mxu0 %v485
  %964 = vmatpush1.bf16.msra.mxu0 %v484
  %965 = vmatprep.subr.bf16.mxu0 %v488
  %966 = vmatpush1.bf16.msra.mxu0 %v487
  %967 = vmatprep.subr.bf16.mxu0 %v491
  %968 = vmatpush1.bf16.msra.mxu0 %v490
  %969 = vmatprep.subr.bf16.mxu0 %v494
  %970 = vmatpush1.bf16.msra.mxu0 %v493
  %971 = vmatprep.subr.bf16.mxu0 0
  %972 = vmatpush1.bf16.msra.mxu0 0
  %973 = vmatprep.subr.bf16.mxu0 0
  %974 = vmatpush1.bf16.msra.mxu0 0
  %975 = vmatprep.subr.bf16.mxu0 0
  %976 = vmatpush1.bf16.msra.mxu0 0
  %977 = vmatprep.subr.bf16.mxu0 0
  %978 = vmatpush1.bf16.msra.mxu0 0
  %979 = vmatprep.subr.bf16.mxu0 0
  %980 = vmatpush1.bf16.msra.mxu0 0
  %981 = vmatprep.subr.bf16.mxu0 0
  %982 = vmatpush1.bf16.msra.mxu0 0
  %983 = vmatprep.subr.bf16.mxu0 0
  %984 = vmatpush1.bf16.msra.mxu0 0
  %985 = vmatprep.subr.bf16.mxu0 0
  %986 = vmatpush1.bf16.msra.mxu0 0
  %987 = vmatprep.mubr.bf16.mxu0 0
  %988 = vmatmul.mubr.bf16.gmra.mrb[0].mxu0 %v954
  %v989 = vpop.f32.mrb[0].mxu0
  %v990 = vadd.f32 %v380, %v989
  %v991 = vpop.f32.mrb[0].mxu0
  %v992 = vadd.f32 %v384, %v991
  %v993 = vpop.f32.mrb[0].mxu0
  %v994 = vpop.f32.mrb[0].mxu0
  %995 = vdwg.mxu0
  %996 = vmatprep.subr.bf16.mxu0 0
  %997 = vmatpush1.bf16.msra.mxu0 %v474
  %998 = vmatprep.subr.bf16.mxu0 0
  %999 = vmatpush1.bf16.msra.mxu0 %v477
  %1000 = vmatprep.subr.bf16.mxu0 0
  %1001 = vmatpush1.bf16.msra.mxu0 %v480
  %1002 = vmatprep.subr.bf16.mxu0 0
  %1003 = vmatpush1.bf16.msra.mxu0 %v483
  %1004 = vmatprep.subr.bf16.mxu0 0
  %1005 = vmatpush1.bf16.msra.mxu0 %v486
  %1006 = vmatprep.subr.bf16.mxu0 0
  %1007 = vmatpush1.bf16.msra.mxu0 %v489
  %1008 = vmatprep.subr.bf16.mxu0 0
  %1009 = vmatpush1.bf16.msra.mxu0 %v492
  %1010 = vmatprep.subr.bf16.mxu0 0
  %1011 = vmatpush1.bf16.msra.mxu0 %v495
  %1012 = vmatprep.subr.bf16.mxu0 0
  %1013 = vmatpush1.bf16.msra.mxu0 0
  %1014 = vmatprep.subr.bf16.mxu0 0
  %1015 = vmatpush1.bf16.msra.mxu0 0
  %1016 = vmatprep.subr.bf16.mxu0 0
  %1017 = vmatpush1.bf16.msra.mxu0 0
  %1018 = vmatprep.subr.bf16.mxu0 0
  %1019 = vmatpush1.bf16.msra.mxu0 0
  %1020 = vmatprep.subr.bf16.mxu0 0
  %1021 = vmatpush1.bf16.msra.mxu0 0
  %1022 = vmatprep.subr.bf16.mxu0 0
  %1023 = vmatpush1.bf16.msra.mxu0 0
  %1024 = vmatprep.subr.bf16.mxu0 0
  %1025 = vmatpush1.bf16.msra.mxu0 0
  %1026 = vmatprep.subr.bf16.mxu0 0
  %1027 = vmatpush1.bf16.msra.mxu0 0
  %1028 = vmatprep.mubr.bf16.mxu0 0
  %1029 = vmatmul.mubr.bf16.gmra.mrb[0].mxu0 %v954
  %v1030 = vpop.f32.mrb[0].mxu0
  %v1031 = vadd.f32 %v388, %v1030
  %v1032 = vpop.f32.mrb[0].mxu0
  %v1033 = vpop.f32.mrb[0].mxu0
  %v1034 = vpop.f32.mrb[0].mxu0
  %1035 = vdwg.mxu0
  %v1036 = vpack.c.bf16 %v846, %v846
  %1037 = vmatprep.subr.bf16.mxu0 %v698
  %1038 = vmatpush1.bf16.msra.mxu0 %v697
  %1039 = vmatprep.subr.bf16.mxu0 %v701
  %1040 = vmatpush1.bf16.msra.mxu0 %v700
  %1041 = vmatprep.subr.bf16.mxu0 %v704
  %1042 = vmatpush1.bf16.msra.mxu0 %v703
  %1043 = vmatprep.subr.bf16.mxu0 %v707
  %1044 = vmatpush1.bf16.msra.mxu0 %v706
  %1045 = vmatprep.subr.bf16.mxu0 %v710
  %1046 = vmatpush1.bf16.msra.mxu0 %v709
  %1047 = vmatprep.subr.bf16.mxu0 %v713
  %1048 = vmatpush1.bf16.msra.mxu0 %v712
  %1049 = vmatprep.subr.bf16.mxu0 %v716
  %1050 = vmatpush1.bf16.msra.mxu0 %v715
  %1051 = vmatprep.subr.bf16.mxu0 %v719
  %1052 = vmatpush1.bf16.msra.mxu0 %v718
  %1053 = vmatprep.subr.bf16.mxu0 0
  %1054 = vmatpush1.bf16.msra.mxu0 0
  %1055 = vmatprep.subr.bf16.mxu0 0
  %1056 = vmatpush1.bf16.msra.mxu0 0
  %1057 = vmatprep.subr.bf16.mxu0 0
  %1058 = vmatpush1.bf16.msra.mxu0 0
  %1059 = vmatprep.subr.bf16.mxu0 0
  %1060 = vmatpush1.bf16.msra.mxu0 0
  %1061 = vmatprep.subr.bf16.mxu0 0
  %1062 = vmatpush1.bf16.msra.mxu0 0
  %1063 = vmatprep.subr.bf16.mxu0 0
  %1064 = vmatpush1.bf16.msra.mxu0 0
  %1065 = vmatprep.subr.bf16.mxu0 0
  %1066 = vmatpush1.bf16.msra.mxu0 0
  %1067 = vmatprep.subr.bf16.mxu0 0
  %1068 = vmatpush1.bf16.msra.mxu0 0
  %1069 = vmatprep.mubr.bf16.mxu0 0
  %1070 = vmatmul.mubr.bf16.gmra.mrb[0].mxu0 %v1036
  %v1071 = vpop.f32.mrb[0].mxu0
  %v1072 = vadd.f32 %v605, %v1071
  %v1073 = vpop.f32.mrb[0].mxu0
  %v1074 = vadd.f32 %v609, %v1073
  %v1075 = vpop.f32.mrb[0].mxu0
  %v1076 = vpop.f32.mrb[0].mxu0
  %1077 = vdwg.mxu0
  %1078 = vmatprep.subr.bf16.mxu0 0
  %1079 = vmatpush1.bf16.msra.mxu0 %v699
  %1080 = vmatprep.subr.bf16.mxu0 0
  %1081 = vmatpush1.bf16.msra.mxu0 %v702
  %1082 = vmatprep.subr.bf16.mxu0 0
  %1083 = vmatpush1.bf16.msra.mxu0 %v705
  %1084 = vmatprep.subr.bf16.mxu0 0
  %1085 = vmatpush1.bf16.msra.mxu0 %v708
  %1086 = vmatprep.subr.bf16.mxu0 0
  %1087 = vmatpush1.bf16.msra.mxu0 %v711
  %1088 = vmatprep.subr.bf16.mxu0 0
  %1089 = vmatpush1.bf16.msra.mxu0 %v714
  %1090 = vmatprep.subr.bf16.mxu0 0
  %1091 = vmatpush1.bf16.msra.mxu0 %v717
  %1092 = vmatprep.subr.bf16.mxu0 0
  %1093 = vmatpush1.bf16.msra.mxu0 %v720
  %1094 = vmatprep.subr.bf16.mxu0 0
  %1095 = vmatpush1.bf16.msra.mxu0 0
  %1096 = vmatprep.subr.bf16.mxu0 0
  %1097 = vmatpush1.bf16.msra.mxu0 0
  %1098 = vmatprep.subr.bf16.mxu0 0
  %1099 = vmatpush1.bf16.msra.mxu0 0
  %1100 = vmatprep.subr.bf16.mxu0 0
  %1101 = vmatpush1.bf16.msra.mxu0 0
  %1102 = vmatprep.subr.bf16.mxu0 0
  %1103 = vmatpush1.bf16.msra.mxu0 0
  %1104 = vmatprep.subr.bf16.mxu0 0
  %1105 = vmatpush1.bf16.msra.mxu0 0
  %1106 = vmatprep.subr.bf16.mxu0 0
  %1107 = vmatpush1.bf16.msra.mxu0 0
  %1108 = vmatprep.subr.bf16.mxu0 0
  %1109 = vmatpush1.bf16.msra.mxu0 0
  %1110 = vmatprep.mubr.bf16.mxu0 0
  %1111 = vmatmul.mubr.bf16.gmra.mrb[0].mxu0 %v1036
  %v1112 = vpop.f32.mrb[0].mxu0
  %v1113 = vadd.f32 %v613, %v1112
  %v1114 = vpop.f32.mrb[0].mxu0
  %v1115 = vpop.f32.mrb[0].mxu0
  %v1116 = vpop.f32.mrb[0].mxu0
  %1117 = vdwg.mxu0
  %v1118 = vadd.f32 %v990, %v1072
  %v1119 = vxor.u32 %v1118, 2147483648
  %v1120 = vmul.f32 %v1119, 1.442695
  %v1121 = vpow.pop %v1120
  %v1122 = vadd.f32 %v1121, 1.0
  %v1123 = vrcp.pop %v1122
  %v1124 = vmul.f32 1.0, %v1123
  %v1125 = vadd.f32 %v992, %v1074
  %v1126 = vxor.u32 %v1125, 2147483648
  %v1127 = vmul.f32 %v1126, 1.442695
  %v1128 = vpow.pop %v1127
  %v1129 = vadd.f32 %v1128, 1.0
  %v1130 = vrcp.pop %v1129
  %v1131 = vmul.f32 1.0, %v1130
  %v1132 = vmul.f32 %v1124, %v1113
  %v1133 = vadd.f32 %v1031, %v1132
  %v1134 = vtanh.pop %v1133
  %v1135 = vsub.f32 1.0, %v1131
  %v1136 = vmul.f32 %v1135, %v1134
  %v1137 = vmul.f32 %v1131, %v846
  %v1138 = vadd.f32 %v1136, %v1137
  %s1139 = scalar_lea.vmem %s7, 8
  %1140 = vst [vmem:[%s1139] sm:$0xff] %v1138
  %1141 = vmatprep.subr.bf16.mxu0 %v223
  %1142 = vmatpush1.bf16.msra.mxu0 %v222
  %1143 = vmatprep.subr.bf16.mxu0 %v226
  %1144 = vmatpush1.bf16.msra.mxu0 %v225
  %1145 = vmatprep.subr.bf16.mxu0 %v229
  %1146 = vmatpush1.bf16.msra.mxu0 %v228
  %1147 = vmatprep.subr.bf16.mxu0 %v232
  %1148 = vmatpush1.bf16.msra.mxu0 %v231
  %1149 = vmatprep.subr.bf16.mxu0 %v235
  %1150 = vmatpush1.bf16.msra.mxu0 %v234
  %1151 = vmatprep.subr.bf16.mxu0 %v238
  %1152 = vmatpush1.bf16.msra.mxu0 %v237
  %1153 = vmatprep.subr.bf16.mxu0 %v241
  %1154 = vmatpush1.bf16.msra.mxu0 %v240
  %1155 = vmatprep.subr.bf16.mxu0 %v244
  %1156 = vmatpush1.bf16.msra.mxu0 %v243
  %1157 = vmatprep.subr.bf16.mxu0 0
  %1158 = vmatpush1.bf16.msra.mxu0 0
  %1159 = vmatprep.subr.bf16.mxu0 0
  %1160 = vmatpush1.bf16.msra.mxu0 0
  %1161 = vmatprep.subr.bf16.mxu0 0
  %1162 = vmatpush1.bf16.msra.mxu0 0
  %1163 = vmatprep.subr.bf16.mxu0 0
  %1164 = vmatpush1.bf16.msra.mxu0 0
  %1165 = vmatprep.subr.bf16.mxu0 0
  %1166 = vmatpush1.bf16.msra.mxu0 0
  %1167 = vmatprep.subr.bf16.mxu0 0
  %1168 = vmatpush1.bf16.msra.mxu0 0
  %1169 = vmatprep.subr.bf16.mxu0 0
  %1170 = vmatpush1.bf16.msra.mxu0 0
  %1171 = vmatprep.subr.bf16.mxu0 0
  %1172 = vmatpush1.bf16.msra.mxu0 0
  %1173 = vmatprep.mubr.bf16.mxu0 0
  %1174 = vmatmul.mubr.bf16.gmra.mrb[0].mxu0 %v954
  %v1175 = vpop.f32.mrb[0].mxu0
  %v1176 = vadd.f32 %v130, %v1175
  %v1177 = vpop.f32.mrb[0].mxu0
  %v1178 = vadd.f32 %v134, %v1177
  %v1179 = vpop.f32.mrb[0].mxu0
  %v1180 = vpop.f32.mrb[0].mxu0
  %1181 = vdwg.mxu0
  %1182 = vmatprep.subr.bf16.mxu0 0
  %1183 = vmatpush1.bf16.msra.mxu0 %v224
  %1184 = vmatprep.subr.bf16.mxu0 0
  %1185 = vmatpush1.bf16.msra.mxu0 %v227
  %1186 = vmatprep.subr.bf16.mxu0 0
  %1187 = vmatpush1.bf16.msra.mxu0 %v230
  %1188 = vmatprep.subr.bf16.mxu0 0
  %1189 = vmatpush1.bf16.msra.mxu0 %v233
  %1190 = vmatprep.subr.bf16.mxu0 0
  %1191 = vmatpush1.bf16.msra.mxu0 %v236
  %1192 = vmatprep.subr.bf16.mxu0 0
  %1193 = vmatpush1.bf16.msra.mxu0 %v239
  %1194 = vmatprep.subr.bf16.mxu0 0
  %1195 = vmatpush1.bf16.msra.mxu0 %v242
  %1196 = vmatprep.subr.bf16.mxu0 0
  %1197 = vmatpush1.bf16.msra.mxu0 %v245
  %1198 = vmatprep.subr.bf16.mxu0 0
  %1199 = vmatpush1.bf16.msra.mxu0 0
  %1200 = vmatprep.subr.bf16.mxu0 0
  %1201 = vmatpush1.bf16.msra.mxu0 0
  %1202 = vmatprep.subr.bf16.mxu0 0
  %1203 = vmatpush1.bf16.msra.mxu0 0
  %1204 = vmatprep.subr.bf16.mxu0 0
  %1205 = vmatpush1.bf16.msra.mxu0 0
  %1206 = vmatprep.subr.bf16.mxu0 0
  %1207 = vmatpush1.bf16.msra.mxu0 0
  %1208 = vmatprep.subr.bf16.mxu0 0
  %1209 = vmatpush1.bf16.msra.mxu0 0
  %1210 = vmatprep.subr.bf16.mxu0 0
  %1211 = vmatpush1.bf16.msra.mxu0 0
  %1212 = vmatprep.subr.bf16.mxu0 0
  %1213 = vmatpush1.bf16.msra.mxu0 0
  %1214 = vmatprep.mubr.bf16.mxu0 0
  %1215 = vmatmul.mubr.bf16.gmra.mrb[0].mxu0 %v954
  %v1216 = vpop.f32.mrb[0].mxu0
  %v1217 = vadd.f32 %v138, %v1216
  %v1218 = vpop.f32.mrb[0].mxu0
  %v1219 = vpop.f32.mrb[0].mxu0
  %v1220 = vpop.f32.mrb[0].mxu0
  %1221 = vdwg.mxu0
  %s1222 = scalar_lea.vmem %s0, 48
  %v1223 = vld [vmem:[%s1222] sm:$0xff]
  %v1224 = vld [vmem:[%s1222 + $0x8] sm:$0xff]
  %v1225 = vld [vmem:[%s1222 + $0x10] sm:$0xff]
  %v1226 = vadd.f32 %v1223, %v1176
  %v1227 = vxor.u32 %v1226, 2147483648
  %v1228 = vmul.f32 %v1227, 1.442695
  %v1229 = vpow.pop %v1228
  %v1230 = vadd.f32 %v1229, 1.0
  %v1231 = vrcp.pop %v1230
  %v1232 = vmul.f32 1.0, %v1231
  %v1233 = vadd.f32 %v1224, %v1178
  %v1234 = vxor.u32 %v1233, 2147483648
  %v1235 = vmul.f32 %v1234, 1.442695
  %v1236 = vpow.pop %v1235
  %v1237 = vadd.f32 %v1236, 1.0
  %v1238 = vrcp.pop %v1237
  %v1239 = vmul.f32 1.0, %v1238
  %v1240 = vmul.f32 %v1232, %v1217
  %v1241 = vadd.f32 %v1225, %v1240
  %v1242 = vtanh.pop %v1241
  %v1243 = vsub.f32 1.0, %v1239
  %v1244 = vmul.f32 %v1243, %v1242
  %v1245 = vmul.f32 %v1239, %v953
  %v1246 = vadd.f32 %v1244, %v1245
  %v1247 = vpack.c.bf16 %v1246, %v1246
  %1248 = vmatprep.subr.bf16.mxu0 %v473
  %1249 = vmatpush1.bf16.msra.mxu0 %v472
  %1250 = vmatprep.subr.bf16.mxu0 %v476
  %1251 = vmatpush1.bf16.msra.mxu0 %v475
  %1252 = vmatprep.subr.bf16.mxu0 %v479
  %1253 = vmatpush1.bf16.msra.mxu0 %v478
  %1254 = vmatprep.subr.bf16.mxu0 %v482
  %1255 = vmatpush1.bf16.msra.mxu0 %v481
  %1256 = vmatprep.subr.bf16.mxu0 %v485
  %1257 = vmatpush1.bf16.msra.mxu0 %v484
  %1258 = vmatprep.subr.bf16.mxu0 %v488
  %1259 = vmatpush1.bf16.msra.mxu0 %v487
  %1260 = vmatprep.subr.bf16.mxu0 %v491
  %1261 = vmatpush1.bf16.msra.mxu0 %v490
  %1262 = vmatprep.subr.bf16.mxu0 %v494
  %1263 = vmatpush1.bf16.msra.mxu0 %v493
  %1264 = vmatprep.subr.bf16.mxu0 0
  %1265 = vmatpush1.bf16.msra.mxu0 0
  %1266 = vmatprep.subr.bf16.mxu0 0
  %1267 = vmatpush1.bf16.msra.mxu0 0
  %1268 = vmatprep.subr.bf16.mxu0 0
  %1269 = vmatpush1.bf16.msra.mxu0 0
  %1270 = vmatprep.subr.bf16.mxu0 0
  %1271 = vmatpush1.bf16.msra.mxu0 0
  %1272 = vmatprep.subr.bf16.mxu0 0
  %1273 = vmatpush1.bf16.msra.mxu0 0
  %1274 = vmatprep.subr.bf16.mxu0 0
  %1275 = vmatpush1.bf16.msra.mxu0 0
  %1276 = vmatprep.subr.bf16.mxu0 0
  %1277 = vmatpush1.bf16.msra.mxu0 0
  %1278 = vmatprep.subr.bf16.mxu0 0
  %1279 = vmatpush1.bf16.msra.mxu0 0
  %1280 = vmatprep.mubr.bf16.mxu0 0
  %1281 = vmatmul.mubr.bf16.gmra.mrb[0].mxu0 %v1247
  %v1282 = vpop.f32.mrb[0].mxu0
  %v1283 = vadd.f32 %v380, %v1282
  %v1284 = vpop.f32.mrb[0].mxu0
  %v1285 = vadd.f32 %v384, %v1284
  %v1286 = vpop.f32.mrb[0].mxu0
  %v1287 = vpop.f32.mrb[0].mxu0
  %1288 = vdwg.mxu0
  %1289 = vmatprep.subr.bf16.mxu0 0
  %1290 = vmatpush1.bf16.msra.mxu0 %v474
  %1291 = vmatprep.subr.bf16.mxu0 0
  %1292 = vmatpush1.bf16.msra.mxu0 %v477
  %1293 = vmatprep.subr.bf16.mxu0 0
  %1294 = vmatpush1.bf16.msra.mxu0 %v480
  %1295 = vmatprep.subr.bf16.mxu0 0
  %1296 = vmatpush1.bf16.msra.mxu0 %v483
  %1297 = vmatprep.subr.bf16.mxu0 0
  %1298 = vmatpush1.bf16.msra.mxu0 %v486
  %1299 = vmatprep.subr.bf16.mxu0 0
  %1300 = vmatpush1.bf16.msra.mxu0 %v489
  %1301 = vmatprep.subr.bf16.mxu0 0
  %1302 = vmatpush1.bf16.msra.mxu0 %v492
  %1303 = vmatprep.subr.bf16.mxu0 0
  %1304 = vmatpush1.bf16.msra.mxu0 %v495
  %1305 = vmatprep.subr.bf16.mxu0 0
  %1306 = vmatpush1.bf16.msra.mxu0 0
  %1307 = vmatprep.subr.bf16.mxu0 0
  %1308 = vmatpush1.bf16.msra.mxu0 0
  %1309 = vmatprep.subr.bf16.mxu0 0
  %1310 = vmatpush1.bf16.msra.mxu0 0
  %1311 = vmatprep.subr.bf16.mxu0 0
  %1312 = vmatpush1.bf16.msra.mxu0 0
  %1313 = vmatprep.subr.bf16.mxu0 0
  %1314 = vmatpush1.bf16.msra.mxu0 0
  %1315 = vmatprep.subr.bf16.mxu0 0
  %1316 = vmatpush1.bf16.msra.mxu0 0
  %1317 = vmatprep.subr.bf16.mxu0 0
  %1318 = vmatpush1.bf16.msra.mxu0 0
  %1319 = vmatprep.subr.bf16.mxu0 0
  %1320 = vmatpush1.bf16.msra.mxu0 0
  %1321 = vmatprep.mubr.bf16.mxu0 0
  %1322 = vmatmul.mubr.bf16.gmra.mrb[0].mxu0 %v1247
  %v1323 = vpop.f32.mrb[0].mxu0
  %v1324 = vadd.f32 %v388, %v1323
  %v1325 = vpop.f32.mrb[0].mxu0
  %v1326 = vpop.f32.mrb[0].mxu0
  %v1327 = vpop.f32.mrb[0].mxu0
  %1328 = vdwg.mxu0
  %v1329 = vpack.c.bf16 %v1138, %v1138
  %1330 = vmatprep.subr.bf16.mxu0 %v698
  %1331 = vmatpush1.bf16.msra.mxu0 %v697
  %1332 = vmatprep.subr.bf16.mxu0 %v701
  %1333 = vmatpush1.bf16.msra.mxu0 %v700
  %1334 = vmatprep.subr.bf16.mxu0 %v704
  %1335 = vmatpush1.bf16.msra.mxu0 %v703
  %1336 = vmatprep.subr.bf16.mxu0 %v707
  %1337 = vmatpush1.bf16.msra.mxu0 %v706
  %1338 = vmatprep.subr.bf16.mxu0 %v710
  %1339 = vmatpush1.bf16.msra.mxu0 %v709
  %1340 = vmatprep.subr.bf16.mxu0 %v713
  %1341 = vmatpush1.bf16.msra.mxu0 %v712
  %1342 = vmatprep.subr.bf16.mxu0 %v716
  %1343 = vmatpush1.bf16.msra.mxu0 %v715
  %1344 = vmatprep.subr.bf16.mxu0 %v719
  %1345 = vmatpush1.bf16.msra.mxu0 %v718
  %1346 = vmatprep.subr.bf16.mxu0 0
  %1347 = vmatpush1.bf16.msra.mxu0 0
  %1348 = vmatprep.subr.bf16.mxu0 0
  %1349 = vmatpush1.bf16.msra.mxu0 0
  %1350 = vmatprep.subr.bf16.mxu0 0
  %1351 = vmatpush1.bf16.msra.mxu0 0
  %1352 = vmatprep.subr.bf16.mxu0 0
  %1353 = vmatpush1.bf16.msra.mxu0 0
  %1354 = vmatprep.subr.bf16.mxu0 0
  %1355 = vmatpush1.bf16.msra.mxu0 0
  %1356 = vmatprep.subr.bf16.mxu0 0
  %1357 = vmatpush1.bf16.msra.mxu0 0
  %1358 = vmatprep.subr.bf16.mxu0 0
  %1359 = vmatpush1.bf16.msra.mxu0 0
  %1360 = vmatprep.subr.bf16.mxu0 0
  %1361 = vmatpush1.bf16.msra.mxu0 0
  %1362 = vmatprep.mubr.bf16.mxu0 0
  %1363 = vmatmul.mubr.bf16.gmra.mrb[0].mxu0 %v1329
  %v1364 = vpop.f32.mrb[0].mxu0
  %v1365 = vadd.f32 %v605, %v1364
  %v1366 = vpop.f32.mrb[0].mxu0
  %v1367 = vadd.f32 %v609, %v1366
  %v1368 = vpop.f32.mrb[0].mxu0
  %v1369 = vpop.f32.mrb[0].mxu0
  %1370 = vdwg.mxu0
  %1371 = vmatprep.subr.bf16.mxu0 0
  %1372 = vmatpush1.bf16.msra.mxu0 %v699
  %1373 = vmatprep.subr.bf16.mxu0 0
  %1374 = vmatpush1.bf16.msra.mxu0 %v702
  %1375 = vmatprep.subr.bf16.mxu0 0
  %1376 = vmatpush1.bf16.msra.mxu0 %v705
  %1377 = vmatprep.subr.bf16.mxu0 0
  %1378 = vmatpush1.bf16.msra.mxu0 %v708
  %1379 = vmatprep.subr.bf16.mxu0 0
  %1380 = vmatpush1.bf16.msra.mxu0 %v711
  %1381 = vmatprep.subr.bf16.mxu0 0
  %1382 = vmatpush1.bf16.msra.mxu0 %v714
  %1383 = vmatprep.subr.bf16.mxu0 0
  %1384 = vmatpush1.bf16.msra.mxu0 %v717
  %1385 = vmatprep.subr.bf16.mxu0 0
  %1386 = vmatpush1.bf16.msra.mxu0 %v720
  %1387 = vmatprep.subr.bf16.mxu0 0
  %1388 = vmatpush1.bf16.msra.mxu0 0
  %1389 = vmatprep.subr.bf16.mxu0 0
  %1390 = vmatpush1.bf16.msra.mxu0 0
  %1391 = vmatprep.subr.bf16.mxu0 0
  %1392 = vmatpush1.bf16.msra.mxu0 0
  %1393 = vmatprep.subr.bf16.mxu0 0
  %1394 = vmatpush1.bf16.msra.mxu0 0
  %1395 = vmatprep.subr.bf16.mxu0 0
  %1396 = vmatpush1.bf16.msra.mxu0 0
  %1397 = vmatprep.subr.bf16.mxu0 0
  %1398 = vmatpush1.bf16.msra.mxu0 0
  %1399 = vmatprep.subr.bf16.mxu0 0
  %1400 = vmatpush1.bf16.msra.mxu0 0
  %1401 = vmatprep.subr.bf16.mxu0 0
  %1402 = vmatpush1.bf16.msra.mxu0 0
  %1403 = vmatprep.mubr.bf16.mxu0 0
  %1404 = vmatmul.mubr.bf16.gmra.mrb[0].mxu0 %v1329
  %v1405 = vpop.f32.mrb[0].mxu0
  %v1406 = vadd.f32 %v613, %v1405
  %v1407 = vpop.f32.mrb[0].mxu0
  %v1408 = vpop.f32.mrb[0].mxu0
  %v1409 = vpop.f32.mrb[0].mxu0
  %1410 = vdwg.mxu0
  %v1411 = vadd.f32 %v1283, %v1365
  %v1412 = vxor.u32 %v1411, 2147483648
  %v1413 = vmul.f32 %v1412, 1.442695
  %v1414 = vpow.pop %v1413
  %v1415 = vadd.f32 %v1414, 1.0
  %v1416 = vrcp.pop %v1415
  %v1417 = vmul.f32 1.0, %v1416
  %v1418 = vadd.f32 %v1285, %v1367
  %v1419 = vxor.u32 %v1418, 2147483648
  %v1420 = vmul.f32 %v1419, 1.442695
  %v1421 = vpow.pop %v1420
  %v1422 = vadd.f32 %v1421, 1.0
  %v1423 = vrcp.pop %v1422
  %v1424 = vmul.f32 1.0, %v1423
  %v1425 = vmul.f32 %v1417, %v1406
  %v1426 = vadd.f32 %v1324, %v1425
  %v1427 = vtanh.pop %v1426
  %v1428 = vsub.f32 1.0, %v1424
  %v1429 = vmul.f32 %v1428, %v1427
  %v1430 = vmul.f32 %v1424, %v1138
  %v1431 = vadd.f32 %v1429, %v1430
  %s1432 = scalar_lea.vmem %s7, 16
  %1433 = vst [vmem:[%s1432] sm:$0xff] %v1431
  %1434 = vmatprep.subr.bf16.mxu0 %v223
  %1435 = vmatpush1.bf16.msra.mxu0 %v222
  %1436 = vmatprep.subr.bf16.mxu0 %v226
  %1437 = vmatpush1.bf16.msra.mxu0 %v225
  %1438 = vmatprep.subr.bf16.mxu0 %v229
  %1439 = vmatpush1.bf16.msra.mxu0 %v228
  %1440 = vmatprep.subr.bf16.mxu0 %v232
  %1441 = vmatpush1.bf16.msra.mxu0 %v231
  %1442 = vmatprep.subr.bf16.mxu0 %v235
  %1443 = vmatpush1.bf16.msra.mxu0 %v234
  %1444 = vmatprep.subr.bf16.mxu0 %v238
  %1445 = vmatpush1.bf16.msra.mxu0 %v237
  %1446 = vmatprep.subr.bf16.mxu0 %v241
  %1447 = vmatpush1.bf16.msra.mxu0 %v240
  %1448 = vmatprep.subr.bf16.mxu0 %v244
  %1449 = vmatpush1.bf16.msra.mxu0 %v243
  %1450 = vmatprep.subr.bf16.mxu0 0
  %1451 = vmatpush1.bf16.msra.mxu0 0
  %1452 = vmatprep.subr.bf16.mxu0 0
  %1453 = vmatpush1.bf16.msra.mxu0 0
  %1454 = vmatprep.subr.bf16.mxu0 0
  %1455 = vmatpush1.bf16.msra.mxu0 0
  %1456 = vmatprep.subr.bf16.mxu0 0
  %1457 = vmatpush1.bf16.msra.mxu0 0
  %1458 = vmatprep.subr.bf16.mxu0 0
  %1459 = vmatpush1.bf16.msra.mxu0 0
  %1460 = vmatprep.subr.bf16.mxu0 0
  %1461 = vmatpush1.bf16.msra.mxu0 0
  %1462 = vmatprep.subr.bf16.mxu0 0
  %1463 = vmatpush1.bf16.msra.mxu0 0
  %1464 = vmatprep.subr.bf16.mxu0 0
  %1465 = vmatpush1.bf16.msra.mxu0 0
  %1466 = vmatprep.mubr.bf16.mxu0 0
  %1467 = vmatmul.mubr.bf16.gmra.mrb[0].mxu0 %v1247
  %v1468 = vpop.f32.mrb[0].mxu0
  %v1469 = vadd.f32 %v130, %v1468
  %v1470 = vpop.f32.mrb[0].mxu0
  %v1471 = vadd.f32 %v134, %v1470
  %v1472 = vpop.f32.mrb[0].mxu0
  %v1473 = vpop.f32.mrb[0].mxu0
  %1474 = vdwg.mxu0
  %1475 = vmatprep.subr.bf16.mxu0 0
  %1476 = vmatpush1.bf16.msra.mxu0 %v224
  %1477 = vmatprep.subr.bf16.mxu0 0
  %1478 = vmatpush1.bf16.msra.mxu0 %v227
  %1479 = vmatprep.subr.bf16.mxu0 0
  %1480 = vmatpush1.bf16.msra.mxu0 %v230
  %1481 = vmatprep.subr.bf16.mxu0 0
  %1482 = vmatpush1.bf16.msra.mxu0 %v233
  %1483 = vmatprep.subr.bf16.mxu0 0
  %1484 = vmatpush1.bf16.msra.mxu0 %v236
  %1485 = vmatprep.subr.bf16.mxu0 0
  %1486 = vmatpush1.bf16.msra.mxu0 %v239
  %1487 = vmatprep.subr.bf16.mxu0 0
  %1488 = vmatpush1.bf16.msra.mxu0 %v242
  %1489 = vmatprep.subr.bf16.mxu0 0
  %1490 = vmatpush1.bf16.msra.mxu0 %v245
  %1491 = vmatprep.subr.bf16.mxu0 0
  %1492 = vmatpush1.bf16.msra.mxu0 0
  %1493 = vmatprep.subr.bf16.mxu0 0
  %1494 = vmatpush1.bf16.msra.mxu0 0
  %1495 = vmatprep.subr.bf16.mxu0 0
  %1496 = vmatpush1.bf16.msra.mxu0 0
  %1497 = vmatprep.subr.bf16.mxu0 0
  %1498 = vmatpush1.bf16.msra.mxu0 0
  %1499 = vmatprep.subr.bf16.mxu0 0
  %1500 = vmatpush1.bf16.msra.mxu0 0
  %1501 = vmatprep.subr.bf16.mxu0 0
  %1502 = vmatpush1.bf16.msra.mxu0 0
  %1503 = vmatprep.subr.bf16.mxu0 0
  %1504 = vmatpush1.bf16.msra.mxu0 0
  %1505 = vmatprep.subr.bf16.mxu0 0
  %1506 = vmatpush1.bf16.msra.mxu0 0
  %1507 = vmatprep.mubr.bf16.mxu0 0
  %1508 = vmatmul.mubr.bf16.gmra.mrb[0].mxu0 %v1247
  %v1509 = vpop.f32.mrb[0].mxu0
  %v1510 = vadd.f32 %v138, %v1509
  %v1511 = vpop.f32.mrb[0].mxu0
  %v1512 = vpop.f32.mrb[0].mxu0
  %v1513 = vpop.f32.mrb[0].mxu0
  %1514 = vdwg.mxu0
  %s1515 = scalar_lea.vmem %s0, 72
  %v1516 = vld [vmem:[%s1515] sm:$0xff]
  %v1517 = vld [vmem:[%s1515 + $0x8] sm:$0xff]
  %v1518 = vld [vmem:[%s1515 + $0x10] sm:$0xff]
  %v1519 = vadd.f32 %v1516, %v1469
  %v1520 = vxor.u32 %v1519, 2147483648
  %v1521 = vmul.f32 %v1520, 1.442695
  %v1522 = vpow.pop %v1521
  %v1523 = vadd.f32 %v1522, 1.0
  %v1524 = vrcp.pop %v1523
  %v1525 = vmul.f32 1.0, %v1524
  %v1526 = vadd.f32 %v1517, %v1471
  %v1527 = vxor.u32 %v1526, 2147483648
  %v1528 = vmul.f32 %v1527, 1.442695
  %v1529 = vpow.pop %v1528
  %v1530 = vadd.f32 %v1529, 1.0
  %v1531 = vrcp.pop %v1530
  %v1532 = vmul.f32 1.0, %v1531
  %v1533 = vmul.f32 %v1525, %v1510
  %v1534 = vadd.f32 %v1518, %v1533
  %v1535 = vtanh.pop %v1534
  %v1536 = vsub.f32 1.0, %v1532
  %v1537 = vmul.f32 %v1536, %v1535
  %v1538 = vmul.f32 %v1532, %v1246
  %v1539 = vadd.f32 %v1537, %v1538
  %v1540 = vpack.c.bf16 %v1539, %v1539
  %1541 = vmatprep.subr.bf16.mxu0 %v473
  %1542 = vmatpush1.bf16.msra.mxu0 %v472
  %1543 = vmatprep.subr.bf16.mxu0 %v476
  %1544 = vmatpush1.bf16.msra.mxu0 %v475
  %1545 = vmatprep.subr.bf16.mxu0 %v479
  %1546 = vmatpush1.bf16.msra.mxu0 %v478
  %1547 = vmatprep.subr.bf16.mxu0 %v482
  %1548 = vmatpush1.bf16.msra.mxu0 %v481
  %1549 = vmatprep.subr.bf16.mxu0 %v485
  %1550 = vmatpush1.bf16.msra.mxu0 %v484
  %1551 = vmatprep.subr.bf16.mxu0 %v488
  %1552 = vmatpush1.bf16.msra.mxu0 %v487
  %1553 = vmatprep.subr.bf16.mxu0 %v491
  %1554 = vmatpush1.bf16.msra.mxu0 %v490
  %1555 = vmatprep.subr.bf16.mxu0 %v494
  %1556 = vmatpush1.bf16.msra.mxu0 %v493
  %1557 = vmatprep.subr.bf16.mxu0 0
  %1558 = vmatpush1.bf16.msra.mxu0 0
  %1559 = vmatprep.subr.bf16.mxu0 0
  %1560 = vmatpush1.bf16.msra.mxu0 0
  %1561 = vmatprep.subr.bf16.mxu0 0
  %1562 = vmatpush1.bf16.msra.mxu0 0
  %1563 = vmatprep.subr.bf16.mxu0 0
  %1564 = vmatpush1.bf16.msra.mxu0 0
  %1565 = vmatprep.subr.bf16.mxu0 0
  %1566 = vmatpush1.bf16.msra.mxu0 0
  %1567 = vmatprep.subr.bf16.mxu0 0
  %1568 = vmatpush1.bf16.msra.mxu0 0
  %1569 = vmatprep.subr.bf16.mxu0 0
  %1570 = vmatpush1.bf16.msra.mxu0 0
  %1571 = vmatprep.subr.bf16.mxu0 0
  %1572 = vmatpush1.bf16.msra.mxu0 0
  %1573 = vmatprep.mubr.bf16.mxu0 0
  %1574 = vmatmul.mubr.bf16.gmra.mrb[0].mxu0 %v1540
  %v1575 = vpop.f32.mrb[0].mxu0
  %v1576 = vadd.f32 %v380, %v1575
  %v1577 = vpop.f32.mrb[0].mxu0
  %v1578 = vadd.f32 %v384, %v1577
  %v1579 = vpop.f32.mrb[0].mxu0
  %v1580 = vpop.f32.mrb[0].mxu0
  %1581 = vdwg.mxu0
  %1582 = vmatprep.subr.bf16.mxu0 0
  %1583 = vmatpush1.bf16.msra.mxu0 %v474
  %1584 = vmatprep.subr.bf16.mxu0 0
  %1585 = vmatpush1.bf16.msra.mxu0 %v477
  %1586 = vmatprep.subr.bf16.mxu0 0
  %1587 = vmatpush1.bf16.msra.mxu0 %v480
  %1588 = vmatprep.subr.bf16.mxu0 0
  %1589 = vmatpush1.bf16.msra.mxu0 %v483
  %1590 = vmatprep.subr.bf16.mxu0 0
  %1591 = vmatpush1.bf16.msra.mxu0 %v486
  %1592 = vmatprep.subr.bf16.mxu0 0
  %1593 = vmatpush1.bf16.msra.mxu0 %v489
  %1594 = vmatprep.subr.bf16.mxu0 0
  %1595 = vmatpush1.bf16.msra.mxu0 %v492
  %1596 = vmatprep.subr.bf16.mxu0 0
  %1597 = vmatpush1.bf16.msra.mxu0 %v495
  %1598 = vmatprep.subr.bf16.mxu0 0
  %1599 = vmatpush1.bf16.msra.mxu0 0
  %1600 = vmatprep.subr.bf16.mxu0 0
  %1601 = vmatpush1.bf16.msra.mxu0 0
  %1602 = vmatprep.subr.bf16.mxu0 0
  %1603 = vmatpush1.bf16.msra.mxu0 0
  %1604 = vmatprep.subr.bf16.mxu0 0
  %1605 = vmatpush1.bf16.msra.mxu0 0
  %1606 = vmatprep.subr.bf16.mxu0 0
  %1607 = vmatpush1.bf16.msra.mxu0 0
  %1608 = vmatprep.subr.bf16.mxu0 0
  %1609 = vmatpush1.bf16.msra.mxu0 0
  %1610 = vmatprep.subr.bf16.mxu0 0
  %1611 = vmatpush1.bf16.msra.mxu0 0
  %1612 = vmatprep.subr.bf16.mxu0 0
  %1613 = vmatpush1.bf16.msra.mxu0 0
  %1614 = vmatprep.mubr.bf16.mxu0 0
  %1615 = vmatmul.mubr.bf16.gmra.mrb[0].mxu0 %v1540
  %v1616 = vpop.f32.mrb[0].mxu0
  %v1617 = vadd.f32 %v388, %v1616
  %v1618 = vpop.f32.mrb[0].mxu0
  %v1619 = vpop.f32.mrb[0].mxu0
  %v1620 = vpop.f32.mrb[0].mxu0
  %1621 = vdwg.mxu0
  %v1622 = vpack.c.bf16 %v1431, %v1431
  %1623 = vmatprep.subr.bf16.mxu0 %v698
  %1624 = vmatpush1.bf16.msra.mxu0 %v697
  %1625 = vmatprep.subr.bf16.mxu0 %v701
  %1626 = vmatpush1.bf16.msra.mxu0 %v700
  %1627 = vmatprep.subr.bf16.mxu0 %v704
  %1628 = vmatpush1.bf16.msra.mxu0 %v703
  %1629 = vmatprep.subr.bf16.mxu0 %v707
  %1630 = vmatpush1.bf16.msra.mxu0 %v706
  %1631 = vmatprep.subr.bf16.mxu0 %v710
  %1632 = vmatpush1.bf16.msra.mxu0 %v709
  %1633 = vmatprep.subr.bf16.mxu0 %v713
  %1634 = vmatpush1.bf16.msra.mxu0 %v712
  %1635 = vmatprep.subr.bf16.mxu0 %v716
  %1636 = vmatpush1.bf16.msra.mxu0 %v715
  %1637 = vmatprep.subr.bf16.mxu0 %v719
  %1638 = vmatpush1.bf16.msra.mxu0 %v718
  %1639 = vmatprep.subr.bf16.mxu0 0
  %1640 = vmatpush1.bf16.msra.mxu0 0
  %1641 = vmatprep.subr.bf16.mxu0 0
  %1642 = vmatpush1.bf16.msra.mxu0 0
  %1643 = vmatprep.subr.bf16.mxu0 0
  %1644 = vmatpush1.bf16.msra.mxu0 0
  %1645 = vmatprep.subr.bf16.mxu0 0
  %1646 = vmatpush1.bf16.msra.mxu0 0
  %1647 = vmatprep.subr.bf16.mxu0 0
  %1648 = vmatpush1.bf16.msra.mxu0 0
  %1649 = vmatprep.subr.bf16.mxu0 0
  %1650 = vmatpush1.bf16.msra.mxu0 0
  %1651 = vmatprep.subr.bf16.mxu0 0
  %1652 = vmatpush1.bf16.msra.mxu0 0
  %1653 = vmatprep.subr.bf16.mxu0 0
  %1654 = vmatpush1.bf16.msra.mxu0 0
  %1655 = vmatprep.mubr.bf16.mxu0 0
  %1656 = vmatmul.mubr.bf16.gmra.mrb[0].mxu0 %v1622
  %v1657 = vpop.f32.mrb[0].mxu0
  %v1658 = vadd.f32 %v605, %v1657
  %v1659 = vpop.f32.mrb[0].mxu0
  %v1660 = vadd.f32 %v609, %v1659
  %v1661 = vpop.f32.mrb[0].mxu0
  %v1662 = vpop.f32.mrb[0].mxu0
  %1663 = vdwg.mxu0
  %1664 = vmatprep.subr.bf16.mxu0 0
  %1665 = vmatpush1.bf16.msra.mxu0 %v699
  %1666 = vmatprep.subr.bf16.mxu0 0
  %1667 = vmatpush1.bf16.msra.mxu0 %v702
  %1668 = vmatprep.subr.bf16.mxu0 0
  %1669 = vmatpush1.bf16.msra.mxu0 %v705
  %1670 = vmatprep.subr.bf16.mxu0 0
  %1671 = vmatpush1.bf16.msra.mxu0 %v708
  %1672 = vmatprep.subr.bf16.mxu0 0
  %1673 = vmatpush1.bf16.msra.mxu0 %v711
  %1674 = vmatprep.subr.bf16.mxu0 0
  %1675 = vmatpush1.bf16.msra.mxu0 %v714
  %1676 = vmatprep.subr.bf16.mxu0 0
  %1677 = vmatpush1.bf16.msra.mxu0 %v717
  %1678 = vmatprep.subr.bf16.mxu0 0
  %1679 = vmatpush1.bf16.msra.mxu0 %v720
  %1680 = vmatprep.subr.bf16.mxu0 0
  %1681 = vmatpush1.bf16.msra.mxu0 0
  %1682 = vmatprep.subr.bf16.mxu0 0
  %1683 = vmatpush1.bf16.msra.mxu0 0
  %1684 = vmatprep.subr.bf16.mxu0 0
  %1685 = vmatpush1.bf16.msra.mxu0 0
  %1686 = vmatprep.subr.bf16.mxu0 0
  %1687 = vmatpush1.bf16.msra.mxu0 0
  %1688 = vmatprep.subr.bf16.mxu0 0
  %1689 = vmatpush1.bf16.msra.mxu0 0
  %1690 = vmatprep.subr.bf16.mxu0 0
  %1691 = vmatpush1.bf16.msra.mxu0 0
  %1692 = vmatprep.subr.bf16.mxu0 0
  %1693 = vmatpush1.bf16.msra.mxu0 0
  %1694 = vmatprep.subr.bf16.mxu0 0
  %1695 = vmatpush1.bf16.msra.mxu0 0
  %1696 = vmatprep.mubr.bf16.mxu0 0
  %1697 = vmatmul.mubr.bf16.gmra.mrb[0].mxu0 %v1622
  %v1698 = vpop.f32.mrb[0].mxu0
  %v1699 = vadd.f32 %v613, %v1698
  %v1700 = vpop.f32.mrb[0].mxu0
  %v1701 = vpop.f32.mrb[0].mxu0
  %v1702 = vpop.f32.mrb[0].mxu0
  %1703 = vdwg.mxu0
  %v1704 = vadd.f32 %v1576, %v1658
  %v1705 = vxor.u32 %v1704, 2147483648
  %v1706 = vmul.f32 %v1705, 1.442695
  %v1707 = vpow.pop %v1706
  %v1708 = vadd.f32 %v1707, 1.0
  %v1709 = vrcp.pop %v1708
  %v1710 = vmul.f32 1.0, %v1709
  %v1711 = vadd.f32 %v1578, %v1660
  %v1712 = vxor.u32 %v1711, 2147483648
  %v1713 = vmul.f32 %v1712, 1.442695
  %v1714 = vpow.pop %v1713
  %v1715 = vadd.f32 %v1714, 1.0
  %v1716 = vrcp.pop %v1715
  %v1717 = vmul.f32 1.0, %v1716
  %v1718 = vmul.f32 %v1710, %v1699
  %v1719 = vadd.f32 %v1617, %v1718
  %v1720 = vtanh.pop %v1719
  %v1721 = vsub.f32 1.0, %v1717
  %v1722 = vmul.f32 %v1721, %v1720
  %v1723 = vmul.f32 %v1717, %v1431
  %v1724 = vadd.f32 %v1722, %v1723
  %s1725 = scalar_lea.vmem %s7, 24
  %1726 = vst [vmem:[%s1725] sm:$0xff] %v1724
  %1727 = vmatprep.subr.bf16.mxu0 %v223
  %1728 = vmatpush1.bf16.msra.mxu0 %v222
  %1729 = vmatprep.subr.bf16.mxu0 %v226
  %1730 = vmatpush1.bf16.msra.mxu0 %v225
  %1731 = vmatprep.subr.bf16.mxu0 %v229
  %1732 = vmatpush1.bf16.msra.mxu0 %v228
  %1733 = vmatprep.subr.bf16.mxu0 %v232
  %1734 = vmatpush1.bf16.msra.mxu0 %v231
  %1735 = vmatprep.subr.bf16.mxu0 %v235
  %1736 = vmatpush1.bf16.msra.mxu0 %v234
  %1737 = vmatprep.subr.bf16.mxu0 %v238
  %1738 = vmatpush1.bf16.msra.mxu0 %v237
  %1739 = vmatprep.subr.bf16.mxu0 %v241
  %1740 = vmatpush1.bf16.msra.mxu0 %v240
  %1741 = vmatprep.subr.bf16.mxu0 %v244
  %1742 = vmatpush1.bf16.msra.mxu0 %v243
  %1743 = vmatprep.subr.bf16.mxu0 0
  %1744 = vmatpush1.bf16.msra.mxu0 0
  %1745 = vmatprep.subr.bf16.mxu0 0
  %1746 = vmatpush1.bf16.msra.mxu0 0
  %1747 = vmatprep.subr.bf16.mxu0 0
  %1748 = vmatpush1.bf16.msra.mxu0 0
  %1749 = vmatprep.subr.bf16.mxu0 0
  %1750 = vmatpush1.bf16.msra.mxu0 0
  %1751 = vmatprep.subr.bf16.mxu0 0
  %1752 = vmatpush1.bf16.msra.mxu0 0
  %1753 = vmatprep.subr.bf16.mxu0 0
  %1754 = vmatpush1.bf16.msra.mxu0 0
  %1755 = vmatprep.subr.bf16.mxu0 0
  %1756 = vmatpush1.bf16.msra.mxu0 0
  %1757 = vmatprep.subr.bf16.mxu0 0
  %1758 = vmatpush1.bf16.msra.mxu0 0
  %1759 = vmatprep.mubr.bf16.mxu0 0
  %1760 = vmatmul.mubr.bf16.gmra.mrb[0].mxu0 %v1540
  %v1761 = vpop.f32.mrb[0].mxu0
  %v1762 = vadd.f32 %v130, %v1761
  %v1763 = vpop.f32.mrb[0].mxu0
  %v1764 = vadd.f32 %v134, %v1763
  %v1765 = vpop.f32.mrb[0].mxu0
  %v1766 = vpop.f32.mrb[0].mxu0
  %1767 = vdwg.mxu0
  %1768 = vmatprep.subr.bf16.mxu0 0
  %1769 = vmatpush1.bf16.msra.mxu0 %v224
  %1770 = vmatprep.subr.bf16.mxu0 0
  %1771 = vmatpush1.bf16.msra.mxu0 %v227
  %1772 = vmatprep.subr.bf16.mxu0 0
  %1773 = vmatpush1.bf16.msra.mxu0 %v230
  %1774 = vmatprep.subr.bf16.mxu0 0
  %1775 = vmatpush1.bf16.msra.mxu0 %v233
  %1776 = vmatprep.subr.bf16.mxu0 0
  %1777 = vmatpush1.bf16.msra.mxu0 %v236
  %1778 = vmatprep.subr.bf16.mxu0 0
  %1779 = vmatpush1.bf16.msra.mxu0 %v239
  %1780 = vmatprep.subr.bf16.mxu0 0
  %1781 = vmatpush1.bf16.msra.mxu0 %v242
  %1782 = vmatprep.subr.bf16.mxu0 0
  %1783 = vmatpush1.bf16.msra.mxu0 %v245
  %1784 = vmatprep.subr.bf16.mxu0 0
  %1785 = vmatpush1.bf16.msra.mxu0 0
  %1786 = vmatprep.subr.bf16.mxu0 0
  %1787 = vmatpush1.bf16.msra.mxu0 0
  %1788 = vmatprep.subr.bf16.mxu0 0
  %1789 = vmatpush1.bf16.msra.mxu0 0
  %1790 = vmatprep.subr.bf16.mxu0 0
  %1791 = vmatpush1.bf16.msra.mxu0 0
  %1792 = vmatprep.subr.bf16.mxu0 0
  %1793 = vmatpush1.bf16.msra.mxu0 0
  %1794 = vmatprep.subr.bf16.mxu0 0
  %1795 = vmatpush1.bf16.msra.mxu0 0
  %1796 = vmatprep.subr.bf16.mxu0 0
  %1797 = vmatpush1.bf16.msra.mxu0 0
  %1798 = vmatprep.subr.bf16.mxu0 0
  %1799 = vmatpush1.bf16.msra.mxu0 0
  %1800 = vmatprep.mubr.bf16.mxu0 0
  %1801 = vmatmul.mubr.bf16.gmra.mrb[0].mxu0 %v1540
  %v1802 = vpop.f32.mrb[0].mxu0
  %v1803 = vadd.f32 %v138, %v1802
  %v1804 = vpop.f32.mrb[0].mxu0
  %v1805 = vpop.f32.mrb[0].mxu0
  %v1806 = vpop.f32.mrb[0].mxu0
  %1807 = vdwg.mxu0
  %s1808 = scalar_lea.vmem %s0, 96
  %v1809 = vld [vmem:[%s1808] sm:$0xff]
  %v1810 = vld [vmem:[%s1808 + $0x8] sm:$0xff]
  %v1811 = vld [vmem:[%s1808 + $0x10] sm:$0xff]
  %v1812 = vadd.f32 %v1809, %v1762
  %v1813 = vxor.u32 %v1812, 2147483648
  %v1814 = vmul.f32 %v1813, 1.442695
  %v1815 = vpow.pop %v1814
  %v1816 = vadd.f32 %v1815, 1.0
  %v1817 = vrcp.pop %v1816
  %v1818 = vmul.f32 1.0, %v1817
  %v1819 = vadd.f32 %v1810, %v1764
  %v1820 = vxor.u32 %v1819, 2147483648
  %v1821 = vmul.f32 %v1820, 1.442695
  %v1822 = vpow.pop %v1821
  %v1823 = vadd.f32 %v1822, 1.0
  %v1824 = vrcp.pop %v1823
  %v1825 = vmul.f32 1.0, %v1824
  %v1826 = vmul.f32 %v1818, %v1803
  %v1827 = vadd.f32 %v1811, %v1826
  %v1828 = vtanh.pop %v1827
  %v1829 = vsub.f32 1.0, %v1825
  %v1830 = vmul.f32 %v1829, %v1828
  %v1831 = vmul.f32 %v1825, %v1539
  %v1832 = vadd.f32 %v1830, %v1831
  %v1833 = vpack.c.bf16 %v1832, %v1832
  %1834 = vmatprep.subr.bf16.mxu0 %v473
  %1835 = vmatpush1.bf16.msra.mxu0 %v472
  %1836 = vmatprep.subr.bf16.mxu0 %v476
  %1837 = vmatpush1.bf16.msra.mxu0 %v475
  %1838 = vmatprep.subr.bf16.mxu0 %v479
  %1839 = vmatpush1.bf16.msra.mxu0 %v478
  %1840 = vmatprep.subr.bf16.mxu0 %v482
  %1841 = vmatpush1.bf16.msra.mxu0 %v481
  %1842 = vmatprep.subr.bf16.mxu0 %v485
  %1843 = vmatpush1.bf16.msra.mxu0 %v484
  %1844 = vmatprep.subr.bf16.mxu0 %v488
  %1845 = vmatpush1.bf16.msra.mxu0 %v487
  %1846 = vmatprep.subr.bf16.mxu0 %v491
  %1847 = vmatpush1.bf16.msra.mxu0 %v490
  %1848 = vmatprep.subr.bf16.mxu0 %v494
  %1849 = vmatpush1.bf16.msra.mxu0 %v493
  %1850 = vmatprep.subr.bf16.mxu0 0
  %1851 = vmatpush1.bf16.msra.mxu0 0
  %1852 = vmatprep.subr.bf16.mxu0 0
  %1853 = vmatpush1.bf16.msra.mxu0 0
  %1854 = vmatprep.subr.bf16.mxu0 0
  %1855 = vmatpush1.bf16.msra.mxu0 0
  %1856 = vmatprep.subr.bf16.mxu0 0
  %1857 = vmatpush1.bf16.msra.mxu0 0
  %1858 = vmatprep.subr.bf16.mxu0 0
  %1859 = vmatpush1.bf16.msra.mxu0 0
  %1860 = vmatprep.subr.bf16.mxu0 0
  %1861 = vmatpush1.bf16.msra.mxu0 0
  %1862 = vmatprep.subr.bf16.mxu0 0
  %1863 = vmatpush1.bf16.msra.mxu0 0
  %1864 = vmatprep.subr.bf16.mxu0 0
  %1865 = vmatpush1.bf16.msra.mxu0 0
  %1866 = vmatprep.mubr.bf16.mxu0 0
  %1867 = vmatmul.mubr.bf16.gmra.mrb[0].mxu0 %v1833
  %v1868 = vpop.f32.mrb[0].mxu0
  %v1869 = vadd.f32 %v380, %v1868
  %v1870 = vpop.f32.mrb[0].mxu0
  %v1871 = vadd.f32 %v384, %v1870
  %v1872 = vpop.f32.mrb[0].mxu0
  %v1873 = vpop.f32.mrb[0].mxu0
  %1874 = vdwg.mxu0
  %1875 = vmatprep.subr.bf16.mxu0 0
  %1876 = vmatpush1.bf16.msra.mxu0 %v474
  %1877 = vmatprep.subr.bf16.mxu0 0
  %1878 = vmatpush1.bf16.msra.mxu0 %v477
  %1879 = vmatprep.subr.bf16.mxu0 0
  %1880 = vmatpush1.bf16.msra.mxu0 %v480
  %1881 = vmatprep.subr.bf16.mxu0 0
  %1882 = vmatpush1.bf16.msra.mxu0 %v483
  %1883 = vmatprep.subr.bf16.mxu0 0
  %1884 = vmatpush1.bf16.msra.mxu0 %v486
  %1885 = vmatprep.subr.bf16.mxu0 0
  %1886 = vmatpush1.bf16.msra.mxu0 %v489
  %1887 = vmatprep.subr.bf16.mxu0 0
  %1888 = vmatpush1.bf16.msra.mxu0 %v492
  %1889 = vmatprep.subr.bf16.mxu0 0
  %1890 = vmatpush1.bf16.msra.mxu0 %v495
  %1891 = vmatprep.subr.bf16.mxu0 0
  %1892 = vmatpush1.bf16.msra.mxu0 0
  %1893 = vmatprep.subr.bf16.mxu0 0
  %1894 = vmatpush1.bf16.msra.mxu0 0
  %1895 = vmatprep.subr.bf16.mxu0 0
  %1896 = vmatpush1.bf16.msra.mxu0 0
  %1897 = vmatprep.subr.bf16.mxu0 0
  %1898 = vmatpush1.bf16.msra.mxu0 0
  %1899 = vmatprep.subr.bf16.mxu0 0
  %1900 = vmatpush1.bf16.msra.mxu0 0
  %1901 = vmatprep.subr.bf16.mxu0 0
  %1902 = vmatpush1.bf16.msra.mxu0 0
  %1903 = vmatprep.subr.bf16.mxu0 0
  %1904 = vmatpush1.bf16.msra.mxu0 0
  %1905 = vmatprep.subr.bf16.mxu0 0
  %1906 = vmatpush1.bf16.msra.mxu0 0
  %1907 = vmatprep.mubr.bf16.mxu0 0
  %1908 = vmatmul.mubr.bf16.gmra.mrb[0].mxu0 %v1833
  %v1909 = vpop.f32.mrb[0].mxu0
  %v1910 = vadd.f32 %v388, %v1909
  %v1911 = vpop.f32.mrb[0].mxu0
  %v1912 = vpop.f32.mrb[0].mxu0
  %v1913 = vpop.f32.mrb[0].mxu0
  %1914 = vdwg.mxu0
  %v1915 = vpack.c.bf16 %v1724, %v1724
  %1916 = vmatprep.subr.bf16.mxu0 %v698
  %1917 = vmatpush1.bf16.msra.mxu0 %v697
  %1918 = vmatprep.subr.bf16.mxu0 %v701
  %1919 = vmatpush1.bf16.msra.mxu0 %v700
  %1920 = vmatprep.subr.bf16.mxu0 %v704
  %1921 = vmatpush1.bf16.msra.mxu0 %v703
  %1922 = vmatprep.subr.bf16.mxu0 %v707
  %1923 = vmatpush1.bf16.msra.mxu0 %v706
  %1924 = vmatprep.subr.bf16.mxu0 %v710
  %1925 = vmatpush1.bf16.msra.mxu0 %v709
  %1926 = vmatprep.subr.bf16.mxu0 %v713
  %1927 = vmatpush1.bf16.msra.mxu0 %v712
  %1928 = vmatprep.subr.bf16.mxu0 %v716
  %1929 = vmatpush1.bf16.msra.mxu0 %v715
  %1930 = vmatprep.subr.bf16.mxu0 %v719
  %1931 = vmatpush1.bf16.msra.mxu0 %v718
  %1932 = vmatprep.subr.bf16.mxu0 0
  %1933 = vmatpush1.bf16.msra.mxu0 0
  %1934 = vmatprep.subr.bf16.mxu0 0
  %1935 = vmatpush1.bf16.msra.mxu0 0
  %1936 = vmatprep.subr.bf16.mxu0 0
  %1937 = vmatpush1.bf16.msra.mxu0 0
  %1938 = vmatprep.subr.bf16.mxu0 0
  %1939 = vmatpush1.bf16.msra.mxu0 0
  %1940 = vmatprep.subr.bf16.mxu0 0
  %1941 = vmatpush1.bf16.msra.mxu0 0
  %1942 = vmatprep.subr.bf16.mxu0 0
  %1943 = vmatpush1.bf16.msra.mxu0 0
  %1944 = vmatprep.subr.bf16.mxu0 0
  %1945 = vmatpush1.bf16.msra.mxu0 0
  %1946 = vmatprep.subr.bf16.mxu0 0
  %1947 = vmatpush1.bf16.msra.mxu0 0
  %1948 = vmatprep.mubr.bf16.mxu0 0
  %1949 = vmatmul.mubr.bf16.gmra.mrb[0].mxu0 %v1915
  %v1950 = vpop.f32.mrb[0].mxu0
  %v1951 = vadd.f32 %v605, %v1950
  %v1952 = vpop.f32.mrb[0].mxu0
  %v1953 = vadd.f32 %v609, %v1952
  %v1954 = vpop.f32.mrb[0].mxu0
  %v1955 = vpop.f32.mrb[0].mxu0
  %1956 = vdwg.mxu0
  %1957 = vmatprep.subr.bf16.mxu0 0
  %1958 = vmatpush1.bf16.msra.mxu0 %v699
  %1959 = vmatprep.subr.bf16.mxu0 0
  %1960 = vmatpush1.bf16.msra.mxu0 %v702
  %1961 = vmatprep.subr.bf16.mxu0 0
  %1962 = vmatpush1.bf16.msra.mxu0 %v705
  %1963 = vmatprep.subr.bf16.mxu0 0
  %1964 = vmatpush1.bf16.msra.mxu0 %v708
  %1965 = vmatprep.subr.bf16.mxu0 0
  %1966 = vmatpush1.bf16.msra.mxu0 %v711
  %1967 = vmatprep.subr.bf16.mxu0 0
  %1968 = vmatpush1.bf16.msra.mxu0 %v714
  %1969 = vmatprep.subr.bf16.mxu0 0
  %1970 = vmatpush1.bf16.msra.mxu0 %v717
  %1971 = vmatprep.subr.bf16.mxu0 0
  %1972 = vmatpush1.bf16.msra.mxu0 %v720
  %1973 = vmatprep.subr.bf16.mxu0 0
  %1974 = vmatpush1.bf16.msra.mxu0 0
  %1975 = vmatprep.subr.bf16.mxu0 0
  %1976 = vmatpush1.bf16.msra.mxu0 0
  %1977 = vmatprep.subr.bf16.mxu0 0
  %1978 = vmatpush1.bf16.msra.mxu0 0
  %1979 = vmatprep.subr.bf16.mxu0 0
  %1980 = vmatpush1.bf16.msra.mxu0 0
  %1981 = vmatprep.subr.bf16.mxu0 0
  %1982 = vmatpush1.bf16.msra.mxu0 0
  %1983 = vmatprep.subr.bf16.mxu0 0
  %1984 = vmatpush1.bf16.msra.mxu0 0
  %1985 = vmatprep.subr.bf16.mxu0 0
  %1986 = vmatpush1.bf16.msra.mxu0 0
  %1987 = vmatprep.subr.bf16.mxu0 0
  %1988 = vmatpush1.bf16.msra.mxu0 0
  %1989 = vmatprep.mubr.bf16.mxu0 0
  %1990 = vmatmul.mubr.bf16.gmra.mrb[0].mxu0 %v1915
  %v1991 = vpop.f32.mrb[0].mxu0
  %v1992 = vadd.f32 %v613, %v1991
  %v1993 = vpop.f32.mrb[0].mxu0
  %v1994 = vpop.f32.mrb[0].mxu0
  %v1995 = vpop.f32.mrb[0].mxu0
  %1996 = vdwg.mxu0
  %v1997 = vadd.f32 %v1869, %v1951
  %v1998 = vxor.u32 %v1997, 2147483648
  %v1999 = vmul.f32 %v1998, 1.442695
  %v2000 = vpow.pop %v1999
  %v2001 = vadd.f32 %v2000, 1.0
  %v2002 = vrcp.pop %v2001
  %v2003 = vmul.f32 1.0, %v2002
  %v2004 = vadd.f32 %v1871, %v1953
  %v2005 = vxor.u32 %v2004, 2147483648
  %v2006 = vmul.f32 %v2005, 1.442695
  %v2007 = vpow.pop %v2006
  %v2008 = vadd.f32 %v2007, 1.0
  %v2009 = vrcp.pop %v2008
  %v2010 = vmul.f32 1.0, %v2009
  %v2011 = vmul.f32 %v2003, %v1992
  %v2012 = vadd.f32 %v1910, %v2011
  %v2013 = vtanh.pop %v2012
  %v2014 = vsub.f32 1.0, %v2010
  %v2015 = vmul.f32 %v2014, %v2013
  %v2016 = vmul.f32 %v2010, %v1724
  %v2017 = vadd.f32 %v2015, %v2016
  %s2018 = scalar_lea.vmem %s7, 32
  %2019 = vst [vmem:[%s2018] sm:$0xff] %v2017
  %2020 = vmatprep.subr.bf16.mxu0 %v223
  %2021 = vmatpush1.bf16.msra.mxu0 %v222
  %2022 = vmatprep.subr.bf16.mxu0 %v226
  %2023 = vmatpush1.bf16.msra.mxu0 %v225
  %2024 = vmatprep.subr.bf16.mxu0 %v229
  %2025 = vmatpush1.bf16.msra.mxu0 %v228
  %2026 = vmatprep.subr.bf16.mxu0 %v232
  %2027 = vmatpush1.bf16.msra.mxu0 %v231
  %2028 = vmatprep.subr.bf16.mxu0 %v235
  %2029 = vmatpush1.bf16.msra.mxu0 %v234
  %2030 = vmatprep.subr.bf16.mxu0 %v238
  %2031 = vmatpush1.bf16.msra.mxu0 %v237
  %2032 = vmatprep.subr.bf16.mxu0 %v241
  %2033 = vmatpush1.bf16.msra.mxu0 %v240
  %2034 = vmatprep.subr.bf16.mxu0 %v244
  %2035 = vmatpush1.bf16.msra.mxu0 %v243
  %2036 = vmatprep.subr.bf16.mxu0 0
  %2037 = vmatpush1.bf16.msra.mxu0 0
  %2038 = vmatprep.subr.bf16.mxu0 0
  %2039 = vmatpush1.bf16.msra.mxu0 0
  %2040 = vmatprep.subr.bf16.mxu0 0
  %2041 = vmatpush1.bf16.msra.mxu0 0
  %2042 = vmatprep.subr.bf16.mxu0 0
  %2043 = vmatpush1.bf16.msra.mxu0 0
  %2044 = vmatprep.subr.bf16.mxu0 0
  %2045 = vmatpush1.bf16.msra.mxu0 0
  %2046 = vmatprep.subr.bf16.mxu0 0
  %2047 = vmatpush1.bf16.msra.mxu0 0
  %2048 = vmatprep.subr.bf16.mxu0 0
  %2049 = vmatpush1.bf16.msra.mxu0 0
  %2050 = vmatprep.subr.bf16.mxu0 0
  %2051 = vmatpush1.bf16.msra.mxu0 0
  %2052 = vmatprep.mubr.bf16.mxu0 0
  %2053 = vmatmul.mubr.bf16.gmra.mrb[0].mxu0 %v1833
  %v2054 = vpop.f32.mrb[0].mxu0
  %v2055 = vadd.f32 %v130, %v2054
  %v2056 = vpop.f32.mrb[0].mxu0
  %v2057 = vadd.f32 %v134, %v2056
  %v2058 = vpop.f32.mrb[0].mxu0
  %v2059 = vpop.f32.mrb[0].mxu0
  %2060 = vdwg.mxu0
  %2061 = vmatprep.subr.bf16.mxu0 0
  %2062 = vmatpush1.bf16.msra.mxu0 %v224
  %2063 = vmatprep.subr.bf16.mxu0 0
  %2064 = vmatpush1.bf16.msra.mxu0 %v227
  %2065 = vmatprep.subr.bf16.mxu0 0
  %2066 = vmatpush1.bf16.msra.mxu0 %v230
  %2067 = vmatprep.subr.bf16.mxu0 0
  %2068 = vmatpush1.bf16.msra.mxu0 %v233
  %2069 = vmatprep.subr.bf16.mxu0 0
  %2070 = vmatpush1.bf16.msra.mxu0 %v236
  %2071 = vmatprep.subr.bf16.mxu0 0
  %2072 = vmatpush1.bf16.msra.mxu0 %v239
  %2073 = vmatprep.subr.bf16.mxu0 0
  %2074 = vmatpush1.bf16.msra.mxu0 %v242
  %2075 = vmatprep.subr.bf16.mxu0 0
  %2076 = vmatpush1.bf16.msra.mxu0 %v245
  %2077 = vmatprep.subr.bf16.mxu0 0
  %2078 = vmatpush1.bf16.msra.mxu0 0
  %2079 = vmatprep.subr.bf16.mxu0 0
  %2080 = vmatpush1.bf16.msra.mxu0 0
  %2081 = vmatprep.subr.bf16.mxu0 0
  %2082 = vmatpush1.bf16.msra.mxu0 0
  %2083 = vmatprep.subr.bf16.mxu0 0
  %2084 = vmatpush1.bf16.msra.mxu0 0
  %2085 = vmatprep.subr.bf16.mxu0 0
  %2086 = vmatpush1.bf16.msra.mxu0 0
  %2087 = vmatprep.subr.bf16.mxu0 0
  %2088 = vmatpush1.bf16.msra.mxu0 0
  %2089 = vmatprep.subr.bf16.mxu0 0
  %2090 = vmatpush1.bf16.msra.mxu0 0
  %2091 = vmatprep.subr.bf16.mxu0 0
  %2092 = vmatpush1.bf16.msra.mxu0 0
  %2093 = vmatprep.mubr.bf16.mxu0 0
  %2094 = vmatmul.mubr.bf16.gmra.mrb[0].mxu0 %v1833
  %v2095 = vpop.f32.mrb[0].mxu0
  %v2096 = vadd.f32 %v138, %v2095
  %v2097 = vpop.f32.mrb[0].mxu0
  %v2098 = vpop.f32.mrb[0].mxu0
  %v2099 = vpop.f32.mrb[0].mxu0
  %2100 = vdwg.mxu0
  %s2101 = scalar_lea.vmem %s0, 120
  %v2102 = vld [vmem:[%s2101] sm:$0xff]
  %v2103 = vld [vmem:[%s2101 + $0x8] sm:$0xff]
  %v2104 = vld [vmem:[%s2101 + $0x10] sm:$0xff]
  %v2105 = vadd.f32 %v2102, %v2055
  %v2106 = vxor.u32 %v2105, 2147483648
  %v2107 = vmul.f32 %v2106, 1.442695
  %v2108 = vpow.pop %v2107
  %v2109 = vadd.f32 %v2108, 1.0
  %v2110 = vrcp.pop %v2109
  %v2111 = vmul.f32 1.0, %v2110
  %v2112 = vadd.f32 %v2103, %v2057
  %v2113 = vxor.u32 %v2112, 2147483648
  %v2114 = vmul.f32 %v2113, 1.442695
  %v2115 = vpow.pop %v2114
  %v2116 = vadd.f32 %v2115, 1.0
  %v2117 = vrcp.pop %v2116
  %v2118 = vmul.f32 1.0, %v2117
  %v2119 = vmul.f32 %v2111, %v2096
  %v2120 = vadd.f32 %v2104, %v2119
  %v2121 = vtanh.pop %v2120
  %v2122 = vsub.f32 1.0, %v2118
  %v2123 = vmul.f32 %v2122, %v2121
  %v2124 = vmul.f32 %v2118, %v1832
  %v2125 = vadd.f32 %v2123, %v2124
  %v2126 = vpack.c.bf16 %v2125, %v2125
  %2127 = vmatprep.subr.bf16.mxu0 %v473
  %2128 = vmatpush1.bf16.msra.mxu0 %v472
  %2129 = vmatprep.subr.bf16.mxu0 %v476
  %2130 = vmatpush1.bf16.msra.mxu0 %v475
  %2131 = vmatprep.subr.bf16.mxu0 %v479
  %2132 = vmatpush1.bf16.msra.mxu0 %v478
  %2133 = vmatprep.subr.bf16.mxu0 %v482
  %2134 = vmatpush1.bf16.msra.mxu0 %v481
  %2135 = vmatprep.subr.bf16.mxu0 %v485
  %2136 = vmatpush1.bf16.msra.mxu0 %v484
  %2137 = vmatprep.subr.bf16.mxu0 %v488
  %2138 = vmatpush1.bf16.msra.mxu0 %v487
  %2139 = vmatprep.subr.bf16.mxu0 %v491
  %2140 = vmatpush1.bf16.msra.mxu0 %v490
  %2141 = vmatprep.subr.bf16.mxu0 %v494
  %2142 = vmatpush1.bf16.msra.mxu0 %v493
  %2143 = vmatprep.subr.bf16.mxu0 0
  %2144 = vmatpush1.bf16.msra.mxu0 0
  %2145 = vmatprep.subr.bf16.mxu0 0
  %2146 = vmatpush1.bf16.msra.mxu0 0
  %2147 = vmatprep.subr.bf16.mxu0 0
  %2148 = vmatpush1.bf16.msra.mxu0 0
  %2149 = vmatprep.subr.bf16.mxu0 0
  %2150 = vmatpush1.bf16.msra.mxu0 0
  %2151 = vmatprep.subr.bf16.mxu0 0
  %2152 = vmatpush1.bf16.msra.mxu0 0
  %2153 = vmatprep.subr.bf16.mxu0 0
  %2154 = vmatpush1.bf16.msra.mxu0 0
  %2155 = vmatprep.subr.bf16.mxu0 0
  %2156 = vmatpush1.bf16.msra.mxu0 0
  %2157 = vmatprep.subr.bf16.mxu0 0
  %2158 = vmatpush1.bf16.msra.mxu0 0
  %2159 = vmatprep.mubr.bf16.mxu0 0
  %2160 = vmatmul.mubr.bf16.gmra.mrb[0].mxu0 %v2126
  %v2161 = vpop.f32.mrb[0].mxu0
  %v2162 = vadd.f32 %v380, %v2161
  %v2163 = vpop.f32.mrb[0].mxu0
  %v2164 = vadd.f32 %v384, %v2163
  %v2165 = vpop.f32.mrb[0].mxu0
  %v2166 = vpop.f32.mrb[0].mxu0
  %2167 = vdwg.mxu0
  %2168 = vmatprep.subr.bf16.mxu0 0
  %2169 = vmatpush1.bf16.msra.mxu0 %v474
  %2170 = vmatprep.subr.bf16.mxu0 0
  %2171 = vmatpush1.bf16.msra.mxu0 %v477
  %2172 = vmatprep.subr.bf16.mxu0 0
  %2173 = vmatpush1.bf16.msra.mxu0 %v480
  %2174 = vmatprep.subr.bf16.mxu0 0
  %2175 = vmatpush1.bf16.msra.mxu0 %v483
  %2176 = vmatprep.subr.bf16.mxu0 0
  %2177 = vmatpush1.bf16.msra.mxu0 %v486
  %2178 = vmatprep.subr.bf16.mxu0 0
  %2179 = vmatpush1.bf16.msra.mxu0 %v489
  %2180 = vmatprep.subr.bf16.mxu0 0
  %2181 = vmatpush1.bf16.msra.mxu0 %v492
  %2182 = vmatprep.subr.bf16.mxu0 0
  %2183 = vmatpush1.bf16.msra.mxu0 %v495
  %2184 = vmatprep.subr.bf16.mxu0 0
  %2185 = vmatpush1.bf16.msra.mxu0 0
  %2186 = vmatprep.subr.bf16.mxu0 0
  %2187 = vmatpush1.bf16.msra.mxu0 0
  %2188 = vmatprep.subr.bf16.mxu0 0
  %2189 = vmatpush1.bf16.msra.mxu0 0
  %2190 = vmatprep.subr.bf16.mxu0 0
  %2191 = vmatpush1.bf16.msra.mxu0 0
  %2192 = vmatprep.subr.bf16.mxu0 0
  %2193 = vmatpush1.bf16.msra.mxu0 0
  %2194 = vmatprep.subr.bf16.mxu0 0
  %2195 = vmatpush1.bf16.msra.mxu0 0
  %2196 = vmatprep.subr.bf16.mxu0 0
  %2197 = vmatpush1.bf16.msra.mxu0 0
  %2198 = vmatprep.subr.bf16.mxu0 0
  %2199 = vmatpush1.bf16.msra.mxu0 0
  %2200 = vmatprep.mubr.bf16.mxu0 0
  %2201 = vmatmul.mubr.bf16.gmra.mrb[0].mxu0 %v2126
  %v2202 = vpop.f32.mrb[0].mxu0
  %v2203 = vadd.f32 %v388, %v2202
  %v2204 = vpop.f32.mrb[0].mxu0
  %v2205 = vpop.f32.mrb[0].mxu0
  %v2206 = vpop.f32.mrb[0].mxu0
  %2207 = vdwg.mxu0
  %v2208 = vpack.c.bf16 %v2017, %v2017
  %2209 = vmatprep.subr.bf16.mxu0 %v698
  %2210 = vmatpush1.bf16.msra.mxu0 %v697
  %2211 = vmatprep.subr.bf16.mxu0 %v701
  %2212 = vmatpush1.bf16.msra.mxu0 %v700
  %2213 = vmatprep.subr.bf16.mxu0 %v704
  %2214 = vmatpush1.bf16.msra.mxu0 %v703
  %2215 = vmatprep.subr.bf16.mxu0 %v707
  %2216 = vmatpush1.bf16.msra.mxu0 %v706
  %2217 = vmatprep.subr.bf16.mxu0 %v710
  %2218 = vmatpush1.bf16.msra.mxu0 %v709
  %2219 = vmatprep.subr.bf16.mxu0 %v713
  %2220 = vmatpush1.bf16.msra.mxu0 %v712
  %2221 = vmatprep.subr.bf16.mxu0 %v716
  %2222 = vmatpush1.bf16.msra.mxu0 %v715
  %2223 = vmatprep.subr.bf16.mxu0 %v719
  %2224 = vmatpush1.bf16.msra.mxu0 %v718
  %2225 = vmatprep.subr.bf16.mxu0 0
  %2226 = vmatpush1.bf16.msra.mxu0 0
  %2227 = vmatprep.subr.bf16.mxu0 0
  %2228 = vmatpush1.bf16.msra.mxu0 0
  %2229 = vmatprep.subr.bf16.mxu0 0
  %2230 = vmatpush1.bf16.msra.mxu0 0
  %2231 = vmatprep.subr.bf16.mxu0 0
  %2232 = vmatpush1.bf16.msra.mxu0 0
  %2233 = vmatprep.subr.bf16.mxu0 0
  %2234 = vmatpush1.bf16.msra.mxu0 0
  %2235 = vmatprep.subr.bf16.mxu0 0
  %2236 = vmatpush1.bf16.msra.mxu0 0
  %2237 = vmatprep.subr.bf16.mxu0 0
  %2238 = vmatpush1.bf16.msra.mxu0 0
  %2239 = vmatprep.subr.bf16.mxu0 0
  %2240 = vmatpush1.bf16.msra.mxu0 0
  %2241 = vmatprep.mubr.bf16.mxu0 0
  %2242 = vmatmul.mubr.bf16.gmra.mrb[0].mxu0 %v2208
  %v2243 = vpop.f32.mrb[0].mxu0
  %v2244 = vadd.f32 %v605, %v2243
  %v2245 = vpop.f32.mrb[0].mxu0
  %v2246 = vadd.f32 %v609, %v2245
  %v2247 = vpop.f32.mrb[0].mxu0
  %v2248 = vpop.f32.mrb[0].mxu0
  %2249 = vdwg.mxu0
  %2250 = vmatprep.subr.bf16.mxu0 0
  %2251 = vmatpush1.bf16.msra.mxu0 %v699
  %2252 = vmatprep.subr.bf16.mxu0 0
  %2253 = vmatpush1.bf16.msra.mxu0 %v702
  %2254 = vmatprep.subr.bf16.mxu0 0
  %2255 = vmatpush1.bf16.msra.mxu0 %v705
  %2256 = vmatprep.subr.bf16.mxu0 0
  %2257 = vmatpush1.bf16.msra.mxu0 %v708
  %2258 = vmatprep.subr.bf16.mxu0 0
  %2259 = vmatpush1.bf16.msra.mxu0 %v711
  %2260 = vmatprep.subr.bf16.mxu0 0
  %2261 = vmatpush1.bf16.msra.mxu0 %v714
  %2262 = vmatprep.subr.bf16.mxu0 0
  %2263 = vmatpush1.bf16.msra.mxu0 %v717
  %2264 = vmatprep.subr.bf16.mxu0 0
  %2265 = vmatpush1.bf16.msra.mxu0 %v720
  %2266 = vmatprep.subr.bf16.mxu0 0
  %2267 = vmatpush1.bf16.msra.mxu0 0
  %2268 = vmatprep.subr.bf16.mxu0 0
  %2269 = vmatpush1.bf16.msra.mxu0 0
  %2270 = vmatprep.subr.bf16.mxu0 0
  %2271 = vmatpush1.bf16.msra.mxu0 0
  %2272 = vmatprep.subr.bf16.mxu0 0
  %2273 = vmatpush1.bf16.msra.mxu0 0
  %2274 = vmatprep.subr.bf16.mxu0 0
  %2275 = vmatpush1.bf16.msra.mxu0 0
  %2276 = vmatprep.subr.bf16.mxu0 0
  %2277 = vmatpush1.bf16.msra.mxu0 0
  %2278 = vmatprep.subr.bf16.mxu0 0
  %2279 = vmatpush1.bf16.msra.mxu0 0
  %2280 = vmatprep.subr.bf16.mxu0 0
  %2281 = vmatpush1.bf16.msra.mxu0 0
  %2282 = vmatprep.mubr.bf16.mxu0 0
  %2283 = vmatmul.mubr.bf16.gmra.mrb[0].mxu0 %v2208
  %v2284 = vpop.f32.mrb[0].mxu0
  %v2285 = vadd.f32 %v613, %v2284
  %v2286 = vpop.f32.mrb[0].mxu0
  %v2287 = vpop.f32.mrb[0].mxu0
  %v2288 = vpop.f32.mrb[0].mxu0
  %2289 = vdwg.mxu0
  %v2290 = vadd.f32 %v2162, %v2244
  %v2291 = vxor.u32 %v2290, 2147483648
  %v2292 = vmul.f32 %v2291, 1.442695
  %v2293 = vpow.pop %v2292
  %v2294 = vadd.f32 %v2293, 1.0
  %v2295 = vrcp.pop %v2294
  %v2296 = vmul.f32 1.0, %v2295
  %v2297 = vadd.f32 %v2164, %v2246
  %v2298 = vxor.u32 %v2297, 2147483648
  %v2299 = vmul.f32 %v2298, 1.442695
  %v2300 = vpow.pop %v2299
  %v2301 = vadd.f32 %v2300, 1.0
  %v2302 = vrcp.pop %v2301
  %v2303 = vmul.f32 1.0, %v2302
  %v2304 = vmul.f32 %v2296, %v2285
  %v2305 = vadd.f32 %v2203, %v2304
  %v2306 = vtanh.pop %v2305
  %v2307 = vsub.f32 1.0, %v2303
  %v2308 = vmul.f32 %v2307, %v2306
  %v2309 = vmul.f32 %v2303, %v2017
  %v2310 = vadd.f32 %v2308, %v2309
  %s2311 = scalar_lea.vmem %s7, 40
  %2312 = vst [vmem:[%s2311] sm:$0xff] %v2310
  %2313 = vmatprep.subr.bf16.mxu0 %v223
  %2314 = vmatpush1.bf16.msra.mxu0 %v222
  %2315 = vmatprep.subr.bf16.mxu0 %v226
  %2316 = vmatpush1.bf16.msra.mxu0 %v225
  %2317 = vmatprep.subr.bf16.mxu0 %v229
  %2318 = vmatpush1.bf16.msra.mxu0 %v228
  %2319 = vmatprep.subr.bf16.mxu0 %v232
  %2320 = vmatpush1.bf16.msra.mxu0 %v231
  %2321 = vmatprep.subr.bf16.mxu0 %v235
  %2322 = vmatpush1.bf16.msra.mxu0 %v234
  %2323 = vmatprep.subr.bf16.mxu0 %v238
  %2324 = vmatpush1.bf16.msra.mxu0 %v237
  %2325 = vmatprep.subr.bf16.mxu0 %v241
  %2326 = vmatpush1.bf16.msra.mxu0 %v240
  %2327 = vmatprep.subr.bf16.mxu0 %v244
  %2328 = vmatpush1.bf16.msra.mxu0 %v243
  %2329 = vmatprep.subr.bf16.mxu0 0
  %2330 = vmatpush1.bf16.msra.mxu0 0
  %2331 = vmatprep.subr.bf16.mxu0 0
  %2332 = vmatpush1.bf16.msra.mxu0 0
  %2333 = vmatprep.subr.bf16.mxu0 0
  %2334 = vmatpush1.bf16.msra.mxu0 0
  %2335 = vmatprep.subr.bf16.mxu0 0
  %2336 = vmatpush1.bf16.msra.mxu0 0
  %2337 = vmatprep.subr.bf16.mxu0 0
  %2338 = vmatpush1.bf16.msra.mxu0 0
  %2339 = vmatprep.subr.bf16.mxu0 0
  %2340 = vmatpush1.bf16.msra.mxu0 0
  %2341 = vmatprep.subr.bf16.mxu0 0
  %2342 = vmatpush1.bf16.msra.mxu0 0
  %2343 = vmatprep.subr.bf16.mxu0 0
  %2344 = vmatpush1.bf16.msra.mxu0 0
  %2345 = vmatprep.mubr.bf16.mxu0 0
  %2346 = vmatmul.mubr.bf16.gmra.mrb[0].mxu0 %v2126
  %v2347 = vpop.f32.mrb[0].mxu0
  %v2348 = vadd.f32 %v130, %v2347
  %v2349 = vpop.f32.mrb[0].mxu0
  %v2350 = vadd.f32 %v134, %v2349
  %v2351 = vpop.f32.mrb[0].mxu0
  %v2352 = vpop.f32.mrb[0].mxu0
  %2353 = vdwg.mxu0
  %2354 = vmatprep.subr.bf16.mxu0 0
  %2355 = vmatpush1.bf16.msra.mxu0 %v224
  %2356 = vmatprep.subr.bf16.mxu0 0
  %2357 = vmatpush1.bf16.msra.mxu0 %v227
  %2358 = vmatprep.subr.bf16.mxu0 0
  %2359 = vmatpush1.bf16.msra.mxu0 %v230
  %2360 = vmatprep.subr.bf16.mxu0 0
  %2361 = vmatpush1.bf16.msra.mxu0 %v233
  %2362 = vmatprep.subr.bf16.mxu0 0
  %2363 = vmatpush1.bf16.msra.mxu0 %v236
  %2364 = vmatprep.subr.bf16.mxu0 0
  %2365 = vmatpush1.bf16.msra.mxu0 %v239
  %2366 = vmatprep.subr.bf16.mxu0 0
  %2367 = vmatpush1.bf16.msra.mxu0 %v242
  %2368 = vmatprep.subr.bf16.mxu0 0
  %2369 = vmatpush1.bf16.msra.mxu0 %v245
  %2370 = vmatprep.subr.bf16.mxu0 0
  %2371 = vmatpush1.bf16.msra.mxu0 0
  %2372 = vmatprep.subr.bf16.mxu0 0
  %2373 = vmatpush1.bf16.msra.mxu0 0
  %2374 = vmatprep.subr.bf16.mxu0 0
  %2375 = vmatpush1.bf16.msra.mxu0 0
  %2376 = vmatprep.subr.bf16.mxu0 0
  %2377 = vmatpush1.bf16.msra.mxu0 0
  %2378 = vmatprep.subr.bf16.mxu0 0
  %2379 = vmatpush1.bf16.msra.mxu0 0
  %2380 = vmatprep.subr.bf16.mxu0 0
  %2381 = vmatpush1.bf16.msra.mxu0 0
  %2382 = vmatprep.subr.bf16.mxu0 0
  %2383 = vmatpush1.bf16.msra.mxu0 0
  %2384 = vmatprep.subr.bf16.mxu0 0
  %2385 = vmatpush1.bf16.msra.mxu0 0
  %2386 = vmatprep.mubr.bf16.mxu0 0
  %2387 = vmatmul.mubr.bf16.gmra.mrb[0].mxu0 %v2126
  %v2388 = vpop.f32.mrb[0].mxu0
  %v2389 = vadd.f32 %v138, %v2388
  %v2390 = vpop.f32.mrb[0].mxu0
  %v2391 = vpop.f32.mrb[0].mxu0
  %v2392 = vpop.f32.mrb[0].mxu0
  %2393 = vdwg.mxu0
  %s2394 = scalar_lea.vmem %s0, 144
  %v2395 = vld [vmem:[%s2394] sm:$0xff]
  %v2396 = vld [vmem:[%s2394 + $0x8] sm:$0xff]
  %v2397 = vld [vmem:[%s2394 + $0x10] sm:$0xff]
  %v2398 = vadd.f32 %v2395, %v2348
  %v2399 = vxor.u32 %v2398, 2147483648
  %v2400 = vmul.f32 %v2399, 1.442695
  %v2401 = vpow.pop %v2400
  %v2402 = vadd.f32 %v2401, 1.0
  %v2403 = vrcp.pop %v2402
  %v2404 = vmul.f32 1.0, %v2403
  %v2405 = vadd.f32 %v2396, %v2350
  %v2406 = vxor.u32 %v2405, 2147483648
  %v2407 = vmul.f32 %v2406, 1.442695
  %v2408 = vpow.pop %v2407
  %v2409 = vadd.f32 %v2408, 1.0
  %v2410 = vrcp.pop %v2409
  %v2411 = vmul.f32 1.0, %v2410
  %v2412 = vmul.f32 %v2404, %v2389
  %v2413 = vadd.f32 %v2397, %v2412
  %v2414 = vtanh.pop %v2413
  %v2415 = vsub.f32 1.0, %v2411
  %v2416 = vmul.f32 %v2415, %v2414
  %v2417 = vmul.f32 %v2411, %v2125
  %v2418 = vadd.f32 %v2416, %v2417
  %v2419 = vpack.c.bf16 %v2418, %v2418
  %2420 = vmatprep.subr.bf16.mxu0 %v473
  %2421 = vmatpush1.bf16.msra.mxu0 %v472
  %2422 = vmatprep.subr.bf16.mxu0 %v476
  %2423 = vmatpush1.bf16.msra.mxu0 %v475
  %2424 = vmatprep.subr.bf16.mxu0 %v479
  %2425 = vmatpush1.bf16.msra.mxu0 %v478
  %2426 = vmatprep.subr.bf16.mxu0 %v482
  %2427 = vmatpush1.bf16.msra.mxu0 %v481
  %2428 = vmatprep.subr.bf16.mxu0 %v485
  %2429 = vmatpush1.bf16.msra.mxu0 %v484
  %2430 = vmatprep.subr.bf16.mxu0 %v488
  %2431 = vmatpush1.bf16.msra.mxu0 %v487
  %2432 = vmatprep.subr.bf16.mxu0 %v491
  %2433 = vmatpush1.bf16.msra.mxu0 %v490
  %2434 = vmatprep.subr.bf16.mxu0 %v494
  %2435 = vmatpush1.bf16.msra.mxu0 %v493
  %2436 = vmatprep.subr.bf16.mxu0 0
  %2437 = vmatpush1.bf16.msra.mxu0 0
  %2438 = vmatprep.subr.bf16.mxu0 0
  %2439 = vmatpush1.bf16.msra.mxu0 0
  %2440 = vmatprep.subr.bf16.mxu0 0
  %2441 = vmatpush1.bf16.msra.mxu0 0
  %2442 = vmatprep.subr.bf16.mxu0 0
  %2443 = vmatpush1.bf16.msra.mxu0 0
  %2444 = vmatprep.subr.bf16.mxu0 0
  %2445 = vmatpush1.bf16.msra.mxu0 0
  %2446 = vmatprep.subr.bf16.mxu0 0
  %2447 = vmatpush1.bf16.msra.mxu0 0
  %2448 = vmatprep.subr.bf16.mxu0 0
  %2449 = vmatpush1.bf16.msra.mxu0 0
  %2450 = vmatprep.subr.bf16.mxu0 0
  %2451 = vmatpush1.bf16.msra.mxu0 0
  %2452 = vmatprep.mubr.bf16.mxu0 0
  %2453 = vmatmul.mubr.bf16.gmra.mrb[0].mxu0 %v2419
  %v2454 = vpop.f32.mrb[0].mxu0
  %v2455 = vadd.f32 %v380, %v2454
  %v2456 = vpop.f32.mrb[0].mxu0
  %v2457 = vadd.f32 %v384, %v2456
  %v2458 = vpop.f32.mrb[0].mxu0
  %v2459 = vpop.f32.mrb[0].mxu0
  %2460 = vdwg.mxu0
  %2461 = vmatprep.subr.bf16.mxu0 0
  %2462 = vmatpush1.bf16.msra.mxu0 %v474
  %2463 = vmatprep.subr.bf16.mxu0 0
  %2464 = vmatpush1.bf16.msra.mxu0 %v477
  %2465 = vmatprep.subr.bf16.mxu0 0
  %2466 = vmatpush1.bf16.msra.mxu0 %v480
  %2467 = vmatprep.subr.bf16.mxu0 0
  %2468 = vmatpush1.bf16.msra.mxu0 %v483
  %2469 = vmatprep.subr.bf16.mxu0 0
  %2470 = vmatpush1.bf16.msra.mxu0 %v486
  %2471 = vmatprep.subr.bf16.mxu0 0
  %2472 = vmatpush1.bf16.msra.mxu0 %v489
  %2473 = vmatprep.subr.bf16.mxu0 0
  %2474 = vmatpush1.bf16.msra.mxu0 %v492
  %2475 = vmatprep.subr.bf16.mxu0 0
  %2476 = vmatpush1.bf16.msra.mxu0 %v495
  %2477 = vmatprep.subr.bf16.mxu0 0
  %2478 = vmatpush1.bf16.msra.mxu0 0
  %2479 = vmatprep.subr.bf16.mxu0 0
  %2480 = vmatpush1.bf16.msra.mxu0 0
  %2481 = vmatprep.subr.bf16.mxu0 0
  %2482 = vmatpush1.bf16.msra.mxu0 0
  %2483 = vmatprep.subr.bf16.mxu0 0
  %2484 = vmatpush1.bf16.msra.mxu0 0
  %2485 = vmatprep.subr.bf16.mxu0 0
  %2486 = vmatpush1.bf16.msra.mxu0 0
  %2487 = vmatprep.subr.bf16.mxu0 0
  %2488 = vmatpush1.bf16.msra.mxu0 0
  %2489 = vmatprep.subr.bf16.mxu0 0
  %2490 = vmatpush1.bf16.msra.mxu0 0
  %2491 = vmatprep.subr.bf16.mxu0 0
  %2492 = vmatpush1.bf16.msra.mxu0 0
  %2493 = vmatprep.mubr.bf16.mxu0 0
  %2494 = vmatmul.mubr.bf16.gmra.mrb[0].mxu0 %v2419
  %v2495 = vpop.f32.mrb[0].mxu0
  %v2496 = vadd.f32 %v388, %v2495
  %v2497 = vpop.f32.mrb[0].mxu0
  %v2498 = vpop.f32.mrb[0].mxu0
  %v2499 = vpop.f32.mrb[0].mxu0
  %2500 = vdwg.mxu0
  %v2501 = vpack.c.bf16 %v2310, %v2310
  %2502 = vmatprep.subr.bf16.mxu0 %v698
  %2503 = vmatpush1.bf16.msra.mxu0 %v697
  %2504 = vmatprep.subr.bf16.mxu0 %v701
  %2505 = vmatpush1.bf16.msra.mxu0 %v700
  %2506 = vmatprep.subr.bf16.mxu0 %v704
  %2507 = vmatpush1.bf16.msra.mxu0 %v703
  %2508 = vmatprep.subr.bf16.mxu0 %v707
  %2509 = vmatpush1.bf16.msra.mxu0 %v706
  %2510 = vmatprep.subr.bf16.mxu0 %v710
  %2511 = vmatpush1.bf16.msra.mxu0 %v709
  %2512 = vmatprep.subr.bf16.mxu0 %v713
  %2513 = vmatpush1.bf16.msra.mxu0 %v712
  %2514 = vmatprep.subr.bf16.mxu0 %v716
  %2515 = vmatpush1.bf16.msra.mxu0 %v715
  %2516 = vmatprep.subr.bf16.mxu0 %v719
  %2517 = vmatpush1.bf16.msra.mxu0 %v718
  %2518 = vmatprep.subr.bf16.mxu0 0
  %2519 = vmatpush1.bf16.msra.mxu0 0
  %2520 = vmatprep.subr.bf16.mxu0 0
  %2521 = vmatpush1.bf16.msra.mxu0 0
  %2522 = vmatprep.subr.bf16.mxu0 0
  %2523 = vmatpush1.bf16.msra.mxu0 0
  %2524 = vmatprep.subr.bf16.mxu0 0
  %2525 = vmatpush1.bf16.msra.mxu0 0
  %2526 = vmatprep.subr.bf16.mxu0 0
  %2527 = vmatpush1.bf16.msra.mxu0 0
  %2528 = vmatprep.subr.bf16.mxu0 0
  %2529 = vmatpush1.bf16.msra.mxu0 0
  %2530 = vmatprep.subr.bf16.mxu0 0
  %2531 = vmatpush1.bf16.msra.mxu0 0
  %2532 = vmatprep.subr.bf16.mxu0 0
  %2533 = vmatpush1.bf16.msra.mxu0 0
  %2534 = vmatprep.mubr.bf16.mxu0 0
  %2535 = vmatmul.mubr.bf16.gmra.mrb[0].mxu0 %v2501
  %v2536 = vpop.f32.mrb[0].mxu0
  %v2537 = vadd.f32 %v605, %v2536
  %v2538 = vpop.f32.mrb[0].mxu0
  %v2539 = vadd.f32 %v609, %v2538
  %v2540 = vpop.f32.mrb[0].mxu0
  %v2541 = vpop.f32.mrb[0].mxu0
  %2542 = vdwg.mxu0
  %2543 = vmatprep.subr.bf16.mxu0 0
  %2544 = vmatpush1.bf16.msra.mxu0 %v699
  %2545 = vmatprep.subr.bf16.mxu0 0
  %2546 = vmatpush1.bf16.msra.mxu0 %v702
  %2547 = vmatprep.subr.bf16.mxu0 0
  %2548 = vmatpush1.bf16.msra.mxu0 %v705
  %2549 = vmatprep.subr.bf16.mxu0 0
  %2550 = vmatpush1.bf16.msra.mxu0 %v708
  %2551 = vmatprep.subr.bf16.mxu0 0
  %2552 = vmatpush1.bf16.msra.mxu0 %v711
  %2553 = vmatprep.subr.bf16.mxu0 0
  %2554 = vmatpush1.bf16.msra.mxu0 %v714
  %2555 = vmatprep.subr.bf16.mxu0 0
  %2556 = vmatpush1.bf16.msra.mxu0 %v717
  %2557 = vmatprep.subr.bf16.mxu0 0
  %2558 = vmatpush1.bf16.msra.mxu0 %v720
  %2559 = vmatprep.subr.bf16.mxu0 0
  %2560 = vmatpush1.bf16.msra.mxu0 0
  %2561 = vmatprep.subr.bf16.mxu0 0
  %2562 = vmatpush1.bf16.msra.mxu0 0
  %2563 = vmatprep.subr.bf16.mxu0 0
  %2564 = vmatpush1.bf16.msra.mxu0 0
  %2565 = vmatprep.subr.bf16.mxu0 0
  %2566 = vmatpush1.bf16.msra.mxu0 0
  %2567 = vmatprep.subr.bf16.mxu0 0
  %2568 = vmatpush1.bf16.msra.mxu0 0
  %2569 = vmatprep.subr.bf16.mxu0 0
  %2570 = vmatpush1.bf16.msra.mxu0 0
  %2571 = vmatprep.subr.bf16.mxu0 0
  %2572 = vmatpush1.bf16.msra.mxu0 0
  %2573 = vmatprep.subr.bf16.mxu0 0
  %2574 = vmatpush1.bf16.msra.mxu0 0
  %2575 = vmatprep.mubr.bf16.mxu0 0
  %2576 = vmatmul.mubr.bf16.gmra.mrb[0].mxu0 %v2501
  %v2577 = vpop.f32.mrb[0].mxu0
  %v2578 = vadd.f32 %v613, %v2577
  %v2579 = vpop.f32.mrb[0].mxu0
  %v2580 = vpop.f32.mrb[0].mxu0
  %v2581 = vpop.f32.mrb[0].mxu0
  %2582 = vdwg.mxu0
  %v2583 = vadd.f32 %v2455, %v2537
  %v2584 = vxor.u32 %v2583, 2147483648
  %v2585 = vmul.f32 %v2584, 1.442695
  %v2586 = vpow.pop %v2585
  %v2587 = vadd.f32 %v2586, 1.0
  %v2588 = vrcp.pop %v2587
  %v2589 = vmul.f32 1.0, %v2588
  %v2590 = vadd.f32 %v2457, %v2539
  %v2591 = vxor.u32 %v2590, 2147483648
  %v2592 = vmul.f32 %v2591, 1.442695
  %v2593 = vpow.pop %v2592
  %v2594 = vadd.f32 %v2593, 1.0
  %v2595 = vrcp.pop %v2594
  %v2596 = vmul.f32 1.0, %v2595
  %v2597 = vmul.f32 %v2589, %v2578
  %v2598 = vadd.f32 %v2496, %v2597
  %v2599 = vtanh.pop %v2598
  %v2600 = vsub.f32 1.0, %v2596
  %v2601 = vmul.f32 %v2600, %v2599
  %v2602 = vmul.f32 %v2596, %v2310
  %v2603 = vadd.f32 %v2601, %v2602
  %s2604 = scalar_lea.vmem %s7, 48
  %2605 = vst [vmem:[%s2604] sm:$0xff] %v2603
  %2606 = vmatprep.subr.bf16.mxu0 %v223
  %2607 = vmatpush1.bf16.msra.mxu0 %v222
  %2608 = vmatprep.subr.bf16.mxu0 %v226
  %2609 = vmatpush1.bf16.msra.mxu0 %v225
  %2610 = vmatprep.subr.bf16.mxu0 %v229
  %2611 = vmatpush1.bf16.msra.mxu0 %v228
  %2612 = vmatprep.subr.bf16.mxu0 %v232
  %2613 = vmatpush1.bf16.msra.mxu0 %v231
  %2614 = vmatprep.subr.bf16.mxu0 %v235
  %2615 = vmatpush1.bf16.msra.mxu0 %v234
  %2616 = vmatprep.subr.bf16.mxu0 %v238
  %2617 = vmatpush1.bf16.msra.mxu0 %v237
  %2618 = vmatprep.subr.bf16.mxu0 %v241
  %2619 = vmatpush1.bf16.msra.mxu0 %v240
  %2620 = vmatprep.subr.bf16.mxu0 %v244
  %2621 = vmatpush1.bf16.msra.mxu0 %v243
  %2622 = vmatprep.subr.bf16.mxu0 0
  %2623 = vmatpush1.bf16.msra.mxu0 0
  %2624 = vmatprep.subr.bf16.mxu0 0
  %2625 = vmatpush1.bf16.msra.mxu0 0
  %2626 = vmatprep.subr.bf16.mxu0 0
  %2627 = vmatpush1.bf16.msra.mxu0 0
  %2628 = vmatprep.subr.bf16.mxu0 0
  %2629 = vmatpush1.bf16.msra.mxu0 0
  %2630 = vmatprep.subr.bf16.mxu0 0
  %2631 = vmatpush1.bf16.msra.mxu0 0
  %2632 = vmatprep.subr.bf16.mxu0 0
  %2633 = vmatpush1.bf16.msra.mxu0 0
  %2634 = vmatprep.subr.bf16.mxu0 0
  %2635 = vmatpush1.bf16.msra.mxu0 0
  %2636 = vmatprep.subr.bf16.mxu0 0
  %2637 = vmatpush1.bf16.msra.mxu0 0
  %2638 = vmatprep.mubr.bf16.mxu0 0
  %2639 = vmatmul.mubr.bf16.gmra.mrb[0].mxu0 %v2419
  %v2640 = vpop.f32.mrb[0].mxu0
  %v2641 = vadd.f32 %v130, %v2640
  %v2642 = vpop.f32.mrb[0].mxu0
  %v2643 = vadd.f32 %v134, %v2642
  %v2644 = vpop.f32.mrb[0].mxu0
  %v2645 = vpop.f32.mrb[0].mxu0
  %2646 = vdwg.mxu0
  %2647 = vmatprep.subr.bf16.mxu0 0
  %2648 = vmatpush1.bf16.msra.mxu0 %v224
  %2649 = vmatprep.subr.bf16.mxu0 0
  %2650 = vmatpush1.bf16.msra.mxu0 %v227
  %2651 = vmatprep.subr.bf16.mxu0 0
  %2652 = vmatpush1.bf16.msra.mxu0 %v230
  %2653 = vmatprep.subr.bf16.mxu0 0
  %2654 = vmatpush1.bf16.msra.mxu0 %v233
  %2655 = vmatprep.subr.bf16.mxu0 0
  %2656 = vmatpush1.bf16.msra.mxu0 %v236
  %2657 = vmatprep.subr.bf16.mxu0 0
  %2658 = vmatpush1.bf16.msra.mxu0 %v239
  %2659 = vmatprep.subr.bf16.mxu0 0
  %2660 = vmatpush1.bf16.msra.mxu0 %v242
  %2661 = vmatprep.subr.bf16.mxu0 0
  %2662 = vmatpush1.bf16.msra.mxu0 %v245
  %2663 = vmatprep.subr.bf16.mxu0 0
  %2664 = vmatpush1.bf16.msra.mxu0 0
  %2665 = vmatprep.subr.bf16.mxu0 0
  %2666 = vmatpush1.bf16.msra.mxu0 0
  %2667 = vmatprep.subr.bf16.mxu0 0
  %2668 = vmatpush1.bf16.msra.mxu0 0
  %2669 = vmatprep.subr.bf16.mxu0 0
  %2670 = vmatpush1.bf16.msra.mxu0 0
  %2671 = vmatprep.subr.bf16.mxu0 0
  %2672 = vmatpush1.bf16.msra.mxu0 0
  %2673 = vmatprep.subr.bf16.mxu0 0
  %2674 = vmatpush1.bf16.msra.mxu0 0
  %2675 = vmatprep.subr.bf16.mxu0 0
  %2676 = vmatpush1.bf16.msra.mxu0 0
  %2677 = vmatprep.subr.bf16.mxu0 0
  %2678 = vmatpush1.bf16.msra.mxu0 0
  %2679 = vmatprep.mubr.bf16.mxu0 0
  %2680 = vmatmul.mubr.bf16.gmra.mrb[0].mxu0 %v2419
  %v2681 = vpop.f32.mrb[0].mxu0
  %v2682 = vadd.f32 %v138, %v2681
  %v2683 = vpop.f32.mrb[0].mxu0
  %v2684 = vpop.f32.mrb[0].mxu0
  %v2685 = vpop.f32.mrb[0].mxu0
  %2686 = vdwg.mxu0
  %s2687 = scalar_lea.vmem %s0, 168
  %v2688 = vld [vmem:[%s2687] sm:$0xff]
  %v2689 = vld [vmem:[%s2687 + $0x8] sm:$0xff]
  %v2690 = vld [vmem:[%s2687 + $0x10] sm:$0xff]
  %v2691 = vadd.f32 %v2688, %v2641
  %v2692 = vxor.u32 %v2691, 2147483648
  %v2693 = vmul.f32 %v2692, 1.442695
  %v2694 = vpow.pop %v2693
  %v2695 = vadd.f32 %v2694, 1.0
  %v2696 = vrcp.pop %v2695
  %v2697 = vmul.f32 1.0, %v2696
  %v2698 = vadd.f32 %v2689, %v2643
  %v2699 = vxor.u32 %v2698, 2147483648
  %v2700 = vmul.f32 %v2699, 1.442695
  %v2701 = vpow.pop %v2700
  %v2702 = vadd.f32 %v2701, 1.0
  %v2703 = vrcp.pop %v2702
  %v2704 = vmul.f32 1.0, %v2703
  %v2705 = vmul.f32 %v2697, %v2682
  %v2706 = vadd.f32 %v2690, %v2705
  %v2707 = vtanh.pop %v2706
  %v2708 = vsub.f32 1.0, %v2704
  %v2709 = vmul.f32 %v2708, %v2707
  %v2710 = vmul.f32 %v2704, %v2418
  %v2711 = vadd.f32 %v2709, %v2710
  %v2712 = vpack.c.bf16 %v2711, %v2711
  %2713 = vmatprep.subr.bf16.mxu0 %v473
  %2714 = vmatpush1.bf16.msra.mxu0 %v472
  %2715 = vmatprep.subr.bf16.mxu0 %v476
  %2716 = vmatpush1.bf16.msra.mxu0 %v475
  %2717 = vmatprep.subr.bf16.mxu0 %v479
  %2718 = vmatpush1.bf16.msra.mxu0 %v478
  %2719 = vmatprep.subr.bf16.mxu0 %v482
  %2720 = vmatpush1.bf16.msra.mxu0 %v481
  %2721 = vmatprep.subr.bf16.mxu0 %v485
  %2722 = vmatpush1.bf16.msra.mxu0 %v484
  %2723 = vmatprep.subr.bf16.mxu0 %v488
  %2724 = vmatpush1.bf16.msra.mxu0 %v487
  %2725 = vmatprep.subr.bf16.mxu0 %v491
  %2726 = vmatpush1.bf16.msra.mxu0 %v490
  %2727 = vmatprep.subr.bf16.mxu0 %v494
  %2728 = vmatpush1.bf16.msra.mxu0 %v493
  %2729 = vmatprep.subr.bf16.mxu0 0
  %2730 = vmatpush1.bf16.msra.mxu0 0
  %2731 = vmatprep.subr.bf16.mxu0 0
  %2732 = vmatpush1.bf16.msra.mxu0 0
  %2733 = vmatprep.subr.bf16.mxu0 0
  %2734 = vmatpush1.bf16.msra.mxu0 0
  %2735 = vmatprep.subr.bf16.mxu0 0
  %2736 = vmatpush1.bf16.msra.mxu0 0
  %2737 = vmatprep.subr.bf16.mxu0 0
  %2738 = vmatpush1.bf16.msra.mxu0 0
  %2739 = vmatprep.subr.bf16.mxu0 0
  %2740 = vmatpush1.bf16.msra.mxu0 0
  %2741 = vmatprep.subr.bf16.mxu0 0
  %2742 = vmatpush1.bf16.msra.mxu0 0
  %2743 = vmatprep.subr.bf16.mxu0 0
  %2744 = vmatpush1.bf16.msra.mxu0 0
  %2745 = vmatprep.mubr.bf16.mxu0 0
  %2746 = vmatmul.mubr.bf16.gmra.mrb[0].mxu0 %v2712
  %v2747 = vpop.f32.mrb[0].mxu0
  %v2748 = vadd.f32 %v380, %v2747
  %v2749 = vpop.f32.mrb[0].mxu0
  %v2750 = vadd.f32 %v384, %v2749
  %v2751 = vpop.f32.mrb[0].mxu0
  %v2752 = vpop.f32.mrb[0].mxu0
  %2753 = vdwg.mxu0
  %2754 = vmatprep.subr.bf16.mxu0 0
  %2755 = vmatpush1.bf16.msra.mxu0 %v474
  %2756 = vmatprep.subr.bf16.mxu0 0
  %2757 = vmatpush1.bf16.msra.mxu0 %v477
  %2758 = vmatprep.subr.bf16.mxu0 0
  %2759 = vmatpush1.bf16.msra.mxu0 %v480
  %2760 = vmatprep.subr.bf16.mxu0 0
  %2761 = vmatpush1.bf16.msra.mxu0 %v483
  %2762 = vmatprep.subr.bf16.mxu0 0
  %2763 = vmatpush1.bf16.msra.mxu0 %v486
  %2764 = vmatprep.subr.bf16.mxu0 0
  %2765 = vmatpush1.bf16.msra.mxu0 %v489
  %2766 = vmatprep.subr.bf16.mxu0 0
  %2767 = vmatpush1.bf16.msra.mxu0 %v492
  %2768 = vmatprep.subr.bf16.mxu0 0
  %2769 = vmatpush1.bf16.msra.mxu0 %v495
  %2770 = vmatprep.subr.bf16.mxu0 0
  %2771 = vmatpush1.bf16.msra.mxu0 0
  %2772 = vmatprep.subr.bf16.mxu0 0
  %2773 = vmatpush1.bf16.msra.mxu0 0
  %2774 = vmatprep.subr.bf16.mxu0 0
  %2775 = vmatpush1.bf16.msra.mxu0 0
  %2776 = vmatprep.subr.bf16.mxu0 0
  %2777 = vmatpush1.bf16.msra.mxu0 0
  %2778 = vmatprep.subr.bf16.mxu0 0
  %2779 = vmatpush1.bf16.msra.mxu0 0
  %2780 = vmatprep.subr.bf16.mxu0 0
  %2781 = vmatpush1.bf16.msra.mxu0 0
  %2782 = vmatprep.subr.bf16.mxu0 0
  %2783 = vmatpush1.bf16.msra.mxu0 0
  %2784 = vmatprep.subr.bf16.mxu0 0
  %2785 = vmatpush1.bf16.msra.mxu0 0
  %2786 = vmatprep.mubr.bf16.mxu0 0
  %2787 = vmatmul.mubr.bf16.gmra.mrb[0].mxu0 %v2712
  %v2788 = vpop.f32.mrb[0].mxu0
  %v2789 = vadd.f32 %v388, %v2788
  %v2790 = vpop.f32.mrb[0].mxu0
  %v2791 = vpop.f32.mrb[0].mxu0
  %v2792 = vpop.f32.mrb[0].mxu0
  %2793 = vdwg.mxu0
  %v2794 = vpack.c.bf16 %v2603, %v2603
  %2795 = vmatprep.subr.bf16.mxu0 %v698
  %2796 = vmatpush1.bf16.msra.mxu0 %v697
  %2797 = vmatprep.subr.bf16.mxu0 %v701
  %2798 = vmatpush1.bf16.msra.mxu0 %v700
  %2799 = vmatprep.subr.bf16.mxu0 %v704
  %2800 = vmatpush1.bf16.msra.mxu0 %v703
  %2801 = vmatprep.subr.bf16.mxu0 %v707
  %2802 = vmatpush1.bf16.msra.mxu0 %v706
  %2803 = vmatprep.subr.bf16.mxu0 %v710
  %2804 = vmatpush1.bf16.msra.mxu0 %v709
  %2805 = vmatprep.subr.bf16.mxu0 %v713
  %2806 = vmatpush1.bf16.msra.mxu0 %v712
  %2807 = vmatprep.subr.bf16.mxu0 %v716
  %2808 = vmatpush1.bf16.msra.mxu0 %v715
  %2809 = vmatprep.subr.bf16.mxu0 %v719
  %2810 = vmatpush1.bf16.msra.mxu0 %v718
  %2811 = vmatprep.subr.bf16.mxu0 0
  %2812 = vmatpush1.bf16.msra.mxu0 0
  %2813 = vmatprep.subr.bf16.mxu0 0
  %2814 = vmatpush1.bf16.msra.mxu0 0
  %2815 = vmatprep.subr.bf16.mxu0 0
  %2816 = vmatpush1.bf16.msra.mxu0 0
  %2817 = vmatprep.subr.bf16.mxu0 0
  %2818 = vmatpush1.bf16.msra.mxu0 0
  %2819 = vmatprep.subr.bf16.mxu0 0
  %2820 = vmatpush1.bf16.msra.mxu0 0
  %2821 = vmatprep.subr.bf16.mxu0 0
  %2822 = vmatpush1.bf16.msra.mxu0 0
  %2823 = vmatprep.subr.bf16.mxu0 0
  %2824 = vmatpush1.bf16.msra.mxu0 0
  %2825 = vmatprep.subr.bf16.mxu0 0
  %2826 = vmatpush1.bf16.msra.mxu0 0
  %2827 = vmatprep.mubr.bf16.mxu0 0
  %2828 = vmatmul.mubr.bf16.gmra.mrb[0].mxu0 %v2794
  %v2829 = vpop.f32.mrb[0].mxu0
  %v2830 = vadd.f32 %v605, %v2829
  %v2831 = vpop.f32.mrb[0].mxu0
  %v2832 = vadd.f32 %v609, %v2831
  %v2833 = vpop.f32.mrb[0].mxu0
  %v2834 = vpop.f32.mrb[0].mxu0
  %2835 = vdwg.mxu0
  %2836 = vmatprep.subr.bf16.mxu0 0
  %2837 = vmatpush1.bf16.msra.mxu0 %v699
  %2838 = vmatprep.subr.bf16.mxu0 0
  %2839 = vmatpush1.bf16.msra.mxu0 %v702
  %2840 = vmatprep.subr.bf16.mxu0 0
  %2841 = vmatpush1.bf16.msra.mxu0 %v705
  %2842 = vmatprep.subr.bf16.mxu0 0
  %2843 = vmatpush1.bf16.msra.mxu0 %v708
  %2844 = vmatprep.subr.bf16.mxu0 0
  %2845 = vmatpush1.bf16.msra.mxu0 %v711
  %2846 = vmatprep.subr.bf16.mxu0 0
  %2847 = vmatpush1.bf16.msra.mxu0 %v714
  %2848 = vmatprep.subr.bf16.mxu0 0
  %2849 = vmatpush1.bf16.msra.mxu0 %v717
  %2850 = vmatprep.subr.bf16.mxu0 0
  %2851 = vmatpush1.bf16.msra.mxu0 %v720
  %2852 = vmatprep.subr.bf16.mxu0 0
  %2853 = vmatpush1.bf16.msra.mxu0 0
  %2854 = vmatprep.subr.bf16.mxu0 0
  %2855 = vmatpush1.bf16.msra.mxu0 0
  %2856 = vmatprep.subr.bf16.mxu0 0
  %2857 = vmatpush1.bf16.msra.mxu0 0
  %2858 = vmatprep.subr.bf16.mxu0 0
  %2859 = vmatpush1.bf16.msra.mxu0 0
  %2860 = vmatprep.subr.bf16.mxu0 0
  %2861 = vmatpush1.bf16.msra.mxu0 0
  %2862 = vmatprep.subr.bf16.mxu0 0
  %2863 = vmatpush1.bf16.msra.mxu0 0
  %2864 = vmatprep.subr.bf16.mxu0 0
  %2865 = vmatpush1.bf16.msra.mxu0 0
  %2866 = vmatprep.subr.bf16.mxu0 0
  %2867 = vmatpush1.bf16.msra.mxu0 0
  %2868 = vmatprep.mubr.bf16.mxu0 0
  %2869 = vmatmul.mubr.bf16.gmra.mrb[0].mxu0 %v2794
  %v2870 = vpop.f32.mrb[0].mxu0
  %v2871 = vadd.f32 %v613, %v2870
  %v2872 = vpop.f32.mrb[0].mxu0
  %v2873 = vpop.f32.mrb[0].mxu0
  %v2874 = vpop.f32.mrb[0].mxu0
  %2875 = vdwg.mxu0
  %v2876 = vadd.f32 %v2748, %v2830
  %v2877 = vxor.u32 %v2876, 2147483648
  %v2878 = vmul.f32 %v2877, 1.442695
  %v2879 = vpow.pop %v2878
  %v2880 = vadd.f32 %v2879, 1.0
  %v2881 = vrcp.pop %v2880
  %v2882 = vmul.f32 1.0, %v2881
  %v2883 = vadd.f32 %v2750, %v2832
  %v2884 = vxor.u32 %v2883, 2147483648
  %v2885 = vmul.f32 %v2884, 1.442695
  %v2886 = vpow.pop %v2885
  %v2887 = vadd.f32 %v2886, 1.0
  %v2888 = vrcp.pop %v2887
  %v2889 = vmul.f32 1.0, %v2888
  %v2890 = vmul.f32 %v2882, %v2871
  %v2891 = vadd.f32 %v2789, %v2890
  %v2892 = vtanh.pop %v2891
  %v2893 = vsub.f32 1.0, %v2889
  %v2894 = vmul.f32 %v2893, %v2892
  %v2895 = vmul.f32 %v2889, %v2603
  %v2896 = vadd.f32 %v2894, %v2895
  %s2897 = scalar_lea.vmem %s7, 56
  %2898 = vst [vmem:[%s2897] sm:$0xff] %v2896
  // Predicated region
  $region30: #{_forward_dense.10} parent=0 // pred_check
    _
  $region31: #{_forward_dense.10} parent=0 // pred_check_branch
    %2900 = sbr.rel (0) target = $region33
  $region32: #{_forward_dense.10} parent=0 // pred_region
    _
  $region33: #{_forward_dense.10} parent=0 // pred_fallthru
    _
  // Predicated region
  $region34: #{_forward_dense.10} parent=0 // pred_check
    _
  $region35: #{_forward_dense.10} parent=0 // pred_check_branch
    %2902 = sbr.rel (0) target = $region37
  $region36: #{_forward_dense.10} parent=0 // pred_region
    _
  $region37: #{_forward_dense.10} parent=0 // pred_fallthru
    _

// kernel: _forward_dense.11
$region0: #{_forward_dense.11}
  #allocation0 [shape = 'u32[]', space=smem, size = 0x4, offset = 0x4, fixed_abs, tag = 'smem constant byte address 0x4 - core index']
  #allocation1 [shape = 'u32[144,128]{1,0:T(1,128)}', space=vmem, size = 0x12000, scoped, tag = 'internal scratch']
  %s0 = inlined_call_operand.vmem [shape: bf16[16,640], index: 0, kind: input, shape index: {}]
  %s1 = inlined_call_operand.vmem [shape: bf16[640,512], index: 1, kind: input, shape index: {}]
  %s2 = inlined_call_operand.vmem [shape: f32[1,512], index: 2, kind: input, shape index: {}]
  %s3 = inlined_call_operand.vmem [shape: bf16[512,128], index: 3, kind: input, shape index: {}]
  %s4 = inlined_call_operand.vmem [shape: f32[1,128], index: 4, kind: input, shape index: {}]
  %s5 = inlined_call_operand.vmem [shape: f32[16,128], index: 5, kind: output, shape index: {}]
  %s6 = sld [smem:[#allocation0]]
  $region30: #{_forward_dense.11} parent=0
    _
  %s8 = ssub.s32 1, %s6
  %s9 = scalar_select 0, %s8, %s6
  // Predicated region
  $region2: #{_forward_dense.11} parent=0 // pred_check
    _
  $region3: #{_forward_dense.11} parent=0 // pred_check_branch
    %11 = sbr.rel (0) target = $region5
  $region4: #{_forward_dense.11} parent=0 // pred_region
    _
  $region5: #{_forward_dense.11} parent=0 // pred_fallthru
    _
  // Predicated region
  $region6: #{_forward_dense.11} parent=0 // pred_check
    _
  $region7: #{_forward_dense.11} parent=0 // pred_check_branch
    %13 = sbr.rel (0) target = $region9
  $region8: #{_forward_dense.11} parent=0 // pred_region
    _
  $region9: #{_forward_dense.11} parent=0 // pred_fallthru
    _
  // Predicated region
  $region10: #{_forward_dense.11} parent=0 // pred_check
    _
  $region11: #{_forward_dense.11} parent=0 // pred_check_branch
    %15 = sbr.rel (0) target = $region13
  $region12: #{_forward_dense.11} parent=0 // pred_region
    _
  $region13: #{_forward_dense.11} parent=0 // pred_fallthru
    _
  // Predicated region
  $region14: #{_forward_dense.11} parent=0 // pred_check
    _
  $region15: #{_forward_dense.11} parent=0 // pred_check_branch
    %17 = sbr.rel (0) target = $region17
  $region16: #{_forward_dense.11} parent=0 // pred_region
    _
  $region17: #{_forward_dense.11} parent=0 // pred_fallthru
    _
  // Predicated region
  $region18: #{_forward_dense.11} parent=0 // pred_check
    _
  $region19: #{_forward_dense.11} parent=0 // pred_check_branch
    %19 = sbr.rel (0) target = $region21
  $region20: #{_forward_dense.11} parent=0 // pred_region
    _
  $region21: #{_forward_dense.11} parent=0 // pred_fallthru
    _
  %v21 = vld [vmem:[%s0] sm:$0xff]
  %v22 = vld [vmem:[%s0 + $0x8] sm:$0xff]
  %v23 = vld [vmem:[%s0 + $0x10] sm:$0xf]
  %v24 = vld [vmem:[%s0 + $0x14] sm:$0xff]
  %v25 = vld [vmem:[%s0 + $0x1c] sm:$0xff]
  %v26 = vld [vmem:[%s0 + $0x24] sm:$0xf]
  %v27 = vld [vmem:[%s1] sm:$0xff]
  %v28 = vld [vmem:[%s1 + $0x8] sm:$0xff]
  %v29 = vld [vmem:[%s1 + $0x10] sm:$0xff]
  %v30 = vld [vmem:[%s1 + $0x18] sm:$0xff]
  %v31 = vld [vmem:[%s1 + $0x20] sm:$0xff]
  %v32 = vld [vmem:[%s1 + $0x28] sm:$0xff]
  %v33 = vld [vmem:[%s1 + $0x30] sm:$0xff]
  %v34 = vld [vmem:[%s1 + $0x38] sm:$0xff]
  %v35 = vld [vmem:[%s1 + $0x40] sm:$0xff]
  %v36 = vld [vmem:[%s1 + $0x48] sm:$0xff]
  %v37 = vld [vmem:[%s1 + $0x50] sm:$0xff]
  %v38 = vld [vmem:[%s1 + $0x58] sm:$0xff]
  %v39 = vld [vmem:[%s1 + $0x60] sm:$0xff]
  %v40 = vld [vmem:[%s1 + $0x68] sm:$0xff]
  %v41 = vld [vmem:[%s1 + $0x70] sm:$0xff]
  %v42 = vld [vmem:[%s1 + $0x78] sm:$0xff]
  %v43 = vld [vmem:[%s1 + $0x80] sm:$0xff]
  %v44 = vld [vmem:[%s1 + $0x88] sm:$0xff]
  %v45 = vld [vmem:[%s1 + $0x90] sm:$0xff]
  %v46 = vld [vmem:[%s1 + $0x98] sm:$0xff]
  %v47 = vld [vmem:[%s1 + $0xa0] sm:$0xff]
  %v48 = vld [vmem:[%s1 + $0xa8] sm:$0xff]
  %v49 = vld [vmem:[%s1 + $0xb0] sm:$0xff]
  %v50 = vld [vmem:[%s1 + $0xb8] sm:$0xff]
  %v51 = vld [vmem:[%s1 + $0xc0] sm:$0xff]
  %v52 = vld [vmem:[%s1 + $0xc8] sm:$0xff]
  %v53 = vld [vmem:[%s1 + $0xd0] sm:$0xff]
  %v54 = vld [vmem:[%s1 + $0xd8] sm:$0xff]
  %v55 = vld [vmem:[%s1 + $0xe0] sm:$0xff]
  %v56 = vld [vmem:[%s1 + $0xe8] sm:$0xff]
  %v57 = vld [vmem:[%s1 + $0xf0] sm:$0xff]
  %v58 = vld [vmem:[%s1 + $0xf8] sm:$0xff]
  %v59 = vld [vmem:[%s1 + $0x100] sm:$0xff]
  %v60 = vld [vmem:[%s1 + $0x108] sm:$0xff]
  %v61 = vld [vmem:[%s1 + $0x110] sm:$0xff]
  %v62 = vld [vmem:[%s1 + $0x118] sm:$0xff]
  %v63 = vld [vmem:[%s1 + $0x120] sm:$0xff]
  %v64 = vld [vmem:[%s1 + $0x128] sm:$0xff]
  %v65 = vld [vmem:[%s1 + $0x130] sm:$0xff]
  %v66 = vld [vmem:[%s1 + $0x138] sm:$0xff]
  %v67 = vld [vmem:[%s1 + $0x140] sm:$0xff]
  %v68 = vld [vmem:[%s1 + $0x148] sm:$0xff]
  %v69 = vld [vmem:[%s1 + $0x150] sm:$0xff]
  %v70 = vld [vmem:[%s1 + $0x158] sm:$0xff]
  %v71 = vld [vmem:[%s1 + $0x160] sm:$0xff]
  %v72 = vld [vmem:[%s1 + $0x168] sm:$0xff]
  %v73 = vld [vmem:[%s1 + $0x170] sm:$0xff]
  %v74 = vld [vmem:[%s1 + $0x178] sm:$0xff]
  %v75 = vld [vmem:[%s1 + $0x180] sm:$0xff]
  %v76 = vld [vmem:[%s1 + $0x188] sm:$0xff]
  %v77 = vld [vmem:[%s1 + $0x190] sm:$0xff]
  %v78 = vld [vmem:[%s1 + $0x198] sm:$0xff]
  %v79 = vld [vmem:[%s1 + $0x1a0] sm:$0xff]
  %v80 = vld [vmem:[%s1 + $0x1a8] sm:$0xff]
  %v81 = vld [vmem:[%s1 + $0x1b0] sm:$0xff]
  %v82 = vld [vmem:[%s1 + $0x1b8] sm:$0xff]
  %v83 = vld [vmem:[%s1 + $0x1c0] sm:$0xff]
  %v84 = vld [vmem:[%s1 + $0x1c8] sm:$0xff]
  %v85 = vld [vmem:[%s1 + $0x1d0] sm:$0xff]
  %v86 = vld [vmem:[%s1 + $0x1d8] sm:$0xff]
  %v87 = vld [vmem:[%s1 + $0x1e0] sm:$0xff]
  %v88 = vld [vmem:[%s1 + $0x1e8] sm:$0xff]
  %v89 = vld [vmem:[%s1 + $0x1f0] sm:$0xff]
  %v90 = vld [vmem:[%s1 + $0x1f8] sm:$0xff]
  %v91 = vld [vmem:[%s1 + $0x200] sm:$0xff]
  %v92 = vld [vmem:[%s1 + $0x208] sm:$0xff]
  %v93 = vld [vmem:[%s1 + $0x210] sm:$0xff]
  %v94 = vld [vmem:[%s1 + $0x218] sm:$0xff]
  %v95 = vld [vmem:[%s1 + $0x220] sm:$0xff]
  %v96 = vld [vmem:[%s1 + $0x228] sm:$0xff]
  %v97 = vld [vmem:[%s1 + $0x230] sm:$0xff]
  %v98 = vld [vmem:[%s1 + $0x238] sm:$0xff]
  %v99 = vld [vmem:[%s1 + $0x240] sm:$0xff]
  %v100 = vld [vmem:[%s1 + $0x248] sm:$0xff]
  %v101 = vld [vmem:[%s1 + $0x250] sm:$0xff]
  %v102 = vld [vmem:[%s1 + $0x258] sm:$0xff]
  %v103 = vld [vmem:[%s1 + $0x260] sm:$0xff]
  %v104 = vld [vmem:[%s1 + $0x268] sm:$0xff]
  %v105 = vld [vmem:[%s1 + $0x270] sm:$0xff]
  %v106 = vld [vmem:[%s1 + $0x278] sm:$0xff]
  %v107 = vld [vmem:[%s1 + $0x280] sm:$0xff]
  %v108 = vld [vmem:[%s1 + $0x288] sm:$0xff]
  %v109 = vld [vmem:[%s1 + $0x290] sm:$0xff]
  %v110 = vld [vmem:[%s1 + $0x298] sm:$0xff]
  %v111 = vld [vmem:[%s1 + $0x2a0] sm:$0xff]
  %v112 = vld [vmem:[%s1 + $0x2a8] sm:$0xff]
  %v113 = vld [vmem:[%s1 + $0x2b0] sm:$0xff]
  %v114 = vld [vmem:[%s1 + $0x2b8] sm:$0xff]
  %v115 = vld [vmem:[%s1 + $0x2c0] sm:$0xff]
  %v116 = vld [vmem:[%s1 + $0x2c8] sm:$0xff]
  %v117 = vld [vmem:[%s1 + $0x2d0] sm:$0xff]
  %v118 = vld [vmem:[%s1 + $0x2d8] sm:$0xff]
  %v119 = vld [vmem:[%s1 + $0x2e0] sm:$0xff]
  %v120 = vld [vmem:[%s1 + $0x2e8] sm:$0xff]
  %v121 = vld [vmem:[%s1 + $0x2f0] sm:$0xff]
  %v122 = vld [vmem:[%s1 + $0x2f8] sm:$0xff]
  %v123 = vld [vmem:[%s1 + $0x300] sm:$0xff]
  %v124 = vld [vmem:[%s1 + $0x308] sm:$0xff]
  %v125 = vld [vmem:[%s1 + $0x310] sm:$0xff]
  %v126 = vld [vmem:[%s1 + $0x318] sm:$0xff]
  %v127 = vld [vmem:[%s1 + $0x320] sm:$0xff]
  %v128 = vld [vmem:[%s1 + $0x328] sm:$0xff]
  %v129 = vld [vmem:[%s1 + $0x330] sm:$0xff]
  %v130 = vld [vmem:[%s1 + $0x338] sm:$0xff]
  %v131 = vld [vmem:[%s1 + $0x340] sm:$0xff]
  %v132 = vld [vmem:[%s1 + $0x348] sm:$0xff]
  %v133 = vld [vmem:[%s1 + $0x350] sm:$0xff]
  %v134 = vld [vmem:[%s1 + $0x358] sm:$0xff]
  %v135 = vld [vmem:[%s1 + $0x360] sm:$0xff]
  %v136 = vld [vmem:[%s1 + $0x368] sm:$0xff]
  %v137 = vld [vmem:[%s1 + $0x370] sm:$0xff]
  %v138 = vld [vmem:[%s1 + $0x378] sm:$0xff]
  %v139 = vld [vmem:[%s1 + $0x380] sm:$0xff]
  %v140 = vld [vmem:[%s1 + $0x388] sm:$0xff]
  %v141 = vld [vmem:[%s1 + $0x390] sm:$0xff]
  %v142 = vld [vmem:[%s1 + $0x398] sm:$0xff]
  %v143 = vld [vmem:[%s1 + $0x3a0] sm:$0xff]
  %v144 = vld [vmem:[%s1 + $0x3a8] sm:$0xff]
  %v145 = vld [vmem:[%s1 + $0x3b0] sm:$0xff]
  %v146 = vld [vmem:[%s1 + $0x3b8] sm:$0xff]
  %v147 = vld [vmem:[%s1 + $0x3c0] sm:$0xff]
  %v148 = vld [vmem:[%s1 + $0x3c8] sm:$0xff]
  %v149 = vld [vmem:[%s1 + $0x3d0] sm:$0xff]
  %v150 = vld [vmem:[%s1 + $0x3d8] sm:$0xff]
  %v151 = vld [vmem:[%s1 + $0x3e0] sm:$0xff]
  %v152 = vld [vmem:[%s1 + $0x3e8] sm:$0xff]
  %v153 = vld [vmem:[%s1 + $0x3f0] sm:$0xff]
  %v154 = vld [vmem:[%s1 + $0x3f8] sm:$0xff]
  %v155 = vld [vmem:[%s1 + $0x400] sm:$0xff]
  %v156 = vld [vmem:[%s1 + $0x408] sm:$0xff]
  %v157 = vld [vmem:[%s1 + $0x410] sm:$0xff]
  %v158 = vld [vmem:[%s1 + $0x418] sm:$0xff]
  %v159 = vld [vmem:[%s1 + $0x420] sm:$0xff]
  %v160 = vld [vmem:[%s1 + $0x428] sm:$0xff]
  %v161 = vld [vmem:[%s1 + $0x430] sm:$0xff]
  %v162 = vld [vmem:[%s1 + $0x438] sm:$0xff]
  %v163 = vld [vmem:[%s1 + $0x440] sm:$0xff]
  %v164 = vld [vmem:[%s1 + $0x448] sm:$0xff]
  %v165 = vld [vmem:[%s1 + $0x450] sm:$0xff]
  %v166 = vld [vmem:[%s1 + $0x458] sm:$0xff]
  %v167 = vld [vmem:[%s1 + $0x460] sm:$0xff]
  %v168 = vld [vmem:[%s1 + $0x468] sm:$0xff]
  %v169 = vld [vmem:[%s1 + $0x470] sm:$0xff]
  %v170 = vld [vmem:[%s1 + $0x478] sm:$0xff]
  %v171 = vld [vmem:[%s1 + $0x480] sm:$0xff]
  %v172 = vld [vmem:[%s1 + $0x488] sm:$0xff]
  %v173 = vld [vmem:[%s1 + $0x490] sm:$0xff]
  %v174 = vld [vmem:[%s1 + $0x498] sm:$0xff]
  %v175 = vld [vmem:[%s1 + $0x4a0] sm:$0xff]
  %v176 = vld [vmem:[%s1 + $0x4a8] sm:$0xff]
  %v177 = vld [vmem:[%s1 + $0x4b0] sm:$0xff]
  %v178 = vld [vmem:[%s1 + $0x4b8] sm:$0xff]
  %v179 = vld [vmem:[%s1 + $0x4c0] sm:$0xff]
  %v180 = vld [vmem:[%s1 + $0x4c8] sm:$0xff]
  %v181 = vld [vmem:[%s1 + $0x4d0] sm:$0xff]
  %v182 = vld [vmem:[%s1 + $0x4d8] sm:$0xff]
  %v183 = vld [vmem:[%s1 + $0x4e0] sm:$0xff]
  %v184 = vld [vmem:[%s1 + $0x4e8] sm:$0xff]
  %v185 = vld [vmem:[%s1 + $0x4f0] sm:$0xff]
  %v186 = vld [vmem:[%s1 + $0x4f8] sm:$0xff]
  %v187 = vld [vmem:[%s2] sm:$0xf]
  %v189 = vlaneseq
  %v190 = vshrl.u32 %v189, 7
  %v191 = vsub.s32 0, %v190
  %v192 = vrot.slane %v187, %v191
  %v193 = vlaneseq
  %v194 = vshrl.u32 %v193, 7
  %v195 = vsub.s32 1, %v194
  %v196 = vrot.slane %v187, %v195
  %v197 = vlaneseq
  %v198 = vshrl.u32 %v197, 7
  %v199 = vsub.s32 2, %v198
  %v200 = vrot.slane %v187, %v199
  %v201 = vlaneseq
  %v202 = vshrl.u32 %v201, 7
  %v203 = vsub.s32 3, %v202
  %v204 = vrot.slane %v187, %v203
  %v215 = vunpack.c.l.b16 %v21
  %v216 = vunpack.c.h.b16 %v21
  %v217 = vunpack.c.l.b16 %v22
  %v218 = vunpack.c.h.b16 %v22
  %v219 = vunpack.c.l.b16 %v23
  %v220 = vunpack.c.l.b16 %v24
  %v221 = vunpack.c.h.b16 %v24
  %v222 = vunpack.c.l.b16 %v25
  %v223 = vunpack.c.h.b16 %v25
  %v224 = vunpack.c.l.b16 %v26
  %v225 = vpack.c.b16 %v220, %v215
  %v226 = vpack.c.b16 %v221, %v216
  %v227 = vpack.c.b16 %v222, %v217
  %v228 = vpack.c.b16 %v223, %v218
  %v229 = vpack.c.b16 %v224, %v219
  %v395 = vunpack.c.l.b16 %v27
  %v396 = vunpack.c.h.b16 %v27
  %v397 = vunpack.c.l.b16 %v28
  %v398 = vunpack.c.h.b16 %v28
  %v399 = vunpack.c.l.b16 %v29
  %v400 = vunpack.c.h.b16 %v29
  %v401 = vunpack.c.l.b16 %v30
  %v402 = vunpack.c.h.b16 %v30
  %v403 = vunpack.c.l.b16 %v31
  %v404 = vunpack.c.h.b16 %v31
  %v405 = vunpack.c.l.b16 %v32
  %v406 = vunpack.c.h.b16 %v32
  %v407 = vunpack.c.l.b16 %v33
  %v408 = vunpack.c.h.b16 %v33
  %v409 = vunpack.c.l.b16 %v34
  %v410 = vunpack.c.h.b16 %v34
  %v411 = vunpack.c.l.b16 %v35
  %v412 = vunpack.c.h.b16 %v35
  %v413 = vunpack.c.l.b16 %v36
  %v414 = vunpack.c.h.b16 %v36
  %v415 = vunpack.c.l.b16 %v37
  %v416 = vunpack.c.h.b16 %v37
  %v417 = vunpack.c.l.b16 %v38
  %v418 = vunpack.c.h.b16 %v38
  %v419 = vunpack.c.l.b16 %v39
  %v420 = vunpack.c.h.b16 %v39
  %v421 = vunpack.c.l.b16 %v40
  %v422 = vunpack.c.h.b16 %v40
  %v423 = vunpack.c.l.b16 %v41
  %v424 = vunpack.c.h.b16 %v41
  %v425 = vunpack.c.l.b16 %v42
  %v426 = vunpack.c.h.b16 %v42
  %v427 = vunpack.c.l.b16 %v43
  %v428 = vunpack.c.h.b16 %v43
  %v429 = vunpack.c.l.b16 %v44
  %v430 = vunpack.c.h.b16 %v44
  %v431 = vunpack.c.l.b16 %v45
  %v432 = vunpack.c.h.b16 %v45
  %v433 = vunpack.c.l.b16 %v46
  %v434 = vunpack.c.h.b16 %v46
  %v435 = vunpack.c.l.b16 %v47
  %v436 = vunpack.c.h.b16 %v47
  %v437 = vunpack.c.l.b16 %v48
  %v438 = vunpack.c.h.b16 %v48
  %v439 = vunpack.c.l.b16 %v49
  %v440 = vunpack.c.h.b16 %v49
  %v441 = vunpack.c.l.b16 %v50
  %v442 = vunpack.c.h.b16 %v50
  %v443 = vunpack.c.l.b16 %v51
  %v444 = vunpack.c.h.b16 %v51
  %v445 = vunpack.c.l.b16 %v52
  %v446 = vunpack.c.h.b16 %v52
  %v447 = vunpack.c.l.b16 %v53
  %v448 = vunpack.c.h.b16 %v53
  %v449 = vunpack.c.l.b16 %v54
  %v450 = vunpack.c.h.b16 %v54
  %v451 = vunpack.c.l.b16 %v55
  %v452 = vunpack.c.h.b16 %v55
  %v453 = vunpack.c.l.b16 %v56
  %v454 = vunpack.c.h.b16 %v56
  %v455 = vunpack.c.l.b16 %v57
  %v456 = vunpack.c.h.b16 %v57
  %v457 = vunpack.c.l.b16 %v58
  %v458 = vunpack.c.h.b16 %v58
  %v459 = vunpack.c.l.b16 %v59
  %v460 = vunpack.c.h.b16 %v59
  %v461 = vunpack.c.l.b16 %v60
  %v462 = vunpack.c.h.b16 %v60
  %v463 = vunpack.c.l.b16 %v61
  %v464 = vunpack.c.h.b16 %v61
  %v465 = vunpack.c.l.b16 %v62
  %v466 = vunpack.c.h.b16 %v62
  %v467 = vunpack.c.l.b16 %v63
  %v468 = vunpack.c.h.b16 %v63
  %v469 = vunpack.c.l.b16 %v64
  %v470 = vunpack.c.h.b16 %v64
  %v471 = vunpack.c.l.b16 %v65
  %v472 = vunpack.c.h.b16 %v65
  %v473 = vunpack.c.l.b16 %v66
  %v474 = vunpack.c.h.b16 %v66
  %v475 = vunpack.c.l.b16 %v67
  %v476 = vunpack.c.h.b16 %v67
  %v477 = vunpack.c.l.b16 %v68
  %v478 = vunpack.c.h.b16 %v68
  %v479 = vunpack.c.l.b16 %v69
  %v480 = vunpack.c.h.b16 %v69
  %v481 = vunpack.c.l.b16 %v70
  %v482 = vunpack.c.h.b16 %v70
  %v483 = vunpack.c.l.b16 %v71
  %v484 = vunpack.c.h.b16 %v71
  %v485 = vunpack.c.l.b16 %v72
  %v486 = vunpack.c.h.b16 %v72
  %v487 = vunpack.c.l.b16 %v73
  %v488 = vunpack.c.h.b16 %v73
  %v489 = vunpack.c.l.b16 %v74
  %v490 = vunpack.c.h.b16 %v74
  %v491 = vunpack.c.l.b16 %v75
  %v492 = vunpack.c.h.b16 %v75
  %v493 = vunpack.c.l.b16 %v76
  %v494 = vunpack.c.h.b16 %v76
  %v495 = vunpack.c.l.b16 %v77
  %v496 = vunpack.c.h.b16 %v77
  %v497 = vunpack.c.l.b16 %v78
  %v498 = vunpack.c.h.b16 %v78
  %v499 = vunpack.c.l.b16 %v79
  %v500 = vunpack.c.h.b16 %v79
  %v501 = vunpack.c.l.b16 %v80
  %v502 = vunpack.c.h.b16 %v80
  %v503 = vunpack.c.l.b16 %v81
  %v504 = vunpack.c.h.b16 %v81
  %v505 = vunpack.c.l.b16 %v82
  %v506 = vunpack.c.h.b16 %v82
  %v507 = vunpack.c.l.b16 %v83
  %v508 = vunpack.c.h.b16 %v83
  %v509 = vunpack.c.l.b16 %v84
  %v510 = vunpack.c.h.b16 %v84
  %v511 = vunpack.c.l.b16 %v85
  %v512 = vunpack.c.h.b16 %v85
  %v513 = vunpack.c.l.b16 %v86
  %v514 = vunpack.c.h.b16 %v86
  %v515 = vunpack.c.l.b16 %v87
  %v516 = vunpack.c.h.b16 %v87
  %v517 = vunpack.c.l.b16 %v88
  %v518 = vunpack.c.h.b16 %v88
  %v519 = vunpack.c.l.b16 %v89
  %v520 = vunpack.c.h.b16 %v89
  %v521 = vunpack.c.l.b16 %v90
  %v522 = vunpack.c.h.b16 %v90
  %v523 = vunpack.c.l.b16 %v91
  %v524 = vunpack.c.h.b16 %v91
  %v525 = vunpack.c.l.b16 %v92
  %v526 = vunpack.c.h.b16 %v92
  %v527 = vunpack.c.l.b16 %v93
  %v528 = vunpack.c.h.b16 %v93
  %v529 = vunpack.c.l.b16 %v94
  %v530 = vunpack.c.h.b16 %v94
  %v531 = vunpack.c.l.b16 %v95
  %v532 = vunpack.c.h.b16 %v95
  %v533 = vunpack.c.l.b16 %v96
  %v534 = vunpack.c.h.b16 %v96
  %v535 = vunpack.c.l.b16 %v97
  %v536 = vunpack.c.h.b16 %v97
  %v537 = vunpack.c.l.b16 %v98
  %v538 = vunpack.c.h.b16 %v98
  %v539 = vunpack.c.l.b16 %v99
  %v540 = vunpack.c.h.b16 %v99
  %v541 = vunpack.c.l.b16 %v100
  %v542 = vunpack.c.h.b16 %v100
  %v543 = vunpack.c.l.b16 %v101
  %v544 = vunpack.c.h.b16 %v101
  %v545 = vunpack.c.l.b16 %v102
  %v546 = vunpack.c.h.b16 %v102
  %v547 = vunpack.c.l.b16 %v103
  %v548 = vunpack.c.h.b16 %v103
  %v549 = vunpack.c.l.b16 %v104
  %v550 = vunpack.c.h.b16 %v104
  %v551 = vunpack.c.l.b16 %v105
  %v552 = vunpack.c.h.b16 %v105
  %v553 = vunpack.c.l.b16 %v106
  %v554 = vunpack.c.h.b16 %v106
  %v555 = vunpack.c.l.b16 %v107
  %v556 = vunpack.c.h.b16 %v107
  %v557 = vunpack.c.l.b16 %v108
  %v558 = vunpack.c.h.b16 %v108
  %v559 = vunpack.c.l.b16 %v109
  %v560 = vunpack.c.h.b16 %v109
  %v561 = vunpack.c.l.b16 %v110
  %v562 = vunpack.c.h.b16 %v110
  %v563 = vunpack.c.l.b16 %v111
  %v564 = vunpack.c.h.b16 %v111
  %v565 = vunpack.c.l.b16 %v112
  %v566 = vunpack.c.h.b16 %v112
  %v567 = vunpack.c.l.b16 %v113
  %v568 = vunpack.c.h.b16 %v113
  %v569 = vunpack.c.l.b16 %v114
  %v570 = vunpack.c.h.b16 %v114
  %v571 = vunpack.c.l.b16 %v115
  %v572 = vunpack.c.h.b16 %v115
  %v573 = vunpack.c.l.b16 %v116
  %v574 = vunpack.c.h.b16 %v116
  %v575 = vunpack.c.l.b16 %v117
  %v576 = vunpack.c.h.b16 %v117
  %v577 = vunpack.c.l.b16 %v118
  %v578 = vunpack.c.h.b16 %v118
  %v579 = vunpack.c.l.b16 %v119
  %v580 = vunpack.c.h.b16 %v119
  %v581 = vunpack.c.l.b16 %v120
  %v582 = vunpack.c.h.b16 %v120
  %v583 = vunpack.c.l.b16 %v121
  %v584 = vunpack.c.h.b16 %v121
  %v585 = vunpack.c.l.b16 %v122
  %v586 = vunpack.c.h.b16 %v122
  %v587 = vunpack.c.l.b16 %v123
  %v588 = vunpack.c.h.b16 %v123
  %v589 = vunpack.c.l.b16 %v124
  %v590 = vunpack.c.h.b16 %v124
  %v591 = vunpack.c.l.b16 %v125
  %v592 = vunpack.c.h.b16 %v125
  %v593 = vunpack.c.l.b16 %v126
  %v594 = vunpack.c.h.b16 %v126
  %v595 = vunpack.c.l.b16 %v127
  %v596 = vunpack.c.h.b16 %v127
  %v597 = vunpack.c.l.b16 %v128
  %v598 = vunpack.c.h.b16 %v128
  %v599 = vunpack.c.l.b16 %v129
  %v600 = vunpack.c.h.b16 %v129
  %v601 = vunpack.c.l.b16 %v130
  %v602 = vunpack.c.h.b16 %v130
  %v603 = vunpack.c.l.b16 %v131
  %v604 = vunpack.c.h.b16 %v131
  %v605 = vunpack.c.l.b16 %v132
  %v606 = vunpack.c.h.b16 %v132
  %v607 = vunpack.c.l.b16 %v133
  %v608 = vunpack.c.h.b16 %v133
  %v609 = vunpack.c.l.b16 %v134
  %v610 = vunpack.c.h.b16 %v134
  %v611 = vunpack.c.l.b16 %v135
  %v612 = vunpack.c.h.b16 %v135
  %v613 = vunpack.c.l.b16 %v136
  %v614 = vunpack.c.h.b16 %v136
  %v615 = vunpack.c.l.b16 %v137
  %v616 = vunpack.c.h.b16 %v137
  %v617 = vunpack.c.l.b16 %v138
  %v618 = vunpack.c.h.b16 %v138
  %v619 = vunpack.c.l.b16 %v139
  %v620 = vunpack.c.h.b16 %v139
  %v621 = vunpack.c.l.b16 %v140
  %v622 = vunpack.c.h.b16 %v140
  %v623 = vunpack.c.l.b16 %v141
  %v624 = vunpack.c.h.b16 %v141
  %v625 = vunpack.c.l.b16 %v142
  %v626 = vunpack.c.h.b16 %v142
  %v627 = vunpack.c.l.b16 %v143
  %v628 = vunpack.c.h.b16 %v143
  %v629 = vunpack.c.l.b16 %v144
  %v630 = vunpack.c.h.b16 %v144
  %v631 = vunpack.c.l.b16 %v145
  %v632 = vunpack.c.h.b16 %v145
  %v633 = vunpack.c.l.b16 %v146
  %v634 = vunpack.c.h.b16 %v146
  %v635 = vunpack.c.l.b16 %v147
  %v636 = vunpack.c.h.b16 %v147
  %v637 = vunpack.c.l.b16 %v148
  %v638 = vunpack.c.h.b16 %v148
  %v639 = vunpack.c.l.b16 %v149
  %v640 = vunpack.c.h.b16 %v149
  %v641 = vunpack.c.l.b16 %v150
  %v642 = vunpack.c.h.b16 %v150
  %v643 = vunpack.c.l.b16 %v151
  %v644 = vunpack.c.h.b16 %v151
  %v645 = vunpack.c.l.b16 %v152
  %v646 = vunpack.c.h.b16 %v152
  %v647 = vunpack.c.l.b16 %v153
  %v648 = vunpack.c.h.b16 %v153
  %v649 = vunpack.c.l.b16 %v154
  %v650 = vunpack.c.h.b16 %v154
  %v651 = vunpack.c.l.b16 %v155
  %v652 = vunpack.c.h.b16 %v155
  %v653 = vunpack.c.l.b16 %v156
  %v654 = vunpack.c.h.b16 %v156
  %v655 = vunpack.c.l.b16 %v157
  %v656 = vunpack.c.h.b16 %v157
  %v657 = vunpack.c.l.b16 %v158
  %v658 = vunpack.c.h.b16 %v158
  %v659 = vunpack.c.l.b16 %v159
  %v660 = vunpack.c.h.b16 %v159
  %v661 = vunpack.c.l.b16 %v160
  %v662 = vunpack.c.h.b16 %v160
  %v663 = vunpack.c.l.b16 %v161
  %v664 = vunpack.c.h.b16 %v161
  %v665 = vunpack.c.l.b16 %v162
  %v666 = vunpack.c.h.b16 %v162
  %v667 = vunpack.c.l.b16 %v163
  %v668 = vunpack.c.h.b16 %v163
  %v669 = vunpack.c.l.b16 %v164
  %v670 = vunpack.c.h.b16 %v164
  %v671 = vunpack.c.l.b16 %v165
  %v672 = vunpack.c.h.b16 %v165
  %v673 = vunpack.c.l.b16 %v166
  %v674 = vunpack.c.h.b16 %v166
  %v675 = vunpack.c.l.b16 %v167
  %v676 = vunpack.c.h.b16 %v167
  %v677 = vunpack.c.l.b16 %v168
  %v678 = vunpack.c.h.b16 %v168
  %v679 = vunpack.c.l.b16 %v169
  %v680 = vunpack.c.h.b16 %v169
  %v681 = vunpack.c.l.b16 %v170
  %v682 = vunpack.c.h.b16 %v170
  %v683 = vunpack.c.l.b16 %v171
  %v684 = vunpack.c.h.b16 %v171
  %v685 = vunpack.c.l.b16 %v172
  %v686 = vunpack.c.h.b16 %v172
  %v687 = vunpack.c.l.b16 %v173
  %v688 = vunpack.c.h.b16 %v173
  %v689 = vunpack.c.l.b16 %v174
  %v690 = vunpack.c.h.b16 %v174
  %v691 = vunpack.c.l.b16 %v175
  %v692 = vunpack.c.h.b16 %v175
  %v693 = vunpack.c.l.b16 %v176
  %v694 = vunpack.c.h.b16 %v176
  %v695 = vunpack.c.l.b16 %v177
  %v696 = vunpack.c.h.b16 %v177
  %v697 = vunpack.c.l.b16 %v178
  %v698 = vunpack.c.h.b16 %v178
  %v699 = vunpack.c.l.b16 %v179
  %v700 = vunpack.c.h.b16 %v179
  %v701 = vunpack.c.l.b16 %v180
  %v702 = vunpack.c.h.b16 %v180
  %v703 = vunpack.c.l.b16 %v181
  %v704 = vunpack.c.h.b16 %v181
  %v705 = vunpack.c.l.b16 %v182
  %v706 = vunpack.c.h.b16 %v182
  %v707 = vunpack.c.l.b16 %v183
  %v708 = vunpack.c.h.b16 %v183
  %v709 = vunpack.c.l.b16 %v184
  %v710 = vunpack.c.h.b16 %v184
  %v711 = vunpack.c.l.b16 %v185
  %v712 = vunpack.c.h.b16 %v185
  %v713 = vunpack.c.l.b16 %v186
  %v714 = vunpack.c.h.b16 %v186
  %v715 = vpack.c.b16 %v399, %v395
  %v716 = vpack.c.b16 %v400, %v396
  %v717 = vpack.c.b16 %v401, %v397
  %v718 = vpack.c.b16 %v402, %v398
  %v719 = vpack.c.b16 %v407, %v403
  %v720 = vpack.c.b16 %v408, %v404
  %v721 = vpack.c.b16 %v409, %v405
  %v722 = vpack.c.b16 %v410, %v406
  %v723 = vpack.c.b16 %v415, %v411
  %v724 = vpack.c.b16 %v416, %v412
  %v725 = vpack.c.b16 %v417, %v413
  %v726 = vpack.c.b16 %v418, %v414
  %v727 = vpack.c.b16 %v423, %v419
  %v728 = vpack.c.b16 %v424, %v420
  %v729 = vpack.c.b16 %v425, %v421
  %v730 = vpack.c.b16 %v426, %v422
  %v731 = vpack.c.b16 %v431, %v427
  %v732 = vpack.c.b16 %v432, %v428
  %v733 = vpack.c.b16 %v433, %v429
  %v734 = vpack.c.b16 %v434, %v430
  %v735 = vpack.c.b16 %v439, %v435
  %v736 = vpack.c.b16 %v440, %v436
  %v737 = vpack.c.b16 %v441, %v437
  %v738 = vpack.c.b16 %v442, %v438
  %v739 = vpack.c.b16 %v447, %v443
  %v740 = vpack.c.b16 %v448, %v444
  %v741 = vpack.c.b16 %v449, %v445
  %v742 = vpack.c.b16 %v450, %v446
  %v743 = vpack.c.b16 %v455, %v451
  %v744 = vpack.c.b16 %v456, %v452
  %v745 = vpack.c.b16 %v457, %v453
  %v746 = vpack.c.b16 %v458, %v454
  %v747 = vpack.c.b16 %v463, %v459
  %v748 = vpack.c.b16 %v464, %v460
  %v749 = vpack.c.b16 %v465, %v461
  %v750 = vpack.c.b16 %v466, %v462
  %v751 = vpack.c.b16 %v471, %v467
  %v752 = vpack.c.b16 %v472, %v468
  %v753 = vpack.c.b16 %v473, %v469
  %v754 = vpack.c.b16 %v474, %v470
  %v755 = vpack.c.b16 %v479, %v475
  %v756 = vpack.c.b16 %v480, %v476
  %v757 = vpack.c.b16 %v481, %v477
  %v758 = vpack.c.b16 %v482, %v478
  %v759 = vpack.c.b16 %v487, %v483
  %v760 = vpack.c.b16 %v488, %v484
  %v761 = vpack.c.b16 %v489, %v485
  %v762 = vpack.c.b16 %v490, %v486
  %v763 = vpack.c.b16 %v495, %v491
  %v764 = vpack.c.b16 %v496, %v492
  %v765 = vpack.c.b16 %v497, %v493
  %v766 = vpack.c.b16 %v498, %v494
  %v767 = vpack.c.b16 %v503, %v499
  %v768 = vpack.c.b16 %v504, %v500
  %v769 = vpack.c.b16 %v505, %v501
  %v770 = vpack.c.b16 %v506, %v502
  %v771 = vpack.c.b16 %v511, %v507
  %v772 = vpack.c.b16 %v512, %v508
  %v773 = vpack.c.b16 %v513, %v509
  %v774 = vpack.c.b16 %v514, %v510
  %v775 = vpack.c.b16 %v519, %v515
  %v776 = vpack.c.b16 %v520, %v516
  %v777 = vpack.c.b16 %v521, %v517
  %v778 = vpack.c.b16 %v522, %v518
  %v779 = vpack.c.b16 %v527, %v523
  %v780 = vpack.c.b16 %v528, %v524
  %v781 = vpack.c.b16 %v529, %v525
  %v782 = vpack.c.b16 %v530, %v526
  %v783 = vpack.c.b16 %v535, %v531
  %v784 = vpack.c.b16 %v536, %v532
  %v785 = vpack.c.b16 %v537, %v533
  %v786 = vpack.c.b16 %v538, %v534
  %v787 = vpack.c.b16 %v543, %v539
  %v788 = vpack.c.b16 %v544, %v540
  %v789 = vpack.c.b16 %v545, %v541
  %v790 = vpack.c.b16 %v546, %v542
  %v791 = vpack.c.b16 %v551, %v547
  %v792 = vpack.c.b16 %v552, %v548
  %v793 = vpack.c.b16 %v553, %v549
  %v794 = vpack.c.b16 %v554, %v550
  %v795 = vpack.c.b16 %v559, %v555
  %v796 = vpack.c.b16 %v560, %v556
  %v797 = vpack.c.b16 %v561, %v557
  %v798 = vpack.c.b16 %v562, %v558
  %v799 = vpack.c.b16 %v567, %v563
  %v800 = vpack.c.b16 %v568, %v564
  %v801 = vpack.c.b16 %v569, %v565
  %v802 = vpack.c.b16 %v570, %v566
  %v803 = vpack.c.b16 %v575, %v571
  %v804 = vpack.c.b16 %v576, %v572
  %v805 = vpack.c.b16 %v577, %v573
  %v806 = vpack.c.b16 %v578, %v574
  %v807 = vpack.c.b16 %v583, %v579
  %v808 = vpack.c.b16 %v584, %v580
  %v809 = vpack.c.b16 %v585, %v581
  %v810 = vpack.c.b16 %v586, %v582
  %v811 = vpack.c.b16 %v591, %v587
  %v812 = vpack.c.b16 %v592, %v588
  %v813 = vpack.c.b16 %v593, %v589
  %v814 = vpack.c.b16 %v594, %v590
  %v815 = vpack.c.b16 %v599, %v595
  %v816 = vpack.c.b16 %v600, %v596
  %v817 = vpack.c.b16 %v601, %v597
  %v818 = vpack.c.b16 %v602, %v598
  %v819 = vpack.c.b16 %v607, %v603
  %v820 = vpack.c.b16 %v608, %v604
  %v821 = vpack.c.b16 %v609, %v605
  %v822 = vpack.c.b16 %v610, %v606
  %v823 = vpack.c.b16 %v615, %v611
  %v824 = vpack.c.b16 %v616, %v612
  %v825 = vpack.c.b16 %v617, %v613
  %v826 = vpack.c.b16 %v618, %v614
  %v827 = vpack.c.b16 %v623, %v619
  %v828 = vpack.c.b16 %v624, %v620
  %v829 = vpack.c.b16 %v625, %v621
  %v830 = vpack.c.b16 %v626, %v622
  %v831 = vpack.c.b16 %v631, %v627
  %v832 = vpack.c.b16 %v632, %v628
  %v833 = vpack.c.b16 %v633, %v629
  %v834 = vpack.c.b16 %v634, %v630
  %v835 = vpack.c.b16 %v639, %v635
  %v836 = vpack.c.b16 %v640, %v636
  %v837 = vpack.c.b16 %v641, %v637
  %v838 = vpack.c.b16 %v642, %v638
  %v839 = vpack.c.b16 %v647, %v643
  %v840 = vpack.c.b16 %v648, %v644
  %v841 = vpack.c.b16 %v649, %v645
  %v842 = vpack.c.b16 %v650, %v646
  %v843 = vpack.c.b16 %v655, %v651
  %v844 = vpack.c.b16 %v656, %v652
  %v845 = vpack.c.b16 %v657, %v653
  %v846 = vpack.c.b16 %v658, %v654
  %v847 = vpack.c.b16 %v663, %v659
  %v848 = vpack.c.b16 %v664, %v660
  %v849 = vpack.c.b16 %v665, %v661
  %v850 = vpack.c.b16 %v666, %v662
  %v851 = vpack.c.b16 %v671, %v667
  %v852 = vpack.c.b16 %v672, %v668
  %v853 = vpack.c.b16 %v673, %v669
  %v854 = vpack.c.b16 %v674, %v670
  %v855 = vpack.c.b16 %v679, %v675
  %v856 = vpack.c.b16 %v680, %v676
  %v857 = vpack.c.b16 %v681, %v677
  %v858 = vpack.c.b16 %v682, %v678
  %v859 = vpack.c.b16 %v687, %v683
  %v860 = vpack.c.b16 %v688, %v684
  %v861 = vpack.c.b16 %v689, %v685
  %v862 = vpack.c.b16 %v690, %v686
  %v863 = vpack.c.b16 %v695, %v691
  %v864 = vpack.c.b16 %v696, %v692
  %v865 = vpack.c.b16 %v697, %v693
  %v866 = vpack.c.b16 %v698, %v694
  %v867 = vpack.c.b16 %v703, %v699
  %v868 = vpack.c.b16 %v704, %v700
  %v869 = vpack.c.b16 %v705, %v701
  %v870 = vpack.c.b16 %v706, %v702
  %v871 = vpack.c.b16 %v711, %v707
  %v872 = vpack.c.b16 %v712, %v708
  %v873 = vpack.c.b16 %v713, %v709
  %v874 = vpack.c.b16 %v714, %v710
  %1035 = vmatprep.subr.bf16.mxu0 %v716
  %1036 = vmatpush1.bf16.msra.mxu0 %v715
  %1037 = vmatprep.subr.bf16.mxu0 %v720
  %1038 = vmatpush1.bf16.msra.mxu0 %v719
  %1039 = vmatprep.subr.bf16.mxu0 %v724
  %1040 = vmatpush1.bf16.msra.mxu0 %v723
  %1041 = vmatprep.subr.bf16.mxu0 %v728
  %1042 = vmatpush1.bf16.msra.mxu0 %v727
  %1043 = vmatprep.subr.bf16.mxu0 %v732
  %1044 = vmatpush1.bf16.msra.mxu0 %v731
  %1045 = vmatprep.subr.bf16.mxu0 %v736
  %1046 = vmatpush1.bf16.msra.mxu0 %v735
  %1047 = vmatprep.subr.bf16.mxu0 %v740
  %1048 = vmatpush1.bf16.msra.mxu0 %v739
  %1049 = vmatprep.subr.bf16.mxu0 %v744
  %1050 = vmatpush1.bf16.msra.mxu0 %v743
  %1051 = vmatprep.subr.bf16.mxu0 %v748
  %1052 = vmatpush1.bf16.msra.mxu0 %v747
  %1053 = vmatprep.subr.bf16.mxu0 %v752
  %1054 = vmatpush1.bf16.msra.mxu0 %v751
  %1055 = vmatprep.subr.bf16.mxu0 %v756
  %1056 = vmatpush1.bf16.msra.mxu0 %v755
  %1057 = vmatprep.subr.bf16.mxu0 %v760
  %1058 = vmatpush1.bf16.msra.mxu0 %v759
  %1059 = vmatprep.subr.bf16.mxu0 %v764
  %1060 = vmatpush1.bf16.msra.mxu0 %v763
  %1061 = vmatprep.subr.bf16.mxu0 %v768
  %1062 = vmatpush1.bf16.msra.mxu0 %v767
  %1063 = vmatprep.subr.bf16.mxu0 %v772
  %1064 = vmatpush1.bf16.msra.mxu0 %v771
  %1065 = vmatprep.subr.bf16.mxu0 %v776
  %1066 = vmatpush1.bf16.msra.mxu0 %v775
  %1067 = vmatprep.mubr.bf16.mxu0 %v226
  %1068 = vmatmul.mubr.bf16.gmra.mrb[0].mxu0 %v225
  %v1069 = vpop.f32.mrb[0].mxu0
  %v1070 = vadd.f32 %v192, %v1069
  %v1071 = vpop.f32.mrb[0].mxu0
  %v1072 = vadd.f32 %v196, %v1071
  %v1073 = vpop.f32.mrb[0].mxu0
  %v1074 = vadd.f32 %v192, %v1073
  %v1075 = vpop.f32.mrb[0].mxu0
  %v1076 = vadd.f32 %v196, %v1075
  %1077 = vdwg.mxu0
  %1078 = vmatprep.subr.bf16.mxu0 %v780
  %1079 = vmatpush1.bf16.msra.mxu0 %v779
  %1080 = vmatprep.subr.bf16.mxu0 %v784
  %1081 = vmatpush1.bf16.msra.mxu0 %v783
  %1082 = vmatprep.subr.bf16.mxu0 %v788
  %1083 = vmatpush1.bf16.msra.mxu0 %v787
  %1084 = vmatprep.subr.bf16.mxu0 %v792
  %1085 = vmatpush1.bf16.msra.mxu0 %v791
  %1086 = vmatprep.subr.bf16.mxu0 %v796
  %1087 = vmatpush1.bf16.msra.mxu0 %v795
  %1088 = vmatprep.subr.bf16.mxu0 %v800
  %1089 = vmatpush1.bf16.msra.mxu0 %v799
  %1090 = vmatprep.subr.bf16.mxu0 %v804
  %1091 = vmatpush1.bf16.msra.mxu0 %v803
  %1092 = vmatprep.subr.bf16.mxu0 %v808
  %1093 = vmatpush1.bf16.msra.mxu0 %v807
  %1094 = vmatprep.subr.bf16.mxu0 %v812
  %1095 = vmatpush1.bf16.msra.mxu0 %v811
  %1096 = vmatprep.subr.bf16.mxu0 %v816
  %1097 = vmatpush1.bf16.msra.mxu0 %v815
  %1098 = vmatprep.subr.bf16.mxu0 %v820
  %1099 = vmatpush1.bf16.msra.mxu0 %v819
  %1100 = vmatprep.subr.bf16.mxu0 %v824
  %1101 = vmatpush1.bf16.msra.mxu0 %v823
  %1102 = vmatprep.subr.bf16.mxu0 %v828
  %1103 = vmatpush1.bf16.msra.mxu0 %v827
  %1104 = vmatprep.subr.bf16.mxu0 %v832
  %1105 = vmatpush1.bf16.msra.mxu0 %v831
  %1106 = vmatprep.subr.bf16.mxu0 %v836
  %1107 = vmatpush1.bf16.msra.mxu0 %v835
  %1108 = vmatprep.subr.bf16.mxu0 %v840
  %1109 = vmatpush1.bf16.msra.mxu0 %v839
  %1110 = vmatprep.mubr.bf16.mxu0 %v228
  %1111 = vmatmul.mubr.bf16.gmra.mrb[0].mxu0 %v227
  %v1112 = vpop.f32.mrb[0].mxu0
  %v1113 = vadd.f32 %v1070, %v1112
  %v1114 = vpop.f32.mrb[0].mxu0
  %v1115 = vadd.f32 %v1072, %v1114
  %v1116 = vpop.f32.mrb[0].mxu0
  %v1117 = vadd.f32 %v1074, %v1116
  %v1118 = vpop.f32.mrb[0].mxu0
  %v1119 = vadd.f32 %v1076, %v1118
  %1120 = vdwg.mxu0
  %1121 = vmatprep.subr.bf16.mxu0 %v844
  %1122 = vmatpush1.bf16.msra.mxu0 %v843
  %1123 = vmatprep.subr.bf16.mxu0 %v848
  %1124 = vmatpush1.bf16.msra.mxu0 %v847
  %1125 = vmatprep.subr.bf16.mxu0 %v852
  %1126 = vmatpush1.bf16.msra.mxu0 %v851
  %1127 = vmatprep.subr.bf16.mxu0 %v856
  %1128 = vmatpush1.bf16.msra.mxu0 %v855
  %1129 = vmatprep.subr.bf16.mxu0 %v860
  %1130 = vmatpush1.bf16.msra.mxu0 %v859
  %1131 = vmatprep.subr.bf16.mxu0 %v864
  %1132 = vmatpush1.bf16.msra.mxu0 %v863
  %1133 = vmatprep.subr.bf16.mxu0 %v868
  %1134 = vmatpush1.bf16.msra.mxu0 %v867
  %1135 = vmatprep.subr.bf16.mxu0 %v872
  %1136 = vmatpush1.bf16.msra.mxu0 %v871
  %1137 = vmatprep.subr.bf16.mxu0 0
  %1138 = vmatpush1.bf16.msra.mxu0 0
  %1139 = vmatprep.subr.bf16.mxu0 0
  %1140 = vmatpush1.bf16.msra.mxu0 0
  %1141 = vmatprep.subr.bf16.mxu0 0
  %1142 = vmatpush1.bf16.msra.mxu0 0
  %1143 = vmatprep.subr.bf16.mxu0 0
  %1144 = vmatpush1.bf16.msra.mxu0 0
  %1145 = vmatprep.subr.bf16.mxu0 0
  %1146 = vmatpush1.bf16.msra.mxu0 0
  %1147 = vmatprep.subr.bf16.mxu0 0
  %1148 = vmatpush1.bf16.msra.mxu0 0
  %1149 = vmatprep.subr.bf16.mxu0 0
  %1150 = vmatpush1.bf16.msra.mxu0 0
  %1151 = vmatprep.subr.bf16.mxu0 0
  %1152 = vmatpush1.bf16.msra.mxu0 0
  %1153 = vmatprep.mubr.bf16.mxu0 0
  %1154 = vmatmul.mubr.bf16.gmra.mrb[0].mxu0 %v229
  %v1155 = vpop.f32.mrb[0].mxu0
  %v1156 = vadd.f32 %v1113, %v1155
  %v1157 = vpop.f32.mrb[0].mxu0
  %v1158 = vadd.f32 %v1115, %v1157
  %v1159 = vpop.f32.mrb[0].mxu0
  %v1160 = vadd.f32 %v1117, %v1159
  %v1161 = vpop.f32.mrb[0].mxu0
  %v1162 = vadd.f32 %v1119, %v1161
  %1163 = vdwg.mxu0
  %1164 = vmatprep.subr.bf16.mxu0 %v718
  %1165 = vmatpush1.bf16.msra.mxu0 %v717
  %1166 = vmatprep.subr.bf16.mxu0 %v722
  %1167 = vmatpush1.bf16.msra.mxu0 %v721
  %1168 = vmatprep.subr.bf16.mxu0 %v726
  %1169 = vmatpush1.bf16.msra.mxu0 %v725
  %1170 = vmatprep.subr.bf16.mxu0 %v730
  %1171 = vmatpush1.bf16.msra.mxu0 %v729
  %1172 = vmatprep.subr.bf16.mxu0 %v734
  %1173 = vmatpush1.bf16.msra.mxu0 %v733
  %1174 = vmatprep.subr.bf16.mxu0 %v738
  %1175 = vmatpush1.bf16.msra.mxu0 %v737
  %1176 = vmatprep.subr.bf16.mxu0 %v742
  %1177 = vmatpush1.bf16.msra.mxu0 %v741
  %1178 = vmatprep.subr.bf16.mxu0 %v746
  %1179 = vmatpush1.bf16.msra.mxu0 %v745
  %1180 = vmatprep.subr.bf16.mxu0 %v750
  %1181 = vmatpush1.bf16.msra.mxu0 %v749
  %1182 = vmatprep.subr.bf16.mxu0 %v754
  %1183 = vmatpush1.bf16.msra.mxu0 %v753
  %1184 = vmatprep.subr.bf16.mxu0 %v758
  %1185 = vmatpush1.bf16.msra.mxu0 %v757
  %1186 = vmatprep.subr.bf16.mxu0 %v762
  %1187 = vmatpush1.bf16.msra.mxu0 %v761
  %1188 = vmatprep.subr.bf16.mxu0 %v766
  %1189 = vmatpush1.bf16.msra.mxu0 %v765
  %1190 = vmatprep.subr.bf16.mxu0 %v770
  %1191 = vmatpush1.bf16.msra.mxu0 %v769
  %1192 = vmatprep.subr.bf16.mxu0 %v774
  %1193 = vmatpush1.bf16.msra.mxu0 %v773
  %1194 = vmatprep.subr.bf16.mxu0 %v778
  %1195 = vmatpush1.bf16.msra.mxu0 %v777
  %1196 = vmatprep.mubr.bf16.mxu0 %v226
  %1197 = vmatmul.mubr.bf16.gmra.mrb[0].mxu0 %v225
  %v1198 = vpop.f32.mrb[0].mxu0
  %v1199 = vadd.f32 %v200, %v1198
  %v1200 = vpop.f32.mrb[0].mxu0
  %v1201 = vadd.f32 %v204, %v1200
  %v1202 = vpop.f32.mrb[0].mxu0
  %v1203 = vadd.f32 %v200, %v1202
  %v1204 = vpop.f32.mrb[0].mxu0
  %v1205 = vadd.f32 %v204, %v1204
  %1206 = vdwg.mxu0
  %1207 = vmatprep.subr.bf16.mxu0 %v782
  %1208 = vmatpush1.bf16.msra.mxu0 %v781
  %1209 = vmatprep.subr.bf16.mxu0 %v786
  %1210 = vmatpush1.bf16.msra.mxu0 %v785
  %1211 = vmatprep.subr.bf16.mxu0 %v790
  %1212 = vmatpush1.bf16.msra.mxu0 %v789
  %1213 = vmatprep.subr.bf16.mxu0 %v794
  %1214 = vmatpush1.bf16.msra.mxu0 %v793
  %1215 = vmatprep.subr.bf16.mxu0 %v798
  %1216 = vmatpush1.bf16.msra.mxu0 %v797
  %1217 = vmatprep.subr.bf16.mxu0 %v802
  %1218 = vmatpush1.bf16.msra.mxu0 %v801
  %1219 = vmatprep.subr.bf16.mxu0 %v806
  %1220 = vmatpush1.bf16.msra.mxu0 %v805
  %1221 = vmatprep.subr.bf16.mxu0 %v810
  %1222 = vmatpush1.bf16.msra.mxu0 %v809
  %1223 = vmatprep.subr.bf16.mxu0 %v814
  %1224 = vmatpush1.bf16.msra.mxu0 %v813
  %1225 = vmatprep.subr.bf16.mxu0 %v818
  %1226 = vmatpush1.bf16.msra.mxu0 %v817
  %1227 = vmatprep.subr.bf16.mxu0 %v822
  %1228 = vmatpush1.bf16.msra.mxu0 %v821
  %1229 = vmatprep.subr.bf16.mxu0 %v826
  %1230 = vmatpush1.bf16.msra.mxu0 %v825
  %1231 = vmatprep.subr.bf16.mxu0 %v830
  %1232 = vmatpush1.bf16.msra.mxu0 %v829
  %1233 = vmatprep.subr.bf16.mxu0 %v834
  %1234 = vmatpush1.bf16.msra.mxu0 %v833
  %1235 = vmatprep.subr.bf16.mxu0 %v838
  %1236 = vmatpush1.bf16.msra.mxu0 %v837
  %1237 = vmatprep.subr.bf16.mxu0 %v842
  %1238 = vmatpush1.bf16.msra.mxu0 %v841
  %1239 = vmatprep.mubr.bf16.mxu0 %v228
  %1240 = vmatmul.mubr.bf16.gmra.mrb[0].mxu0 %v227
  %v1241 = vpop.f32.mrb[0].mxu0
  %v1242 = vadd.f32 %v1199, %v1241
  %v1243 = vpop.f32.mrb[0].mxu0
  %v1244 = vadd.f32 %v1201, %v1243
  %v1245 = vpop.f32.mrb[0].mxu0
  %v1246 = vadd.f32 %v1203, %v1245
  %v1247 = vpop.f32.mrb[0].mxu0
  %v1248 = vadd.f32 %v1205, %v1247
  %1249 = vdwg.mxu0
  %1250 = vmatprep.subr.bf16.mxu0 %v846
  %1251 = vmatpush1.bf16.msra.mxu0 %v845
  %1252 = vmatprep.subr.bf16.mxu0 %v850
  %1253 = vmatpush1.bf16.msra.mxu0 %v849
  %1254 = vmatprep.subr.bf16.mxu0 %v854
  %1255 = vmatpush1.bf16.msra.mxu0 %v853
  %1256 = vmatprep.subr.bf16.mxu0 %v858
  %1257 = vmatpush1.bf16.msra.mxu0 %v857
  %1258 = vmatprep.subr.bf16.mxu0 %v862
  %1259 = vmatpush1.bf16.msra.mxu0 %v861
  %1260 = vmatprep.subr.bf16.mxu0 %v866
  %1261 = vmatpush1.bf16.msra.mxu0 %v865
  %1262 = vmatprep.subr.bf16.mxu0 %v870
  %1263 = vmatpush1.bf16.msra.mxu0 %v869
  %1264 = vmatprep.subr.bf16.mxu0 %v874
  %1265 = vmatpush1.bf16.msra.mxu0 %v873
  %1266 = vmatprep.subr.bf16.mxu0 0
  %1267 = vmatpush1.bf16.msra.mxu0 0
  %1268 = vmatprep.subr.bf16.mxu0 0
  %1269 = vmatpush1.bf16.msra.mxu0 0
  %1270 = vmatprep.subr.bf16.mxu0 0
  %1271 = vmatpush1.bf16.msra.mxu0 0
  %1272 = vmatprep.subr.bf16.mxu0 0
  %1273 = vmatpush1.bf16.msra.mxu0 0
  %1274 = vmatprep.subr.bf16.mxu0 0
  %1275 = vmatpush1.bf16.msra.mxu0 0
  %1276 = vmatprep.subr.bf16.mxu0 0
  %1277 = vmatpush1.bf16.msra.mxu0 0
  %1278 = vmatprep.subr.bf16.mxu0 0
  %1279 = vmatpush1.bf16.msra.mxu0 0
  %1280 = vmatprep.subr.bf16.mxu0 0
  %1281 = vmatpush1.bf16.msra.mxu0 0
  %1282 = vmatprep.mubr.bf16.mxu0 0
  %1283 = vmatmul.mubr.bf16.gmra.mrb[0].mxu0 %v229
  %v1284 = vpop.f32.mrb[0].mxu0
  %v1285 = vadd.f32 %v1242, %v1284
  %v1286 = vpop.f32.mrb[0].mxu0
  %v1287 = vadd.f32 %v1244, %v1286
  %v1288 = vpop.f32.mrb[0].mxu0
  %v1289 = vadd.f32 %v1246, %v1288
  %v1290 = vpop.f32.mrb[0].mxu0
  %v1291 = vadd.f32 %v1248, %v1290
  %1292 = vdwg.mxu0
  %v1293 = vmax.f32 %v1156, 0.0
  %v1294 = vmax.f32 %v1158, 0.0
  %v1295 = vmax.f32 %v1285, 0.0
  %v1296 = vmax.f32 %v1287, 0.0
  %v1297 = vmax.f32 %v1160, 0.0
  %v1298 = vmax.f32 %v1162, 0.0
  %v1299 = vmax.f32 %v1289, 0.0
  %v1300 = vmax.f32 %v1291, 0.0
  %v1301 = vpack.c.bf16 %v1297, %v1293
  %v1302 = vpack.c.bf16 %v1298, %v1294
  %v1303 = vpack.c.bf16 %v1299, %v1295
  %v1304 = vpack.c.bf16 %v1300, %v1296
  %v1305 = vld [vmem:[%s3] sm:$0xf]
  %v1306 = vld [vmem:[%s3 + $0x4] sm:$0xf]
  %v1307 = vld [vmem:[%s3 + $0x8] sm:$0xf]
  %v1308 = vld [vmem:[%s3 + $0xc] sm:$0xf]
  %v1309 = vld [vmem:[%s3 + $0x10] sm:$0xf]
  %v1310 = vld [vmem:[%s3 + $0x14] sm:$0xf]
  %v1311 = vld [vmem:[%s3 + $0x18] sm:$0xf]
  %v1312 = vld [vmem:[%s3 + $0x1c] sm:$0xf]
  %v1313 = vld [vmem:[%s3 + $0x20] sm:$0xf]
  %v1314 = vld [vmem:[%s3 + $0x24] sm:$0xf]
  %v1315 = vld [vmem:[%s3 + $0x28] sm:$0xf]
  %v1316 = vld [vmem:[%s3 + $0x2c] sm:$0xf]
  %v1317 = vld [vmem:[%s3 + $0x30] sm:$0xf]
  %v1318 = vld [vmem:[%s3 + $0x34] sm:$0xf]
  %v1319 = vld [vmem:[%s3 + $0x38] sm:$0xf]
  %v1320 = vld [vmem:[%s3 + $0x3c] sm:$0xf]
  %v1321 = vld [vmem:[%s3 + $0x40] sm:$0xf]
  %v1322 = vld [vmem:[%s3 + $0x44] sm:$0xf]
  %v1323 = vld [vmem:[%s3 + $0x48] sm:$0xf]
  %v1324 = vld [vmem:[%s3 + $0x4c] sm:$0xf]
  %v1325 = vld [vmem:[%s3 + $0x50] sm:$0xf]
  %v1326 = vld [vmem:[%s3 + $0x54] sm:$0xf]
  %v1327 = vld [vmem:[%s3 + $0x58] sm:$0xf]
  %v1328 = vld [vmem:[%s3 + $0x5c] sm:$0xf]
  %v1329 = vld [vmem:[%s3 + $0x60] sm:$0xf]
  %v1330 = vld [vmem:[%s3 + $0x64] sm:$0xf]
  %v1331 = vld [vmem:[%s3 + $0x68] sm:$0xf]
  %v1332 = vld [vmem:[%s3 + $0x6c] sm:$0xf]
  %v1333 = vld [vmem:[%s3 + $0x70] sm:$0xf]
  %v1334 = vld [vmem:[%s3 + $0x74] sm:$0xf]
  %v1335 = vld [vmem:[%s3 + $0x78] sm:$0xf]
  %v1336 = vld [vmem:[%s3 + $0x7c] sm:$0xf]
  %v1337 = vld [vmem:[%s3 + $0x80] sm:$0xf]
  %v1338 = vld [vmem:[%s3 + $0x84] sm:$0xf]
  %v1339 = vld [vmem:[%s3 + $0x88] sm:$0xf]
  %v1340 = vld [vmem:[%s3 + $0x8c] sm:$0xf]
  %v1341 = vld [vmem:[%s3 + $0x90] sm:$0xf]
  %v1342 = vld [vmem:[%s3 + $0x94] sm:$0xf]
  %v1343 = vld [vmem:[%s3 + $0x98] sm:$0xf]
  %v1344 = vld [vmem:[%s3 + $0x9c] sm:$0xf]
  %v1345 = vld [vmem:[%s3 + $0xa0] sm:$0xf]
  %v1346 = vld [vmem:[%s3 + $0xa4] sm:$0xf]
  %v1347 = vld [vmem:[%s3 + $0xa8] sm:$0xf]
  %v1348 = vld [vmem:[%s3 + $0xac] sm:$0xf]
  %v1349 = vld [vmem:[%s3 + $0xb0] sm:$0xf]
  %v1350 = vld [vmem:[%s3 + $0xb4] sm:$0xf]
  %v1351 = vld [vmem:[%s3 + $0xb8] sm:$0xf]
  %v1352 = vld [vmem:[%s3 + $0xbc] sm:$0xf]
  %v1353 = vld [vmem:[%s3 + $0xc0] sm:$0xf]
  %v1354 = vld [vmem:[%s3 + $0xc4] sm:$0xf]
  %v1355 = vld [vmem:[%s3 + $0xc8] sm:$0xf]
  %v1356 = vld [vmem:[%s3 + $0xcc] sm:$0xf]
  %v1357 = vld [vmem:[%s3 + $0xd0] sm:$0xf]
  %v1358 = vld [vmem:[%s3 + $0xd4] sm:$0xf]
  %v1359 = vld [vmem:[%s3 + $0xd8] sm:$0xf]
  %v1360 = vld [vmem:[%s3 + $0xdc] sm:$0xf]
  %v1361 = vld [vmem:[%s3 + $0xe0] sm:$0xf]
  %v1362 = vld [vmem:[%s3 + $0xe4] sm:$0xf]
  %v1363 = vld [vmem:[%s3 + $0xe8] sm:$0xf]
  %v1364 = vld [vmem:[%s3 + $0xec] sm:$0xf]
  %v1365 = vld [vmem:[%s3 + $0xf0] sm:$0xf]
  %v1366 = vld [vmem:[%s3 + $0xf4] sm:$0xf]
  %v1367 = vld [vmem:[%s3 + $0xf8] sm:$0xf]
  %v1368 = vld [vmem:[%s3 + $0xfc] sm:$0xf]
  %v1369 = vld [vmem:[%s4] sm:$0x1]
  %v1371 = vlaneseq
  %v1372 = vshrl.u32 %v1371, 7
  %v1373 = vsub.s32 0, %v1372
  %v1374 = vrot.slane %v1369, %v1373
  %v1440 = vunpack.c.l.b16 %v1305
  %v1441 = vunpack.c.l.b16 %v1306
  %v1442 = vunpack.c.l.b16 %v1307
  %v1443 = vunpack.c.l.b16 %v1308
  %v1444 = vunpack.c.l.b16 %v1309
  %v1445 = vunpack.c.l.b16 %v1310
  %v1446 = vunpack.c.l.b16 %v1311
  %v1447 = vunpack.c.l.b16 %v1312
  %v1448 = vunpack.c.l.b16 %v1313
  %v1449 = vunpack.c.l.b16 %v1314
  %v1450 = vunpack.c.l.b16 %v1315
  %v1451 = vunpack.c.l.b16 %v1316
  %v1452 = vunpack.c.l.b16 %v1317
  %v1453 = vunpack.c.l.b16 %v1318
  %v1454 = vunpack.c.l.b16 %v1319
  %v1455 = vunpack.c.l.b16 %v1320
  %v1456 = vunpack.c.l.b16 %v1321
  %v1457 = vunpack.c.l.b16 %v1322
  %v1458 = vunpack.c.l.b16 %v1323
  %v1459 = vunpack.c.l.b16 %v1324
  %v1460 = vunpack.c.l.b16 %v1325
  %v1461 = vunpack.c.l.b16 %v1326
  %v1462 = vunpack.c.l.b16 %v1327
  %v1463 = vunpack.c.l.b16 %v1328
  %v1464 = vunpack.c.l.b16 %v1329
  %v1465 = vunpack.c.l.b16 %v1330
  %v1466 = vunpack.c.l.b16 %v1331
  %v1467 = vunpack.c.l.b16 %v1332
  %v1468 = vunpack.c.l.b16 %v1333
  %v1469 = vunpack.c.l.b16 %v1334
  %v1470 = vunpack.c.l.b16 %v1335
  %v1471 = vunpack.c.l.b16 %v1336
  %v1472 = vunpack.c.l.b16 %v1337
  %v1473 = vunpack.c.l.b16 %v1338
  %v1474 = vunpack.c.l.b16 %v1339
  %v1475 = vunpack.c.l.b16 %v1340
  %v1476 = vunpack.c.l.b16 %v1341
  %v1477 = vunpack.c.l.b16 %v1342
  %v1478 = vunpack.c.l.b16 %v1343
  %v1479 = vunpack.c.l.b16 %v1344
  %v1480 = vunpack.c.l.b16 %v1345
  %v1481 = vunpack.c.l.b16 %v1346
  %v1482 = vunpack.c.l.b16 %v1347
  %v1483 = vunpack.c.l.b16 %v1348
  %v1484 = vunpack.c.l.b16 %v1349
  %v1485 = vunpack.c.l.b16 %v1350
  %v1486 = vunpack.c.l.b16 %v1351
  %v1487 = vunpack.c.l.b16 %v1352
  %v1488 = vunpack.c.l.b16 %v1353
  %v1489 = vunpack.c.l.b16 %v1354
  %v1490 = vunpack.c.l.b16 %v1355
  %v1491 = vunpack.c.l.b16 %v1356
  %v1492 = vunpack.c.l.b16 %v1357
  %v1493 = vunpack.c.l.b16 %v1358
  %v1494 = vunpack.c.l.b16 %v1359
  %v1495 = vunpack.c.l.b16 %v1360
  %v1496 = vunpack.c.l.b16 %v1361
  %v1497 = vunpack.c.l.b16 %v1362
  %v1498 = vunpack.c.l.b16 %v1363
  %v1499 = vunpack.c.l.b16 %v1364
  %v1500 = vunpack.c.l.b16 %v1365
  %v1501 = vunpack.c.l.b16 %v1366
  %v1502 = vunpack.c.l.b16 %v1367
  %v1503 = vunpack.c.l.b16 %v1368
  %v1504 = vpack.c.b16 %v1441, %v1440
  %v1505 = vpack.c.b16 %v1443, %v1442
  %v1506 = vpack.c.b16 %v1445, %v1444
  %v1507 = vpack.c.b16 %v1447, %v1446
  %v1508 = vpack.c.b16 %v1449, %v1448
  %v1509 = vpack.c.b16 %v1451, %v1450
  %v1510 = vpack.c.b16 %v1453, %v1452
  %v1511 = vpack.c.b16 %v1455, %v1454
  %v1512 = vpack.c.b16 %v1457, %v1456
  %v1513 = vpack.c.b16 %v1459, %v1458
  %v1514 = vpack.c.b16 %v1461, %v1460
  %v1515 = vpack.c.b16 %v1463, %v1462
  %v1516 = vpack.c.b16 %v1465, %v1464
  %v1517 = vpack.c.b16 %v1467, %v1466
  %v1518 = vpack.c.b16 %v1469, %v1468
  %v1519 = vpack.c.b16 %v1471, %v1470
  %v1520 = vpack.c.b16 %v1473, %v1472
  %v1521 = vpack.c.b16 %v1475, %v1474
  %v1522 = vpack.c.b16 %v1477, %v1476
  %v1523 = vpack.c.b16 %v1479, %v1478
  %v1524 = vpack.c.b16 %v1481, %v1480
  %v1525 = vpack.c.b16 %v1483, %v1482
  %v1526 = vpack.c.b16 %v1485, %v1484
  %v1527 = vpack.c.b16 %v1487, %v1486
  %v1528 = vpack.c.b16 %v1489, %v1488
  %v1529 = vpack.c.b16 %v1491, %v1490
  %v1530 = vpack.c.b16 %v1493, %v1492
  %v1531 = vpack.c.b16 %v1495, %v1494
  %v1532 = vpack.c.b16 %v1497, %v1496
  %v1533 = vpack.c.b16 %v1499, %v1498
  %v1534 = vpack.c.b16 %v1501, %v1500
  %v1535 = vpack.c.b16 %v1503, %v1502
  %1568 = vmatprep.subr.bf16.mxu0 0
  %1569 = vmatpush1.bf16.msra.mxu0 %v1504
  %1570 = vmatprep.subr.bf16.mxu0 0
  %1571 = vmatpush1.bf16.msra.mxu0 %v1505
  %1572 = vmatprep.subr.bf16.mxu0 0
  %1573 = vmatpush1.bf16.msra.mxu0 %v1506
  %1574 = vmatprep.subr.bf16.mxu0 0
  %1575 = vmatpush1.bf16.msra.mxu0 %v1507
  %1576 = vmatprep.subr.bf16.mxu0 0
  %1577 = vmatpush1.bf16.msra.mxu0 %v1508
  %1578 = vmatprep.subr.bf16.mxu0 0
  %1579 = vmatpush1.bf16.msra.mxu0 %v1509
  %1580 = vmatprep.subr.bf16.mxu0 0
  %1581 = vmatpush1.bf16.msra.mxu0 %v1510
  %1582 = vmatprep.subr.bf16.mxu0 0
  %1583 = vmatpush1.bf16.msra.mxu0 %v1511
  %1584 = vmatprep.subr.bf16.mxu0 0
  %1585 = vmatpush1.bf16.msra.mxu0 %v1512
  %1586 = vmatprep.subr.bf16.mxu0 0
  %1587 = vmatpush1.bf16.msra.mxu0 %v1513
  %1588 = vmatprep.subr.bf16.mxu0 0
  %1589 = vmatpush1.bf16.msra.mxu0 %v1514
  %1590 = vmatprep.subr.bf16.mxu0 0
  %1591 = vmatpush1.bf16.msra.mxu0 %v1515
  %1592 = vmatprep.subr.bf16.mxu0 0
  %1593 = vmatpush1.bf16.msra.mxu0 %v1516
  %1594 = vmatprep.subr.bf16.mxu0 0
  %1595 = vmatpush1.bf16.msra.mxu0 %v1517
  %1596 = vmatprep.subr.bf16.mxu0 0
  %1597 = vmatpush1.bf16.msra.mxu0 %v1518
  %1598 = vmatprep.subr.bf16.mxu0 0
  %1599 = vmatpush1.bf16.msra.mxu0 %v1519
  %1600 = vmatprep.mubr.bf16.mxu0 %v1302
  %1601 = vmatmul.mubr.bf16.gmra.mrb[0].mxu0 %v1301
  %v1602 = vpop.f32.mrb[0].mxu0
  %v1603 = vadd.f32 %v1374, %v1602
  %v1604 = vpop.f32.mrb[0].mxu0
  %v1605 = vpop.f32.mrb[0].mxu0
  %v1606 = vadd.f32 %v1374, %v1605
  %v1607 = vpop.f32.mrb[0].mxu0
  %1608 = vdwg.mxu0
  %1609 = vmatprep.subr.bf16.mxu0 0
  %1610 = vmatpush1.bf16.msra.mxu0 %v1520
  %1611 = vmatprep.subr.bf16.mxu0 0
  %1612 = vmatpush1.bf16.msra.mxu0 %v1521
  %1613 = vmatprep.subr.bf16.mxu0 0
  %1614 = vmatpush1.bf16.msra.mxu0 %v1522
  %1615 = vmatprep.subr.bf16.mxu0 0
  %1616 = vmatpush1.bf16.msra.mxu0 %v1523
  %1617 = vmatprep.subr.bf16.mxu0 0
  %1618 = vmatpush1.bf16.msra.mxu0 %v1524
  %1619 = vmatprep.subr.bf16.mxu0 0
  %1620 = vmatpush1.bf16.msra.mxu0 %v1525
  %1621 = vmatprep.subr.bf16.mxu0 0
  %1622 = vmatpush1.bf16.msra.mxu0 %v1526
  %1623 = vmatprep.subr.bf16.mxu0 0
  %1624 = vmatpush1.bf16.msra.mxu0 %v1527
  %1625 = vmatprep.subr.bf16.mxu0 0
  %1626 = vmatpush1.bf16.msra.mxu0 %v1528
  %1627 = vmatprep.subr.bf16.mxu0 0
  %1628 = vmatpush1.bf16.msra.mxu0 %v1529
  %1629 = vmatprep.subr.bf16.mxu0 0
  %1630 = vmatpush1.bf16.msra.mxu0 %v1530
  %1631 = vmatprep.subr.bf16.mxu0 0
  %1632 = vmatpush1.bf16.msra.mxu0 %v1531
  %1633 = vmatprep.subr.bf16.mxu0 0
  %1634 = vmatpush1.bf16.msra.mxu0 %v1532
  %1635 = vmatprep.subr.bf16.mxu0 0
  %1636 = vmatpush1.bf16.msra.mxu0 %v1533
  %1637 = vmatprep.subr.bf16.mxu0 0
  %1638 = vmatpush1.bf16.msra.mxu0 %v1534
  %1639 = vmatprep.subr.bf16.mxu0 0
  %1640 = vmatpush1.bf16.msra.mxu0 %v1535
  %1641 = vmatprep.mubr.bf16.mxu0 %v1304
  %1642 = vmatmul.mubr.bf16.gmra.mrb[0].mxu0 %v1303
  %v1643 = vpop.f32.mrb[0].mxu0
  %v1644 = vadd.f32 %v1603, %v1643
  %v1645 = vpop.f32.mrb[0].mxu0
  %v1646 = vpop.f32.mrb[0].mxu0
  %v1647 = vadd.f32 %v1606, %v1646
  %v1648 = vpop.f32.mrb[0].mxu0
  %1649 = vdwg.mxu0
  %1650 = vst [vmem:[%s5] sm:$0xff] %v1644
  %1651 = vst [vmem:[%s5 + $0x8] sm:$0xff] %v1647
  // Predicated region
  $region22: #{_forward_dense.11} parent=0 // pred_check
    _
  $region23: #{_forward_dense.11} parent=0 // pred_check_branch
    %1653 = sbr.rel (0) target = $region25
  $region24: #{_forward_dense.11} parent=0 // pred_region
    _
  $region25: #{_forward_dense.11} parent=0 // pred_fallthru
    _
  // Predicated region
  $region26: #{_forward_dense.11} parent=0 // pred_check
    _
  $region27: #{_forward_dense.11} parent=0 // pred_check_branch
    %1655 = sbr.rel (0) target = $region29
  $region28: #{_forward_dense.11} parent=0 // pred_region
    _
  $region29: #{_forward_dense.11} parent=0 // pred_fallthru
    _

</llo_original>
